<compile_context>
chip_gen: v7x
topology: tpu7x:2x2x1
jax: 0.10.0
libtpu: 0.0.40
codegen_flags: <defaults>
</compile_context>

<pallas_src>
import functools
import math

import jax
import jax.numpy as jnp
from jax.experimental import pallas as pl
from jax.experimental.pallas import tpu as pltpu


# ----------------------------------------------------------------------------
# Generation-aware VMEM budget / tile preferences
# ----------------------------------------------------------------------------
def _vmem_budget():
    try:
        cap = int(pltpu.get_tpu_info().vmem_capacity_bytes)
    except Exception:
        cap = 64 * 1024 * 1024          # conservative (v7x-sized) fallback
    return min(96 * 1024 * 1024, (cap * 3) // 4)


VMEM_LIMIT = _vmem_budget()

if VMEM_LIMIT >= 64 * 1024 * 1024:      # v5e / v6e: 128 MiB physical VMEM
    _TM_PREFS = (512, 256, 128)
    _TN_PREFS = (512, 256, 128)
    _TK_PREFS = (1024, 512, 256, 128)
else:                                    # v7x: 64 MiB physical VMEM
    _TM_PREFS = (256, 128)
    _TN_PREFS = (256, 128)
    _TK_PREFS = (512, 256, 128)


def _pick_tile(dim, prefs, align):
    """Largest preferred tile dividing `dim`; else the largest `align`-multiple
    divisor <= prefs[0]; else the full dim (always a legal Pallas block)."""
    for p in prefs:
        if dim >= p and dim % p == 0:
            return p
    cap = min(prefs[0], dim)
    t = (cap // align) * align
    while t >= align:
        if dim % t == 0:
            return t
        t -= align
    return dim


def _gelu(x):
    # TODO(synk): HF ViT uses the exact erf GELU; the tanh approximation is used
    # so the activation stays fused in-kernel (difference ~1e-3 vs reference).
    c = math.sqrt(2.0 / math.pi)
    return 0.5 * x * (1.0 + jnp.tanh(c * (x + 0.044715 * x * x * x)))


def _apply_act(x, activation):
    if activation == "gelu":
        return _gelu(x)
    if activation == "relu":
        return jnp.maximum(x, 0.0)
    return x


# ----------------------------------------------------------------------------
# Kernel 1: tiled matmul, f32 accumulation directly in the resident output
#           block, bias / activation / residual folded into the K epilogue.
# ----------------------------------------------------------------------------
def _linear_kernel(x_ref, w_ref, b_ref, *rest, activation, has_residual):
    if has_residual:
        r_ref, o_ref = rest
    else:
        (o_ref,) = rest
    k = pl.program_id(2)
    part = jnp.dot(x_ref[...].astype(jnp.bfloat16), w_ref[...],
                   preferred_element_type=jnp.float32)

    @pl.when(k == 0)
    def _():
        o_ref[...] = part               # direct store: no zero-fill pass

    @pl.when(k > 0)
    def _():
        o_ref[...] += part              # accumulate into the resident out block

    @pl.when(k == pl.num_programs(2) - 1)
    def _():
        acc = o_ref[...] + b_ref[...]
        acc = _apply_act(acc, activation)
        if has_residual:
            acc = acc + r_ref[...]
        o_ref[...] = acc


def fused_linear(x, w, b, residual=None, activation=None):
    """y = act(x @ w + b) (+ residual).  x:(M,K) f32, w:(K,N) bf16, b:(N,) f32."""
    M, K = x.shape
    N = w.shape[1]
    tm = _pick_tile(M, _TM_PREFS, 8)
    tn = _pick_tile(N, _TN_PREFS, 128)
    tk = _pick_tile(K, _TK_PREFS, 128)
    has_res = residual is not None
    kernel = functools.partial(_linear_kernel, activation=activation,
                               has_residual=has_res)
    in_specs = [
        pl.BlockSpec((tm, tk), lambda i, j, k: (i, k)),
        pl.BlockSpec((tk, tn), lambda i, j, k: (k, j)),
        pl.BlockSpec((1, tn), lambda i, j, k: (0, j)),      # constant over k
    ]
    args = [x, w, b.reshape(1, N)]
    if has_res:
        in_specs.append(pl.BlockSpec((tm, tn), lambda i, j, k: (i, j)))
        args.append(residual)
    return pl.pallas_call(
        kernel,
        out_shape=jax.ShapeDtypeStruct((M, N), jnp.float32),
        grid=(M // tm, N // tn, K // tk),
        in_specs=in_specs,
        out_specs=pl.BlockSpec((tm, tn), lambda i, j, k: (i, j)),
        compiler_params=pltpu.CompilerParams(
            dimension_semantics=("parallel", "parallel", "arbitrary"),
            vmem_limit_bytes=VMEM_LIMIT),
    )(*args)


# ----------------------------------------------------------------------------
# Kernel 2: LayerNorm fused into its consumer matmul.  N is tiled; LN runs once
#           per row tile (j==0) into a bf16 VMEM scratch reused across N tiles.
#           LN(x) is only written to HBM when the caller needs it (emit_xn).
# ----------------------------------------------------------------------------
def _ln_linear_kernel(x_ref, g_ref, beta_ref, w_ref, b_ref, *rest,
                      eps, activation, emit_xn):
    if emit_xn:
        y_ref, xn_ref, xn_s = rest
    else:
        y_ref, xn_s = rest

    @pl.when(pl.program_id(1) == 0)           # LN once per row tile
    def _():
        x = x_ref[...]
        mean = jnp.mean(x, axis=-1, keepdims=True)
        var = jnp.mean(jnp.square(x - mean), axis=-1, keepdims=True)
        xn = (x - mean) * jax.lax.rsqrt(var + eps)
        xn = xn * g_ref[...] + beta_ref[...]
        if emit_xn:
            xn_ref[...] = xn
        xn_s[...] = xn.astype(jnp.bfloat16)

    acc = jnp.dot(xn_s[...], w_ref[...], preferred_element_type=jnp.float32)
    y_ref[...] = _apply_act(acc + b_ref[...], activation)


def ln_linear(x, gamma, beta, w, b, activation=None, eps=1e-12, emit_xn=True):
    """Returns (act(LN(x)@w+b), LN(x)) if emit_xn, else just the first value.
    x:(M,K) f32, w:(K,N) bf16."""
    M, K = x.shape
    N = w.shape[1]
    tm = _pick_tile(M, _TM_PREFS, 8)
    tn = _pick_tile(N, _TN_PREFS, 128)
    kernel = functools.partial(_ln_linear_kernel, eps=eps, activation=activation,
                               emit_xn=emit_xn)
    in_specs = [
        pl.BlockSpec((tm, K), lambda i, j: (i, 0)),          # constant over j
        pl.BlockSpec((1, K), lambda i, j: (0, 0)),
        pl.BlockSpec((1, K), lambda i, j: (0, 0)),
        pl.BlockSpec((K, tn), lambda i, j: (0, j)),
        pl.BlockSpec((1, tn), lambda i, j: (0, j)),
    ]
    y_spec = pl.BlockSpec((tm, tn), lambda i, j: (i, j))
    if emit_xn:
        out_shape = (jax.ShapeDtypeStruct((M, N), jnp.float32),
                     jax.ShapeDtypeStruct((M, K), jnp.float32))
        out_specs = (y_spec, pl.BlockSpec((tm, K), lambda i, j: (i, 0)))
    else:
        out_shape = jax.ShapeDtypeStruct((M, N), jnp.float32)
        out_specs = y_spec
    return pl.pallas_call(
        kernel,
        out_shape=out_shape,
        grid=(M // tm, N // tn),
        in_specs=in_specs,
        out_specs=out_specs,
        scratch_shapes=[pltpu.VMEM((tm, K), jnp.bfloat16)],
        compiler_params=pltpu.CompilerParams(
            dimension_semantics=("parallel", "arbitrary"),
            vmem_limit_bytes=VMEM_LIMIT),
    )(x, gamma.reshape(1, K), beta.reshape(1, K), w, b.reshape(1, N))


# ----------------------------------------------------------------------------
# Kernel 3: dense + bottleneck adapter + residual in ONE kernel.
#   out = x @ W + b + residual + relu(a_in @ Wd + bd) @ Wu + bu
#   attn variant (adapter_on_x=True):  a_in = x (=sa_out), residual = z (=LN1(x))
#   mlp  variant (adapter_on_x=False): a_in = z (=x_prime), residual = z
#   (ScailingAndShifting folded into Wd/bd, 0.1*lamda folded into Wu/bu.)
# ----------------------------------------------------------------------------
def _dense_adapter_kernel(x_ref, z_ref, w_ref, b_ref, wd_ref, bd_ref,
                          wu_ref, bu_ref, o_ref, *, adapter_on_x):
    x = x_ref[...].astype(jnp.bfloat16)
    z = z_ref[...]                                           # f32 residual
    main = jnp.dot(x, w_ref[...], preferred_element_type=jnp.float32) + b_ref[...]
    a_in = x if adapter_on_x else z.astype(jnp.bfloat16)
    h = jnp.dot(a_in, wd_ref[...], preferred_element_type=jnp.float32) + bd_ref[...]
    h = jnp.maximum(h, 0.0).astype(jnp.bfloat16)
    adap = jnp.dot(h, wu_ref[...], preferred_element_type=jnp.float32) + bu_ref[...]
    o_ref[...] = main + z + adap


def dense_adapter(x, z, w, b, wd, bd, wu, bu, adapter_on_x):
    M, K = x.shape
    D = w.shape[1]
    A = wd.shape[1]
    tm = _pick_tile(M, _TM_PREFS, 8)
    kernel = functools.partial(_dense_adapter_kernel, adapter_on_x=adapter_on_x)
    return pl.pallas_call(
        kernel,
        out_shape=jax.ShapeDtypeStruct((M, D), jnp.float32),
        grid=(M // tm,),
        in_specs=[
            pl.BlockSpec((tm, K), lambda i: (i, 0)),
            pl.BlockSpec((tm, D), lambda i: (i, 0)),
            pl.BlockSpec((K, D), lambda i: (0, 0)),
            pl.BlockSpec((1, D), lambda i: (0, 0)),
            pl.BlockSpec((D, A), lambda i: (0, 0)),
            pl.BlockSpec((1, A), lambda i: (0, 0)),
            pl.BlockSpec((A, D), lambda i: (0, 0)),
            pl.BlockSpec((1, D), lambda i: (0, 0)),
        ],
        out_specs=pl.BlockSpec((tm, D), lambda i: (i, 0)),
        compiler_params=pltpu.CompilerParams(
            dimension_semantics=("parallel",),
            vmem_limit_bytes=VMEM_LIMIT),
    )(x, z, w, b.reshape(1, D), wd, bd.reshape(1, A), wu, bu.reshape(1, D))


# ----------------------------------------------------------------------------
# Kernel 4: multi-head attention on the merged (S, 3D) layout.  One program per
#           batch element; heads are sliced in-kernel (static slices, stays in
#           vregs), so NO XLA head split/merge transposes are needed and the
#           output is a single lane-dense (S, D) block in merged layout.
# ----------------------------------------------------------------------------
def _mha_kernel(qkv_ref, o_ref, *, num_heads, head_dim, s_real, scale):
    qkv = qkv_ref[0].astype(jnp.bfloat16)                    # (S_pad, 3D)
    S = qkv.shape[0]
    D = num_heads * head_dim
    if S > s_real:       # mask padded key positions (static branch)
        kid = jax.lax.broadcasted_iota(jnp.int32, (1, S), 1)
        mask = jnp.where(kid < s_real, 0.0, -1e30).astype(jnp.float32)
    else:
        mask = None
    ctxs = []
    for h in range(num_heads):                               # static unroll
        q = qkv[:, h * head_dim:(h + 1) * head_dim]
        k = qkv[:, D + h * head_dim:D + (h + 1) * head_dim]
        v = qkv[:, 2 * D + h * head_dim:2 * D + (h + 1) * head_dim]
        # QK^T via a last-dim contraction (rhs-transposed matmul, no relayout).
        s = jax.lax.dot_general(q, k, (((1,), (1,)), ((), ())),
                                preferred_element_type=jnp.float32) * scale
        if mask is not None:
            s = s + mask
        s = s - jnp.max(s, axis=-1, keepdims=True)
        p = jnp.exp(s)
        p = p * pl.reciprocal(jnp.sum(p, axis=-1, keepdims=True), approx=False)
        ctxs.append(jnp.dot(p.astype(jnp.bfloat16), v,
                            preferred_element_type=jnp.float32))
    # Single lane-dense store of the merged-head context; feeds Wo directly.
    o_ref[0] = jnp.concatenate(ctxs, axis=-1).astype(o_ref.dtype)


def multi_head_attention(qkv, num_heads, s_real):
    """qkv: (B, S_pad, 3D) f32 -> merged context (B, S_pad, D) f32."""
    B, S, threeD = qkv.shape
    D = threeD // 3
    Dh = D // num_heads
    kernel = functools.partial(_mha_kernel, num_heads=num_heads, head_dim=Dh,
                               s_real=s_real, scale=1.0 / math.sqrt(Dh))
    return pl.pallas_call(
        kernel,
        out_shape=jax.ShapeDtypeStruct((B, S, D), jnp.float32),
        grid=(B,),
        in_specs=[pl.BlockSpec((1, S, threeD), lambda b: (b, 0, 0))],
        out_specs=pl.BlockSpec((1, S, D), lambda b: (b, 0, 0)),
        compiler_params=pltpu.CompilerParams(
            dimension_semantics=("parallel",),
            vmem_limit_bytes=VMEM_LIMIT),
    )(qkv)


# ----------------------------------------------------------------------------
# One-time parameter preparation: weight folding + bf16 cast (outside jit).
# ----------------------------------------------------------------------------
def _fold_sns_into_down(scale, shift, wd, bd):
    # (x*scale + shift) @ wd + bd  ==  x @ (scale[:,None]*wd) + (shift@wd + bd)
    # TODO(synk): ScailingAndShifting source not provided; assumed per-feature
    # affine (x*scale + shift) applied before the adapter down projection.
    return scale[:, None] * wd, shift @ wd + bd


def prepare_params(params, cfg, lamda=0.1):
    """Fold QKV concat / sns / lamda into the weights and cast them to bf16,
    ONCE, outside jit -> weights live in HBM as bf16 and no per-forward folds."""
    w16 = lambda w: w.astype(jnp.bfloat16)
    out = {
        "patch_w": w16(params["patch"]["w"]), "patch_b": params["patch"]["b"],
        "cls": params["cls"], "pos": params["pos"],
        "final_ln_g": params["final_ln_g"], "final_ln_b": params["final_ln_b"],
        "cls_w": w16(params["classifier"]["w"]), "cls_b": params["classifier"]["b"],
        "layers": [],
    }
    for i, lp in enumerate(params["layers"]):
        L = {
            "ln1_g": lp["ln1_g"], "ln1_b": lp["ln1_b"],
            "ln2_g": lp["ln2_g"], "ln2_b": lp["ln2_b"],
            "wqkv": w16(jnp.concatenate(
                [lp["q"]["w"], lp["k"]["w"], lp["v"]["w"]], axis=1)),
            "bqkv": jnp.concatenate(
                [lp["q"]["b"], lp["k"]["b"], lp["v"]["b"]], axis=0),
            "wo": w16(lp["attn_out"]["w"]), "bo": lp["attn_out"]["b"],
            "wi": w16(lp["inter"]["w"]), "bi": lp["inter"]["b"],
            "wout": w16(lp["out"]["w"]), "bout": lp["out"]["b"],
        }
        if i < cfg["n_cada"]:
            # TODO(synk): ContinualAdapterLayer source not provided; assumed
            # bottleneck adapter Linear(D->A) -> ReLU -> Linear(A->D).
            for name, cal in (("msha", lp["cal_msha"]), ("mlp", lp["cal_mlp"])):
                wd, bd = _fold_sns_into_down(lp["sns_scale"], lp["sns_shift"],
                                             cal["down"]["w"], cal["down"]["b"])
                L[name + "_wd"] = w16(wd)
                L[name + "_bd"] = bd
                L[name + "_wu"] = w16(lamda * cal["up"]["w"])
                L[name + "_bu"] = lamda * cal["up"]["b"]
        out["layers"].append(L)
    return out


# ----------------------------------------------------------------------------
# JAX glue: embeddings, encoder blocks, full forward
# ----------------------------------------------------------------------------
def vit_embeddings(pixel_values, prepped, patch, D):
    """Patch conv (stride = kernel = patch) as im2col matmul, + cls + pos."""
    B, C, H, W = pixel_values.shape
    nh, nw = H // patch, W // patch
    p = pixel_values.reshape(B, C, nh, patch, nw, patch)
    p = p.transpose(0, 2, 4, 1, 3, 5).reshape(B * nh * nw, C * patch * patch)
    x = fused_linear(p, prepped["patch_w"], prepped["patch_b"])
    x = x.reshape(B, nh * nw, D)
    cls = jnp.broadcast_to(prepped["cls"], (B, 1, D)).astype(x.dtype)
    x = jnp.concatenate([cls, x], axis=1)
    return x + prepped["pos"]


def encoder_block(x2d, B, S_pad, S_real, L, num_heads, cada):
    D = L["ln1_g"].shape[0]
    if cada:
        # h = layernorm_before(x) is reused as the attention-branch residual.
        qkv, h = ln_linear(x2d, L["ln1_g"], L["ln1_b"], L["wqkv"], L["bqkv"],
                           emit_xn=True)
        sa = multi_head_attention(qkv.reshape(B, S_pad, 3 * D), num_heads,
                                  S_real).reshape(B * S_pad, D)
        # attention.output.dense + MSHA adapter (sns & lamda pre-folded)
        # + residual h, all in one kernel.
        x_pre = dense_adapter(sa, h, L["wo"], L["bo"],
                              L["msha_wd"], L["msha_bd"],
                              L["msha_wu"], L["msha_bu"], adapter_on_x=True)
        # x_prime = layernorm_after(.) reused as MLP residual & adapter input.
        mlp_h, x_prime = ln_linear(x_pre, L["ln2_g"], L["ln2_b"],
                                   L["wi"], L["bi"], activation="gelu",
                                   emit_xn=True)
        # ViTOutput dense + residual x_prime + MLP adapter, one kernel.
        return dense_adapter(mlp_h, x_prime, L["wout"], L["bout"],
                             L["mlp_wd"], L["mlp_bd"],
                             L["mlp_wu"], L["mlp_bu"], adapter_on_x=False)
    else:
        qkv = ln_linear(x2d, L["ln1_g"], L["ln1_b"], L["wqkv"], L["bqkv"],
                        emit_xn=False)                   # LN output not needed
        sa = multi_head_attention(qkv.reshape(B, S_pad, 3 * D), num_heads,
                                  S_real).reshape(B * S_pad, D)
        x1 = fused_linear(sa, L["wo"], L["bo"], residual=x2d)  # residual: pre-LN x
        mlp_h = ln_linear(x1, L["ln2_g"], L["ln2_b"], L["wi"], L["bi"],
                          activation="gelu", emit_xn=False)
        return fused_linear(mlp_h, L["wout"], L["bout"], residual=x1)


def cada_vit_forward(pixel_values, prepped, cfg):
    B = pixel_values.shape[0]
    D, H, P = cfg["D"], cfg["heads"], cfg["P"]
    x = vit_embeddings(pixel_values, prepped, P, D)          # (B, S_real, D)
    S_real = x.shape[1]
    # Pad the token axis so M = B*S_pad is sublane-aligned; padded keys are
    # masked in the attention kernel and padded rows never affect real rows.
    # TODO(synk): for production shapes pad further so M is a multiple of 128
    # (guarantees a >=2-way M grid for v7x megacore sharding).
    S_pad = ((S_real + 7) // 8) * 8
    if S_pad != S_real:
        x = jnp.pad(x, ((0, 0), (0, S_pad - S_real), (0, 0)))
    x2d = x.reshape(B * S_pad, D)
    for i, L in enumerate(prepped["layers"]):
        x2d = encoder_block(x2d, B, S_pad, S_real, L, H,
                            cada=(i < cfg["n_cada"]))
    # Final LayerNorm fused with the classifier, applied to the CLS row only
    # (LN is row-wise so LN(x)[:,0] == LN(x[:,0])).
    cls_tok = x2d.reshape(B, S_pad, D)[:, 0, :]
    logits = ln_linear(cls_tok, prepped["final_ln_g"], prepped["final_ln_b"],
                       prepped["cls_w"], prepped["cls_b"], emit_xn=False)
    # NOTE: the PyTorch CADA_ViTModel.forward computes logits but returns None;
    # we return them so the computation is observable.
    return logits


# ----------------------------------------------------------------------------
# Deterministic parameter init (synthetic; shapes follow the module __init__)
# ----------------------------------------------------------------------------
def init_params(key, cfg):
    D, I, A = cfg["D"], cfg["I"], cfg["A"]
    C, P, S = cfg["C"], cfg["P"], cfg["S"]
    keys = iter(jax.random.split(key, 512))

    def dense(d_in, d_out):
        return {
            "w": jax.random.normal(next(keys), (d_in, d_out), jnp.float32) * 0.02,
            "b": jax.random.normal(next(keys), (d_out,), jnp.float32) * 0.02,
        }

    params = {
        "patch": dense(C * P * P, D),    # conv weight [D,C,P,P] flattened
        "cls": jax.random.normal(next(keys), (1, 1, D), jnp.float32) * 0.02,
        "pos": jax.random.normal(next(keys), (1, S, D), jnp.float32) * 0.02,
        "final_ln_g": jnp.ones((D,), jnp.float32),
        "final_ln_b": jnp.zeros((D,), jnp.float32),
        "classifier": dense(D, cfg["num_classes"]),
        "layers": [],
    }
    for i in range(cfg["layers"]):
        lp = {
            "ln1_g": jnp.ones((D,), jnp.float32), "ln1_b": jnp.zeros((D,), jnp.float32),
            "ln2_g": jnp.ones((D,), jnp.float32), "ln2_b": jnp.zeros((D,), jnp.float32),
            "q": dense(D, D), "k": dense(D, D), "v": dense(D, D),
            "attn_out": dense(D, D),
            "inter": dense(D, I),
            "out": dense(I, D),
        }
        if i < cfg["n_cada"]:
            lp["sns_scale"] = 1.0 + 0.02 * jax.random.normal(next(keys), (D,), jnp.float32)
            lp["sns_shift"] = 0.02 * jax.random.normal(next(keys), (D,), jnp.float32)
            lp["cal_msha"] = {"down": dense(D, A), "up": dense(A, D)}
            lp["cal_mlp"] = {"down": dense(D, A), "up": dense(A, D)}
        params["layers"].append(lp)
    return params


# ----------------------------------------------------------------------------
if __name__ == "__main__":
    # Small config consistent with the module structure:
    #   embed_dim=128, 2 heads (head_dim 64), MLP intermediate=512 (=4*D),
    #   adapter hidden_dim=64, 6 encoder layers (first 5 CADA-wrapped),
    #   10 classes, 3x16x16 images with 8x8 patches -> 4 patches + CLS = 5 tokens.
    cfg = dict(D=128, heads=2, I=512, A=64, layers=6, n_cada=5,
               num_classes=10, C=3, P=8, S=5)

    key = jax.random.PRNGKey(0)
    pkey, xkey = jax.random.split(key)
    params = init_params(pkey, cfg)
    prepped = prepare_params(params, cfg)     # one-time fold + bf16 (outside jit)

    pixel_values = jax.random.normal(xkey, (2, cfg["C"], 16, 16), jnp.float32)

    fwd = jax.jit(lambda px, p: cada_vit_forward(px, p, cfg))
    logits = fwd(pixel_values, prepped)
    jax.block_until_ready(logits)

    assert logits.shape == (2, cfg["num_classes"])
    assert bool(jnp.all(jnp.isfinite(logits)))
    print("KERNEL_OK")
</pallas_src>

<mosaic_0001>
module attributes {stable_mosaic.version = 11 : i64} {
  func.func @_linear_kernel(%arg0: i32, %arg1: i32, %arg2: i32, %arg3: memref<8x192xf32, #tpu.memory_space<vmem>>, %arg4: memref<192x128xbf16, #tpu.memory_space<vmem>>, %arg5: memref<1x128xf32, #tpu.memory_space<vmem>>, %arg6: memref<8x128xf32, #tpu.memory_space<vmem>>) attributes {dimension_semantics = [#tpu.dimension_semantics<parallel>, #tpu.dimension_semantics<parallel>, #tpu.dimension_semantics<arbitrary>], iteration_bounds = array<i64: 1, 1, 1>, scalar_prefetch = 0 : i64, scratch_operands = 0 : i64, tpu.core_type = #tpu.core_type<tc>, window_params = [{transform_indices = @transform_0, window_bounds = array<i64: 8, 192>}, {transform_indices = @transform_1, window_bounds = array<i64: 192, 128>}, {transform_indices = @transform_2, window_bounds = array<i64: 1, 128>}, {transform_indices = @transform_3, window_bounds = array<i64: 8, 128>}]} {
    %c0 = arith.constant 0 : index
    %c0_0 = arith.constant 0 : index
    %0 = vector.load %arg3[%c0, %c0_0] : memref<8x192xf32, #tpu.memory_space<vmem>>, vector<8x192xf32>
    %1 = arith.truncf %0 : vector<8x192xf32> to vector<8x192xbf16>
    %c0_1 = arith.constant 0 : index
    %c0_2 = arith.constant 0 : index
    %2 = vector.load %arg4[%c0_1, %c0_2] : memref<192x128xbf16, #tpu.memory_space<vmem>>, vector<192x128xbf16>
    %cst = arith.constant dense<0.000000e+00> : vector<8x128xf32>
    %3 = tpu.matmul %1, %2, %cst {dimension_numbers = #tpu.dot_dimension_numbers<[1], [0], [0], [1], [0, 0, 1, 1], [], []>} : vector<8x192xbf16>, vector<192x128xbf16>, vector<8x128xf32> -> vector<8x128xf32>
    %c0_i32 = arith.constant 0 : i32
    %4 = arith.cmpi eq, %arg2, %c0_i32 : i32
    %5 = arith.extui %4 : i1 to i32
    %c0_i32_3 = arith.constant 0 : i32
    %6 = arith.cmpi ne, %5, %c0_i32_3 : i32
    scf.if %6 {
      %c0_8 = arith.constant 0 : index
      %c0_9 = arith.constant 0 : index
      %13 = vector.load %arg6[%c0_8, %c0_9] : memref<8x128xf32, #tpu.memory_space<vmem>>, vector<8x128xf32>
      tpu.vector_store %arg6[%c0_8, %c0_9], %3 {strides = array<i32>} : memref<8x128xf32, #tpu.memory_space<vmem>>, vector<8x128xf32>,
    } else {
    }
    %c0_i32_4 = arith.constant 0 : i32
    %7 = arith.cmpi sgt, %arg2, %c0_i32_4 : i32
    %8 = arith.extui %7 : i1 to i32
    %c0_i32_5 = arith.constant 0 : i32
    %9 = arith.cmpi ne, %8, %c0_i32_5 : i32
    scf.if %9 {
      %c0_8 = arith.constant 0 : index
      %c0_9 = arith.constant 0 : index
      %13 = vector.load %arg6[%c0_8, %c0_9] : memref<8x128xf32, #tpu.memory_space<vmem>>, vector<8x128xf32>
      %14 = arith.addf %13, %3 : vector<8x128xf32>
      %c0_10 = arith.constant 0 : index
      %c0_11 = arith.constant 0 : index
      %15 = vector.load %arg6[%c0_10, %c0_11] : memref<8x128xf32, #tpu.memory_space<vmem>>, vector<8x128xf32>
      tpu.vector_store %arg6[%c0_10, %c0_11], %14 {strides = array<i32>} : memref<8x128xf32, #tpu.memory_space<vmem>>, vector<8x128xf32>,
    } else {
    }
    %c0_i32_6 = arith.constant 0 : i32
    %10 = arith.cmpi eq, %arg2, %c0_i32_6 : i32
    %11 = arith.extui %10 : i1 to i32
    %c0_i32_7 = arith.constant 0 : i32
    %12 = arith.cmpi ne, %11, %c0_i32_7 : i32
    scf.if %12 {
      %c0_8 = arith.constant 0 : index
      %c0_9 = arith.constant 0 : index
      %13 = vector.load %arg6[%c0_8, %c0_9] : memref<8x128xf32, #tpu.memory_space<vmem>>, vector<8x128xf32>
      %c0_10 = arith.constant 0 : index
      %c0_11 = arith.constant 0 : index
      %14 = vector.load %arg5[%c0_10, %c0_11] : memref<1x128xf32, #tpu.memory_space<vmem>>, vector<1x128xf32>
      %15 = vector.broadcast %14 : vector<1x128xf32> to vector<8x128xf32>
      %16 = arith.addf %13, %15 : vector<8x128xf32>
      %c0_12 = arith.constant 0 : index
      %c0_13 = arith.constant 0 : index
      %17 = vector.load %arg6[%c0_12, %c0_13] : memref<8x128xf32, #tpu.memory_space<vmem>>, vector<8x128xf32>
      tpu.vector_store %arg6[%c0_12, %c0_13], %16 {strides = array<i32>} : memref<8x128xf32, #tpu.memory_space<vmem>>, vector<8x128xf32>,
    } else {
    }
    return
  }
  func.func @transform_0(%arg0: i32, %arg1: i32, %arg2: i32) -> (i32, i32) {
    %c0_i32 = arith.constant 0 : i32
    return %arg0, %arg2 : i32, i32
  }
  func.func @transform_1(%arg0: i32, %arg1: i32, %arg2: i32) -> (i32, i32) {
    %c0_i32 = arith.constant 0 : i32
    return %arg2, %arg1 : i32, i32
  }
  func.func @transform_2(%arg0: i32, %arg1: i32, %arg2: i32) -> (i32, i32) {
    %c0_i32 = arith.constant 0 : i32
    %c0_i32_0 = arith.constant 0 : i32
    return %c0_i32, %arg1 : i32, i32
  }
  func.func @transform_3(%arg0: i32, %arg1: i32, %arg2: i32) -> (i32, i32) {
    %c0_i32 = arith.constant 0 : i32
    return %arg0, %arg1 : i32, i32
  }
}

module attributes {stable_mosaic.version = 11 : i64} {
  func.func @_mha_kernel(%arg0: i32, %arg1: memref<1x8x384xf32, #tpu.memory_space<vmem>>, %arg2: memref<1x8x128xf32, #tpu.memory_space<vmem>>) attributes {dimension_semantics = [#tpu.dimension_semantics<parallel>], iteration_bounds = array<i64: 2>, scalar_prefetch = 0 : i64, scratch_operands = 0 : i64, tpu.core_type = #tpu.core_type<tc>, window_params = [{transform_indices = @transform_0, window_bounds = array<i64: 1, 8, 384>}, {transform_indices = @transform_1, window_bounds = array<i64: 1, 8, 128>}]} {
    %c0 = arith.constant 0 : index
    %c0_0 = arith.constant 0 : index
    %c0_1 = arith.constant 0 : index
    %0 = vector.load %arg1[%c0, %c0_0, %c0_1] : memref<1x8x384xf32, #tpu.memory_space<vmem>>, vector<1x8x384xf32>
    %1 = vector.shape_cast %0 : vector<1x8x384xf32> to vector<8x384xf32>
    %2 = arith.truncf %1 : vector<8x384xf32> to vector<8x384xbf16>
    %3 = tpu.iota {dimensions = array<i32: 1>} : vector<1x8xi32>
    %c5_i32 = arith.constant 5 : i32
    %4 = vector.broadcast %c5_i32 : i32 to vector<1x8xi32>
    %5 = arith.cmpi slt, %3, %4 : vector<1x8xi32>
    %cst = arith.constant 0.000000e+00 : f32
    %cst_2 = arith.constant -1.000000e+30 : f32
    %6 = vector.broadcast %cst : f32 to vector<1x8xf32>
    %7 = vector.broadcast %cst_2 : f32 to vector<1x8xf32>
    %8 = arith.select %5, %6, %7 : vector<1x8xi1>, vector<1x8xf32>
    %9 = vector.extract_strided_slice %2 {offsets = [0, 0], sizes = [8, 64], strides = [1, 1]} : vector<8x384xbf16> to vector<8x64xbf16>
    %10 = vector.extract_strided_slice %2 {offsets = [0, 128], sizes = [8, 64], strides = [1, 1]} : vector<8x384xbf16> to vector<8x64xbf16>
    %11 = vector.extract_strided_slice %2 {offsets = [0, 256], sizes = [8, 64], strides = [1, 1]} : vector<8x384xbf16> to vector<8x64xbf16>
    %cst_3 = arith.constant dense<0.000000e+00> : vector<8x8xf32>
    %12 = tpu.matmul %9, %10, %cst_3 {dimension_numbers = #tpu.dot_dimension_numbers<[1], [1], [0], [0], [0, 0, 1, 0], [], []>} : vector<8x64xbf16>, vector<8x64xbf16>, vector<8x8xf32> -> vector<8x8xf32>
    %cst_4 = arith.constant 1.250000e-01 : f32
    %13 = vector.broadcast %cst_4 : f32 to vector<8x8xf32>
    %14 = arith.mulf %12, %13 : vector<8x8xf32>
    %15 = vector.broadcast %8 : vector<1x8xf32> to vector<8x8xf32>
    %16 = arith.addf %14, %15 : vector<8x8xf32>
    %cst_5 = arith.constant dense<0xFF800000> : vector<8xf32>
    %17 = vector.multi_reduction <maximumf>, %16, %cst_5 [1] : vector<8x8xf32> to vector<8xf32>
    %18 = vector.shape_cast %17 : vector<8xf32> to vector<8x1xf32>
    %19 = vector.broadcast %18 : vector<8x1xf32> to vector<8x8xf32>
    %20 = arith.subf %16, %19 : vector<8x8xf32>
    %21 = math.exp %20 : vector<8x8xf32>
    %cst_6 = arith.constant dense<0.000000e+00> : vector<8xf32>
    %22 = vector.multi_reduction <add>, %21, %cst_6 [1] : vector<8x8xf32> to vector<8xf32>
    %23 = vector.shape_cast %22 : vector<8xf32> to vector<8x1xf32>
    %24 = tpu.reciprocal %23 : vector<8x1xf32> -> vector<8x1xf32>
    %25 = vector.broadcast %24 : vector<8x1xf32> to vector<8x8xf32>
    %26 = arith.mulf %21, %25 : vector<8x8xf32>
    %27 = arith.truncf %26 : vector<8x8xf32> to vector<8x8xbf16>
    %cst_7 = arith.constant dense<0.000000e+00> : vector<8x64xf32>
    %28 = tpu.matmul %27, %11, %cst_7 {dimension_numbers = #tpu.dot_dimension_numbers<[1], [0], [0], [1], [0, 0, 1, 1], [], []>} : vector<8x8xbf16>, vector<8x64xbf16>, vector<8x64xf32> -> vector<8x64xf32>
    %29 = vector.extract_strided_slice %2 {offsets = [0, 64], sizes = [8, 64], strides = [1, 1]} : vector<8x384xbf16> to vector<8x64xbf16>
    %30 = vector.extract_strided_slice %2 {offsets = [0, 192], sizes = [8, 64], strides = [1, 1]} : vector<8x384xbf16> to vector<8x64xbf16>
    %31 = vector.extract_strided_slice %2 {offsets = [0, 320], sizes = [8, 64], strides = [1, 1]} : vector<8x384xbf16> to vector<8x64xbf16>
    %cst_8 = arith.constant dense<0.000000e+00> : vector<8x8xf32>
    %32 = tpu.matmul %29, %30, %cst_8 {dimension_numbers = #tpu.dot_dimension_numbers<[1], [1], [0], [0], [0, 0, 1, 0], [], []>} : vector<8x64xbf16>, vector<8x64xbf16>, vector<8x8xf32> -> vector<8x8xf32>
    %cst_9 = arith.constant 1.250000e-01 : f32
    %33 = vector.broadcast %cst_9 : f32 to vector<8x8xf32>
    %34 = arith.mulf %32, %33 : vector<8x8xf32>
    %35 = vector.broadcast %8 : vector<1x8xf32> to vector<8x8xf32>
    %36 = arith.addf %34, %35 : vector<8x8xf32>
    %cst_10 = arith.constant dense<0xFF800000> : vector<8xf32>
    %37 = vector.multi_reduction <maximumf>, %36, %cst_10 [1] : vector<8x8xf32> to vector<8xf32>
    %38 = vector.shape_cast %37 : vector<8xf32> to vector<8x1xf32>
    %39 = vector.broadcast %38 : vector<8x1xf32> to vector<8x8xf32>
    %40 = arith.subf %36, %39 : vector<8x8xf32>
    %41 = math.exp %40 : vector<8x8xf32>
    %cst_11 = arith.constant dense<0.000000e+00> : vector<8xf32>
    %42 = vector.multi_reduction <add>, %41, %cst_11 [1] : vector<8x8xf32> to vector<8xf32>
    %43 = vector.shape_cast %42 : vector<8xf32> to vector<8x1xf32>
    %44 = tpu.reciprocal %43 : vector<8x1xf32> -> vector<8x1xf32>
    %45 = vector.broadcast %44 : vector<8x1xf32> to vector<8x8xf32>
    %46 = arith.mulf %41, %45 : vector<8x8xf32>
    %47 = arith.truncf %46 : vector<8x8xf32> to vector<8x8xbf16>
    %cst_12 = arith.constant dense<0.000000e+00> : vector<8x64xf32>
    %48 = tpu.matmul %47, %31, %cst_12 {dimension_numbers = #tpu.dot_dimension_numbers<[1], [0], [0], [1], [0, 0, 1, 1], [], []>} : vector<8x8xbf16>, vector<8x64xbf16>, vector<8x64xf32> -> vector<8x64xf32>
    %49 = tpu.concatenate %28, %48 in 1 : vector<8x64xf32>, vector<8x64xf32> -> vector<8x128xf32>
    %c0_13 = arith.constant 0 : index
    %c0_14 = arith.constant 0 : index
    %c0_15 = arith.constant 0 : index
    %50 = vector.load %arg2[%c0_13, %c0_14, %c0_15] : memref<1x8x128xf32, #tpu.memory_space<vmem>>, vector<1x8x128xf32>
    %51 = vector.shape_cast %50 : vector<1x8x128xf32> to vector<8x128xf32>
    %52 = vector.shape_cast %49 : vector<8x128xf32> to vector<1x8x128xf32>
    tpu.vector_store %arg2[%c0_13, %c0_14, %c0_15], %52 {strides = array<i32>} : memref<1x8x128xf32, #tpu.memory_space<vmem>>, vector<1x8x128xf32>,
    return
  }
  func.func @transform_0(%arg0: i32) -> (i32, i32, i32) {
    %c0_i32 = arith.constant 0 : i32
    %c0_i32_0 = arith.constant 0 : i32
    %c0_i32_1 = arith.constant 0 : i32
    return %arg0, %c0_i32, %c0_i32_0 : i32, i32, i32
  }
  func.func @transform_1(%arg0: i32) -> (i32, i32, i32) {
    %c0_i32 = arith.constant 0 : i32
    %c0_i32_0 = arith.constant 0 : i32
    %c0_i32_1 = arith.constant 0 : i32
    return %arg0, %c0_i32, %c0_i32_0 : i32, i32, i32
  }
}

module attributes {stable_mosaic.version = 11 : i64} {
  func.func @_ln_linear_kernel(%arg0: i32, %arg1: i32, %arg2: memref<16x128xf32, #tpu.memory_space<vmem>>, %arg3: memref<1x128xf32, #tpu.memory_space<vmem>>, %arg4: memref<1x128xf32, #tpu.memory_space<vmem>>, %arg5: memref<128x128xbf16, #tpu.memory_space<vmem>>, %arg6: memref<1x128xf32, #tpu.memory_space<vmem>>, %arg7: memref<16x128xf32, #tpu.memory_space<vmem>>, %arg8: memref<16x128xf32, #tpu.memory_space<vmem>>, %arg9: memref<16x128xbf16, #tpu.memory_space<vmem>>) attributes {dimension_semantics = [#tpu.dimension_semantics<parallel>, #tpu.dimension_semantics<arbitrary>], iteration_bounds = array<i64: 1, 3>, scalar_prefetch = 0 : i64, scratch_operands = 1 : i64, tpu.core_type = #tpu.core_type<tc>, window_params = [{transform_indices = @transform_0, window_bounds = array<i64: 16, 128>}, {pipeline_mode = #tpu.pipeline_mode<synchronous>, transform_indices = @transform_1, window_bounds = array<i64: 1, 128>}, {pipeline_mode = #tpu.pipeline_mode<synchronous>, transform_indices = @transform_2, window_bounds = array<i64: 1, 128>}, {transform_indices = @transform_3, window_bounds = array<i64: 128, 128>}, {transform_indices = @transform_4, window_bounds = array<i64: 1, 128>}, {transform_indices = @transform_5, window_bounds = array<i64: 16, 128>}, {transform_indices = @transform_6, window_bounds = array<i64: 16, 128>}]} {
    %c0_i32 = arith.constant 0 : i32
    %0 = arith.cmpi eq, %arg1, %c0_i32 : i32
    %1 = arith.extui %0 : i1 to i32
    %c0_i32_0 = arith.constant 0 : i32
    %2 = arith.cmpi ne, %1, %c0_i32_0 : i32
    scf.if %2 {
      %c0_8 = arith.constant 0 : index
      %c0_9 = arith.constant 0 : index
      %10 = vector.load %arg2[%c0_8, %c0_9] : memref<16x128xf32, #tpu.memory_space<vmem>>, vector<16x128xf32>
      %cst_10 = arith.constant dense<0.000000e+00> : vector<16xf32>
      %11 = vector.multi_reduction <add>, %10, %cst_10 [1] : vector<16x128xf32> to vector<16xf32>
      %12 = vector.shape_cast %11 : vector<16xf32> to vector<16x1xf32>
      %cst_11 = arith.constant 1.280000e+02 : f32
      %13 = vector.broadcast %cst_11 : f32 to vector<16x1xf32>
      %14 = arith.divf %12, %13 : vector<16x1xf32>
      %15 = vector.broadcast %14 : vector<16x1xf32> to vector<16x128xf32>
      %16 = arith.subf %10, %15 : vector<16x128xf32>
      %17 = arith.mulf %16, %16 : vector<16x128xf32>
      %cst_12 = arith.constant dense<0.000000e+00> : vector<16xf32>
      %18 = vector.multi_reduction <add>, %17, %cst_12 [1] : vector<16x128xf32> to vector<16xf32>
      %19 = vector.shape_cast %18 : vector<16xf32> to vector<16x1xf32>
      %cst_13 = arith.constant 1.280000e+02 : f32
      %20 = vector.broadcast %cst_13 : f32 to vector<16x1xf32>
      %21 = arith.divf %19, %20 : vector<16x1xf32>
      %22 = vector.broadcast %14 : vector<16x1xf32> to vector<16x128xf32>
      %23 = arith.subf %10, %22 : vector<16x128xf32>
      %cst_14 = arith.constant 9.99999996E-13 : f32
      %24 = vector.broadcast %cst_14 : f32 to vector<16x1xf32>
      %25 = arith.addf %21, %24 : vector<16x1xf32>
      %26 = math.rsqrt %25 : vector<16x1xf32>
      %27 = vector.broadcast %26 : vector<16x1xf32> to vector<16x128xf32>
      %28 = arith.mulf %23, %27 : vector<16x128xf32>
      %c0_15 = arith.constant 0 : index
      %c0_16 = arith.constant 0 : index
      %29 = vector.load %arg3[%c0_15, %c0_16] : memref<1x128xf32, #tpu.memory_space<vmem>>, vector<1x128xf32>
      %30 = vector.broadcast %29 : vector<1x128xf32> to vector<16x128xf32>
      %31 = arith.mulf %28, %30 : vector<16x128xf32>
      %c0_17 = arith.constant 0 : index
      %c0_18 = arith.constant 0 : index
      %32 = vector.load %arg4[%c0_17, %c0_18] : memref<1x128xf32, #tpu.memory_space<vmem>>, vector<1x128xf32>
      %33 = vector.broadcast %32 : vector<1x128xf32> to vector<16x128xf32>
      %34 = arith.addf %31, %33 : vector<16x128xf32>
      %c0_19 = arith.constant 0 : index
      %c0_20 = arith.constant 0 : index
      %35 = vector.load %arg8[%c0_19, %c0_20] : memref<16x128xf32, #tpu.memory_space<vmem>>, vector<16x128xf32>
      tpu.vector_store %arg8[%c0_19, %c0_20], %34 {strides = array<i32>} : memref<16x128xf32, #tpu.memory_space<vmem>>, vector<16x128xf32>,
      %36 = arith.truncf %34 : vector<16x128xf32> to vector<16x128xbf16>
      %c0_21 = arith.constant 0 : index
      %c0_22 = arith.constant 0 : index
      %37 = vector.load %arg9[%c0_21, %c0_22] : memref<16x128xbf16, #tpu.memory_space<vmem>>, vector<16x128xbf16>
      tpu.vector_store %arg9[%c0_21, %c0_22], %36 {strides = array<i32>} : memref<16x128xbf16, #tpu.memory_space<vmem>>, vector<16x128xbf16>,
    } else {
    }
    %c0 = arith.constant 0 : index
    %c0_1 = arith.constant 0 : index
    %3 = vector.load %arg9[%c0, %c0_1] : memref<16x128xbf16, #tpu.memory_space<vmem>>, vector<16x128xbf16>
    %c0_2 = arith.constant 0 : index
    %c0_3 = arith.constant 0 : index
    %4 = vector.load %arg5[%c0_2, %c0_3] : memref<128x128xbf16, #tpu.memory_space<vmem>>, vector<128x128xbf16>
    %cst = arith.constant dense<0.000000e+00> : vector<16x128xf32>
    %5 = tpu.matmul %3, %4, %cst {dimension_numbers = #tpu.dot_dimension_numbers<[1], [0], [0], [1], [0, 0, 1, 1], [], []>} : vector<16x128xbf16>, vector<128x128xbf16>, vector<16x128xf32> -> vector<16x128xf32>
    %c0_4 = arith.constant 0 : index
    %c0_5 = arith.constant 0 : index
    %6 = vector.load %arg6[%c0_4, %c0_5] : memref<1x128xf32, #tpu.memory_space<vmem>>, vector<1x128xf32>
    %7 = vector.broadcast %6 : vector<1x128xf32> to vector<16x128xf32>
    %8 = arith.addf %5, %7 : vector<16x128xf32>
    %c0_6 = arith.constant 0 : index
    %c0_7 = arith.constant 0 : index
    %9 = vector.load %arg7[%c0_6, %c0_7] : memref<16x128xf32, #tpu.memory_space<vmem>>, vector<16x128xf32>
    tpu.vector_store %arg7[%c0_6, %c0_7], %8 {strides = array<i32>} : memref<16x128xf32, #tpu.memory_space<vmem>>, vector<16x128xf32>,
    return
  }
  func.func @transform_0(%arg0: i32, %arg1: i32) -> (i32, i32) {
    %c0_i32 = arith.constant 0 : i32
    %c0_i32_0 = arith.constant 0 : i32
    return %arg0, %c0_i32 : i32, i32
  }
  func.func @transform_1(%arg0: i32, %arg1: i32) -> (i32, i32) {
    %c0_i32 = arith.constant 0 : i32
    %c0_i32_0 = arith.constant 0 : i32
    %c0_i32_1 = arith.constant 0 : i32
    return %c0_i32, %c0_i32_0 : i32, i32
  }
  func.func @transform_2(%arg0: i32, %arg1: i32) -> (i32, i32) {
    %c0_i32 = arith.constant 0 : i32
    %c0_i32_0 = arith.constant 0 : i32
    %c0_i32_1 = arith.constant 0 : i32
    return %c0_i32, %c0_i32_0 : i32, i32
  }
  func.func @transform_3(%arg0: i32, %arg1: i32) -> (i32, i32) {
    %c0_i32 = arith.constant 0 : i32
    %c0_i32_0 = arith.constant 0 : i32
    return %c0_i32, %arg1 : i32, i32
  }
  func.func @transform_4(%arg0: i32, %arg1: i32) -> (i32, i32) {
    %c0_i32 = arith.constant 0 : i32
    %c0_i32_0 = arith.constant 0 : i32
    return %c0_i32, %arg1 : i32, i32
  }
  func.func @transform_5(%arg0: i32, %arg1: i32) -> (i32, i32) {
    %c0_i32 = arith.constant 0 : i32
    return %arg0, %arg1 : i32, i32
  }
  func.func @transform_6(%arg0: i32, %arg1: i32) -> (i32, i32) {
    %c0_i32 = arith.constant 0 : i32
    %c0_i32_0 = arith.constant 0 : i32
    return %arg0, %c0_i32 : i32, i32
  }
}

module attributes {stable_mosaic.version = 11 : i64} {
  func.func @_dense_adapter_kernel(%arg0: i32, %arg1: memref<16x128xf32, #tpu.memory_space<vmem>>, %arg2: memref<16x128xf32, #tpu.memory_space<vmem>>, %arg3: memref<128x128xbf16, #tpu.memory_space<vmem>>, %arg4: memref<1x128xf32, #tpu.memory_space<vmem>>, %arg5: memref<128x64xbf16, #tpu.memory_space<vmem>>, %arg6: memref<1x64xf32, #tpu.memory_space<vmem>>, %arg7: memref<64x128xbf16, #tpu.memory_space<vmem>>, %arg8: memref<1x128xf32, #tpu.memory_space<vmem>>, %arg9: memref<16x128xf32, #tpu.memory_space<vmem>>) attributes {dimension_semantics = [#tpu.dimension_semantics<parallel>], iteration_bounds = array<i64: 1>, scalar_prefetch = 0 : i64, scratch_operands = 0 : i64, tpu.core_type = #tpu.core_type<tc>, window_params = [{transform_indices = @transform_0, window_bounds = array<i64: 16, 128>}, {transform_indices = @transform_1, window_bounds = array<i64: 16, 128>}, {pipeline_mode = #tpu.pipeline_mode<synchronous>, transform_indices = @transform_2, window_bounds = array<i64: 128, 128>}, {pipeline_mode = #tpu.pipeline_mode<synchronous>, transform_indices = @transform_3, window_bounds = array<i64: 1, 128>}, {pipeline_mode = #tpu.pipeline_mode<synchronous>, transform_indices = @transform_4, window_bounds = array<i64: 128, 64>}, {pipeline_mode = #tpu.pipeline_mode<synchronous>, transform_indices = @transform_5, window_bounds = array<i64: 1, 64>}, {pipeline_mode = #tpu.pipeline_mode<synchronous>, transform_indices = @transform_6, window_bounds = array<i64: 64, 128>}, {pipeline_mode = #tpu.pipeline_mode<synchronous>, transform_indices = @transform_7, window_bounds = array<i64: 1, 128>}, {transform_indices = @transform_8, window_bounds = array<i64: 16, 128>}]} {
    %c0 = arith.constant 0 : index
    %c0_0 = arith.constant 0 : index
    %0 = vector.load %arg1[%c0, %c0_0] : memref<16x128xf32, #tpu.memory_space<vmem>>, vector<16x128xf32>
    %1 = arith.truncf %0 : vector<16x128xf32> to vector<16x128xbf16>
    %c0_1 = arith.constant 0 : index
    %c0_2 = arith.constant 0 : index
    %2 = vector.load %arg2[%c0_1, %c0_2] : memref<16x128xf32, #tpu.memory_space<vmem>>, vector<16x128xf32>
    %c0_3 = arith.constant 0 : index
    %c0_4 = arith.constant 0 : index
    %3 = vector.load %arg3[%c0_3, %c0_4] : memref<128x128xbf16, #tpu.memory_space<vmem>>, vector<128x128xbf16>
    %cst = arith.constant dense<0.000000e+00> : vector<16x128xf32>
    %4 = tpu.matmul %1, %3, %cst {dimension_numbers = #tpu.dot_dimension_numbers<[1], [0], [0], [1], [0, 0, 1, 1], [], []>} : vector<16x128xbf16>, vector<128x128xbf16>, vector<16x128xf32> -> vector<16x128xf32>
    %c0_5 = arith.constant 0 : index
    %c0_6 = arith.constant 0 : index
    %5 = vector.load %arg4[%c0_5, %c0_6] : memref<1x128xf32, #tpu.memory_space<vmem>>, vector<1x128xf32>
    %6 = vector.broadcast %5 : vector<1x128xf32> to vector<16x128xf32>
    %7 = arith.addf %4, %6 : vector<16x128xf32>
    %c0_7 = arith.constant 0 : index
    %c0_8 = arith.constant 0 : index
    %8 = vector.load %arg5[%c0_7, %c0_8] : memref<128x64xbf16, #tpu.memory_space<vmem>>, vector<128x64xbf16>
    %cst_9 = arith.constant dense<0.000000e+00> : vector<16x64xf32>
    %9 = tpu.matmul %1, %8, %cst_9 {dimension_numbers = #tpu.dot_dimension_numbers<[1], [0], [0], [1], [0, 0, 1, 1], [], []>} : vector<16x128xbf16>, vector<128x64xbf16>, vector<16x64xf32> -> vector<16x64xf32>
    %c0_10 = arith.constant 0 : index
    %c0_11 = arith.constant 0 : index
    %10 = vector.load %arg6[%c0_10, %c0_11] : memref<1x64xf32, #tpu.memory_space<vmem>>, vector<1x64xf32>
    %11 = vector.broadcast %10 : vector<1x64xf32> to vector<16x64xf32>
    %12 = arith.addf %9, %11 : vector<16x64xf32>
    %cst_12 = arith.constant 0.000000e+00 : f32
    %13 = vector.broadcast %cst_12 : f32 to vector<16x64xf32>
    %14 = arith.maximumf %12, %13 : vector<16x64xf32>
    %15 = arith.truncf %14 : vector<16x64xf32> to vector<16x64xbf16>
    %c0_13 = arith.constant 0 : index
    %c0_14 = arith.constant 0 : index
    %16 = vector.load %arg7[%c0_13, %c0_14] : memref<64x128xbf16, #tpu.memory_space<vmem>>, vector<64x128xbf16>
    %cst_15 = arith.constant dense<0.000000e+00> : vector<16x128xf32>
    %17 = tpu.matmul %15, %16, %cst_15 {dimension_numbers = #tpu.dot_dimension_numbers<[1], [0], [0], [1], [0, 0, 1, 1], [], []>} : vector<16x64xbf16>, vector<64x128xbf16>, vector<16x128xf32> -> vector<16x128xf32>
    %c0_16 = arith.constant 0 : index
    %c0_17 = arith.constant 0 : index
    %18 = vector.load %arg8[%c0_16, %c0_17] : memref<1x128xf32, #tpu.memory_space<vmem>>, vector<1x128xf32>
    %19 = vector.broadcast %18 : vector<1x128xf32> to vector<16x128xf32>
    %20 = arith.addf %17, %19 : vector<16x128xf32>
    %21 = arith.addf %7, %2 : vector<16x128xf32>
    %22 = arith.addf %21, %20 : vector<16x128xf32>
    %c0_18 = arith.constant 0 : index
    %c0_19 = arith.constant 0 : index
    %23 = vector.load %arg9[%c0_18, %c0_19] : memref<16x128xf32, #tpu.memory_space<vmem>>, vector<16x128xf32>
    tpu.vector_store %arg9[%c0_18, %c0_19], %22 {strides = array<i32>} : memref<16x128xf32, #tpu.memory_space<vmem>>, vector<16x128xf32>,
    return
  }
  func.func @transform_0(%arg0: i32) -> (i32, i32) {
    %c0_i32 = arith.constant 0 : i32
    %c0_i32_0 = arith.constant 0 : i32
    return %arg0, %c0_i32 : i32, i32
  }
  func.func @transform_1(%arg0: i32) -> (i32, i32) {
    %c0_i32 = arith.constant 0 : i32
    %c0_i32_0 = arith.constant 0 : i32
    return %arg0, %c0_i32 : i32, i32
  }
  func.func @transform_2(%arg0: i32) -> (i32, i32) {
    %c0_i32 = arith.constant 0 : i32
    %c0_i32_0 = arith.constant 0 : i32
    %c0_i32_1 = arith.constant 0 : i32
    return %c0_i32, %c0_i32_0 : i32, i32
  }
  func.func @transform_3(%arg0: i32) -> (i32, i32) {
    %c0_i32 = arith.constant 0 : i32
    %c0_i32_0 = arith.constant 0 : i32
    %c0_i32_1 = arith.constant 0 : i32
    return %c0_i32, %c0_i32_0 : i32, i32
  }
  func.func @transform_4(%arg0: i32) -> (i32, i32) {
    %c0_i32 = arith.constant 0 : i32
    %c0_i32_0 = arith.constant 0 : i32
    %c0_i32_1 = arith.constant 0 : i32
    return %c0_i32, %c0_i32_0 : i32, i32
  }
  func.func @transform_5(%arg0: i32) -> (i32, i32) {
    %c0_i32 = arith.constant 0 : i32
    %c0_i32_0 = arith.constant 0 : i32
    %c0_i32_1 = arith.constant 0 : i32
    return %c0_i32, %c0_i32_0 : i32, i32
  }
  func.func @transform_6(%arg0: i32) -> (i32, i32) {
    %c0_i32 = arith.constant 0 : i32
    %c0_i32_0 = arith.constant 0 : i32
    %c0_i32_1 = arith.constant 0 : i32
    return %c0_i32, %c0_i32_0 : i32, i32
  }
  func.func @transform_7(%arg0: i32) -> (i32, i32) {
    %c0_i32 = arith.constant 0 : i32
    %c0_i32_0 = arith.constant 0 : i32
    %c0_i32_1 = arith.constant 0 : i32
    return %c0_i32, %c0_i32_0 : i32, i32
  }
  func.func @transform_8(%arg0: i32) -> (i32, i32) {
    %c0_i32 = arith.constant 0 : i32
    %c0_i32_0 = arith.constant 0 : i32
    return %arg0, %c0_i32 : i32, i32
  }
}

module attributes {stable_mosaic.version = 11 : i64} {
  func.func @_ln_linear_kernel(%arg0: i32, %arg1: i32, %arg2: memref<16x128xf32, #tpu.memory_space<vmem>>, %arg3: memref<1x128xf32, #tpu.memory_space<vmem>>, %arg4: memref<1x128xf32, #tpu.memory_space<vmem>>, %arg5: memref<128x256xbf16, #tpu.memory_space<vmem>>, %arg6: memref<1x256xf32, #tpu.memory_space<vmem>>, %arg7: memref<16x256xf32, #tpu.memory_space<vmem>>, %arg8: memref<16x128xf32, #tpu.memory_space<vmem>>, %arg9: memref<16x128xbf16, #tpu.memory_space<vmem>>) attributes {dimension_semantics = [#tpu.dimension_semantics<parallel>, #tpu.dimension_semantics<arbitrary>], iteration_bounds = array<i64: 1, 2>, scalar_prefetch = 0 : i64, scratch_operands = 1 : i64, tpu.core_type = #tpu.core_type<tc>, window_params = [{transform_indices = @transform_0, window_bounds = array<i64: 16, 128>}, {pipeline_mode = #tpu.pipeline_mode<synchronous>, transform_indices = @transform_1, window_bounds = array<i64: 1, 128>}, {pipeline_mode = #tpu.pipeline_mode<synchronous>, transform_indices = @transform_2, window_bounds = array<i64: 1, 128>}, {transform_indices = @transform_3, window_bounds = array<i64: 128, 256>}, {transform_indices = @transform_4, window_bounds = array<i64: 1, 256>}, {transform_indices = @transform_5, window_bounds = array<i64: 16, 256>}, {transform_indices = @transform_6, window_bounds = array<i64: 16, 128>}]} {
    %c0_i32 = arith.constant 0 : i32
    %0 = arith.cmpi eq, %arg1, %c0_i32 : i32
    %1 = arith.extui %0 : i1 to i32
    %c0_i32_0 = arith.constant 0 : i32
    %2 = arith.cmpi ne, %1, %c0_i32_0 : i32
    scf.if %2 {
      %c0_12 = arith.constant 0 : index
      %c0_13 = arith.constant 0 : index
      %23 = vector.load %arg2[%c0_12, %c0_13] : memref<16x128xf32, #tpu.memory_space<vmem>>, vector<16x128xf32>
      %cst_14 = arith.constant dense<0.000000e+00> : vector<16xf32>
      %24 = vector.multi_reduction <add>, %23, %cst_14 [1] : vector<16x128xf32> to vector<16xf32>
      %25 = vector.shape_cast %24 : vector<16xf32> to vector<16x1xf32>
      %cst_15 = arith.constant 1.280000e+02 : f32
      %26 = vector.broadcast %cst_15 : f32 to vector<16x1xf32>
      %27 = arith.divf %25, %26 : vector<16x1xf32>
      %28 = vector.broadcast %27 : vector<16x1xf32> to vector<16x128xf32>
      %29 = arith.subf %23, %28 : vector<16x128xf32>
      %30 = arith.mulf %29, %29 : vector<16x128xf32>
      %cst_16 = arith.constant dense<0.000000e+00> : vector<16xf32>
      %31 = vector.multi_reduction <add>, %30, %cst_16 [1] : vector<16x128xf32> to vector<16xf32>
      %32 = vector.shape_cast %31 : vector<16xf32> to vector<16x1xf32>
      %cst_17 = arith.constant 1.280000e+02 : f32
      %33 = vector.broadcast %cst_17 : f32 to vector<16x1xf32>
      %34 = arith.divf %32, %33 : vector<16x1xf32>
      %35 = vector.broadcast %27 : vector<16x1xf32> to vector<16x128xf32>
      %36 = arith.subf %23, %35 : vector<16x128xf32>
      %cst_18 = arith.constant 9.99999996E-13 : f32
      %37 = vector.broadcast %cst_18 : f32 to vector<16x1xf32>
      %38 = arith.addf %34, %37 : vector<16x1xf32>
      %39 = math.rsqrt %38 : vector<16x1xf32>
      %40 = vector.broadcast %39 : vector<16x1xf32> to vector<16x128xf32>
      %41 = arith.mulf %36, %40 : vector<16x128xf32>
      %c0_19 = arith.constant 0 : index
      %c0_20 = arith.constant 0 : index
      %42 = vector.load %arg3[%c0_19, %c0_20] : memref<1x128xf32, #tpu.memory_space<vmem>>, vector<1x128xf32>
      %43 = vector.broadcast %42 : vector<1x128xf32> to vector<16x128xf32>
      %44 = arith.mulf %41, %43 : vector<16x128xf32>
      %c0_21 = arith.constant 0 : index
      %c0_22 = arith.constant 0 : index
      %45 = vector.load %arg4[%c0_21, %c0_22] : memref<1x128xf32, #tpu.memory_space<vmem>>, vector<1x128xf32>
      %46 = vector.broadcast %45 : vector<1x128xf32> to vector<16x128xf32>
      %47 = arith.addf %44, %46 : vector<16x128xf32>
      %c0_23 = arith.constant 0 : index
      %c0_24 = arith.constant 0 : index
      %48 = vector.load %arg8[%c0_23, %c0_24] : memref<16x128xf32, #tpu.memory_space<vmem>>, vector<16x128xf32>
      tpu.vector_store %arg8[%c0_23, %c0_24], %47 {strides = array<i32>} : memref<16x128xf32, #tpu.memory_space<vmem>>, vector<16x128xf32>,
      %49 = arith.truncf %47 : vector<16x128xf32> to vector<16x128xbf16>
      %c0_25 = arith.constant 0 : index
      %c0_26 = arith.constant 0 : index
      %50 = vector.load %arg9[%c0_25, %c0_26] : memref<16x128xbf16, #tpu.memory_space<vmem>>, vector<16x128xbf16>
      tpu.vector_store %arg9[%c0_25, %c0_26], %49 {strides = array<i32>} : memref<16x128xbf16, #tpu.memory_space<vmem>>, vector<16x128xbf16>,
    } else {
    }
    %c0 = arith.constant 0 : index
    %c0_1 = arith.constant 0 : index
    %3 = vector.load %arg9[%c0, %c0_1] : memref<16x128xbf16, #tpu.memory_space<vmem>>, vector<16x128xbf16>
    %c0_2 = arith.constant 0 : index
    %c0_3 = arith.constant 0 : index
    %4 = vector.load %arg5[%c0_2, %c0_3] : memref<128x256xbf16, #tpu.memory_space<vmem>>, vector<128x256xbf16>
    %cst = arith.constant dense<0.000000e+00> : vector<16x256xf32>
    %5 = tpu.matmul %3, %4, %cst {dimension_numbers = #tpu.dot_dimension_numbers<[1], [0], [0], [1], [0, 0, 1, 1], [], []>} : vector<16x128xbf16>, vector<128x256xbf16>, vector<16x256xf32> -> vector<16x256xf32>
    %c0_4 = arith.constant 0 : index
    %c0_5 = arith.constant 0 : index
    %6 = vector.load %arg6[%c0_4, %c0_5] : memref<1x256xf32, #tpu.memory_space<vmem>>, vector<1x256xf32>
    %7 = vector.broadcast %6 : vector<1x256xf32> to vector<16x256xf32>
    %8 = arith.addf %5, %7 : vector<16x256xf32>
    %cst_6 = arith.constant 5.000000e-01 : f32
    %9 = vector.broadcast %cst_6 : f32 to vector<16x256xf32>
    %10 = arith.mulf %9, %8 : vector<16x256xf32>
    %cst_7 = arith.constant 4.471500e-02 : f32
    %11 = vector.broadcast %cst_7 : f32 to vector<16x256xf32>
    %12 = arith.mulf %11, %8 : vector<16x256xf32>
    %13 = arith.mulf %12, %8 : vector<16x256xf32>
    %14 = arith.mulf %13, %8 : vector<16x256xf32>
    %15 = arith.addf %8, %14 : vector<16x256xf32>
    %cst_8 = arith.constant 0.797884583 : f32
    %16 = vector.broadcast %cst_8 : f32 to vector<16x256xf32>
    %17 = arith.mulf %16, %15 : vector<16x256xf32>
    %18 = math.tanh %17 : vector<16x256xf32>
    %cst_9 = arith.constant 1.000000e+00 : f32
    %19 = vector.broadcast %cst_9 : f32 to vector<16x256xf32>
    %20 = arith.addf %19, %18 : vector<16x256xf32>
    %21 = arith.mulf %10, %20 : vector<16x256xf32>
    %c0_10 = arith.constant 0 : index
    %c0_11 = arith.constant 0 : index
    %22 = vector.load %arg7[%c0_10, %c0_11] : memref<16x256xf32, #tpu.memory_space<vmem>>, vector<16x256xf32>
    tpu.vector_store %arg7[%c0_10, %c0_11], %21 {strides = array<i32>} : memref<16x256xf32, #tpu.memory_space<vmem>>, vector<16x256xf32>,
    return
  }
  func.func @transform_0(%arg0: i32, %arg1: i32) -> (i32, i32) {
    %c0_i32 = arith.constant 0 : i32
    %c0_i32_0 = arith.constant 0 : i32
    return %arg0, %c0_i32 : i32, i32
  }
  func.func @transform_1(%arg0: i32, %arg1: i32) -> (i32, i32) {
    %c0_i32 = arith.constant 0 : i32
    %c0_i32_0 = arith.constant 0 : i32
    %c0_i32_1 = arith.constant 0 : i32
    return %c0_i32, %c0_i32_0 : i32, i32
  }
  func.func @transform_2(%arg0: i32, %arg1: i32) -> (i32, i32) {
    %c0_i32 = arith.constant 0 : i32
    %c0_i32_0 = arith.constant 0 : i32
    %c0_i32_1 = arith.constant 0 : i32
    return %c0_i32, %c0_i32_0 : i32, i32
  }
  func.func @transform_3(%arg0: i32, %arg1: i32) -> (i32, i32) {
    %c0_i32 = arith.constant 0 : i32
    %c0_i32_0 = arith.constant 0 : i32
    return %c0_i32, %arg1 : i32, i32
  }
  func.func @transform_4(%arg0: i32, %arg1: i32) -> (i32, i32) {
    %c0_i32 = arith.constant 0 : i32
    %c0_i32_0 = arith.constant 0 : i32
    return %c0_i32, %arg1 : i32, i32
  }
  func.func @transform_5(%arg0: i32, %arg1: i32) -> (i32, i32) {
    %c0_i32 = arith.constant 0 : i32
    return %arg0, %arg1 : i32, i32
  }
  func.func @transform_6(%arg0: i32, %arg1: i32) -> (i32, i32) {
    %c0_i32 = arith.constant 0 : i32
    %c0_i32_0 = arith.constant 0 : i32
    return %arg0, %c0_i32 : i32, i32
  }
}

module attributes {stable_mosaic.version = 11 : i64} {
  func.func @_dense_adapter_kernel(%arg0: i32, %arg1: memref<16x512xf32, #tpu.memory_space<vmem>>, %arg2: memref<16x128xf32, #tpu.memory_space<vmem>>, %arg3: memref<512x128xbf16, #tpu.memory_space<vmem>>, %arg4: memref<1x128xf32, #tpu.memory_space<vmem>>, %arg5: memref<128x64xbf16, #tpu.memory_space<vmem>>, %arg6: memref<1x64xf32, #tpu.memory_space<vmem>>, %arg7: memref<64x128xbf16, #tpu.memory_space<vmem>>, %arg8: memref<1x128xf32, #tpu.memory_space<vmem>>, %arg9: memref<16x128xf32, #tpu.memory_space<vmem>>) attributes {dimension_semantics = [#tpu.dimension_semantics<parallel>], iteration_bounds = array<i64: 1>, scalar_prefetch = 0 : i64, scratch_operands = 0 : i64, tpu.core_type = #tpu.core_type<tc>, window_params = [{transform_indices = @transform_0, window_bounds = array<i64: 16, 512>}, {transform_indices = @transform_1, window_bounds = array<i64: 16, 128>}, {pipeline_mode = #tpu.pipeline_mode<synchronous>, transform_indices = @transform_2, window_bounds = array<i64: 512, 128>}, {pipeline_mode = #tpu.pipeline_mode<synchronous>, transform_indices = @transform_3, window_bounds = array<i64: 1, 128>}, {pipeline_mode = #tpu.pipeline_mode<synchronous>, transform_indices = @transform_4, window_bounds = array<i64: 128, 64>}, {pipeline_mode = #tpu.pipeline_mode<synchronous>, transform_indices = @transform_5, window_bounds = array<i64: 1, 64>}, {pipeline_mode = #tpu.pipeline_mode<synchronous>, transform_indices = @transform_6, window_bounds = array<i64: 64, 128>}, {pipeline_mode = #tpu.pipeline_mode<synchronous>, transform_indices = @transform_7, window_bounds = array<i64: 1, 128>}, {transform_indices = @transform_8, window_bounds = array<i64: 16, 128>}]} {
    %c0 = arith.constant 0 : index
    %c0_0 = arith.constant 0 : index
    %0 = vector.load %arg1[%c0, %c0_0] : memref<16x512xf32, #tpu.memory_space<vmem>>, vector<16x512xf32>
    %1 = arith.truncf %0 : vector<16x512xf32> to vector<16x512xbf16>
    %c0_1 = arith.constant 0 : index
    %c0_2 = arith.constant 0 : index
    %2 = vector.load %arg2[%c0_1, %c0_2] : memref<16x128xf32, #tpu.memory_space<vmem>>, vector<16x128xf32>
    %c0_3 = arith.constant 0 : index
    %c0_4 = arith.constant 0 : index
    %3 = vector.load %arg3[%c0_3, %c0_4] : memref<512x128xbf16, #tpu.memory_space<vmem>>, vector<512x128xbf16>
    %cst = arith.constant dense<0.000000e+00> : vector<16x128xf32>
    %4 = tpu.matmul %1, %3, %cst {dimension_numbers = #tpu.dot_dimension_numbers<[1], [0], [0], [1], [0, 0, 1, 1], [], []>} : vector<16x512xbf16>, vector<512x128xbf16>, vector<16x128xf32> -> vector<16x128xf32>
    %c0_5 = arith.constant 0 : index
    %c0_6 = arith.constant 0 : index
    %5 = vector.load %arg4[%c0_5, %c0_6] : memref<1x128xf32, #tpu.memory_space<vmem>>, vector<1x128xf32>
    %6 = vector.broadcast %5 : vector<1x128xf32> to vector<16x128xf32>
    %7 = arith.addf %4, %6 : vector<16x128xf32>
    %8 = arith.truncf %2 : vector<16x128xf32> to vector<16x128xbf16>
    %c0_7 = arith.constant 0 : index
    %c0_8 = arith.constant 0 : index
    %9 = vector.load %arg5[%c0_7, %c0_8] : memref<128x64xbf16, #tpu.memory_space<vmem>>, vector<128x64xbf16>
    %cst_9 = arith.constant dense<0.000000e+00> : vector<16x64xf32>
    %10 = tpu.matmul %8, %9, %cst_9 {dimension_numbers = #tpu.dot_dimension_numbers<[1], [0], [0], [1], [0, 0, 1, 1], [], []>} : vector<16x128xbf16>, vector<128x64xbf16>, vector<16x64xf32> -> vector<16x64xf32>
    %c0_10 = arith.constant 0 : index
    %c0_11 = arith.constant 0 : index
    %11 = vector.load %arg6[%c0_10, %c0_11] : memref<1x64xf32, #tpu.memory_space<vmem>>, vector<1x64xf32>
    %12 = vector.broadcast %11 : vector<1x64xf32> to vector<16x64xf32>
    %13 = arith.addf %10, %12 : vector<16x64xf32>
    %cst_12 = arith.constant 0.000000e+00 : f32
    %14 = vector.broadcast %cst_12 : f32 to vector<16x64xf32>
    %15 = arith.maximumf %13, %14 : vector<16x64xf32>
    %16 = arith.truncf %15 : vector<16x64xf32> to vector<16x64xbf16>
    %c0_13 = arith.constant 0 : index
    %c0_14 = arith.constant 0 : index
    %17 = vector.load %arg7[%c0_13, %c0_14] : memref<64x128xbf16, #tpu.memory_space<vmem>>, vector<64x128xbf16>
    %cst_15 = arith.constant dense<0.000000e+00> : vector<16x128xf32>
    %18 = tpu.matmul %16, %17, %cst_15 {dimension_numbers = #tpu.dot_dimension_numbers<[1], [0], [0], [1], [0, 0, 1, 1], [], []>} : vector<16x64xbf16>, vector<64x128xbf16>, vector<16x128xf32> -> vector<16x128xf32>
    %c0_16 = arith.constant 0 : index
    %c0_17 = arith.constant 0 : index
    %19 = vector.load %arg8[%c0_16, %c0_17] : memref<1x128xf32, #tpu.memory_space<vmem>>, vector<1x128xf32>
    %20 = vector.broadcast %19 : vector<1x128xf32> to vector<16x128xf32>
    %21 = arith.addf %18, %20 : vector<16x128xf32>
    %22 = arith.addf %7, %2 : vector<16x128xf32>
    %23 = arith.addf %22, %21 : vector<16x128xf32>
    %c0_18 = arith.constant 0 : index
    %c0_19 = arith.constant 0 : index
    %24 = vector.load %arg9[%c0_18, %c0_19] : memref<16x128xf32, #tpu.memory_space<vmem>>, vector<16x128xf32>
    tpu.vector_store %arg9[%c0_18, %c0_19], %23 {strides = array<i32>} : memref<16x128xf32, #tpu.memory_space<vmem>>, vector<16x128xf32>,
    return
  }
  func.func @transform_0(%arg0: i32) -> (i32, i32) {
    %c0_i32 = arith.constant 0 : i32
    %c0_i32_0 = arith.constant 0 : i32
    return %arg0, %c0_i32 : i32, i32
  }
  func.func @transform_1(%arg0: i32) -> (i32, i32) {
    %c0_i32 = arith.constant 0 : i32
    %c0_i32_0 = arith.constant 0 : i32
    return %arg0, %c0_i32 : i32, i32
  }
  func.func @transform_2(%arg0: i32) -> (i32, i32) {
    %c0_i32 = arith.constant 0 : i32
    %c0_i32_0 = arith.constant 0 : i32
    %c0_i32_1 = arith.constant 0 : i32
    return %c0_i32, %c0_i32_0 : i32, i32
  }
  func.func @transform_3(%arg0: i32) -> (i32, i32) {
    %c0_i32 = arith.constant 0 : i32
    %c0_i32_0 = arith.constant 0 : i32
    %c0_i32_1 = arith.constant 0 : i32
    return %c0_i32, %c0_i32_0 : i32, i32
  }
  func.func @transform_4(%arg0: i32) -> (i32, i32) {
    %c0_i32 = arith.constant 0 : i32
    %c0_i32_0 = arith.constant 0 : i32
    %c0_i32_1 = arith.constant 0 : i32
    return %c0_i32, %c0_i32_0 : i32, i32
  }
  func.func @transform_5(%arg0: i32) -> (i32, i32) {
    %c0_i32 = arith.constant 0 : i32
    %c0_i32_0 = arith.constant 0 : i32
    %c0_i32_1 = arith.constant 0 : i32
    return %c0_i32, %c0_i32_0 : i32, i32
  }
  func.func @transform_6(%arg0: i32) -> (i32, i32) {
    %c0_i32 = arith.constant 0 : i32
    %c0_i32_0 = arith.constant 0 : i32
    %c0_i32_1 = arith.constant 0 : i32
    return %c0_i32, %c0_i32_0 : i32, i32
  }
  func.func @transform_7(%arg0: i32) -> (i32, i32) {
    %c0_i32 = arith.constant 0 : i32
    %c0_i32_0 = arith.constant 0 : i32
    %c0_i32_1 = arith.constant 0 : i32
    return %c0_i32, %c0_i32_0 : i32, i32
  }
  func.func @transform_8(%arg0: i32) -> (i32, i32) {
    %c0_i32 = arith.constant 0 : i32
    %c0_i32_0 = arith.constant 0 : i32
    return %arg0, %c0_i32 : i32, i32
  }
}

module attributes {stable_mosaic.version = 11 : i64} {
  func.func @_ln_linear_kernel(%arg0: i32, %arg1: i32, %arg2: memref<16x128xf32, #tpu.memory_space<vmem>>, %arg3: memref<1x128xf32, #tpu.memory_space<vmem>>, %arg4: memref<1x128xf32, #tpu.memory_space<vmem>>, %arg5: memref<128x128xbf16, #tpu.memory_space<vmem>>, %arg6: memref<1x128xf32, #tpu.memory_space<vmem>>, %arg7: memref<16x128xf32, #tpu.memory_space<vmem>>, %arg8: memref<16x128xbf16, #tpu.memory_space<vmem>>) attributes {dimension_semantics = [#tpu.dimension_semantics<parallel>, #tpu.dimension_semantics<arbitrary>], iteration_bounds = array<i64: 1, 3>, scalar_prefetch = 0 : i64, scratch_operands = 1 : i64, tpu.core_type = #tpu.core_type<tc>, window_params = [{transform_indices = @transform_0, window_bounds = array<i64: 16, 128>}, {pipeline_mode = #tpu.pipeline_mode<synchronous>, transform_indices = @transform_1, window_bounds = array<i64: 1, 128>}, {pipeline_mode = #tpu.pipeline_mode<synchronous>, transform_indices = @transform_2, window_bounds = array<i64: 1, 128>}, {transform_indices = @transform_3, window_bounds = array<i64: 128, 128>}, {transform_indices = @transform_4, window_bounds = array<i64: 1, 128>}, {transform_indices = @transform_5, window_bounds = array<i64: 16, 128>}]} {
    %c0_i32 = arith.constant 0 : i32
    %0 = arith.cmpi eq, %arg1, %c0_i32 : i32
    %1 = arith.extui %0 : i1 to i32
    %c0_i32_0 = arith.constant 0 : i32
    %2 = arith.cmpi ne, %1, %c0_i32_0 : i32
    scf.if %2 {
      %c0_8 = arith.constant 0 : index
      %c0_9 = arith.constant 0 : index
      %10 = vector.load %arg2[%c0_8, %c0_9] : memref<16x128xf32, #tpu.memory_space<vmem>>, vector<16x128xf32>
      %cst_10 = arith.constant dense<0.000000e+00> : vector<16xf32>
      %11 = vector.multi_reduction <add>, %10, %cst_10 [1] : vector<16x128xf32> to vector<16xf32>
      %12 = vector.shape_cast %11 : vector<16xf32> to vector<16x1xf32>
      %cst_11 = arith.constant 1.280000e+02 : f32
      %13 = vector.broadcast %cst_11 : f32 to vector<16x1xf32>
      %14 = arith.divf %12, %13 : vector<16x1xf32>
      %15 = vector.broadcast %14 : vector<16x1xf32> to vector<16x128xf32>
      %16 = arith.subf %10, %15 : vector<16x128xf32>
      %17 = arith.mulf %16, %16 : vector<16x128xf32>
      %cst_12 = arith.constant dense<0.000000e+00> : vector<16xf32>
      %18 = vector.multi_reduction <add>, %17, %cst_12 [1] : vector<16x128xf32> to vector<16xf32>
      %19 = vector.shape_cast %18 : vector<16xf32> to vector<16x1xf32>
      %cst_13 = arith.constant 1.280000e+02 : f32
      %20 = vector.broadcast %cst_13 : f32 to vector<16x1xf32>
      %21 = arith.divf %19, %20 : vector<16x1xf32>
      %22 = vector.broadcast %14 : vector<16x1xf32> to vector<16x128xf32>
      %23 = arith.subf %10, %22 : vector<16x128xf32>
      %cst_14 = arith.constant 9.99999996E-13 : f32
      %24 = vector.broadcast %cst_14 : f32 to vector<16x1xf32>
      %25 = arith.addf %21, %24 : vector<16x1xf32>
      %26 = math.rsqrt %25 : vector<16x1xf32>
      %27 = vector.broadcast %26 : vector<16x1xf32> to vector<16x128xf32>
      %28 = arith.mulf %23, %27 : vector<16x128xf32>
      %c0_15 = arith.constant 0 : index
      %c0_16 = arith.constant 0 : index
      %29 = vector.load %arg3[%c0_15, %c0_16] : memref<1x128xf32, #tpu.memory_space<vmem>>, vector<1x128xf32>
      %30 = vector.broadcast %29 : vector<1x128xf32> to vector<16x128xf32>
      %31 = arith.mulf %28, %30 : vector<16x128xf32>
      %c0_17 = arith.constant 0 : index
      %c0_18 = arith.constant 0 : index
      %32 = vector.load %arg4[%c0_17, %c0_18] : memref<1x128xf32, #tpu.memory_space<vmem>>, vector<1x128xf32>
      %33 = vector.broadcast %32 : vector<1x128xf32> to vector<16x128xf32>
      %34 = arith.addf %31, %33 : vector<16x128xf32>
      %35 = arith.truncf %34 : vector<16x128xf32> to vector<16x128xbf16>
      %c0_19 = arith.constant 0 : index
      %c0_20 = arith.constant 0 : index
      %36 = vector.load %arg8[%c0_19, %c0_20] : memref<16x128xbf16, #tpu.memory_space<vmem>>, vector<16x128xbf16>
      tpu.vector_store %arg8[%c0_19, %c0_20], %35 {strides = array<i32>} : memref<16x128xbf16, #tpu.memory_space<vmem>>, vector<16x128xbf16>,
    } else {
    }
    %c0 = arith.constant 0 : index
    %c0_1 = arith.constant 0 : index
    %3 = vector.load %arg8[%c0, %c0_1] : memref<16x128xbf16, #tpu.memory_space<vmem>>, vector<16x128xbf16>
    %c0_2 = arith.constant 0 : index
    %c0_3 = arith.constant 0 : index
    %4 = vector.load %arg5[%c0_2, %c0_3] : memref<128x128xbf16, #tpu.memory_space<vmem>>, vector<128x128xbf16>
    %cst = arith.constant dense<0.000000e+00> : vector<16x128xf32>
    %5 = tpu.matmul %3, %4, %cst {dimension_numbers = #tpu.dot_dimension_numbers<[1], [0], [0], [1], [0, 0, 1, 1], [], []>} : vector<16x128xbf16>, vector<128x128xbf16>, vector<16x128xf32> -> vector<16x128xf32>
    %c0_4 = arith.constant 0 : index
    %c0_5 = arith.constant 0 : index
    %6 = vector.load %arg6[%c0_4, %c0_5] : memref<1x128xf32, #tpu.memory_space<vmem>>, vector<1x128xf32>
    %7 = vector.broadcast %6 : vector<1x128xf32> to vector<16x128xf32>
    %8 = arith.addf %5, %7 : vector<16x128xf32>
    %c0_6 = arith.constant 0 : index
    %c0_7 = arith.constant 0 : index
    %9 = vector.load %arg7[%c0_6, %c0_7] : memref<16x128xf32, #tpu.memory_space<vmem>>, vector<16x128xf32>
    tpu.vector_store %arg7[%c0_6, %c0_7], %8 {strides = array<i32>} : memref<16x128xf32, #tpu.memory_space<vmem>>, vector<16x128xf32>,
    return
  }
  func.func @transform_0(%arg0: i32, %arg1: i32) -> (i32, i32) {
    %c0_i32 = arith.constant 0 : i32
    %c0_i32_0 = arith.constant 0 : i32
    return %arg0, %c0_i32 : i32, i32
  }
  func.func @transform_1(%arg0: i32, %arg1: i32) -> (i32, i32) {
    %c0_i32 = arith.constant 0 : i32
    %c0_i32_0 = arith.constant 0 : i32
    %c0_i32_1 = arith.constant 0 : i32
    return %c0_i32, %c0_i32_0 : i32, i32
  }
  func.func @transform_2(%arg0: i32, %arg1: i32) -> (i32, i32) {
    %c0_i32 = arith.constant 0 : i32
    %c0_i32_0 = arith.constant 0 : i32
    %c0_i32_1 = arith.constant 0 : i32
    return %c0_i32, %c0_i32_0 : i32, i32
  }
  func.func @transform_3(%arg0: i32, %arg1: i32) -> (i32, i32) {
    %c0_i32 = arith.constant 0 : i32
    %c0_i32_0 = arith.constant 0 : i32
    return %c0_i32, %arg1 : i32, i32
  }
  func.func @transform_4(%arg0: i32, %arg1: i32) -> (i32, i32) {
    %c0_i32 = arith.constant 0 : i32
    %c0_i32_0 = arith.constant 0 : i32
    return %c0_i32, %arg1 : i32, i32
  }
  func.func @transform_5(%arg0: i32, %arg1: i32) -> (i32, i32) {
    %c0_i32 = arith.constant 0 : i32
    return %arg0, %arg1 : i32, i32
  }
}

module attributes {stable_mosaic.version = 11 : i64} {
  func.func @_linear_kernel(%arg0: i32, %arg1: i32, %arg2: i32, %arg3: memref<16x128xf32, #tpu.memory_space<vmem>>, %arg4: memref<128x128xbf16, #tpu.memory_space<vmem>>, %arg5: memref<1x128xf32, #tpu.memory_space<vmem>>, %arg6: memref<16x128xf32, #tpu.memory_space<vmem>>, %arg7: memref<16x128xf32, #tpu.memory_space<vmem>>) attributes {dimension_semantics = [#tpu.dimension_semantics<parallel>, #tpu.dimension_semantics<parallel>, #tpu.dimension_semantics<arbitrary>], iteration_bounds = array<i64: 1, 1, 1>, scalar_prefetch = 0 : i64, scratch_operands = 0 : i64, tpu.core_type = #tpu.core_type<tc>, window_params = [{transform_indices = @transform_0, window_bounds = array<i64: 16, 128>}, {transform_indices = @transform_1, window_bounds = array<i64: 128, 128>}, {transform_indices = @transform_2, window_bounds = array<i64: 1, 128>}, {transform_indices = @transform_3, window_bounds = array<i64: 16, 128>}, {transform_indices = @transform_4, window_bounds = array<i64: 16, 128>}]} {
    %c0 = arith.constant 0 : index
    %c0_0 = arith.constant 0 : index
    %0 = vector.load %arg3[%c0, %c0_0] : memref<16x128xf32, #tpu.memory_space<vmem>>, vector<16x128xf32>
    %1 = arith.truncf %0 : vector<16x128xf32> to vector<16x128xbf16>
    %c0_1 = arith.constant 0 : index
    %c0_2 = arith.constant 0 : index
    %2 = vector.load %arg4[%c0_1, %c0_2] : memref<128x128xbf16, #tpu.memory_space<vmem>>, vector<128x128xbf16>
    %cst = arith.constant dense<0.000000e+00> : vector<16x128xf32>
    %3 = tpu.matmul %1, %2, %cst {dimension_numbers = #tpu.dot_dimension_numbers<[1], [0], [0], [1], [0, 0, 1, 1], [], []>} : vector<16x128xbf16>, vector<128x128xbf16>, vector<16x128xf32> -> vector<16x128xf32>
    %c0_i32 = arith.constant 0 : i32
    %4 = arith.cmpi eq, %arg2, %c0_i32 : i32
    %5 = arith.extui %4 : i1 to i32
    %c0_i32_3 = arith.constant 0 : i32
    %6 = arith.cmpi ne, %5, %c0_i32_3 : i32
    scf.if %6 {
      %c0_8 = arith.constant 0 : index
      %c0_9 = arith.constant 0 : index
      %13 = vector.load %arg7[%c0_8, %c0_9] : memref<16x128xf32, #tpu.memory_space<vmem>>, vector<16x128xf32>
      tpu.vector_store %arg7[%c0_8, %c0_9], %3 {strides = array<i32>} : memref<16x128xf32, #tpu.memory_space<vmem>>, vector<16x128xf32>,
    } else {
    }
    %c0_i32_4 = arith.constant 0 : i32
    %7 = arith.cmpi sgt, %arg2, %c0_i32_4 : i32
    %8 = arith.extui %7 : i1 to i32
    %c0_i32_5 = arith.constant 0 : i32
    %9 = arith.cmpi ne, %8, %c0_i32_5 : i32
    scf.if %9 {
      %c0_8 = arith.constant 0 : index
      %c0_9 = arith.constant 0 : index
      %13 = vector.load %arg7[%c0_8, %c0_9] : memref<16x128xf32, #tpu.memory_space<vmem>>, vector<16x128xf32>
      %14 = arith.addf %13, %3 : vector<16x128xf32>
      %c0_10 = arith.constant 0 : index
      %c0_11 = arith.constant 0 : index
      %15 = vector.load %arg7[%c0_10, %c0_11] : memref<16x128xf32, #tpu.memory_space<vmem>>, vector<16x128xf32>
      tpu.vector_store %arg7[%c0_10, %c0_11], %14 {strides = array<i32>} : memref<16x128xf32, #tpu.memory_space<vmem>>, vector<16x128xf32>,
    } else {
    }
    %c0_i32_6 = arith.constant 0 : i32
    %10 = arith.cmpi eq, %arg2, %c0_i32_6 : i32
    %11 = arith.extui %10 : i1 to i32
    %c0_i32_7 = arith.constant 0 : i32
    %12 = arith.cmpi ne, %11, %c0_i32_7 : i32
    scf.if %12 {
      %c0_8 = arith.constant 0 : index
      %c0_9 = arith.constant 0 : index
      %13 = vector.load %arg7[%c0_8, %c0_9] : memref<16x128xf32, #tpu.memory_space<vmem>>, vector<16x128xf32>
      %c0_10 = arith.constant 0 : index
      %c0_11 = arith.constant 0 : index
      %14 = vector.load %arg5[%c0_10, %c0_11] : memref<1x128xf32, #tpu.memory_space<vmem>>, vector<1x128xf32>
      %15 = vector.broadcast %14 : vector<1x128xf32> to vector<16x128xf32>
      %16 = arith.addf %13, %15 : vector<16x128xf32>
      %c0_12 = arith.constant 0 : index
      %c0_13 = arith.constant 0 : index
      %17 = vector.load %arg6[%c0_12, %c0_13] : memref<16x128xf32, #tpu.memory_space<vmem>>, vector<16x128xf32>
      %18 = arith.addf %16, %17 : vector<16x128xf32>
      %c0_14 = arith.constant 0 : index
      %c0_15 = arith.constant 0 : index
      %19 = vector.load %arg7[%c0_14, %c0_15] : memref<16x128xf32, #tpu.memory_space<vmem>>, vector<16x128xf32>
      tpu.vector_store %arg7[%c0_14, %c0_15], %18 {strides = array<i32>} : memref<16x128xf32, #tpu.memory_space<vmem>>, vector<16x128xf32>,
    } else {
    }
    return
  }
  func.func @transform_0(%arg0: i32, %arg1: i32, %arg2: i32) -> (i32, i32) {
    %c0_i32 = arith.constant 0 : i32
    return %arg0, %arg2 : i32, i32
  }
  func.func @transform_1(%arg0: i32, %arg1: i32, %arg2: i32) -> (i32, i32) {
    %c0_i32 = arith.constant 0 : i32
    return %arg2, %arg1 : i32, i32
  }
  func.func @transform_2(%arg0: i32, %arg1: i32, %arg2: i32) -> (i32, i32) {
    %c0_i32 = arith.constant 0 : i32
    %c0_i32_0 = arith.constant 0 : i32
    return %c0_i32, %arg1 : i32, i32
  }
  func.func @transform_3(%arg0: i32, %arg1: i32, %arg2: i32) -> (i32, i32) {
    %c0_i32 = arith.constant 0 : i32
    return %arg0, %arg1 : i32, i32
  }
  func.func @transform_4(%arg0: i32, %arg1: i32, %arg2: i32) -> (i32, i32) {
    %c0_i32 = arith.constant 0 : i32
    return %arg0, %arg1 : i32, i32
  }
}

module attributes {stable_mosaic.version = 11 : i64} {
  func.func @_ln_linear_kernel(%arg0: i32, %arg1: i32, %arg2: memref<16x128xf32, #tpu.memory_space<vmem>>, %arg3: memref<1x128xf32, #tpu.memory_space<vmem>>, %arg4: memref<1x128xf32, #tpu.memory_space<vmem>>, %arg5: memref<128x256xbf16, #tpu.memory_space<vmem>>, %arg6: memref<1x256xf32, #tpu.memory_space<vmem>>, %arg7: memref<16x256xf32, #tpu.memory_space<vmem>>, %arg8: memref<16x128xbf16, #tpu.memory_space<vmem>>) attributes {dimension_semantics = [#tpu.dimension_semantics<parallel>, #tpu.dimension_semantics<arbitrary>], iteration_bounds = array<i64: 1, 2>, scalar_prefetch = 0 : i64, scratch_operands = 1 : i64, tpu.core_type = #tpu.core_type<tc>, window_params = [{transform_indices = @transform_0, window_bounds = array<i64: 16, 128>}, {pipeline_mode = #tpu.pipeline_mode<synchronous>, transform_indices = @transform_1, window_bounds = array<i64: 1, 128>}, {pipeline_mode = #tpu.pipeline_mode<synchronous>, transform_indices = @transform_2, window_bounds = array<i64: 1, 128>}, {transform_indices = @transform_3, window_bounds = array<i64: 128, 256>}, {transform_indices = @transform_4, window_bounds = array<i64: 1, 256>}, {transform_indices = @transform_5, window_bounds = array<i64: 16, 256>}]} {
    %c0_i32 = arith.constant 0 : i32
    %0 = arith.cmpi eq, %arg1, %c0_i32 : i32
    %1 = arith.extui %0 : i1 to i32
    %c0_i32_0 = arith.constant 0 : i32
    %2 = arith.cmpi ne, %1, %c0_i32_0 : i32
    scf.if %2 {
      %c0_12 = arith.constant 0 : index
      %c0_13 = arith.constant 0 : index
      %23 = vector.load %arg2[%c0_12, %c0_13] : memref<16x128xf32, #tpu.memory_space<vmem>>, vector<16x128xf32>
      %cst_14 = arith.constant dense<0.000000e+00> : vector<16xf32>
      %24 = vector.multi_reduction <add>, %23, %cst_14 [1] : vector<16x128xf32> to vector<16xf32>
      %25 = vector.shape_cast %24 : vector<16xf32> to vector<16x1xf32>
      %cst_15 = arith.constant 1.280000e+02 : f32
      %26 = vector.broadcast %cst_15 : f32 to vector<16x1xf32>
      %27 = arith.divf %25, %26 : vector<16x1xf32>
      %28 = vector.broadcast %27 : vector<16x1xf32> to vector<16x128xf32>
      %29 = arith.subf %23, %28 : vector<16x128xf32>
      %30 = arith.mulf %29, %29 : vector<16x128xf32>
      %cst_16 = arith.constant dense<0.000000e+00> : vector<16xf32>
      %31 = vector.multi_reduction <add>, %30, %cst_16 [1] : vector<16x128xf32> to vector<16xf32>
      %32 = vector.shape_cast %31 : vector<16xf32> to vector<16x1xf32>
      %cst_17 = arith.constant 1.280000e+02 : f32
      %33 = vector.broadcast %cst_17 : f32 to vector<16x1xf32>
      %34 = arith.divf %32, %33 : vector<16x1xf32>
      %35 = vector.broadcast %27 : vector<16x1xf32> to vector<16x128xf32>
      %36 = arith.subf %23, %35 : vector<16x128xf32>
      %cst_18 = arith.constant 9.99999996E-13 : f32
      %37 = vector.broadcast %cst_18 : f32 to vector<16x1xf32>
      %38 = arith.addf %34, %37 : vector<16x1xf32>
      %39 = math.rsqrt %38 : vector<16x1xf32>
      %40 = vector.broadcast %39 : vector<16x1xf32> to vector<16x128xf32>
      %41 = arith.mulf %36, %40 : vector<16x128xf32>
      %c0_19 = arith.constant 0 : index
      %c0_20 = arith.constant 0 : index
      %42 = vector.load %arg3[%c0_19, %c0_20] : memref<1x128xf32, #tpu.memory_space<vmem>>, vector<1x128xf32>
      %43 = vector.broadcast %42 : vector<1x128xf32> to vector<16x128xf32>
      %44 = arith.mulf %41, %43 : vector<16x128xf32>
      %c0_21 = arith.constant 0 : index
      %c0_22 = arith.constant 0 : index
      %45 = vector.load %arg4[%c0_21, %c0_22] : memref<1x128xf32, #tpu.memory_space<vmem>>, vector<1x128xf32>
      %46 = vector.broadcast %45 : vector<1x128xf32> to vector<16x128xf32>
      %47 = arith.addf %44, %46 : vector<16x128xf32>
      %48 = arith.truncf %47 : vector<16x128xf32> to vector<16x128xbf16>
      %c0_23 = arith.constant 0 : index
      %c0_24 = arith.constant 0 : index
      %49 = vector.load %arg8[%c0_23, %c0_24] : memref<16x128xbf16, #tpu.memory_space<vmem>>, vector<16x128xbf16>
      tpu.vector_store %arg8[%c0_23, %c0_24], %48 {strides = array<i32>} : memref<16x128xbf16, #tpu.memory_space<vmem>>, vector<16x128xbf16>,
    } else {
    }
    %c0 = arith.constant 0 : index
    %c0_1 = arith.constant 0 : index
    %3 = vector.load %arg8[%c0, %c0_1] : memref<16x128xbf16, #tpu.memory_space<vmem>>, vector<16x128xbf16>
    %c0_2 = arith.constant 0 : index
    %c0_3 = arith.constant 0 : index
    %4 = vector.load %arg5[%c0_2, %c0_3] : memref<128x256xbf16, #tpu.memory_space<vmem>>, vector<128x256xbf16>
    %cst = arith.constant dense<0.000000e+00> : vector<16x256xf32>
    %5 = tpu.matmul %3, %4, %cst {dimension_numbers = #tpu.dot_dimension_numbers<[1], [0], [0], [1], [0, 0, 1, 1], [], []>} : vector<16x128xbf16>, vector<128x256xbf16>, vector<16x256xf32> -> vector<16x256xf32>
    %c0_4 = arith.constant 0 : index
    %c0_5 = arith.constant 0 : index
    %6 = vector.load %arg6[%c0_4, %c0_5] : memref<1x256xf32, #tpu.memory_space<vmem>>, vector<1x256xf32>
    %7 = vector.broadcast %6 : vector<1x256xf32> to vector<16x256xf32>
    %8 = arith.addf %5, %7 : vector<16x256xf32>
    %cst_6 = arith.constant 5.000000e-01 : f32
    %9 = vector.broadcast %cst_6 : f32 to vector<16x256xf32>
    %10 = arith.mulf %9, %8 : vector<16x256xf32>
    %cst_7 = arith.constant 4.471500e-02 : f32
    %11 = vector.broadcast %cst_7 : f32 to vector<16x256xf32>
    %12 = arith.mulf %11, %8 : vector<16x256xf32>
    %13 = arith.mulf %12, %8 : vector<16x256xf32>
    %14 = arith.mulf %13, %8 : vector<16x256xf32>
    %15 = arith.addf %8, %14 : vector<16x256xf32>
    %cst_8 = arith.constant 0.797884583 : f32
    %16 = vector.broadcast %cst_8 : f32 to vector<16x256xf32>
    %17 = arith.mulf %16, %15 : vector<16x256xf32>
    %18 = math.tanh %17 : vector<16x256xf32>
    %cst_9 = arith.constant 1.000000e+00 : f32
    %19 = vector.broadcast %cst_9 : f32 to vector<16x256xf32>
    %20 = arith.addf %19, %18 : vector<16x256xf32>
    %21 = arith.mulf %10, %20 : vector<16x256xf32>
    %c0_10 = arith.constant 0 : index
    %c0_11 = arith.constant 0 : index
    %22 = vector.load %arg7[%c0_10, %c0_11] : memref<16x256xf32, #tpu.memory_space<vmem>>, vector<16x256xf32>
    tpu.vector_store %arg7[%c0_10, %c0_11], %21 {strides = array<i32>} : memref<16x256xf32, #tpu.memory_space<vmem>>, vector<16x256xf32>,
    return
  }
  func.func @transform_0(%arg0: i32, %arg1: i32) -> (i32, i32) {
    %c0_i32 = arith.constant 0 : i32
    %c0_i32_0 = arith.constant 0 : i32
    return %arg0, %c0_i32 : i32, i32
  }
  func.func @transform_1(%arg0: i32, %arg1: i32) -> (i32, i32) {
    %c0_i32 = arith.constant 0 : i32
    %c0_i32_0 = arith.constant 0 : i32
    %c0_i32_1 = arith.constant 0 : i32
    return %c0_i32, %c0_i32_0 : i32, i32
  }
  func.func @transform_2(%arg0: i32, %arg1: i32) -> (i32, i32) {
    %c0_i32 = arith.constant 0 : i32
    %c0_i32_0 = arith.constant 0 : i32
    %c0_i32_1 = arith.constant 0 : i32
    return %c0_i32, %c0_i32_0 : i32, i32
  }
  func.func @transform_3(%arg0: i32, %arg1: i32) -> (i32, i32) {
    %c0_i32 = arith.constant 0 : i32
    %c0_i32_0 = arith.constant 0 : i32
    return %c0_i32, %arg1 : i32, i32
  }
  func.func @transform_4(%arg0: i32, %arg1: i32) -> (i32, i32) {
    %c0_i32 = arith.constant 0 : i32
    %c0_i32_0 = arith.constant 0 : i32
    return %c0_i32, %arg1 : i32, i32
  }
  func.func @transform_5(%arg0: i32, %arg1: i32) -> (i32, i32) {
    %c0_i32 = arith.constant 0 : i32
    return %arg0, %arg1 : i32, i32
  }
}

module attributes {stable_mosaic.version = 11 : i64} {
  func.func @_linear_kernel(%arg0: i32, %arg1: i32, %arg2: i32, %arg3: memref<16x512xf32, #tpu.memory_space<vmem>>, %arg4: memref<512x128xbf16, #tpu.memory_space<vmem>>, %arg5: memref<1x128xf32, #tpu.memory_space<vmem>>, %arg6: memref<16x128xf32, #tpu.memory_space<vmem>>, %arg7: memref<16x128xf32, #tpu.memory_space<vmem>>) attributes {dimension_semantics = [#tpu.dimension_semantics<parallel>, #tpu.dimension_semantics<parallel>, #tpu.dimension_semantics<arbitrary>], iteration_bounds = array<i64: 1, 1, 1>, scalar_prefetch = 0 : i64, scratch_operands = 0 : i64, tpu.core_type = #tpu.core_type<tc>, window_params = [{transform_indices = @transform_0, window_bounds = array<i64: 16, 512>}, {transform_indices = @transform_1, window_bounds = array<i64: 512, 128>}, {transform_indices = @transform_2, window_bounds = array<i64: 1, 128>}, {transform_indices = @transform_3, window_bounds = array<i64: 16, 128>}, {transform_indices = @transform_4, window_bounds = array<i64: 16, 128>}]} {
    %c0 = arith.constant 0 : index
    %c0_0 = arith.constant 0 : index
    %0 = vector.load %arg3[%c0, %c0_0] : memref<16x512xf32, #tpu.memory_space<vmem>>, vector<16x512xf32>
    %1 = arith.truncf %0 : vector<16x512xf32> to vector<16x512xbf16>
    %c0_1 = arith.constant 0 : index
    %c0_2 = arith.constant 0 : index
    %2 = vector.load %arg4[%c0_1, %c0_2] : memref<512x128xbf16, #tpu.memory_space<vmem>>, vector<512x128xbf16>
    %cst = arith.constant dense<0.000000e+00> : vector<16x128xf32>
    %3 = tpu.matmul %1, %2, %cst {dimension_numbers = #tpu.dot_dimension_numbers<[1], [0], [0], [1], [0, 0, 1, 1], [], []>} : vector<16x512xbf16>, vector<512x128xbf16>, vector<16x128xf32> -> vector<16x128xf32>
    %c0_i32 = arith.constant 0 : i32
    %4 = arith.cmpi eq, %arg2, %c0_i32 : i32
    %5 = arith.extui %4 : i1 to i32
    %c0_i32_3 = arith.constant 0 : i32
    %6 = arith.cmpi ne, %5, %c0_i32_3 : i32
    scf.if %6 {
      %c0_8 = arith.constant 0 : index
      %c0_9 = arith.constant 0 : index
      %13 = vector.load %arg7[%c0_8, %c0_9] : memref<16x128xf32, #tpu.memory_space<vmem>>, vector<16x128xf32>
      tpu.vector_store %arg7[%c0_8, %c0_9], %3 {strides = array<i32>} : memref<16x128xf32, #tpu.memory_space<vmem>>, vector<16x128xf32>,
    } else {
    }
    %c0_i32_4 = arith.constant 0 : i32
    %7 = arith.cmpi sgt, %arg2, %c0_i32_4 : i32
    %8 = arith.extui %7 : i1 to i32
    %c0_i32_5 = arith.constant 0 : i32
    %9 = arith.cmpi ne, %8, %c0_i32_5 : i32
    scf.if %9 {
      %c0_8 = arith.constant 0 : index
      %c0_9 = arith.constant 0 : index
      %13 = vector.load %arg7[%c0_8, %c0_9] : memref<16x128xf32, #tpu.memory_space<vmem>>, vector<16x128xf32>
      %14 = arith.addf %13, %3 : vector<16x128xf32>
      %c0_10 = arith.constant 0 : index
      %c0_11 = arith.constant 0 : index
      %15 = vector.load %arg7[%c0_10, %c0_11] : memref<16x128xf32, #tpu.memory_space<vmem>>, vector<16x128xf32>
      tpu.vector_store %arg7[%c0_10, %c0_11], %14 {strides = array<i32>} : memref<16x128xf32, #tpu.memory_space<vmem>>, vector<16x128xf32>,
    } else {
    }
    %c0_i32_6 = arith.constant 0 : i32
    %10 = arith.cmpi eq, %arg2, %c0_i32_6 : i32
    %11 = arith.extui %10 : i1 to i32
    %c0_i32_7 = arith.constant 0 : i32
    %12 = arith.cmpi ne, %11, %c0_i32_7 : i32
    scf.if %12 {
      %c0_8 = arith.constant 0 : index
      %c0_9 = arith.constant 0 : index
      %13 = vector.load %arg7[%c0_8, %c0_9] : memref<16x128xf32, #tpu.memory_space<vmem>>, vector<16x128xf32>
      %c0_10 = arith.constant 0 : index
      %c0_11 = arith.constant 0 : index
      %14 = vector.load %arg5[%c0_10, %c0_11] : memref<1x128xf32, #tpu.memory_space<vmem>>, vector<1x128xf32>
      %15 = vector.broadcast %14 : vector<1x128xf32> to vector<16x128xf32>
      %16 = arith.addf %13, %15 : vector<16x128xf32>
      %c0_12 = arith.constant 0 : index
      %c0_13 = arith.constant 0 : index
      %17 = vector.load %arg6[%c0_12, %c0_13] : memref<16x128xf32, #tpu.memory_space<vmem>>, vector<16x128xf32>
      %18 = arith.addf %16, %17 : vector<16x128xf32>
      %c0_14 = arith.constant 0 : index
      %c0_15 = arith.constant 0 : index
      %19 = vector.load %arg7[%c0_14, %c0_15] : memref<16x128xf32, #tpu.memory_space<vmem>>, vector<16x128xf32>
      tpu.vector_store %arg7[%c0_14, %c0_15], %18 {strides = array<i32>} : memref<16x128xf32, #tpu.memory_space<vmem>>, vector<16x128xf32>,
    } else {
    }
    return
  }
  func.func @transform_0(%arg0: i32, %arg1: i32, %arg2: i32) -> (i32, i32) {
    %c0_i32 = arith.constant 0 : i32
    return %arg0, %arg2 : i32, i32
  }
  func.func @transform_1(%arg0: i32, %arg1: i32, %arg2: i32) -> (i32, i32) {
    %c0_i32 = arith.constant 0 : i32
    return %arg2, %arg1 : i32, i32
  }
  func.func @transform_2(%arg0: i32, %arg1: i32, %arg2: i32) -> (i32, i32) {
    %c0_i32 = arith.constant 0 : i32
    %c0_i32_0 = arith.constant 0 : i32
    return %c0_i32, %arg1 : i32, i32
  }
  func.func @transform_3(%arg0: i32, %arg1: i32, %arg2: i32) -> (i32, i32) {
    %c0_i32 = arith.constant 0 : i32
    return %arg0, %arg1 : i32, i32
  }
  func.func @transform_4(%arg0: i32, %arg1: i32, %arg2: i32) -> (i32, i32) {
    %c0_i32 = arith.constant 0 : i32
    return %arg0, %arg1 : i32, i32
  }
}

module attributes {stable_mosaic.version = 11 : i64} {
  func.func @_ln_linear_kernel(%arg0: i32, %arg1: i32, %arg2: memref<2x128xf32, #tpu.memory_space<vmem>>, %arg3: memref<1x128xf32, #tpu.memory_space<vmem>>, %arg4: memref<1x128xf32, #tpu.memory_space<vmem>>, %arg5: memref<128x10xbf16, #tpu.memory_space<vmem>>, %arg6: memref<1x10xf32, #tpu.memory_space<vmem>>, %arg7: memref<2x10xf32, #tpu.memory_space<vmem>>, %arg8: memref<2x128xbf16, #tpu.memory_space<vmem>>) attributes {dimension_semantics = [#tpu.dimension_semantics<parallel>, #tpu.dimension_semantics<arbitrary>], iteration_bounds = array<i64: 1, 1>, scalar_prefetch = 0 : i64, scratch_operands = 1 : i64, tpu.core_type = #tpu.core_type<tc>, window_params = [{transform_indices = @transform_0, window_bounds = array<i64: 2, 128>}, {pipeline_mode = #tpu.pipeline_mode<synchronous>, transform_indices = @transform_1, window_bounds = array<i64: 1, 128>}, {pipeline_mode = #tpu.pipeline_mode<synchronous>, transform_indices = @transform_2, window_bounds = array<i64: 1, 128>}, {transform_indices = @transform_3, window_bounds = array<i64: 128, 10>}, {transform_indices = @transform_4, window_bounds = array<i64: 1, 10>}, {transform_indices = @transform_5, window_bounds = array<i64: 2, 10>}]} {
    %c0_i32 = arith.constant 0 : i32
    %0 = arith.cmpi eq, %arg1, %c0_i32 : i32
    %1 = arith.extui %0 : i1 to i32
    %c0_i32_0 = arith.constant 0 : i32
    %2 = arith.cmpi ne, %1, %c0_i32_0 : i32
    scf.if %2 {
      %c0_8 = arith.constant 0 : index
      %c0_9 = arith.constant 0 : index
      %10 = vector.load %arg2[%c0_8, %c0_9] : memref<2x128xf32, #tpu.memory_space<vmem>>, vector<2x128xf32>
      %cst_10 = arith.constant dense<0.000000e+00> : vector<2xf32>
      %11 = vector.multi_reduction <add>, %10, %cst_10 [1] : vector<2x128xf32> to vector<2xf32>
      %12 = vector.shape_cast %11 : vector<2xf32> to vector<2x1xf32>
      %cst_11 = arith.constant 1.280000e+02 : f32
      %13 = vector.broadcast %cst_11 : f32 to vector<2x1xf32>
      %14 = arith.divf %12, %13 : vector<2x1xf32>
      %15 = vector.broadcast %14 : vector<2x1xf32> to vector<2x128xf32>
      %16 = arith.subf %10, %15 : vector<2x128xf32>
      %17 = arith.mulf %16, %16 : vector<2x128xf32>
      %cst_12 = arith.constant dense<0.000000e+00> : vector<2xf32>
      %18 = vector.multi_reduction <add>, %17, %cst_12 [1] : vector<2x128xf32> to vector<2xf32>
      %19 = vector.shape_cast %18 : vector<2xf32> to vector<2x1xf32>
      %cst_13 = arith.constant 1.280000e+02 : f32
      %20 = vector.broadcast %cst_13 : f32 to vector<2x1xf32>
      %21 = arith.divf %19, %20 : vector<2x1xf32>
      %22 = vector.broadcast %14 : vector<2x1xf32> to vector<2x128xf32>
      %23 = arith.subf %10, %22 : vector<2x128xf32>
      %cst_14 = arith.constant 9.99999996E-13 : f32
      %24 = vector.broadcast %cst_14 : f32 to vector<2x1xf32>
      %25 = arith.addf %21, %24 : vector<2x1xf32>
      %26 = math.rsqrt %25 : vector<2x1xf32>
      %27 = vector.broadcast %26 : vector<2x1xf32> to vector<2x128xf32>
      %28 = arith.mulf %23, %27 : vector<2x128xf32>
      %c0_15 = arith.constant 0 : index
      %c0_16 = arith.constant 0 : index
      %29 = vector.load %arg3[%c0_15, %c0_16] : memref<1x128xf32, #tpu.memory_space<vmem>>, vector<1x128xf32>
      %30 = vector.broadcast %29 : vector<1x128xf32> to vector<2x128xf32>
      %31 = arith.mulf %28, %30 : vector<2x128xf32>
      %c0_17 = arith.constant 0 : index
      %c0_18 = arith.constant 0 : index
      %32 = vector.load %arg4[%c0_17, %c0_18] : memref<1x128xf32, #tpu.memory_space<vmem>>, vector<1x128xf32>
      %33 = vector.broadcast %32 : vector<1x128xf32> to vector<2x128xf32>
      %34 = arith.addf %31, %33 : vector<2x128xf32>
      %35 = arith.truncf %34 : vector<2x128xf32> to vector<2x128xbf16>
      %c0_19 = arith.constant 0 : index
      %c0_20 = arith.constant 0 : index
      %36 = vector.load %arg8[%c0_19, %c0_20] : memref<2x128xbf16, #tpu.memory_space<vmem>>, vector<2x128xbf16>
      tpu.vector_store %arg8[%c0_19, %c0_20], %35 {strides = array<i32>} : memref<2x128xbf16, #tpu.memory_space<vmem>>, vector<2x128xbf16>,
    } else {
    }
    %c0 = arith.constant 0 : index
    %c0_1 = arith.constant 0 : index
    %3 = vector.load %arg8[%c0, %c0_1] : memref<2x128xbf16, #tpu.memory_space<vmem>>, vector<2x128xbf16>
    %c0_2 = arith.constant 0 : index
    %c0_3 = arith.constant 0 : index
    %4 = vector.load %arg5[%c0_2, %c0_3] : memref<128x10xbf16, #tpu.memory_space<vmem>>, vector<128x10xbf16>
    %cst = arith.constant dense<0.000000e+00> : vector<2x10xf32>
    %5 = tpu.matmul %3, %4, %cst {dimension_numbers = #tpu.dot_dimension_numbers<[1], [0], [0], [1], [0, 0, 1, 1], [], []>} : vector<2x128xbf16>, vector<128x10xbf16>, vector<2x10xf32> -> vector<2x10xf32>
    %c0_4 = arith.constant 0 : index
    %c0_5 = arith.constant 0 : index
    %6 = vector.load %arg6[%c0_4, %c0_5] : memref<1x10xf32, #tpu.memory_space<vmem>>, vector<1x10xf32>
    %7 = vector.broadcast %6 : vector<1x10xf32> to vector<2x10xf32>
    %8 = arith.addf %5, %7 : vector<2x10xf32>
    %c0_6 = arith.constant 0 : index
    %c0_7 = arith.constant 0 : index
    %9 = vector.load %arg7[%c0_6, %c0_7] : memref<2x10xf32, #tpu.memory_space<vmem>>, vector<2x10xf32>
    tpu.vector_store %arg7[%c0_6, %c0_7], %8 {strides = array<i32>} : memref<2x10xf32, #tpu.memory_space<vmem>>, vector<2x10xf32>,
    return
  }
  func.func @transform_0(%arg0: i32, %arg1: i32) -> (i32, i32) {
    %c0_i32 = arith.constant 0 : i32
    %c0_i32_0 = arith.constant 0 : i32
    return %arg0, %c0_i32 : i32, i32
  }
  func.func @transform_1(%arg0: i32, %arg1: i32) -> (i32, i32) {
    %c0_i32 = arith.constant 0 : i32
    %c0_i32_0 = arith.constant 0 : i32
    %c0_i32_1 = arith.constant 0 : i32
    return %c0_i32, %c0_i32_0 : i32, i32
  }
  func.func @transform_2(%arg0: i32, %arg1: i32) -> (i32, i32) {
    %c0_i32 = arith.constant 0 : i32
    %c0_i32_0 = arith.constant 0 : i32
    %c0_i32_1 = arith.constant 0 : i32
    return %c0_i32, %c0_i32_0 : i32, i32
  }
  func.func @transform_3(%arg0: i32, %arg1: i32) -> (i32, i32) {
    %c0_i32 = arith.constant 0 : i32
    %c0_i32_0 = arith.constant 0 : i32
    return %c0_i32, %arg1 : i32, i32
  }
  func.func @transform_4(%arg0: i32, %arg1: i32) -> (i32, i32) {
    %c0_i32 = arith.constant 0 : i32
    %c0_i32_0 = arith.constant 0 : i32
    return %c0_i32, %arg1 : i32, i32
  }
  func.func @transform_5(%arg0: i32, %arg1: i32) -> (i32, i32) {
    %c0_i32 = arith.constant 0 : i32
    return %arg0, %arg1 : i32, i32
  }
}

</mosaic_0001>

<llo_original>
// kernel: _lambda_.32
$region0: #{_lambda_.32}
  #allocation0 [shape = 'u32[]', space=smem, size = 0x4, offset = 0x4, fixed_abs, tag = 'smem constant byte address 0x4 - core index']
  #allocation1 [shape = 'u32[144,128]{1,0:T(1,128)}', space=vmem, size = 0x12000, scoped, tag = 'internal scratch']
  %s0 = inlined_call_operand.vmem [shape: f32[8,192], index: 0, kind: input, shape index: {}]
  %s1 = inlined_call_operand.vmem [shape: bf16[192,128], index: 1, kind: input, shape index: {}]
  %s2 = inlined_call_operand.vmem [shape: f32[1,128], index: 2, kind: input, shape index: {}]
  %s3 = inlined_call_operand.vmem [shape: f32[8,128], index: 3, kind: output, shape index: {}]
  %s4 = sld [smem:[#allocation0]]
  $region34: #{_lambda_.32} parent=0
    _
  %s6 = ssub.s32 1, %s4
  %s7 = scalar_select 0, %s6, %s4
  // Predicated region
  $region2: #{_lambda_.32} parent=0 // pred_check
    _
  $region3: #{_lambda_.32} parent=0 // pred_check_branch
    %9 = sbr.rel (0) target = $region5
  $region4: #{_lambda_.32} parent=0 // pred_region
    _
  $region5: #{_lambda_.32} parent=0 // pred_fallthru
    _
  // Predicated region
  $region6: #{_lambda_.32} parent=0 // pred_check
    _
  $region7: #{_lambda_.32} parent=0 // pred_check_branch
    %11 = sbr.rel (0) target = $region9
  $region8: #{_lambda_.32} parent=0 // pred_region
    _
  $region9: #{_lambda_.32} parent=0 // pred_fallthru
    _
  // Predicated region
  $region10: #{_lambda_.32} parent=0 // pred_check
    _
  $region11: #{_lambda_.32} parent=0 // pred_check_branch
    %13 = sbr.rel (0) target = $region13
  $region12: #{_lambda_.32} parent=0 // pred_region
    _
  $region13: #{_lambda_.32} parent=0 // pred_fallthru
    _
  %v15 = vld [vmem:[%s0] sm:$0xff]
  %v16 = vld [vmem:[%s0 + $0x8] sm:$0xff]
  %v17 = vpack.c.bf16 %v15, %v15
  %v18 = vpack.c.bf16 %v16, %v16
  %v19 = vld [vmem:[%s1] sm:$0xf]
  %v20 = vld [vmem:[%s1 + $0x4] sm:$0xf]
  %v21 = vld [vmem:[%s1 + $0x8] sm:$0xf]
  %v22 = vld [vmem:[%s1 + $0xc] sm:$0xf]
  %v23 = vld [vmem:[%s1 + $0x10] sm:$0xf]
  %v24 = vld [vmem:[%s1 + $0x14] sm:$0xf]
  %v25 = vld [vmem:[%s1 + $0x18] sm:$0xf]
  %v26 = vld [vmem:[%s1 + $0x1c] sm:$0xf]
  %v27 = vld [vmem:[%s1 + $0x20] sm:$0xf]
  %v28 = vld [vmem:[%s1 + $0x24] sm:$0xf]
  %v29 = vld [vmem:[%s1 + $0x28] sm:$0xf]
  %v30 = vld [vmem:[%s1 + $0x2c] sm:$0xf]
  %v31 = vld [vmem:[%s1 + $0x30] sm:$0xf]
  %v32 = vld [vmem:[%s1 + $0x34] sm:$0xf]
  %v33 = vld [vmem:[%s1 + $0x38] sm:$0xf]
  %v34 = vld [vmem:[%s1 + $0x3c] sm:$0xf]
  %v35 = vld [vmem:[%s1 + $0x40] sm:$0xf]
  %v36 = vld [vmem:[%s1 + $0x44] sm:$0xf]
  %v37 = vld [vmem:[%s1 + $0x48] sm:$0xf]
  %v38 = vld [vmem:[%s1 + $0x4c] sm:$0xf]
  %v39 = vld [vmem:[%s1 + $0x50] sm:$0xf]
  %v40 = vld [vmem:[%s1 + $0x54] sm:$0xf]
  %v41 = vld [vmem:[%s1 + $0x58] sm:$0xf]
  %v42 = vld [vmem:[%s1 + $0x5c] sm:$0xf]
  %v67 = vunpack.c.l.b16 %v19
  %v68 = vunpack.c.l.b16 %v20
  %v69 = vunpack.c.l.b16 %v21
  %v70 = vunpack.c.l.b16 %v22
  %v71 = vunpack.c.l.b16 %v23
  %v72 = vunpack.c.l.b16 %v24
  %v73 = vunpack.c.l.b16 %v25
  %v74 = vunpack.c.l.b16 %v26
  %v75 = vunpack.c.l.b16 %v27
  %v76 = vunpack.c.l.b16 %v28
  %v77 = vunpack.c.l.b16 %v29
  %v78 = vunpack.c.l.b16 %v30
  %v79 = vunpack.c.l.b16 %v31
  %v80 = vunpack.c.l.b16 %v32
  %v81 = vunpack.c.l.b16 %v33
  %v82 = vunpack.c.l.b16 %v34
  %v83 = vunpack.c.l.b16 %v35
  %v84 = vunpack.c.l.b16 %v36
  %v85 = vunpack.c.l.b16 %v37
  %v86 = vunpack.c.l.b16 %v38
  %v87 = vunpack.c.l.b16 %v39
  %v88 = vunpack.c.l.b16 %v40
  %v89 = vunpack.c.l.b16 %v41
  %v90 = vunpack.c.l.b16 %v42
  %v91 = vpack.c.b16 %v68, %v67
  %v92 = vpack.c.b16 %v70, %v69
  %v93 = vpack.c.b16 %v72, %v71
  %v94 = vpack.c.b16 %v74, %v73
  %v95 = vpack.c.b16 %v76, %v75
  %v96 = vpack.c.b16 %v78, %v77
  %v97 = vpack.c.b16 %v80, %v79
  %v98 = vpack.c.b16 %v82, %v81
  %v99 = vpack.c.b16 %v84, %v83
  %v100 = vpack.c.b16 %v86, %v85
  %v101 = vpack.c.b16 %v88, %v87
  %v102 = vpack.c.b16 %v90, %v89
  %vm115 = vcmask 523264
  %v117 = vsel %vm115, %v18, 0
  %119 = vmatprep.subr.bf16.mxu0 0
  %120 = vmatpush1.bf16.msra.mxu0 %v91
  %121 = vmatprep.subr.bf16.mxu0 0
  %122 = vmatpush1.bf16.msra.mxu0 %v92
  %123 = vmatprep.subr.bf16.mxu0 0
  %124 = vmatpush1.bf16.msra.mxu0 %v93
  %125 = vmatprep.subr.bf16.mxu0 0
  %126 = vmatpush1.bf16.msra.mxu0 %v94
  %127 = vmatprep.subr.bf16.mxu0 0
  %128 = vmatpush1.bf16.msra.mxu0 %v95
  %129 = vmatprep.subr.bf16.mxu0 0
  %130 = vmatpush1.bf16.msra.mxu0 %v96
  %131 = vmatprep.subr.bf16.mxu0 0
  %132 = vmatpush1.bf16.msra.mxu0 %v97
  %133 = vmatprep.subr.bf16.mxu0 0
  %134 = vmatpush1.bf16.msra.mxu0 %v98
  %135 = vmatprep.subr.bf16.mxu0 0
  %136 = vmatpush1.bf16.msra.mxu0 %v99
  %137 = vmatprep.subr.bf16.mxu0 0
  %138 = vmatpush1.bf16.msra.mxu0 %v100
  %139 = vmatprep.subr.bf16.mxu0 0
  %140 = vmatpush1.bf16.msra.mxu0 %v101
  %141 = vmatprep.subr.bf16.mxu0 0
  %142 = vmatpush1.bf16.msra.mxu0 %v102
  %143 = vmatprep.subr.bf16.mxu0 0
  %144 = vmatpush1.bf16.msra.mxu0 0
  %145 = vmatprep.subr.bf16.mxu0 0
  %146 = vmatpush1.bf16.msra.mxu0 0
  %147 = vmatprep.subr.bf16.mxu0 0
  %148 = vmatpush1.bf16.msra.mxu0 0
  %149 = vmatprep.subr.bf16.mxu0 0
  %150 = vmatpush1.bf16.msra.mxu0 0
  %151 = vmatprep.mubr.bf16.mxu0 %v117
  %152 = vmatmul.mubr.bf16.gmra.mrb[0].mxu0 %v17
  %v153 = vpop.f32.mrb[0].mxu0
  %v154 = vadd.f32 0.0, %v153
  %v155 = vpop.f32.mrb[0].mxu0
  %v156 = vpop.f32.mrb[0].mxu0
  %v157 = vpop.f32.mrb[0].mxu0
  %158 = vdwg.mxu0
  %p159 = scmp.eq.s32.totalorder 0, 0
  // Predicated region
  $region14: #{_lambda_.32} parent=0 // pred_check
    %p160 = pneg %p159
  $region15: #{_lambda_.32} parent=0 // pred_check_branch
    %162 = sbr.rel (%p160) target = $region17
  $region16: #{_lambda_.32} parent=0 // pred_region
    %163 = vst [vmem:[%s3] sm:$0xff] %v154
  $region17: #{_lambda_.32} parent=0 // pred_fallthru
    _
  %p164 = scmp.gt.s32.totalorder 0, 0
  // Predicated region
  $region18: #{_lambda_.32} parent=0 // pred_check
    %p165 = pneg %p164
  $region19: #{_lambda_.32} parent=0 // pred_check_branch
    %167 = sbr.rel (%p165) target = $region21
  $region20: #{_lambda_.32} parent=0 // pred_region
    %v168 = vld [vmem:[%s3] sm:$0xff]
    %v169 = vadd.f32 %v168, %v154
    %170 = vst [vmem:[%s3] sm:$0xff] %v169
  $region21: #{_lambda_.32} parent=0 // pred_fallthru
    _
  // Predicated region
  $region22: #{_lambda_.32} parent=0 // pred_check
    %p171 = pneg %p159
  $region23: #{_lambda_.32} parent=0 // pred_check_branch
    %173 = sbr.rel (%p171) target = $region25
  $region24: #{_lambda_.32} parent=0 // pred_region
    %v174 = vld [vmem:[%s3] sm:$0xff]
    %v175 = vld [vmem:[%s2] sm:$0x1]
    %v177 = vlaneseq
    %v178 = vshrl.u32 %v177, 7
    %v179 = vsub.s32 0, %v178
    %v180 = vrot.slane %v175, %v179
    %v182 = vadd.f32 %v174, %v180
    %183 = vst [vmem:[%s3] sm:$0xff] %v182
  $region25: #{_lambda_.32} parent=0 // pred_fallthru
    _
  // Predicated region
  $region26: #{_lambda_.32} parent=0 // pred_check
    _
  $region27: #{_lambda_.32} parent=0 // pred_check_branch
    %185 = sbr.rel (0) target = $region29
  $region28: #{_lambda_.32} parent=0 // pred_region
    _
  $region29: #{_lambda_.32} parent=0 // pred_fallthru
    _
  // Predicated region
  $region30: #{_lambda_.32} parent=0 // pred_check
    _
  $region31: #{_lambda_.32} parent=0 // pred_check_branch
    %187 = sbr.rel (0) target = $region33
  $region32: #{_lambda_.32} parent=0 // pred_region
    _
  $region33: #{_lambda_.32} parent=0 // pred_fallthru
    _

// kernel: _lambda_.34
$region0: #{_lambda_.34}
  #allocation0 [shape = 'u32[]', space=smem, size = 0x4, offset = 0x4, fixed_abs, tag = 'smem constant byte address 0x4 - core index']
  #allocation1 [shape = 'u32[144,128]{1,0:T(1,128)}', space=vmem, size = 0x12000, scoped, tag = 'internal scratch']
  %s0 = inlined_call_operand.vmem [shape: f32[2,8,384], index: 0, kind: input, shape index: {}]
  %s1 = inlined_call_operand.vmem [shape: f32[2,8,128], index: 1, kind: output, shape index: {}]
  %s2 = sld [smem:[#allocation0]]
  $region37: #{_lambda_.34} parent=0
    _
  %s4 = ssub.s32 1, %s2
  %s5 = scalar_select 0, %s4, %s2
  loop: start=0, step=1, limit=4
  $region2: #{_lambda_.34} parent=0 // loop_pre_header
    _
  $region3: #{_lambda_.34} parent=0 // loop_header
    %s7 = sphi 0, %s11
    %p8 = scmp.ge.s32.totalorder %s7, 4
    %s17 = sphi 0, %s19
    %s20 = sphi 0, %s17
    %s21 = sphi 0, %s20
    %s37 = sphi 0, %s21
    %s43 = sphi 0, %s45
    %s46 = sphi 0, %s43
    %s47 = sphi 0, %s46
    %s63 = sphi 0, %s47
  $region4: #{_lambda_.34} parent=0 // loop_header_branch
    %10 = sbr.rel (%p8) target = $region8
  $region5: #{_lambda_.34} parent=0 // loop_body
    %s12 = ssub.s32 %s7, 1
    %s13 = ssub.s32 %s7, 2
    %s14 = sadd.s32 %s7, 1
    %s15 = ssub.s32 %s7, %s14
    %p16 = scmp.eq.s32.totalorder %s15, 0
    %s18 = sadd.s32 %s17, 1
    %s19 = scalar_select %p16, %s17, %s18
    %p22 = pneg %p16
    %p23 = scmp.eq.s32.totalorder %s7, 1
    %p24 = por %p22, %p23
    %p25 = scmp.ne.s32.totalorder %s17, %s20
    %p26 = scmp.eq.s32.totalorder %s7, 0
    %p27 = por %p25, %p26
    %p28 = scmp.ne.s32.totalorder %s17, %s20
    %p29 = scmp.eq.s32.totalorder %s12, 1
    %p30 = por %p28, %p29
    %p31 = scmp.ne.s32.totalorder %s20, %s21
    %p32 = scmp.eq.s32.totalorder %s12, 0
    %p33 = por %p31, %p32
    %p34 = scmp.ne.s32.totalorder %s20, %s21
    %p35 = scmp.eq.s32.totalorder %s13, 1
    %p36 = por %p34, %p35
    %p38 = scmp.ne.s32.totalorder %s21, %s37
    %p39 = scmp.eq.s32.totalorder %s13, 0
    %p40 = por %p38, %p39
    %s41 = ssub.s32 %s7, %s14
    %p42 = scmp.eq.s32.totalorder %s41, 0
    %s44 = sadd.s32 %s43, 1
    %s45 = scalar_select %p42, %s43, %s44
    %p48 = pneg %p42
    %p49 = scmp.eq.s32.totalorder %s7, 1
    %p50 = por %p48, %p49
    %p51 = scmp.ne.s32.totalorder %s43, %s46
    %p52 = scmp.eq.s32.totalorder %s7, 0
    %p53 = por %p51, %p52
    %p54 = scmp.ne.s32.totalorder %s43, %s46
    %p55 = scmp.eq.s32.totalorder %s12, 1
    %p56 = por %p54, %p55
    %p57 = scmp.ne.s32.totalorder %s46, %s47
    %p58 = scmp.eq.s32.totalorder %s12, 0
    %p59 = por %p57, %p58
    %p60 = scmp.ne.s32.totalorder %s46, %s47
    %p61 = scmp.eq.s32.totalorder %s13, 1
    %p62 = por %p60, %p61
    %p64 = scmp.ne.s32.totalorder %s47, %s63
    %p65 = scmp.eq.s32.totalorder %s13, 0
    %p66 = por %p64, %p65
    %p67 = scmp.le.s32.totalorder 1, %s7
    %p68 = scmp.lt.s32.totalorder %s7, 3
    %p69 = pnand %p67, %p68
    %p70 = pneg %p69
    // Predicated region
    $region9: #{_lambda_.34} parent=5 // pred_check
      _
    $region10: #{_lambda_.34} parent=5 // pred_check_branch
      %72 = sbr.rel (%p69) target = $region12
    $region11: #{_lambda_.34} parent=5 // pred_region
      %s73 = ssub.s32 %s7, 1
    $region12: #{_lambda_.34} parent=5 // pred_fallthru
      _
    %p74 = scmp.lt.s32.totalorder %s7, 2
    // Predicated region
    $region13: #{_lambda_.34} parent=5 // pred_check
      %p75 = pneg %p74
    $region14: #{_lambda_.34} parent=5 // pred_check_branch
      %77 = sbr.rel (%p75) target = $region16
    $region15: #{_lambda_.34} parent=5 // pred_region
      // Predicated region
      $region17: #{_lambda_.34} parent=15 // pred_check
        %p78 = pneg %p27
      $region18: #{_lambda_.34} parent=15 // pred_check_branch
        %80 = sbr.rel (%p78) target = $region20
      $region19: #{_lambda_.34} parent=15 // pred_region
        %p81 = scmp.lt.s32.totalorder %s7, 1
        %s82 = scalar_select %p81, %s7, 1
        %s83 = smul.addr %s82, 3
        %s84 = smul.addr %s83, 8
        %s85 = scalar_lea.vmem %s0, %s84
      $region20: #{_lambda_.34} parent=15 // pred_fallthru
        _
    $region16: #{_lambda_.34} parent=5 // pred_fallthru
      _
    %p86 = scmp.le.s32.totalorder 1, %s7
    %p87 = scmp.lt.s32.totalorder %s7, 3
    %p88 = pnand %p86, %p87
    %p89 = pneg %p88
    // Predicated region
    $region21: #{_lambda_.34} parent=5 // pred_check
      _
    $region22: #{_lambda_.34} parent=5 // pred_check_branch
      %91 = sbr.rel (%p88) target = $region24
    $region23: #{_lambda_.34} parent=5 // pred_region
      %s92 = ssub.s32 %s7, 1
      %p93 = scmp.lt.s32.totalorder %s12, 1
      %s94 = scalar_select %p93, %s12, 1
      %s95 = smul.addr %s94, 3
      %s96 = smul.addr %s95, 8
      %s97 = scalar_lea.vmem %s0, %s96
      %p98 = pneg %p33
      %p99 = pneg %p30
      %p100 = pneg %p59
      %p101 = pneg %p56
      %p102 = scmp.lt.s32.totalorder %s12, 1
      %s103 = scalar_select %p102, %s12, 1
      %s104 = smul.addr %s103, 8
      %s105 = scalar_lea.vmem %s1, %s104
      %p106 = scmp.lt.s32.totalorder %s12, 1
      %s107 = scalar_select %p106, %s12, 1
      %s108 = smul.addr %s107, 3
      %s109 = smul.addr %s108, 8
      %s110 = scalar_lea.vmem %s0, %s109
      %p111 = scmp.lt.s32.totalorder %s12, 1
      %s112 = scalar_select %p111, %s12, 1
      %s113 = smul.addr %s112, 8
      %s114 = scalar_lea.vmem %s1, %s113
      %v116 = vld [vmem:[%s110] sm:$0xff]
      %v117 = vld [vmem:[%s110 + $0x8] sm:$0xff]
      %v118 = vld [vmem:[%s110 + $0x10] sm:$0xff]
      %v119 = vpack.c.bf16 %v116, %v116
      %v120 = vpack.c.bf16 %v117, %v117
      %v121 = vpack.c.bf16 %v118, %v118
      %v122 = vlaneseq
      %v123 = vand.u32 %v122, 127
      %vm124 = vcmp.lt.s32.totalorder %v123, 5
      %v125 = vsel %vm124, 0.0, -1e+30
      %vm126 = vcmask 523264
      %v128 = vsel %vm126, %v119, 0
      %v131 = vsel %vm126, %v120, 0
      %133 = vmatprep.subr.bf16.mxu0 0
      %134 = vmatpush1.bf16.xpose.msra.mxu0 %v131
      %135 = vmatprep.subr.bf16.mxu0 0
      %136 = vmatpush1.bf16.xpose.msra.mxu0 0
      %137 = vmatprep.subr.bf16.mxu0 0
      %138 = vmatpush1.bf16.xpose.msra.mxu0 0
      %139 = vmatprep.subr.bf16.mxu0 0
      %140 = vmatpush1.bf16.xpose.msra.mxu0 0
      %141 = vmatprep.subr.bf16.mxu0 0
      %142 = vmatpush1.bf16.xpose.msra.mxu0 0
      %143 = vmatprep.subr.bf16.mxu0 0
      %144 = vmatpush1.bf16.xpose.msra.mxu0 0
      %145 = vmatprep.subr.bf16.mxu0 0
      %146 = vmatpush1.bf16.xpose.msra.mxu0 0
      %147 = vmatprep.subr.bf16.mxu0 0
      %148 = vmatpush1.bf16.xpose.msra.mxu0 0
      %149 = vmatprep.subr.bf16.mxu0 0
      %150 = vmatpush1.bf16.xpose.msra.mxu0 0
      %151 = vmatprep.subr.bf16.mxu0 0
      %152 = vmatpush1.bf16.xpose.msra.mxu0 0
      %153 = vmatprep.subr.bf16.mxu0 0
      %154 = vmatpush1.bf16.xpose.msra.mxu0 0
      %155 = vmatprep.subr.bf16.mxu0 0
      %156 = vmatpush1.bf16.xpose.msra.mxu0 0
      %157 = vmatprep.subr.bf16.mxu0 0
      %158 = vmatpush1.bf16.xpose.msra.mxu0 0
      %159 = vmatprep.subr.bf16.mxu0 0
      %160 = vmatpush1.bf16.xpose.msra.mxu0 0
      %161 = vmatprep.subr.bf16.mxu0 0
      %162 = vmatpush1.bf16.xpose.msra.mxu0 0
      %163 = vmatprep.subr.bf16.mxu0 0
      %164 = vmatpush1.bf16.xpose.msra.mxu0 0
      %165 = vmatprep.mubr.bf16.mxu0 0
      %166 = vmatmul.mubr.bf16.gmra.mrb[0].mxu0 %v128
      %v167 = vpop.f32.mrb[0].mxu0
      %v168 = vadd.f32 0.0, %v167
      %v169 = vpop.f32.mrb[0].mxu0
      %v170 = vpop.f32.mrb[0].mxu0
      %v171 = vpop.f32.mrb[0].mxu0
      %172 = vdwg.mxu0
      %v173 = vmul.f32 %v168, 0.125
      %v174 = vadd.f32 %v173, %v125
      %vm175 = vcmask 64512
      %v176 = vsel %vm175, %v174, -inf
      %177 = vmax.xlane.f32.xlu0 %v176
      %v178 = vpop.xlane.xlu0 %177
      %v179 = vsub.f32 %v174, %v178
      %v180 = vmul.f32 %v179, 1.442695
      %v181 = vpow.pop %v180
      %v182 = vsel %vm175, %v181, 0.0
      %183 = vadd.xlane.f32.xlu0 %v182
      %v184 = vpop.xlane.xlu0 %183
      %v185 = vrcp.pop %v184
      %v186 = vmul.f32 %v181, %v185
      %v187 = vpack.c.bf16 %v186, %v186
      %v189 = vsel %vm175, %v187, 0
      %vm191 = vcmask 1043456
      %v193 = vsel %vm191, %v121, 0
      %195 = vmatprep.subr.bf16.mxu0 0
      %196 = vmatpush1.bf16.msra.mxu0 %v193
      %197 = vmatprep.subr.bf16.mxu0 0
      %198 = vmatpush1.bf16.msra.mxu0 0
      %199 = vmatprep.subr.bf16.mxu0 0
      %200 = vmatpush1.bf16.msra.mxu0 0
      %201 = vmatprep.subr.bf16.mxu0 0
      %202 = vmatpush1.bf16.msra.mxu0 0
      %203 = vmatprep.subr.bf16.mxu0 0
      %204 = vmatpush1.bf16.msra.mxu0 0
      %205 = vmatprep.subr.bf16.mxu0 0
      %206 = vmatpush1.bf16.msra.mxu0 0
      %207 = vmatprep.subr.bf16.mxu0 0
      %208 = vmatpush1.bf16.msra.mxu0 0
      %209 = vmatprep.subr.bf16.mxu0 0
      %210 = vmatpush1.bf16.msra.mxu0 0
      %211 = vmatprep.subr.bf16.mxu0 0
      %212 = vmatpush1.bf16.msra.mxu0 0
      %213 = vmatprep.subr.bf16.mxu0 0
      %214 = vmatpush1.bf16.msra.mxu0 0
      %215 = vmatprep.subr.bf16.mxu0 0
      %216 = vmatpush1.bf16.msra.mxu0 0
      %217 = vmatprep.subr.bf16.mxu0 0
      %218 = vmatpush1.bf16.msra.mxu0 0
      %219 = vmatprep.subr.bf16.mxu0 0
      %220 = vmatpush1.bf16.msra.mxu0 0
      %221 = vmatprep.subr.bf16.mxu0 0
      %222 = vmatpush1.bf16.msra.mxu0 0
      %223 = vmatprep.subr.bf16.mxu0 0
      %224 = vmatpush1.bf16.msra.mxu0 0
      %225 = vmatprep.subr.bf16.mxu0 0
      %226 = vmatpush1.bf16.msra.mxu0 0
      %227 = vmatprep.mubr.bf16.mxu0 0
      %228 = vmatmul.mubr.bf16.gmra.mrb[0].mxu0 %v189
      %v229 = vpop.f32.mrb[0].mxu0
      %v230 = vadd.f32 0.0, %v229
      %v231 = vpop.f32.mrb[0].mxu0
      %v232 = vpop.f32.mrb[0].mxu0
      %v233 = vpop.f32.mrb[0].mxu0
      %234 = vdwg.mxu0
      %236 = vrot.lane.b32.xlu0 %v119, 64
      %v237 = vpop.permute.xlu0 %236
      %239 = vrot.lane.b32.xlu0 %v120, 64
      %v240 = vpop.permute.xlu0 %239
      %v242 = vsel %vm126, %v237, 0
      %v245 = vsel %vm126, %v240, 0
      %247 = vmatprep.subr.bf16.mxu0 0
      %248 = vmatpush1.bf16.xpose.msra.mxu0 %v245
      %249 = vmatprep.subr.bf16.mxu0 0
      %250 = vmatpush1.bf16.xpose.msra.mxu0 0
      %251 = vmatprep.subr.bf16.mxu0 0
      %252 = vmatpush1.bf16.xpose.msra.mxu0 0
      %253 = vmatprep.subr.bf16.mxu0 0
      %254 = vmatpush1.bf16.xpose.msra.mxu0 0
      %255 = vmatprep.subr.bf16.mxu0 0
      %256 = vmatpush1.bf16.xpose.msra.mxu0 0
      %257 = vmatprep.subr.bf16.mxu0 0
      %258 = vmatpush1.bf16.xpose.msra.mxu0 0
      %259 = vmatprep.subr.bf16.mxu0 0
      %260 = vmatpush1.bf16.xpose.msra.mxu0 0
      %261 = vmatprep.subr.bf16.mxu0 0
      %262 = vmatpush1.bf16.xpose.msra.mxu0 0
      %263 = vmatprep.subr.bf16.mxu0 0
      %264 = vmatpush1.bf16.xpose.msra.mxu0 0
      %265 = vmatprep.subr.bf16.mxu0 0
      %266 = vmatpush1.bf16.xpose.msra.mxu0 0
      %267 = vmatprep.subr.bf16.mxu0 0
      %268 = vmatpush1.bf16.xpose.msra.mxu0 0
      %269 = vmatprep.subr.bf16.mxu0 0
      %270 = vmatpush1.bf16.xpose.msra.mxu0 0
      %271 = vmatprep.subr.bf16.mxu0 0
      %272 = vmatpush1.bf16.xpose.msra.mxu0 0
      %273 = vmatprep.subr.bf16.mxu0 0
      %274 = vmatpush1.bf16.xpose.msra.mxu0 0
      %275 = vmatprep.subr.bf16.mxu0 0
      %276 = vmatpush1.bf16.xpose.msra.mxu0 0
      %277 = vmatprep.subr.bf16.mxu0 0
      %278 = vmatpush1.bf16.xpose.msra.mxu0 0
      %279 = vmatprep.mubr.bf16.mxu0 0
      %280 = vmatmul.mubr.bf16.gmra.mrb[0].mxu0 %v242
      %v281 = vpop.f32.mrb[0].mxu0
      %v282 = vadd.f32 0.0, %v281
      %v283 = vpop.f32.mrb[0].mxu0
      %v284 = vpop.f32.mrb[0].mxu0
      %v285 = vpop.f32.mrb[0].mxu0
      %286 = vdwg.mxu0
      %v287 = vmul.f32 %v282, 0.125
      %v288 = vadd.f32 %v287, %v125
      %v289 = vsel %vm175, %v288, -inf
      %290 = vmax.xlane.f32.xlu0 %v289
      %v291 = vpop.xlane.xlu0 %290
      %v292 = vsub.f32 %v288, %v291
      %v293 = vmul.f32 %v292, 1.442695
      %v294 = vpow.pop %v293
      %v295 = vsel %vm175, %v294, 0.0
      %296 = vadd.xlane.f32.xlu0 %v295
      %v297 = vpop.xlane.xlu0 %296
      %v298 = vrcp.pop %v297
      %v299 = vmul.f32 %v294, %v298
      %v300 = vpack.c.bf16 %v299, %v299
      %302 = vrot.lane.b32.xlu0 %v121, 64
      %v303 = vpop.permute.xlu0 %302
      %v305 = vsel %vm175, %v300, 0
      %v308 = vsel %vm191, %v303, 0
      %310 = vmatprep.subr.bf16.mxu0 0
      %311 = vmatpush1.bf16.msra.mxu0 %v308
      %312 = vmatprep.subr.bf16.mxu0 0
      %313 = vmatpush1.bf16.msra.mxu0 0
      %314 = vmatprep.subr.bf16.mxu0 0
      %315 = vmatpush1.bf16.msra.mxu0 0
      %316 = vmatprep.subr.bf16.mxu0 0
      %317 = vmatpush1.bf16.msra.mxu0 0
      %318 = vmatprep.subr.bf16.mxu0 0
      %319 = vmatpush1.bf16.msra.mxu0 0
      %320 = vmatprep.subr.bf16.mxu0 0
      %321 = vmatpush1.bf16.msra.mxu0 0
      %322 = vmatprep.subr.bf16.mxu0 0
      %323 = vmatpush1.bf16.msra.mxu0 0
      %324 = vmatprep.subr.bf16.mxu0 0
      %325 = vmatpush1.bf16.msra.mxu0 0
      %326 = vmatprep.subr.bf16.mxu0 0
      %327 = vmatpush1.bf16.msra.mxu0 0
      %328 = vmatprep.subr.bf16.mxu0 0
      %329 = vmatpush1.bf16.msra.mxu0 0
      %330 = vmatprep.subr.bf16.mxu0 0
      %331 = vmatpush1.bf16.msra.mxu0 0
      %332 = vmatprep.subr.bf16.mxu0 0
      %333 = vmatpush1.bf16.msra.mxu0 0
      %334 = vmatprep.subr.bf16.mxu0 0
      %335 = vmatpush1.bf16.msra.mxu0 0
      %336 = vmatprep.subr.bf16.mxu0 0
      %337 = vmatpush1.bf16.msra.mxu0 0
      %338 = vmatprep.subr.bf16.mxu0 0
      %339 = vmatpush1.bf16.msra.mxu0 0
      %340 = vmatprep.subr.bf16.mxu0 0
      %341 = vmatpush1.bf16.msra.mxu0 0
      %342 = vmatprep.mubr.bf16.mxu0 0
      %343 = vmatmul.mubr.bf16.gmra.mrb[0].mxu0 %v305
      %v344 = vpop.f32.mrb[0].mxu0
      %v345 = vadd.f32 0.0, %v344
      %v346 = vpop.f32.mrb[0].mxu0
      %v347 = vpop.f32.mrb[0].mxu0
      %v348 = vpop.f32.mrb[0].mxu0
      %349 = vdwg.mxu0
      %351 = vrot.lane.b32.xlu0 %v345, 64
      %v352 = vpop.permute.xlu0 %351
      %v354 = vsel %vm126, %v230, %v352
      %355 = vst [vmem:[%s114] sm:$0xff] %v354
      %p356 = scmp.lt.s32.totalorder %s12, 1
      %s357 = scalar_select %p356, %s12, 1
      %s358 = smul.addr %s357, 8
      %s359 = scalar_lea.vmem %s1, %s358
      // Predicated region
      $region25: #{_lambda_.34} parent=23 // pred_check
        %p360 = pneg %p56
      $region26: #{_lambda_.34} parent=23 // pred_check_branch
        %362 = sbr.rel (%p360) target = $region28
      $region27: #{_lambda_.34} parent=23 // pred_region
        _
      $region28: #{_lambda_.34} parent=23 // pred_fallthru
        _
    $region24: #{_lambda_.34} parent=5 // pred_fallthru
      _
    %p363 = scmp.le.s32.totalorder 2, %s7
    // Predicated region
    $region29: #{_lambda_.34} parent=5 // pred_check
      %p364 = pneg %p363
    $region30: #{_lambda_.34} parent=5 // pred_check_branch
      %366 = sbr.rel (%p364) target = $region32
    $region31: #{_lambda_.34} parent=5 // pred_region
      %s367 = ssub.s32 %s7, 2
      // Predicated region
      $region33: #{_lambda_.34} parent=31 // pred_check
        %p368 = pneg %p62
      $region34: #{_lambda_.34} parent=31 // pred_check_branch
        %370 = sbr.rel (%p368) target = $region36
      $region35: #{_lambda_.34} parent=31 // pred_region
        %p371 = scmp.lt.s32.totalorder %s13, 1
        %s372 = scalar_select %p371, %s13, 1
        %s373 = smul.addr %s372, 8
        %s374 = scalar_lea.vmem %s1, %s373
      $region36: #{_lambda_.34} parent=31 // pred_fallthru
        _
    $region32: #{_lambda_.34} parent=5 // pred_fallthru
      _
  $region6: #{_lambda_.34} parent=0 // loop_footer
    %s11 = sadd.s32 1, %s7
  $region7: #{_lambda_.34} parent=0 // loop_footer_branch
    %6 = sbr.rel target = $region3
  $region8: #{_lambda_.34} parent=0 // loop_exit
    _

// kernel: _lambda_.33
$region0: #{_lambda_.33}
  #allocation0 [shape = 'u32[]', space=smem, size = 0x4, offset = 0x4, fixed_abs, tag = 'smem constant byte address 0x4 - core index']
  #allocation1 [shape = 'u32[144,128]{1,0:T(1,128)}', space=vmem, size = 0x12000, scoped, tag = 'internal scratch']
  #allocation2 [shape = 'bf16[16,128]{1,0:T(16,128)(2,1)}', space=vmem, size = 0x1000, scoped, tag = 'scratch operand']
  %s0 = inlined_call_operand.vmem [shape: f32[16,128], index: 0, kind: input, shape index: {}]
  %s1 = inlined_call_operand.vmem [shape: f32[1,128], index: 1, kind: input, shape index: {}]
  %s2 = inlined_call_operand.vmem [shape: f32[1,128], index: 2, kind: input, shape index: {}]
  %s3 = inlined_call_operand.vmem [shape: bf16[128,384], index: 3, kind: input, shape index: {}]
  %s4 = inlined_call_operand.vmem [shape: f32[1,384], index: 4, kind: input, shape index: {}]
  %s5 = inlined_call_operand.vmem [shape: f32[16,384], index: 5, kind: output, shape index: {0}]
  %s6 = inlined_call_operand.vmem [shape: f32[16,128], index: 6, kind: output, shape index: {1}]
  %7 = xla_tuple %s5, %s6
  %s8 = sld [smem:[#allocation0]]
  $region140: #{_lambda_.33} parent=0
    _
  %s10 = ssub.s32 1, %s8
  %s11 = scalar_select 0, %s10, %s8
  $region1: #{_lambda_.33} parent=0
    #allocation3 [shape = 'u8[65536]{0}', space=vmem, size = 0x10000, scoped, tag = 'input window, operand 3']
    #allocation4 [shape = 'u8[16384]{0}', space=vmem, size = 0x4000, scoped, tag = 'output window, operand 0']
    loop: start=0, step=1, limit=5
    $region2: #{_lambda_.33} parent=1 // loop_pre_header
      _
    $region3: #{_lambda_.33} parent=1 // loop_header
      %s13 = sphi 0, %s17
      %p14 = scmp.ge.s32.totalorder %s13, 5
      %s20 = sphi 0, %s32
      %s21 = sphi 0, %s28
      %s22 = sphi 0, %s20
      %s23 = sphi 0, %s21
      %s24 = sphi 0, %s22
      %s25 = sphi 0, %s23
      %s35 = sphi 0, %s37
      %s38 = sphi 0, %s35
      %s39 = sphi 0, %s38
      %s55 = sphi 0, %s39
      %s59 = sphi 0, %s59
      %s61 = sphi 0, %s59
      %s62 = sphi 0, %s61
      %s76 = sphi 0, %s62
      %s80 = sphi 0, %s80
      %s82 = sphi 0, %s80
      %s83 = sphi 0, %s82
      %s97 = sphi 0, %s83
      %s103 = sphi 0, %s105
      %s106 = sphi 0, %s103
      %s107 = sphi 0, %s106
      %s123 = sphi 0, %s107
      %s129 = sphi 0, %s131
      %s132 = sphi 0, %s129
      %s133 = sphi 0, %s132
      %s149 = sphi 0, %s133
      %s157 = sphi 0, %s159
      %s160 = sphi 0, %s157
      %s161 = sphi 0, %s160
      %s177 = sphi 0, %s161
      %s183 = sphi 0, %s185
      %s186 = sphi 0, %s183
      %s187 = sphi 0, %s186
      %s203 = sphi 0, %s187
    $region4: #{_lambda_.33} parent=1 // loop_header_branch
      %16 = sbr.rel (%p14) target = $region8
    $region5: #{_lambda_.33} parent=1 // loop_body
      %s18 = ssub.s32 %s13, 1
      %s19 = ssub.s32 %s13, 2
      %s26 = sadd.s32 1, %s21
      %p27 = scmp.ge.s32.totalorder %s26, 3
      %s28 = scalar_select %p27, 0, %s26
      %s29 = sadd.s32 1, %s20
      %s30 = scalar_select %p27, %s29, %s20
      %p31 = scmp.ge.s32.totalorder %s30, 1
      %s32 = scalar_select %p31, 0, %s30
      %s33 = ssub.s32 %s20, %s32
      %p34 = scmp.eq.s32.totalorder %s33, 0
      %s36 = sadd.s32 %s35, 1
      %s37 = scalar_select %p34, %s35, %s36
      %p40 = pneg %p34
      %p41 = scmp.eq.s32.totalorder %s13, 2
      %p42 = por %p40, %p41
      %p43 = scmp.ne.s32.totalorder %s35, %s38
      %p44 = scmp.eq.s32.totalorder %s13, 0
      %p45 = por %p43, %p44
      %p46 = scmp.ne.s32.totalorder %s35, %s38
      %p47 = scmp.eq.s32.totalorder %s18, 2
      %p48 = por %p46, %p47
      %p49 = scmp.ne.s32.totalorder %s38, %s39
      %p50 = scmp.eq.s32.totalorder %s18, 0
      %p51 = por %p49, %p50
      %p52 = scmp.ne.s32.totalorder %s38, %s39
      %p53 = scmp.eq.s32.totalorder %s19, 2
      %p54 = por %p52, %p53
      %p56 = scmp.ne.s32.totalorder %s39, %s55
      %p57 = scmp.eq.s32.totalorder %s19, 0
      %p58 = por %p56, %p57
      %s60 = sadd.s32 %s59, 1
      %p63 = scmp.eq.s32.totalorder %s13, 2
      %p64 = scmp.ne.s32.totalorder %s59, %s61
      %p65 = scmp.eq.s32.totalorder %s13, 0
      %p66 = por %p64, %p65
      %p67 = scmp.ne.s32.totalorder %s59, %s61
      %p68 = scmp.eq.s32.totalorder %s18, 2
      %p69 = por %p67, %p68
      %p70 = scmp.ne.s32.totalorder %s61, %s62
      %p71 = scmp.eq.s32.totalorder %s18, 0
      %p72 = por %p70, %p71
      %p73 = scmp.ne.s32.totalorder %s61, %s62
      %p74 = scmp.eq.s32.totalorder %s19, 2
      %p75 = por %p73, %p74
      %p77 = scmp.ne.s32.totalorder %s62, %s76
      %p78 = scmp.eq.s32.totalorder %s19, 0
      %p79 = por %p77, %p78
      %s81 = sadd.s32 %s80, 1
      %p84 = scmp.eq.s32.totalorder %s13, 2
      %p85 = scmp.ne.s32.totalorder %s80, %s82
      %p86 = scmp.eq.s32.totalorder %s13, 0
      %p87 = por %p85, %p86
      %p88 = scmp.ne.s32.totalorder %s80, %s82
      %p89 = scmp.eq.s32.totalorder %s18, 2
      %p90 = por %p88, %p89
      %p91 = scmp.ne.s32.totalorder %s82, %s83
      %p92 = scmp.eq.s32.totalorder %s18, 0
      %p93 = por %p91, %p92
      %p94 = scmp.ne.s32.totalorder %s82, %s83
      %p95 = scmp.eq.s32.totalorder %s19, 2
      %p96 = por %p94, %p95
      %p98 = scmp.ne.s32.totalorder %s83, %s97
      %p99 = scmp.eq.s32.totalorder %s19, 0
      %p100 = por %p98, %p99
      %s101 = ssub.s32 %s21, %s28
      %p102 = scmp.eq.s32.totalorder %s101, 0
      %s104 = sadd.s32 %s103, 1
      %s105 = scalar_select %p102, %s103, %s104
      %p108 = pneg %p102
      %p109 = scmp.eq.s32.totalorder %s13, 2
      %p110 = por %p108, %p109
      %p111 = scmp.ne.s32.totalorder %s103, %s106
      %p112 = scmp.eq.s32.totalorder %s13, 0
      %p113 = por %p111, %p112
      %p114 = scmp.ne.s32.totalorder %s103, %s106
      %p115 = scmp.eq.s32.totalorder %s18, 2
      %p116 = por %p114, %p115
      %p117 = scmp.ne.s32.totalorder %s106, %s107
      %p118 = scmp.eq.s32.totalorder %s18, 0
      %p119 = por %p117, %p118
      %p120 = scmp.ne.s32.totalorder %s106, %s107
      %p121 = scmp.eq.s32.totalorder %s19, 2
      %p122 = por %p120, %p121
      %p124 = scmp.ne.s32.totalorder %s107, %s123
      %p125 = scmp.eq.s32.totalorder %s19, 0
      %p126 = por %p124, %p125
      %s127 = ssub.s32 %s21, %s28
      %p128 = scmp.eq.s32.totalorder %s127, 0
      %s130 = sadd.s32 %s129, 1
      %s131 = scalar_select %p128, %s129, %s130
      %p134 = pneg %p128
      %p135 = scmp.eq.s32.totalorder %s13, 2
      %p136 = por %p134, %p135
      %p137 = scmp.ne.s32.totalorder %s129, %s132
      %p138 = scmp.eq.s32.totalorder %s13, 0
      %p139 = por %p137, %p138
      %p140 = scmp.ne.s32.totalorder %s129, %s132
      %p141 = scmp.eq.s32.totalorder %s18, 2
      %p142 = por %p140, %p141
      %p143 = scmp.ne.s32.totalorder %s132, %s133
      %p144 = scmp.eq.s32.totalorder %s18, 0
      %p145 = por %p143, %p144
      %p146 = scmp.ne.s32.totalorder %s132, %s133
      %p147 = scmp.eq.s32.totalorder %s19, 2
      %p148 = por %p146, %p147
      %p150 = scmp.ne.s32.totalorder %s133, %s149
      %p151 = scmp.eq.s32.totalorder %s19, 0
      %p152 = por %p150, %p151
      %s153 = ssub.s32 %s20, %s32
      %s154 = ssub.s32 %s21, %s28
      %s155 = sor.u32 %s153, %s154
      %p156 = scmp.eq.s32.totalorder %s155, 0
      %s158 = sadd.s32 %s157, 1
      %s159 = scalar_select %p156, %s157, %s158
      %p162 = pneg %p156
      %p163 = scmp.eq.s32.totalorder %s13, 2
      %p164 = por %p162, %p163
      %p165 = scmp.ne.s32.totalorder %s157, %s160
      %p166 = scmp.eq.s32.totalorder %s13, 0
      %p167 = por %p165, %p166
      %p168 = scmp.ne.s32.totalorder %s157, %s160
      %p169 = scmp.eq.s32.totalorder %s18, 2
      %p170 = por %p168, %p169
      %p171 = scmp.ne.s32.totalorder %s160, %s161
      %p172 = scmp.eq.s32.totalorder %s18, 0
      %p173 = por %p171, %p172
      %p174 = scmp.ne.s32.totalorder %s160, %s161
      %p175 = scmp.eq.s32.totalorder %s19, 2
      %p176 = por %p174, %p175
      %p178 = scmp.ne.s32.totalorder %s161, %s177
      %p179 = scmp.eq.s32.totalorder %s19, 0
      %p180 = por %p178, %p179
      %s181 = ssub.s32 %s20, %s32
      %p182 = scmp.eq.s32.totalorder %s181, 0
      %s184 = sadd.s32 %s183, 1
      %s185 = scalar_select %p182, %s183, %s184
      %p188 = pneg %p182
      %p189 = scmp.eq.s32.totalorder %s13, 2
      %p190 = por %p188, %p189
      %p191 = scmp.ne.s32.totalorder %s183, %s186
      %p192 = scmp.eq.s32.totalorder %s13, 0
      %p193 = por %p191, %p192
      %p194 = scmp.ne.s32.totalorder %s183, %s186
      %p195 = scmp.eq.s32.totalorder %s18, 2
      %p196 = por %p194, %p195
      %p197 = scmp.ne.s32.totalorder %s186, %s187
      %p198 = scmp.eq.s32.totalorder %s18, 0
      %p199 = por %p197, %p198
      %p200 = scmp.ne.s32.totalorder %s186, %s187
      %p201 = scmp.eq.s32.totalorder %s19, 2
      %p202 = por %p200, %p201
      %p204 = scmp.ne.s32.totalorder %s187, %s203
      %p205 = scmp.eq.s32.totalorder %s19, 0
      %p206 = por %p204, %p205
      %p207 = scmp.le.s32.totalorder 1, %s13
      %p208 = scmp.lt.s32.totalorder %s13, 4
      %p209 = pnand %p207, %p208
      %p210 = pneg %p209
      // Predicated region
      $region9: #{_lambda_.33} parent=5 // pred_check
        _
      $region10: #{_lambda_.33} parent=5 // pred_check_branch
        %212 = sbr.rel (%p209) target = $region12
      $region11: #{_lambda_.33} parent=5 // pred_region
        %s213 = ssub.s32 %s13, 1
        // Predicated region
        $region13: #{_lambda_.33} parent=11 // pred_check
          %p214 = pneg %p51
        $region14: #{_lambda_.33} parent=11 // pred_check_branch
          %216 = sbr.rel (%p214) target = $region16
        $region15: #{_lambda_.33} parent=11 // pred_region
          %s217 = smul.u32 2, %s22
          %p218 = scmp.lt.s32.totalorder %s217, 1
          %s219 = scalar_select %p218, %s217, 1
          %s220 = smul.addr %s219, 8
          %s221 = scalar_lea.vmem %s0, %s220
          %s222 = smul.u32 2, %s22
        $region16: #{_lambda_.33} parent=11 // pred_fallthru
          _
        // Predicated region
        $region17: #{_lambda_.33} parent=11 // pred_check
          %p223 = pneg %p72
        $region18: #{_lambda_.33} parent=11 // pred_check_branch
          %225 = sbr.rel (%p223) target = $region20
        $region19: #{_lambda_.33} parent=11 // pred_region
          _
        $region20: #{_lambda_.33} parent=11 // pred_fallthru
          _
        // Predicated region
        $region21: #{_lambda_.33} parent=11 // pred_check
          %p226 = pneg %p93
        $region22: #{_lambda_.33} parent=11 // pred_check_branch
          %228 = sbr.rel (%p226) target = $region24
        $region23: #{_lambda_.33} parent=11 // pred_region
          _
        $region24: #{_lambda_.33} parent=11 // pred_fallthru
          _
      $region12: #{_lambda_.33} parent=5 // pred_fallthru
        _
      %p229 = scmp.lt.s32.totalorder %s13, 3
      // Predicated region
      $region25: #{_lambda_.33} parent=5 // pred_check
        %p230 = pneg %p229
      $region26: #{_lambda_.33} parent=5 // pred_check_branch
        %232 = sbr.rel (%p230) target = $region28
      $region27: #{_lambda_.33} parent=5 // pred_region
        // Predicated region
        $region29: #{_lambda_.33} parent=27 // pred_check
          %p233 = pneg %p113
        $region30: #{_lambda_.33} parent=27 // pred_check_branch
          %235 = sbr.rel (%p233) target = $region32
        $region31: #{_lambda_.33} parent=27 // pred_region
          %s236 = sand.u32 %s103, 1
          %s237 = sand.u32 %s103, 1
          %s238 = smul.addr %s237, 64
          %s239 = scalar_lea.vmem [#allocation3], %s238
          %s240 = smul.addr %s21, 4
          %s241 = scalar_lea.vmem %s3, %s240
          // Predicated region
          $region33: #{_lambda_.33} parent=31 // pred_check
            _
          $region34: #{_lambda_.33} parent=31 // pred_check_branch
            %243 = sbr.rel (0) target = $region36
          $region35: #{_lambda_.33} parent=31 // pred_region
            // Predicated region
            $region37: #{_lambda_.33} parent=35 // pred_check
              _
            $region38: #{_lambda_.33} parent=35 // pred_check_branch
              %245 = sbr.rel target = $region40
            $region39: #{_lambda_.33} parent=35 // pred_region
              // Predicated region
              $region52: #{_lambda_.33} parent=39 // pred_check
                _
              $region53: #{_lambda_.33} parent=39 // pred_check_branch
                %290 = sbr.rel (0) target = $region55
              $region54: #{_lambda_.33} parent=39 // pred_region
                loop: start=0, step=1, limit=1
                $region56: #{_lambda_.33} parent=54 // loop_pre_header
                  _
                $region57: #{_lambda_.33} parent=54 // loop_header
                  %s292 = sphi 0, %s296
                  %p293 = scmp.ge.s32.totalorder %s292, 1
                  %s297 = sphi %s241, %s241
                  %s298 = sphi %s239, %s239
                $region58: #{_lambda_.33} parent=54 // loop_header_branch
                  %295 = sbr.rel (%p293) target = $region62
                $region59: #{_lambda_.33} parent=54 // loop_body
                  _
                $region60: #{_lambda_.33} parent=54 // loop_footer
                  %s296 = sadd.s32 1, %s292
                $region61: #{_lambda_.33} parent=54 // loop_footer_branch
                  %291 = sbr.rel target = $region57
                $region62: #{_lambda_.33} parent=54 // loop_exit
                  _
                loop: start=0, step=1, limit=1
                $region63: #{_lambda_.33} parent=54 // loop_pre_header
                  _
                $region64: #{_lambda_.33} parent=54 // loop_header
                  %s301 = sphi 0, %s305
                  %p302 = scmp.ge.s32.totalorder %s301, 1
                  %s306 = sphi %s241, %s241
                  %s307 = sphi %s239, %s239
                $region65: #{_lambda_.33} parent=54 // loop_header_branch
                  %304 = sbr.rel (%p302) target = $region69
                $region66: #{_lambda_.33} parent=54 // loop_body
                  %v308 = vld [vmem:[%s306] sm:$0xf]
                  %309 = vst [vmem:[%s307] sm:$0xf] %v308
                  %v310 = vld [vmem:[%s306 + $0xc] sm:$0xf]
                  %311 = vst [vmem:[%s307 + $0x4] sm:$0xf] %v310
                  %v312 = vld [vmem:[%s306 + $0x18] sm:$0xf]
                  %313 = vst [vmem:[%s307 + $0x8] sm:$0xf] %v312
                  %v314 = vld [vmem:[%s306 + $0x24] sm:$0xf]
                  %315 = vst [vmem:[%s307 + $0xc] sm:$0xf] %v314
                  %v316 = vld [vmem:[%s306 + $0x30] sm:$0xf]
                  %317 = vst [vmem:[%s307 + $0x10] sm:$0xf] %v316
                  %v318 = vld [vmem:[%s306 + $0x3c] sm:$0xf]
                  %319 = vst [vmem:[%s307 + $0x14] sm:$0xf] %v318
                  %v320 = vld [vmem:[%s306 + $0x48] sm:$0xf]
                  %321 = vst [vmem:[%s307 + $0x18] sm:$0xf] %v320
                  %v322 = vld [vmem:[%s306 + $0x54] sm:$0xf]
                  %323 = vst [vmem:[%s307 + $0x1c] sm:$0xf] %v322
                  %v324 = vld [vmem:[%s306 + $0x60] sm:$0xf]
                  %325 = vst [vmem:[%s307 + $0x20] sm:$0xf] %v324
                  %v326 = vld [vmem:[%s306 + $0x6c] sm:$0xf]
                  %327 = vst [vmem:[%s307 + $0x24] sm:$0xf] %v326
                  %v328 = vld [vmem:[%s306 + $0x78] sm:$0xf]
                  %329 = vst [vmem:[%s307 + $0x28] sm:$0xf] %v328
                  %v330 = vld [vmem:[%s306 + $0x84] sm:$0xf]
                  %331 = vst [vmem:[%s307 + $0x2c] sm:$0xf] %v330
                  %v332 = vld [vmem:[%s306 + $0x90] sm:$0xf]
                  %333 = vst [vmem:[%s307 + $0x30] sm:$0xf] %v332
                  %v334 = vld [vmem:[%s306 + $0x9c] sm:$0xf]
                  %335 = vst [vmem:[%s307 + $0x34] sm:$0xf] %v334
                  %v336 = vld [vmem:[%s306 + $0xa8] sm:$0xf]
                  %337 = vst [vmem:[%s307 + $0x38] sm:$0xf] %v336
                  %v338 = vld [vmem:[%s306 + $0xb4] sm:$0xf]
                  %339 = vst [vmem:[%s307 + $0x3c] sm:$0xf] %v338
                $region67: #{_lambda_.33} parent=54 // loop_footer
                  %s305 = sadd.s32 1, %s301
                $region68: #{_lambda_.33} parent=54 // loop_footer_branch
                  %300 = sbr.rel target = $region64
                $region69: #{_lambda_.33} parent=54 // loop_exit
                  _
              $region55: #{_lambda_.33} parent=39 // pred_fallthru
                _
            $region40: #{_lambda_.33} parent=35 // pred_fallthru
              _
            // Predicated region
            $region41: #{_lambda_.33} parent=35 // pred_check
              _
            $region42: #{_lambda_.33} parent=35 // pred_check_branch
              %247 = sbr.rel (0) target = $region44
            $region43: #{_lambda_.33} parent=35 // pred_region
              loop: start=0, step=1, limit=1
              $region45: #{_lambda_.33} parent=43 // loop_pre_header
                _
              $region46: #{_lambda_.33} parent=43 // loop_header
                %s250 = sphi 0, %s254
                %p251 = scmp.ge.s32.totalorder %s250, 1
                %s255 = sphi %s241, %s241
                %s256 = sphi %s239, %s239
              $region47: #{_lambda_.33} parent=43 // loop_header_branch
                %253 = sbr.rel (%p251) target = $region51
              $region48: #{_lambda_.33} parent=43 // loop_body
                %v257 = vld [vmem:[%s255] sm:$0xf]
                %258 = vst [vmem:[%s256] sm:$0xf] %v257
                %v259 = vld [vmem:[%s255 + $0xc] sm:$0xf]
                %260 = vst [vmem:[%s256 + $0x4] sm:$0xf] %v259
                %v261 = vld [vmem:[%s255 + $0x18] sm:$0xf]
                %262 = vst [vmem:[%s256 + $0x8] sm:$0xf] %v261
                %v263 = vld [vmem:[%s255 + $0x24] sm:$0xf]
                %264 = vst [vmem:[%s256 + $0xc] sm:$0xf] %v263
                %v265 = vld [vmem:[%s255 + $0x30] sm:$0xf]
                %266 = vst [vmem:[%s256 + $0x10] sm:$0xf] %v265
                %v267 = vld [vmem:[%s255 + $0x3c] sm:$0xf]
                %268 = vst [vmem:[%s256 + $0x14] sm:$0xf] %v267
                %v269 = vld [vmem:[%s255 + $0x48] sm:$0xf]
                %270 = vst [vmem:[%s256 + $0x18] sm:$0xf] %v269
                %v271 = vld [vmem:[%s255 + $0x54] sm:$0xf]
                %272 = vst [vmem:[%s256 + $0x1c] sm:$0xf] %v271
                %v273 = vld [vmem:[%s255 + $0x60] sm:$0xf]
                %274 = vst [vmem:[%s256 + $0x20] sm:$0xf] %v273
                %v275 = vld [vmem:[%s255 + $0x6c] sm:$0xf]
                %276 = vst [vmem:[%s256 + $0x24] sm:$0xf] %v275
                %v277 = vld [vmem:[%s255 + $0x78] sm:$0xf]
                %278 = vst [vmem:[%s256 + $0x28] sm:$0xf] %v277
                %v279 = vld [vmem:[%s255 + $0x84] sm:$0xf]
                %280 = vst [vmem:[%s256 + $0x2c] sm:$0xf] %v279
                %v281 = vld [vmem:[%s255 + $0x90] sm:$0xf]
                %282 = vst [vmem:[%s256 + $0x30] sm:$0xf] %v281
                %v283 = vld [vmem:[%s255 + $0x9c] sm:$0xf]
                %284 = vst [vmem:[%s256 + $0x34] sm:$0xf] %v283
                %v285 = vld [vmem:[%s255 + $0xa8] sm:$0xf]
                %286 = vst [vmem:[%s256 + $0x38] sm:$0xf] %v285
                %v287 = vld [vmem:[%s255 + $0xb4] sm:$0xf]
                %288 = vst [vmem:[%s256 + $0x3c] sm:$0xf] %v287
              $region49: #{_lambda_.33} parent=43 // loop_footer
                %s254 = sadd.s32 1, %s250
              $region50: #{_lambda_.33} parent=43 // loop_footer_branch
                %249 = sbr.rel target = $region46
              $region51: #{_lambda_.33} parent=43 // loop_exit
                _
            $region44: #{_lambda_.33} parent=35 // pred_fallthru
              _
          $region36: #{_lambda_.33} parent=31 // pred_fallthru
            _
          %340 = vnop
        $region32: #{_lambda_.33} parent=27 // pred_fallthru
          _
        // Predicated region
        $region70: #{_lambda_.33} parent=27 // pred_check
          %p341 = pneg %p139
        $region71: #{_lambda_.33} parent=27 // pred_check_branch
          %343 = sbr.rel (%p341) target = $region73
        $region72: #{_lambda_.33} parent=27 // pred_region
          %p344 = scmp.lt.s32.totalorder %s21, 2
          %s345 = scalar_select %p344, %s21, 2
          %s346 = scalar_lea.vmem %s4, %s345
        $region73: #{_lambda_.33} parent=27 // pred_fallthru
          _
      $region28: #{_lambda_.33} parent=5 // pred_fallthru
        _
      %p347 = scmp.le.s32.totalorder 1, %s13
      %p348 = scmp.lt.s32.totalorder %s13, 4
      %p349 = pnand %p347, %p348
      %p350 = pneg %p349
      // Predicated region
      $region74: #{_lambda_.33} parent=5 // pred_check
        _
      $region75: #{_lambda_.33} parent=5 // pred_check_branch
        %352 = sbr.rel (%p349) target = $region77
      $region76: #{_lambda_.33} parent=5 // pred_region
        %s353 = ssub.s32 %s13, 1
        %s354 = sand.u32 %s106, 1
        %s355 = sand.u32 %s106, 1
        %s356 = smul.addr %s355, 64
        %s357 = scalar_lea.vmem [#allocation3], %s356
        // Predicated region
        $region78: #{_lambda_.33} parent=76 // pred_check
          %p358 = pneg %p119
        $region79: #{_lambda_.33} parent=76 // pred_check_branch
          %360 = sbr.rel (%p358) target = $region81
        $region80: #{_lambda_.33} parent=76 // pred_region
          _
        $region81: #{_lambda_.33} parent=76 // pred_fallthru
          _
        %s361 = smul.u32 2, %s22
        %p362 = scmp.lt.s32.totalorder %s361, 1
        %s363 = scalar_select %p362, %s361, 1
        %s364 = smul.addr %s363, 8
        %s365 = scalar_lea.vmem %s0, %s364
        %p366 = pneg %p51
        %p367 = pneg %p48
        %p368 = pneg %p72
        %p369 = pneg %p69
        %p370 = pneg %p93
        %p371 = pneg %p90
        %s372 = sand.u32 %s106, 1
        %s373 = sand.u32 %s106, 1
        %s374 = smul.addr %s373, 64
        %s375 = scalar_lea.vmem [#allocation3], %s374
        %p376 = pneg %p119
        %p377 = pneg %p116
        %p378 = scmp.lt.s32.totalorder %s23, 2
        %s379 = scalar_select %p378, %s23, 2
        %s380 = scalar_lea.vmem %s4, %s379
        %p381 = pneg %p145
        %p382 = pneg %p142
        %p383 = pneg %p173
        %p384 = pneg %p170
        %s385 = sand.u32 %s160, 1
        %s386 = sand.u32 %s160, 1
        %s387 = smul.addr %s386, 16
        %s388 = scalar_lea.vmem [#allocation4], %s387
        %p389 = pneg %p199
        %p390 = pneg %p196
        %s391 = smul.u32 2, %s22
        %p392 = scmp.lt.s32.totalorder %s391, 1
        %s393 = scalar_select %p392, %s391, 1
        %s394 = smul.addr %s393, 8
        %s395 = scalar_lea.vmem %s6, %s394
        %s396 = smul.u32 2, %s22
        %p397 = scmp.lt.s32.totalorder %s396, 1
        %s398 = scalar_select %p397, %s396, 1
        %s399 = smul.addr %s398, 8
        %s400 = scalar_lea.vmem %s0, %s399
        %s401 = smul.u32 2, %s22
        %p402 = scmp.lt.s32.totalorder %s23, 2
        %s403 = scalar_select %p402, %s23, 2
        %s404 = scalar_lea.vmem %s4, %s403
        %s405 = smul.u32 2, %s22
        %s406 = smul.u32 2, %s22
        %p407 = scmp.lt.s32.totalorder %s406, 1
        %s408 = scalar_select %p407, %s406, 1
        %s409 = smul.addr %s408, 8
        %s410 = scalar_lea.vmem %s6, %s409
        %s411 = smul.u32 2, %s22
        %p413 = scmp.eq.s32.totalorder %s23, 0
        // Predicated region
        $region82: #{_lambda_.33} parent=76 // pred_check
          %p414 = pneg %p413
        $region83: #{_lambda_.33} parent=76 // pred_check_branch
          %416 = sbr.rel (%p414) target = $region85
        $region84: #{_lambda_.33} parent=76 // pred_region
          %v417 = vld [vmem:[%s400] sm:$0xff]
          %v418 = vld [vmem:[%s400 + $0x8] sm:$0xff]
          %419 = vadd.xlane.f32.xlu0 %v417
          %v420 = vpop.xlane.xlu0 %419
          %421 = vadd.xlane.f32.xlu0 %v418
          %v422 = vpop.xlane.xlu0 %421
          %v423 = vrcp.pop 128.0
          %v424 = vmul.f32 %v420, %v423
          %v425 = vmul.f32 %v422, %v423
          %v426 = vsub.f32 %v417, %v424
          %v427 = vsub.f32 %v418, %v425
          %v428 = vmul.f32 %v426, %v426
          %v429 = vmul.f32 %v427, %v427
          %430 = vadd.xlane.f32.xlu0 %v428
          %v431 = vpop.xlane.xlu0 %430
          %432 = vadd.xlane.f32.xlu0 %v429
          %v433 = vpop.xlane.xlu0 %432
          %v434 = vmul.f32 %v431, %v423
          %v435 = vmul.f32 %v433, %v423
          %v436 = vadd.f32 %v434, 1e-12
          %v437 = vadd.f32 %v435, 1e-12
          %v438 = vrsqrt.pop %v436
          %v439 = vrsqrt.pop %v437
          %v440 = vmul.f32 %v426, %v438
          %v441 = vmul.f32 %v427, %v439
          %v442 = vld [vmem:[%s1] sm:$0x1]
          %v444 = vlaneseq
          %v445 = vshrl.u32 %v444, 7
          %v446 = vsub.s32 0, %v445
          %v447 = vrot.slane %v442, %v446
          %v449 = vmul.f32 %v440, %v447
          %v450 = vmul.f32 %v441, %v447
          %v451 = vld [vmem:[%s2] sm:$0x1]
          %v453 = vlaneseq
          %v454 = vshrl.u32 %v453, 7
          %v455 = vsub.s32 0, %v454
          %v456 = vrot.slane %v451, %v455
          %v458 = vadd.f32 %v449, %v456
          %v459 = vadd.f32 %v450, %v456
          %460 = vst [vmem:[%s410] sm:$0xff] %v458
          %461 = vst [vmem:[%s410 + $0x8] sm:$0xff] %v459
          %v462 = vpack.c.bf16 %v459, %v458
          %463 = vst [vmem:[#allocation2] sm:$0xff] %v462
        $region85: #{_lambda_.33} parent=76 // pred_fallthru
          _
        %v464 = vld [vmem:[#allocation2] sm:$0xff]
        %v465 = vld [vmem:[%s357] sm:$0xf]
        %v466 = vld [vmem:[%s357 + $0x4] sm:$0xf]
        %v467 = vld [vmem:[%s357 + $0x8] sm:$0xf]
        %v468 = vld [vmem:[%s357 + $0xc] sm:$0xf]
        %v469 = vld [vmem:[%s357 + $0x10] sm:$0xf]
        %v470 = vld [vmem:[%s357 + $0x14] sm:$0xf]
        %v471 = vld [vmem:[%s357 + $0x18] sm:$0xf]
        %v472 = vld [vmem:[%s357 + $0x1c] sm:$0xf]
        %v473 = vld [vmem:[%s357 + $0x20] sm:$0xf]
        %v474 = vld [vmem:[%s357 + $0x24] sm:$0xf]
        %v475 = vld [vmem:[%s357 + $0x28] sm:$0xf]
        %v476 = vld [vmem:[%s357 + $0x2c] sm:$0xf]
        %v477 = vld [vmem:[%s357 + $0x30] sm:$0xf]
        %v478 = vld [vmem:[%s357 + $0x34] sm:$0xf]
        %v479 = vld [vmem:[%s357 + $0x38] sm:$0xf]
        %v480 = vld [vmem:[%s357 + $0x3c] sm:$0xf]
        %v481 = vld [vmem:[%s404] sm:$0x1]
        %v483 = vlaneseq
        %v484 = vshrl.u32 %v483, 7
        %v485 = vsub.s32 0, %v484
        %v486 = vrot.slane %v481, %v485
        %v504 = vunpack.c.l.b16 %v465
        %v505 = vunpack.c.l.b16 %v466
        %v506 = vunpack.c.l.b16 %v467
        %v507 = vunpack.c.l.b16 %v468
        %v508 = vunpack.c.l.b16 %v469
        %v509 = vunpack.c.l.b16 %v470
        %v510 = vunpack.c.l.b16 %v471
        %v511 = vunpack.c.l.b16 %v472
        %v512 = vunpack.c.l.b16 %v473
        %v513 = vunpack.c.l.b16 %v474
        %v514 = vunpack.c.l.b16 %v475
        %v515 = vunpack.c.l.b16 %v476
        %v516 = vunpack.c.l.b16 %v477
        %v517 = vunpack.c.l.b16 %v478
        %v518 = vunpack.c.l.b16 %v479
        %v519 = vunpack.c.l.b16 %v480
        %v520 = vpack.c.b16 %v505, %v504
        %v521 = vpack.c.b16 %v507, %v506
        %v522 = vpack.c.b16 %v509, %v508
        %v523 = vpack.c.b16 %v511, %v510
        %v524 = vpack.c.b16 %v513, %v512
        %v525 = vpack.c.b16 %v515, %v514
        %v526 = vpack.c.b16 %v517, %v516
        %v527 = vpack.c.b16 %v519, %v518
        %536 = vmatprep.subr.bf16.mxu0 0
        %537 = vmatpush1.bf16.msra.mxu0 %v520
        %538 = vmatprep.subr.bf16.mxu0 0
        %539 = vmatpush1.bf16.msra.mxu0 %v521
        %540 = vmatprep.subr.bf16.mxu0 0
        %541 = vmatpush1.bf16.msra.mxu0 %v522
        %542 = vmatprep.subr.bf16.mxu0 0
        %543 = vmatpush1.bf16.msra.mxu0 %v523
        %544 = vmatprep.subr.bf16.mxu0 0
        %545 = vmatpush1.bf16.msra.mxu0 %v524
        %546 = vmatprep.subr.bf16.mxu0 0
        %547 = vmatpush1.bf16.msra.mxu0 %v525
        %548 = vmatprep.subr.bf16.mxu0 0
        %549 = vmatpush1.bf16.msra.mxu0 %v526
        %550 = vmatprep.subr.bf16.mxu0 0
        %551 = vmatpush1.bf16.msra.mxu0 %v527
        %552 = vmatprep.subr.bf16.mxu0 0
        %553 = vmatpush1.bf16.msra.mxu0 0
        %554 = vmatprep.subr.bf16.mxu0 0
        %555 = vmatpush1.bf16.msra.mxu0 0
        %556 = vmatprep.subr.bf16.mxu0 0
        %557 = vmatpush1.bf16.msra.mxu0 0
        %558 = vmatprep.subr.bf16.mxu0 0
        %559 = vmatpush1.bf16.msra.mxu0 0
        %560 = vmatprep.subr.bf16.mxu0 0
        %561 = vmatpush1.bf16.msra.mxu0 0
        %562 = vmatprep.subr.bf16.mxu0 0
        %563 = vmatpush1.bf16.msra.mxu0 0
        %564 = vmatprep.subr.bf16.mxu0 0
        %565 = vmatpush1.bf16.msra.mxu0 0
        %566 = vmatprep.subr.bf16.mxu0 0
        %567 = vmatpush1.bf16.msra.mxu0 0
        %568 = vmatprep.mubr.bf16.mxu0 0
        %569 = vmatmul.mubr.bf16.gmra.mrb[0].mxu0 %v464
        %v570 = vpop.f32.mrb[0].mxu0
        %v571 = vadd.f32 %v486, %v570
        %v572 = vpop.f32.mrb[0].mxu0
        %v573 = vpop.f32.mrb[0].mxu0
        %v574 = vadd.f32 %v486, %v573
        %v575 = vpop.f32.mrb[0].mxu0
        %576 = vdwg.mxu0
        %577 = vst [vmem:[%s388] sm:$0xff] %v571
        %578 = vst [vmem:[%s388 + $0x8] sm:$0xff] %v574
        %s579 = sand.u32 %s160, 1
        %s580 = sand.u32 %s160, 1
        %s581 = smul.addr %s580, 16
        %s582 = scalar_lea.vmem [#allocation4], %s581
        %s583 = smul.u32 2, %s22
        %p584 = scmp.lt.s32.totalorder %s583, 1
        %s585 = scalar_select %p584, %s583, 1
        %s586 = smul.addr %s585, 8
        %s587 = scalar_lea.vmem %s6, %s586
        // Predicated region
        $region86: #{_lambda_.33} parent=76 // pred_check
          %p588 = pneg %p170
        $region87: #{_lambda_.33} parent=76 // pred_check_branch
          %590 = sbr.rel (%p588) target = $region89
        $region88: #{_lambda_.33} parent=76 // pred_region
          %s591 = smul.u32 2, %s22
          %s592 = smul.addr %s591, 3
          %s593 = sadd.s32 %s23, %s592
          %s594 = smul.addr %s593, 8
          %s595 = scalar_lea.vmem %s5, %s594
          // Predicated region
          $region90: #{_lambda_.33} parent=88 // pred_check
            _
          $region91: #{_lambda_.33} parent=88 // pred_check_branch
            %597 = sbr.rel (0) target = $region93
          $region92: #{_lambda_.33} parent=88 // pred_region
            // Predicated region
            $region94: #{_lambda_.33} parent=92 // pred_check
              _
            $region95: #{_lambda_.33} parent=92 // pred_check_branch
              %599 = sbr.rel (0) target = $region97
            $region96: #{_lambda_.33} parent=92 // pred_region
              // Predicated region
              $region109: #{_lambda_.33} parent=96 // pred_check
                _
              $region110: #{_lambda_.33} parent=96 // pred_check_branch
                %616 = sbr.rel (0) target = $region112
              $region111: #{_lambda_.33} parent=96 // pred_region
                loop: start=0, step=1, limit=1
                $region113: #{_lambda_.33} parent=111 // loop_pre_header
                  _
                $region114: #{_lambda_.33} parent=111 // loop_header
                  %s618 = sphi 0, %s622
                  %p619 = scmp.ge.s32.totalorder %s618, 1
                  %s623 = sphi %s582, %s582
                  %s624 = sphi %s595, %s595
                $region115: #{_lambda_.33} parent=111 // loop_header_branch
                  %621 = sbr.rel (%p619) target = $region119
                $region116: #{_lambda_.33} parent=111 // loop_body
                  %v625 = vld [vmem:[%s623] sm:$0xff]
                  %626 = vst [vmem:[%s624] sm:$0xff] %v625
                  %v627 = vld [vmem:[%s623 + $0x8] sm:$0xff]
                  %628 = vst [vmem:[%s624 + $0x18] sm:$0xff] %v627
                $region117: #{_lambda_.33} parent=111 // loop_footer
                  %s622 = sadd.s32 1, %s618
                $region118: #{_lambda_.33} parent=111 // loop_footer_branch
                  %617 = sbr.rel target = $region114
                $region119: #{_lambda_.33} parent=111 // loop_exit
                  _
              $region112: #{_lambda_.33} parent=96 // pred_fallthru
                _
              // Predicated region
              $region120: #{_lambda_.33} parent=96 // pred_check
                _
              $region121: #{_lambda_.33} parent=96 // pred_check_branch
                %630 = sbr.rel target = $region123
              $region122: #{_lambda_.33} parent=96 // pred_region
                _
              $region123: #{_lambda_.33} parent=96 // pred_fallthru
                _
            $region97: #{_lambda_.33} parent=92 // pred_fallthru
              _
            // Predicated region
            $region98: #{_lambda_.33} parent=92 // pred_check
              _
            $region99: #{_lambda_.33} parent=92 // pred_check_branch
              %601 = sbr.rel target = $region101
            $region100: #{_lambda_.33} parent=92 // pred_region
              loop: start=0, step=1, limit=1
              $region102: #{_lambda_.33} parent=100 // loop_pre_header
                _
              $region103: #{_lambda_.33} parent=100 // loop_header
                %s604 = sphi 0, %s608
                %p605 = scmp.ge.s32.totalorder %s604, 1
                %s609 = sphi %s582, %s582
                %s610 = sphi %s595, %s595
              $region104: #{_lambda_.33} parent=100 // loop_header_branch
                %607 = sbr.rel (%p605) target = $region108
              $region105: #{_lambda_.33} parent=100 // loop_body
                %v611 = vld [vmem:[%s609] sm:$0xff]
                %612 = vst [vmem:[%s610] sm:$0xff] %v611
                %v613 = vld [vmem:[%s609 + $0x8] sm:$0xff]
                %614 = vst [vmem:[%s610 + $0x18] sm:$0xff] %v613
              $region106: #{_lambda_.33} parent=100 // loop_footer
                %s608 = sadd.s32 1, %s604
              $region107: #{_lambda_.33} parent=100 // loop_footer_branch
                %603 = sbr.rel target = $region103
              $region108: #{_lambda_.33} parent=100 // loop_exit
                _
            $region101: #{_lambda_.33} parent=92 // pred_fallthru
              _
          $region93: #{_lambda_.33} parent=88 // pred_fallthru
            _
          %631 = vnop
        $region89: #{_lambda_.33} parent=76 // pred_fallthru
          _
        // Predicated region
        $region124: #{_lambda_.33} parent=76 // pred_check
          %p632 = pneg %p196
        $region125: #{_lambda_.33} parent=76 // pred_check_branch
          %634 = sbr.rel (%p632) target = $region127
        $region126: #{_lambda_.33} parent=76 // pred_region
          %s635 = smul.u32 2, %s22
        $region127: #{_lambda_.33} parent=76 // pred_fallthru
          _
        // Predicated region
        $region128: #{_lambda_.33} parent=76 // pred_check
          %p636 = pneg %p196
        $region129: #{_lambda_.33} parent=76 // pred_check_branch
          %638 = sbr.rel (%p636) target = $region131
        $region130: #{_lambda_.33} parent=76 // pred_region
          %s639 = smul.u32 2, %s22
          %p640 = scmp.lt.s32.totalorder %s639, 1
          %s641 = scalar_select %p640, %s639, 1
          %s642 = smul.addr %s641, 8
          %s643 = scalar_lea.vmem %s6, %s642
        $region131: #{_lambda_.33} parent=76 // pred_fallthru
          _
      $region77: #{_lambda_.33} parent=5 // pred_fallthru
        _
      %p644 = scmp.le.s32.totalorder 2, %s13
      // Predicated region
      $region132: #{_lambda_.33} parent=5 // pred_check
        %p645 = pneg %p644
      $region133: #{_lambda_.33} parent=5 // pred_check_branch
        %647 = sbr.rel (%p645) target = $region135
      $region134: #{_lambda_.33} parent=5 // pred_region
        %s648 = ssub.s32 %s13, 2
        // Predicated region
        $region136: #{_lambda_.33} parent=134 // pred_check
          %p649 = pneg %p176
        $region137: #{_lambda_.33} parent=134 // pred_check_branch
          %651 = sbr.rel (%p649) target = $region139
        $region138: #{_lambda_.33} parent=134 // pred_region
          %s652 = sand.u32 %s161, 1
          %s653 = sand.u32 %s161, 1
          %s654 = smul.addr %s653, 16
          %s655 = scalar_lea.vmem [#allocation4], %s654
        $region139: #{_lambda_.33} parent=134 // pred_fallthru
          _
      $region135: #{_lambda_.33} parent=5 // pred_fallthru
        _
    $region6: #{_lambda_.33} parent=1 // loop_footer
      %s17 = sadd.s32 1, %s13
    $region7: #{_lambda_.33} parent=1 // loop_footer_branch
      %12 = sbr.rel target = $region3
    $region8: #{_lambda_.33} parent=1 // loop_exit
      _

// kernel: _lambda_.35
$region0: #{_lambda_.35}
  #allocation0 [shape = 'u32[]', space=smem, size = 0x4, offset = 0x4, fixed_abs, tag = 'smem constant byte address 0x4 - core index']
  #allocation1 [shape = 'u32[144,128]{1,0:T(1,128)}', space=vmem, size = 0x12000, scoped, tag = 'internal scratch']
  %s0 = inlined_call_operand.vmem [shape: f32[16,128], index: 0, kind: input, shape index: {}]
  %s1 = inlined_call_operand.vmem [shape: f32[16,128], index: 1, kind: input, shape index: {}]
  %s2 = inlined_call_operand.vmem [shape: bf16[128,128], index: 2, kind: input, shape index: {}]
  %s3 = inlined_call_operand.vmem [shape: f32[1,128], index: 3, kind: input, shape index: {}]
  %s4 = inlined_call_operand.vmem [shape: bf16[128,64], index: 4, kind: input, shape index: {}]
  %s5 = inlined_call_operand.vmem [shape: f32[1,64], index: 5, kind: input, shape index: {}]
  %s6 = inlined_call_operand.vmem [shape: bf16[64,128], index: 6, kind: input, shape index: {}]
  %s7 = inlined_call_operand.vmem [shape: f32[1,128], index: 7, kind: input, shape index: {}]
  %s8 = inlined_call_operand.vmem [shape: f32[16,128], index: 8, kind: output, shape index: {}]
  %s9 = sld [smem:[#allocation0]]
  $region42: #{_lambda_.35} parent=0
    _
  %s11 = ssub.s32 1, %s9
  %s12 = scalar_select 0, %s11, %s9
  // Predicated region
  $region2: #{_lambda_.35} parent=0 // pred_check
    _
  $region3: #{_lambda_.35} parent=0 // pred_check_branch
    %14 = sbr.rel (0) target = $region5
  $region4: #{_lambda_.35} parent=0 // pred_region
    _
  $region5: #{_lambda_.35} parent=0 // pred_fallthru
    _
  // Predicated region
  $region6: #{_lambda_.35} parent=0 // pred_check
    _
  $region7: #{_lambda_.35} parent=0 // pred_check_branch
    %16 = sbr.rel (0) target = $region9
  $region8: #{_lambda_.35} parent=0 // pred_region
    _
  $region9: #{_lambda_.35} parent=0 // pred_fallthru
    _
  // Predicated region
  $region10: #{_lambda_.35} parent=0 // pred_check
    _
  $region11: #{_lambda_.35} parent=0 // pred_check_branch
    %18 = sbr.rel (0) target = $region13
  $region12: #{_lambda_.35} parent=0 // pred_region
    _
  $region13: #{_lambda_.35} parent=0 // pred_fallthru
    _
  // Predicated region
  $region14: #{_lambda_.35} parent=0 // pred_check
    _
  $region15: #{_lambda_.35} parent=0 // pred_check_branch
    %20 = sbr.rel (0) target = $region17
  $region16: #{_lambda_.35} parent=0 // pred_region
    _
  $region17: #{_lambda_.35} parent=0 // pred_fallthru
    _
  // Predicated region
  $region18: #{_lambda_.35} parent=0 // pred_check
    _
  $region19: #{_lambda_.35} parent=0 // pred_check_branch
    %22 = sbr.rel (0) target = $region21
  $region20: #{_lambda_.35} parent=0 // pred_region
    _
  $region21: #{_lambda_.35} parent=0 // pred_fallthru
    _
  // Predicated region
  $region22: #{_lambda_.35} parent=0 // pred_check
    _
  $region23: #{_lambda_.35} parent=0 // pred_check_branch
    %24 = sbr.rel (0) target = $region25
  $region24: #{_lambda_.35} parent=0 // pred_region
    _
  $region25: #{_lambda_.35} parent=0 // pred_fallthru
    _
  // Predicated region
  $region26: #{_lambda_.35} parent=0 // pred_check
    _
  $region27: #{_lambda_.35} parent=0 // pred_check_branch
    %26 = sbr.rel (0) target = $region29
  $region28: #{_lambda_.35} parent=0 // pred_region
    _
  $region29: #{_lambda_.35} parent=0 // pred_fallthru
    _
  // Predicated region
  $region30: #{_lambda_.35} parent=0 // pred_check
    _
  $region31: #{_lambda_.35} parent=0 // pred_check_branch
    %28 = sbr.rel (0) target = $region33
  $region32: #{_lambda_.35} parent=0 // pred_region
    _
  $region33: #{_lambda_.35} parent=0 // pred_fallthru
    _
  %v30 = vld [vmem:[%s0] sm:$0xff]
  %v31 = vld [vmem:[%s0 + $0x8] sm:$0xff]
  %v32 = vpack.c.bf16 %v31, %v30
  %v33 = vld [vmem:[%s1] sm:$0xff]
  %v34 = vld [vmem:[%s1 + $0x8] sm:$0xff]
  %v35 = vld [vmem:[%s2] sm:$0xf]
  %v36 = vld [vmem:[%s2 + $0x4] sm:$0xf]
  %v37 = vld [vmem:[%s2 + $0x8] sm:$0xf]
  %v38 = vld [vmem:[%s2 + $0xc] sm:$0xf]
  %v39 = vld [vmem:[%s2 + $0x10] sm:$0xf]
  %v40 = vld [vmem:[%s2 + $0x14] sm:$0xf]
  %v41 = vld [vmem:[%s2 + $0x18] sm:$0xf]
  %v42 = vld [vmem:[%s2 + $0x1c] sm:$0xf]
  %v43 = vld [vmem:[%s2 + $0x20] sm:$0xf]
  %v44 = vld [vmem:[%s2 + $0x24] sm:$0xf]
  %v45 = vld [vmem:[%s2 + $0x28] sm:$0xf]
  %v46 = vld [vmem:[%s2 + $0x2c] sm:$0xf]
  %v47 = vld [vmem:[%s2 + $0x30] sm:$0xf]
  %v48 = vld [vmem:[%s2 + $0x34] sm:$0xf]
  %v49 = vld [vmem:[%s2 + $0x38] sm:$0xf]
  %v50 = vld [vmem:[%s2 + $0x3c] sm:$0xf]
  %v51 = vld [vmem:[%s3] sm:$0x1]
  %v53 = vlaneseq
  %v54 = vshrl.u32 %v53, 7
  %v55 = vsub.s32 0, %v54
  %v56 = vrot.slane %v51, %v55
  %v74 = vunpack.c.l.b16 %v35
  %v75 = vunpack.c.l.b16 %v36
  %v76 = vunpack.c.l.b16 %v37
  %v77 = vunpack.c.l.b16 %v38
  %v78 = vunpack.c.l.b16 %v39
  %v79 = vunpack.c.l.b16 %v40
  %v80 = vunpack.c.l.b16 %v41
  %v81 = vunpack.c.l.b16 %v42
  %v82 = vunpack.c.l.b16 %v43
  %v83 = vunpack.c.l.b16 %v44
  %v84 = vunpack.c.l.b16 %v45
  %v85 = vunpack.c.l.b16 %v46
  %v86 = vunpack.c.l.b16 %v47
  %v87 = vunpack.c.l.b16 %v48
  %v88 = vunpack.c.l.b16 %v49
  %v89 = vunpack.c.l.b16 %v50
  %v90 = vpack.c.b16 %v75, %v74
  %v91 = vpack.c.b16 %v77, %v76
  %v92 = vpack.c.b16 %v79, %v78
  %v93 = vpack.c.b16 %v81, %v80
  %v94 = vpack.c.b16 %v83, %v82
  %v95 = vpack.c.b16 %v85, %v84
  %v96 = vpack.c.b16 %v87, %v86
  %v97 = vpack.c.b16 %v89, %v88
  %106 = vmatprep.subr.bf16.mxu0 0
  %107 = vmatpush1.bf16.msra.mxu0 %v90
  %108 = vmatprep.subr.bf16.mxu0 0
  %109 = vmatpush1.bf16.msra.mxu0 %v91
  %110 = vmatprep.subr.bf16.mxu0 0
  %111 = vmatpush1.bf16.msra.mxu0 %v92
  %112 = vmatprep.subr.bf16.mxu0 0
  %113 = vmatpush1.bf16.msra.mxu0 %v93
  %114 = vmatprep.subr.bf16.mxu0 0
  %115 = vmatpush1.bf16.msra.mxu0 %v94
  %116 = vmatprep.subr.bf16.mxu0 0
  %117 = vmatpush1.bf16.msra.mxu0 %v95
  %118 = vmatprep.subr.bf16.mxu0 0
  %119 = vmatpush1.bf16.msra.mxu0 %v96
  %120 = vmatprep.subr.bf16.mxu0 0
  %121 = vmatpush1.bf16.msra.mxu0 %v97
  %122 = vmatprep.subr.bf16.mxu0 0
  %123 = vmatpush1.bf16.msra.mxu0 0
  %124 = vmatprep.subr.bf16.mxu0 0
  %125 = vmatpush1.bf16.msra.mxu0 0
  %126 = vmatprep.subr.bf16.mxu0 0
  %127 = vmatpush1.bf16.msra.mxu0 0
  %128 = vmatprep.subr.bf16.mxu0 0
  %129 = vmatpush1.bf16.msra.mxu0 0
  %130 = vmatprep.subr.bf16.mxu0 0
  %131 = vmatpush1.bf16.msra.mxu0 0
  %132 = vmatprep.subr.bf16.mxu0 0
  %133 = vmatpush1.bf16.msra.mxu0 0
  %134 = vmatprep.subr.bf16.mxu0 0
  %135 = vmatpush1.bf16.msra.mxu0 0
  %136 = vmatprep.subr.bf16.mxu0 0
  %137 = vmatpush1.bf16.msra.mxu0 0
  %138 = vmatprep.mubr.bf16.mxu0 0
  %139 = vmatmul.mubr.bf16.gmra.mrb[0].mxu0 %v32
  %v140 = vpop.f32.mrb[0].mxu0
  %v141 = vadd.f32 %v56, %v140
  %v142 = vpop.f32.mrb[0].mxu0
  %v143 = vpop.f32.mrb[0].mxu0
  %v144 = vadd.f32 %v56, %v143
  %v145 = vpop.f32.mrb[0].mxu0
  %146 = vdwg.mxu0
  %v147 = vld [vmem:[%s4] sm:$0xf]
  %v148 = vld [vmem:[%s4 + $0x4] sm:$0xf]
  %v149 = vld [vmem:[%s4 + $0x8] sm:$0xf]
  %v150 = vld [vmem:[%s4 + $0xc] sm:$0xf]
  %v151 = vld [vmem:[%s4 + $0x10] sm:$0xf]
  %v152 = vld [vmem:[%s4 + $0x14] sm:$0xf]
  %v153 = vld [vmem:[%s4 + $0x18] sm:$0xf]
  %v154 = vld [vmem:[%s4 + $0x1c] sm:$0xf]
  %v155 = vld [vmem:[%s4 + $0x20] sm:$0xf]
  %v156 = vld [vmem:[%s4 + $0x24] sm:$0xf]
  %v157 = vld [vmem:[%s4 + $0x28] sm:$0xf]
  %v158 = vld [vmem:[%s4 + $0x2c] sm:$0xf]
  %v159 = vld [vmem:[%s4 + $0x30] sm:$0xf]
  %v160 = vld [vmem:[%s4 + $0x34] sm:$0xf]
  %v161 = vld [vmem:[%s4 + $0x38] sm:$0xf]
  %v162 = vld [vmem:[%s4 + $0x3c] sm:$0xf]
  %v163 = vld [vmem:[%s5] sm:$0x1]
  %v165 = vlaneseq
  %v166 = vshrl.u32 %v165, 7
  %v167 = vsub.s32 0, %v166
  %v168 = vrot.slane %v163, %v167
  %v186 = vunpack.c.l.b16 %v147
  %v187 = vunpack.c.l.b16 %v148
  %v188 = vunpack.c.l.b16 %v149
  %v189 = vunpack.c.l.b16 %v150
  %v190 = vunpack.c.l.b16 %v151
  %v191 = vunpack.c.l.b16 %v152
  %v192 = vunpack.c.l.b16 %v153
  %v193 = vunpack.c.l.b16 %v154
  %v194 = vunpack.c.l.b16 %v155
  %v195 = vunpack.c.l.b16 %v156
  %v196 = vunpack.c.l.b16 %v157
  %v197 = vunpack.c.l.b16 %v158
  %v198 = vunpack.c.l.b16 %v159
  %v199 = vunpack.c.l.b16 %v160
  %v200 = vunpack.c.l.b16 %v161
  %v201 = vunpack.c.l.b16 %v162
  %v202 = vpack.c.b16 %v187, %v186
  %v203 = vpack.c.b16 %v189, %v188
  %v204 = vpack.c.b16 %v191, %v190
  %v205 = vpack.c.b16 %v193, %v192
  %v206 = vpack.c.b16 %v195, %v194
  %v207 = vpack.c.b16 %v197, %v196
  %v208 = vpack.c.b16 %v199, %v198
  %v209 = vpack.c.b16 %v201, %v200
  %218 = vmatprep.subr.bf16.mxu0 0
  %219 = vmatpush1.bf16.msra.mxu0 %v202
  %220 = vmatprep.subr.bf16.mxu0 0
  %221 = vmatpush1.bf16.msra.mxu0 %v203
  %222 = vmatprep.subr.bf16.mxu0 0
  %223 = vmatpush1.bf16.msra.mxu0 %v204
  %224 = vmatprep.subr.bf16.mxu0 0
  %225 = vmatpush1.bf16.msra.mxu0 %v205
  %226 = vmatprep.subr.bf16.mxu0 0
  %227 = vmatpush1.bf16.msra.mxu0 %v206
  %228 = vmatprep.subr.bf16.mxu0 0
  %229 = vmatpush1.bf16.msra.mxu0 %v207
  %230 = vmatprep.subr.bf16.mxu0 0
  %231 = vmatpush1.bf16.msra.mxu0 %v208
  %232 = vmatprep.subr.bf16.mxu0 0
  %233 = vmatpush1.bf16.msra.mxu0 %v209
  %234 = vmatprep.subr.bf16.mxu0 0
  %235 = vmatpush1.bf16.msra.mxu0 0
  %236 = vmatprep.subr.bf16.mxu0 0
  %237 = vmatpush1.bf16.msra.mxu0 0
  %238 = vmatprep.subr.bf16.mxu0 0
  %239 = vmatpush1.bf16.msra.mxu0 0
  %240 = vmatprep.subr.bf16.mxu0 0
  %241 = vmatpush1.bf16.msra.mxu0 0
  %242 = vmatprep.subr.bf16.mxu0 0
  %243 = vmatpush1.bf16.msra.mxu0 0
  %244 = vmatprep.subr.bf16.mxu0 0
  %245 = vmatpush1.bf16.msra.mxu0 0
  %246 = vmatprep.subr.bf16.mxu0 0
  %247 = vmatpush1.bf16.msra.mxu0 0
  %248 = vmatprep.subr.bf16.mxu0 0
  %249 = vmatpush1.bf16.msra.mxu0 0
  %250 = vmatprep.mubr.bf16.mxu0 0
  %251 = vmatmul.mubr.bf16.gmra.mrb[0].mxu0 %v32
  %v252 = vpop.f32.mrb[0].mxu0
  %v253 = vadd.f32 %v168, %v252
  %v254 = vpop.f32.mrb[0].mxu0
  %v255 = vpop.f32.mrb[0].mxu0
  %v256 = vadd.f32 %v168, %v255
  %v257 = vpop.f32.mrb[0].mxu0
  %258 = vdwg.mxu0
  %v259 = vmax.f32 %v253, 0.0
  %v260 = vmax.f32 %v256, 0.0
  %v261 = vpack.c.bf16 %v260, %v259
  %v262 = vld [vmem:[%s6] sm:$0xf]
  %v263 = vld [vmem:[%s6 + $0x4] sm:$0xf]
  %v264 = vld [vmem:[%s6 + $0x8] sm:$0xf]
  %v265 = vld [vmem:[%s6 + $0xc] sm:$0xf]
  %v266 = vld [vmem:[%s6 + $0x10] sm:$0xf]
  %v267 = vld [vmem:[%s6 + $0x14] sm:$0xf]
  %v268 = vld [vmem:[%s6 + $0x18] sm:$0xf]
  %v269 = vld [vmem:[%s6 + $0x1c] sm:$0xf]
  %v270 = vld [vmem:[%s7] sm:$0x1]
  %v272 = vlaneseq
  %v273 = vshrl.u32 %v272, 7
  %v274 = vsub.s32 0, %v273
  %v275 = vrot.slane %v270, %v274
  %v285 = vunpack.c.l.b16 %v262
  %v286 = vunpack.c.l.b16 %v263
  %v287 = vunpack.c.l.b16 %v264
  %v288 = vunpack.c.l.b16 %v265
  %v289 = vunpack.c.l.b16 %v266
  %v290 = vunpack.c.l.b16 %v267
  %v291 = vunpack.c.l.b16 %v268
  %v292 = vunpack.c.l.b16 %v269
  %v293 = vpack.c.b16 %v286, %v285
  %v294 = vpack.c.b16 %v288, %v287
  %v295 = vpack.c.b16 %v290, %v289
  %v296 = vpack.c.b16 %v292, %v291
  %vm301 = vcmask 523264
  %v303 = vsel %vm301, %v261, 0
  %305 = vmatprep.subr.bf16.mxu0 0
  %306 = vmatpush1.bf16.msra.mxu0 %v293
  %307 = vmatprep.subr.bf16.mxu0 0
  %308 = vmatpush1.bf16.msra.mxu0 %v294
  %309 = vmatprep.subr.bf16.mxu0 0
  %310 = vmatpush1.bf16.msra.mxu0 %v295
  %311 = vmatprep.subr.bf16.mxu0 0
  %312 = vmatpush1.bf16.msra.mxu0 %v296
  %313 = vmatprep.subr.bf16.mxu0 0
  %314 = vmatpush1.bf16.msra.mxu0 0
  %315 = vmatprep.subr.bf16.mxu0 0
  %316 = vmatpush1.bf16.msra.mxu0 0
  %317 = vmatprep.subr.bf16.mxu0 0
  %318 = vmatpush1.bf16.msra.mxu0 0
  %319 = vmatprep.subr.bf16.mxu0 0
  %320 = vmatpush1.bf16.msra.mxu0 0
  %321 = vmatprep.subr.bf16.mxu0 0
  %322 = vmatpush1.bf16.msra.mxu0 0
  %323 = vmatprep.subr.bf16.mxu0 0
  %324 = vmatpush1.bf16.msra.mxu0 0
  %325 = vmatprep.subr.bf16.mxu0 0
  %326 = vmatpush1.bf16.msra.mxu0 0
  %327 = vmatprep.subr.bf16.mxu0 0
  %328 = vmatpush1.bf16.msra.mxu0 0
  %329 = vmatprep.subr.bf16.mxu0 0
  %330 = vmatpush1.bf16.msra.mxu0 0
  %331 = vmatprep.subr.bf16.mxu0 0
  %332 = vmatpush1.bf16.msra.mxu0 0
  %333 = vmatprep.subr.bf16.mxu0 0
  %334 = vmatpush1.bf16.msra.mxu0 0
  %335 = vmatprep.subr.bf16.mxu0 0
  %336 = vmatpush1.bf16.msra.mxu0 0
  %337 = vmatprep.mubr.bf16.mxu0 0
  %338 = vmatmul.mubr.bf16.gmra.mrb[0].mxu0 %v303
  %v339 = vpop.f32.mrb[0].mxu0
  %v340 = vadd.f32 %v275, %v339
  %v341 = vpop.f32.mrb[0].mxu0
  %v342 = vpop.f32.mrb[0].mxu0
  %v343 = vadd.f32 %v275, %v342
  %v344 = vpop.f32.mrb[0].mxu0
  %345 = vdwg.mxu0
  %v346 = vadd.f32 %v141, %v33
  %v347 = vadd.f32 %v144, %v34
  %v348 = vadd.f32 %v346, %v340
  %v349 = vadd.f32 %v347, %v343
  %350 = vst [vmem:[%s8] sm:$0xff] %v348
  %351 = vst [vmem:[%s8 + $0x8] sm:$0xff] %v349
  // Predicated region
  $region34: #{_lambda_.35} parent=0 // pred_check
    _
  $region35: #{_lambda_.35} parent=0 // pred_check_branch
    %353 = sbr.rel (0) target = $region37
  $region36: #{_lambda_.35} parent=0 // pred_region
    _
  $region37: #{_lambda_.35} parent=0 // pred_fallthru
    _
  // Predicated region
  $region38: #{_lambda_.35} parent=0 // pred_check
    _
  $region39: #{_lambda_.35} parent=0 // pred_check_branch
    %355 = sbr.rel (0) target = $region41
  $region40: #{_lambda_.35} parent=0 // pred_region
    _
  $region41: #{_lambda_.35} parent=0 // pred_fallthru
    _

// kernel: _lambda_.36
$region0: #{_lambda_.36}
  #allocation0 [shape = 'u32[]', space=smem, size = 0x4, offset = 0x4, fixed_abs, tag = 'smem constant byte address 0x4 - core index']
  #allocation1 [shape = 'u32[144,128]{1,0:T(1,128)}', space=vmem, size = 0x12000, scoped, tag = 'internal scratch']
  #allocation2 [shape = 'bf16[16,128]{1,0:T(16,128)(2,1)}', space=vmem, size = 0x1000, scoped, tag = 'scratch operand']
  %s0 = inlined_call_operand.vmem [shape: f32[16,128], index: 0, kind: input, shape index: {}]
  %s1 = inlined_call_operand.vmem [shape: f32[1,128], index: 1, kind: input, shape index: {}]
  %s2 = inlined_call_operand.vmem [shape: f32[1,128], index: 2, kind: input, shape index: {}]
  %s3 = inlined_call_operand.vmem [shape: bf16[128,512], index: 3, kind: input, shape index: {}]
  %s4 = inlined_call_operand.vmem [shape: f32[1,512], index: 4, kind: input, shape index: {}]
  %s5 = inlined_call_operand.vmem [shape: f32[16,512], index: 5, kind: output, shape index: {0}]
  %s6 = inlined_call_operand.vmem [shape: f32[16,128], index: 6, kind: output, shape index: {1}]
  %7 = xla_tuple %s5, %s6
  %s8 = sld [smem:[#allocation0]]
  $region122: #{_lambda_.36} parent=0
    _
  %s10 = ssub.s32 1, %s8
  %s11 = scalar_select 0, %s10, %s8
  $region1: #{_lambda_.36} parent=0
    #allocation3 [shape = 'u8[131072]{0}', space=vmem, size = 0x20000, scoped, tag = 'input window, operand 3']
    #allocation4 [shape = 'u8[32768]{0}', space=vmem, size = 0x8000, scoped, tag = 'output window, operand 0']
    loop: start=0, step=1, limit=4
    $region2: #{_lambda_.36} parent=1 // loop_pre_header
      _
    $region3: #{_lambda_.36} parent=1 // loop_header
      %s13 = sphi 0, %s17
      %p14 = scmp.ge.s32.totalorder %s13, 4
      %s20 = sphi 0, %s32
      %s21 = sphi 0, %s28
      %s22 = sphi 0, %s20
      %s23 = sphi 0, %s21
      %s24 = sphi 0, %s22
      %s25 = sphi 0, %s23
      %s35 = sphi 0, %s37
      %s38 = sphi 0, %s35
      %s39 = sphi 0, %s38
      %s55 = sphi 0, %s39
      %s59 = sphi 0, %s59
      %s61 = sphi 0, %s59
      %s62 = sphi 0, %s61
      %s76 = sphi 0, %s62
      %s80 = sphi 0, %s80
      %s82 = sphi 0, %s80
      %s83 = sphi 0, %s82
      %s97 = sphi 0, %s83
      %s103 = sphi 0, %s105
      %s106 = sphi 0, %s103
      %s107 = sphi 0, %s106
      %s123 = sphi 0, %s107
      %s129 = sphi 0, %s131
      %s132 = sphi 0, %s129
      %s133 = sphi 0, %s132
      %s149 = sphi 0, %s133
      %s157 = sphi 0, %s159
      %s160 = sphi 0, %s157
      %s161 = sphi 0, %s160
      %s177 = sphi 0, %s161
      %s183 = sphi 0, %s185
      %s186 = sphi 0, %s183
      %s187 = sphi 0, %s186
      %s203 = sphi 0, %s187
    $region4: #{_lambda_.36} parent=1 // loop_header_branch
      %16 = sbr.rel (%p14) target = $region8
    $region5: #{_lambda_.36} parent=1 // loop_body
      %s18 = ssub.s32 %s13, 1
      %s19 = ssub.s32 %s13, 2
      %s26 = sadd.s32 1, %s21
      %p27 = scmp.ge.s32.totalorder %s26, 2
      %s28 = scalar_select %p27, 0, %s26
      %s29 = sadd.s32 1, %s20
      %s30 = scalar_select %p27, %s29, %s20
      %p31 = scmp.ge.s32.totalorder %s30, 1
      %s32 = scalar_select %p31, 0, %s30
      %s33 = ssub.s32 %s20, %s32
      %p34 = scmp.eq.s32.totalorder %s33, 0
      %s36 = sadd.s32 %s35, 1
      %s37 = scalar_select %p34, %s35, %s36
      %p40 = pneg %p34
      %p41 = scmp.eq.s32.totalorder %s13, 1
      %p42 = por %p40, %p41
      %p43 = scmp.ne.s32.totalorder %s35, %s38
      %p44 = scmp.eq.s32.totalorder %s13, 0
      %p45 = por %p43, %p44
      %p46 = scmp.ne.s32.totalorder %s35, %s38
      %p47 = scmp.eq.s32.totalorder %s18, 1
      %p48 = por %p46, %p47
      %p49 = scmp.ne.s32.totalorder %s38, %s39
      %p50 = scmp.eq.s32.totalorder %s18, 0
      %p51 = por %p49, %p50
      %p52 = scmp.ne.s32.totalorder %s38, %s39
      %p53 = scmp.eq.s32.totalorder %s19, 1
      %p54 = por %p52, %p53
      %p56 = scmp.ne.s32.totalorder %s39, %s55
      %p57 = scmp.eq.s32.totalorder %s19, 0
      %p58 = por %p56, %p57
      %s60 = sadd.s32 %s59, 1
      %p63 = scmp.eq.s32.totalorder %s13, 1
      %p64 = scmp.ne.s32.totalorder %s59, %s61
      %p65 = scmp.eq.s32.totalorder %s13, 0
      %p66 = por %p64, %p65
      %p67 = scmp.ne.s32.totalorder %s59, %s61
      %p68 = scmp.eq.s32.totalorder %s18, 1
      %p69 = por %p67, %p68
      %p70 = scmp.ne.s32.totalorder %s61, %s62
      %p71 = scmp.eq.s32.totalorder %s18, 0
      %p72 = por %p70, %p71
      %p73 = scmp.ne.s32.totalorder %s61, %s62
      %p74 = scmp.eq.s32.totalorder %s19, 1
      %p75 = por %p73, %p74
      %p77 = scmp.ne.s32.totalorder %s62, %s76
      %p78 = scmp.eq.s32.totalorder %s19, 0
      %p79 = por %p77, %p78
      %s81 = sadd.s32 %s80, 1
      %p84 = scmp.eq.s32.totalorder %s13, 1
      %p85 = scmp.ne.s32.totalorder %s80, %s82
      %p86 = scmp.eq.s32.totalorder %s13, 0
      %p87 = por %p85, %p86
      %p88 = scmp.ne.s32.totalorder %s80, %s82
      %p89 = scmp.eq.s32.totalorder %s18, 1
      %p90 = por %p88, %p89
      %p91 = scmp.ne.s32.totalorder %s82, %s83
      %p92 = scmp.eq.s32.totalorder %s18, 0
      %p93 = por %p91, %p92
      %p94 = scmp.ne.s32.totalorder %s82, %s83
      %p95 = scmp.eq.s32.totalorder %s19, 1
      %p96 = por %p94, %p95
      %p98 = scmp.ne.s32.totalorder %s83, %s97
      %p99 = scmp.eq.s32.totalorder %s19, 0
      %p100 = por %p98, %p99
      %s101 = ssub.s32 %s21, %s28
      %p102 = scmp.eq.s32.totalorder %s101, 0
      %s104 = sadd.s32 %s103, 1
      %s105 = scalar_select %p102, %s103, %s104
      %p108 = pneg %p102
      %p109 = scmp.eq.s32.totalorder %s13, 1
      %p110 = por %p108, %p109
      %p111 = scmp.ne.s32.totalorder %s103, %s106
      %p112 = scmp.eq.s32.totalorder %s13, 0
      %p113 = por %p111, %p112
      %p114 = scmp.ne.s32.totalorder %s103, %s106
      %p115 = scmp.eq.s32.totalorder %s18, 1
      %p116 = por %p114, %p115
      %p117 = scmp.ne.s32.totalorder %s106, %s107
      %p118 = scmp.eq.s32.totalorder %s18, 0
      %p119 = por %p117, %p118
      %p120 = scmp.ne.s32.totalorder %s106, %s107
      %p121 = scmp.eq.s32.totalorder %s19, 1
      %p122 = por %p120, %p121
      %p124 = scmp.ne.s32.totalorder %s107, %s123
      %p125 = scmp.eq.s32.totalorder %s19, 0
      %p126 = por %p124, %p125
      %s127 = ssub.s32 %s21, %s28
      %p128 = scmp.eq.s32.totalorder %s127, 0
      %s130 = sadd.s32 %s129, 1
      %s131 = scalar_select %p128, %s129, %s130
      %p134 = pneg %p128
      %p135 = scmp.eq.s32.totalorder %s13, 1
      %p136 = por %p134, %p135
      %p137 = scmp.ne.s32.totalorder %s129, %s132
      %p138 = scmp.eq.s32.totalorder %s13, 0
      %p139 = por %p137, %p138
      %p140 = scmp.ne.s32.totalorder %s129, %s132
      %p141 = scmp.eq.s32.totalorder %s18, 1
      %p142 = por %p140, %p141
      %p143 = scmp.ne.s32.totalorder %s132, %s133
      %p144 = scmp.eq.s32.totalorder %s18, 0
      %p145 = por %p143, %p144
      %p146 = scmp.ne.s32.totalorder %s132, %s133
      %p147 = scmp.eq.s32.totalorder %s19, 1
      %p148 = por %p146, %p147
      %p150 = scmp.ne.s32.totalorder %s133, %s149
      %p151 = scmp.eq.s32.totalorder %s19, 0
      %p152 = por %p150, %p151
      %s153 = ssub.s32 %s20, %s32
      %s154 = ssub.s32 %s21, %s28
      %s155 = sor.u32 %s153, %s154
      %p156 = scmp.eq.s32.totalorder %s155, 0
      %s158 = sadd.s32 %s157, 1
      %s159 = scalar_select %p156, %s157, %s158
      %p162 = pneg %p156
      %p163 = scmp.eq.s32.totalorder %s13, 1
      %p164 = por %p162, %p163
      %p165 = scmp.ne.s32.totalorder %s157, %s160
      %p166 = scmp.eq.s32.totalorder %s13, 0
      %p167 = por %p165, %p166
      %p168 = scmp.ne.s32.totalorder %s157, %s160
      %p169 = scmp.eq.s32.totalorder %s18, 1
      %p170 = por %p168, %p169
      %p171 = scmp.ne.s32.totalorder %s160, %s161
      %p172 = scmp.eq.s32.totalorder %s18, 0
      %p173 = por %p171, %p172
      %p174 = scmp.ne.s32.totalorder %s160, %s161
      %p175 = scmp.eq.s32.totalorder %s19, 1
      %p176 = por %p174, %p175
      %p178 = scmp.ne.s32.totalorder %s161, %s177
      %p179 = scmp.eq.s32.totalorder %s19, 0
      %p180 = por %p178, %p179
      %s181 = ssub.s32 %s20, %s32
      %p182 = scmp.eq.s32.totalorder %s181, 0
      %s184 = sadd.s32 %s183, 1
      %s185 = scalar_select %p182, %s183, %s184
      %p188 = pneg %p182
      %p189 = scmp.eq.s32.totalorder %s13, 1
      %p190 = por %p188, %p189
      %p191 = scmp.ne.s32.totalorder %s183, %s186
      %p192 = scmp.eq.s32.totalorder %s13, 0
      %p193 = por %p191, %p192
      %p194 = scmp.ne.s32.totalorder %s183, %s186
      %p195 = scmp.eq.s32.totalorder %s18, 1
      %p196 = por %p194, %p195
      %p197 = scmp.ne.s32.totalorder %s186, %s187
      %p198 = scmp.eq.s32.totalorder %s18, 0
      %p199 = por %p197, %p198
      %p200 = scmp.ne.s32.totalorder %s186, %s187
      %p201 = scmp.eq.s32.totalorder %s19, 1
      %p202 = por %p200, %p201
      %p204 = scmp.ne.s32.totalorder %s187, %s203
      %p205 = scmp.eq.s32.totalorder %s19, 0
      %p206 = por %p204, %p205
      %p207 = scmp.le.s32.totalorder 1, %s13
      %p208 = scmp.lt.s32.totalorder %s13, 3
      %p209 = pnand %p207, %p208
      %p210 = pneg %p209
      // Predicated region
      $region9: #{_lambda_.36} parent=5 // pred_check
        _
      $region10: #{_lambda_.36} parent=5 // pred_check_branch
        %212 = sbr.rel (%p209) target = $region12
      $region11: #{_lambda_.36} parent=5 // pred_region
        %s213 = ssub.s32 %s13, 1
        // Predicated region
        $region13: #{_lambda_.36} parent=11 // pred_check
          %p214 = pneg %p51
        $region14: #{_lambda_.36} parent=11 // pred_check_branch
          %216 = sbr.rel (%p214) target = $region16
        $region15: #{_lambda_.36} parent=11 // pred_region
          %s217 = smul.u32 2, %s22
          %p218 = scmp.lt.s32.totalorder %s217, 1
          %s219 = scalar_select %p218, %s217, 1
          %s220 = smul.addr %s219, 8
          %s221 = scalar_lea.vmem %s0, %s220
          %s222 = smul.u32 2, %s22
        $region16: #{_lambda_.36} parent=11 // pred_fallthru
          _
        // Predicated region
        $region17: #{_lambda_.36} parent=11 // pred_check
          %p223 = pneg %p72
        $region18: #{_lambda_.36} parent=11 // pred_check_branch
          %225 = sbr.rel (%p223) target = $region20
        $region19: #{_lambda_.36} parent=11 // pred_region
          _
        $region20: #{_lambda_.36} parent=11 // pred_fallthru
          _
        // Predicated region
        $region21: #{_lambda_.36} parent=11 // pred_check
          %p226 = pneg %p93
        $region22: #{_lambda_.36} parent=11 // pred_check_branch
          %228 = sbr.rel (%p226) target = $region24
        $region23: #{_lambda_.36} parent=11 // pred_region
          _
        $region24: #{_lambda_.36} parent=11 // pred_fallthru
          _
      $region12: #{_lambda_.36} parent=5 // pred_fallthru
        _
      %p229 = scmp.lt.s32.totalorder %s13, 2
      // Predicated region
      $region25: #{_lambda_.36} parent=5 // pred_check
        %p230 = pneg %p229
      $region26: #{_lambda_.36} parent=5 // pred_check_branch
        %232 = sbr.rel (%p230) target = $region28
      $region27: #{_lambda_.36} parent=5 // pred_region
        // Predicated region
        $region29: #{_lambda_.36} parent=27 // pred_check
          %p233 = pneg %p113
        $region30: #{_lambda_.36} parent=27 // pred_check_branch
          %235 = sbr.rel (%p233) target = $region32
        $region31: #{_lambda_.36} parent=27 // pred_region
          %s236 = sand.u32 %s103, 1
          %s237 = sand.u32 %s103, 1
          %s238 = smul.addr %s237, 128
          %s239 = scalar_lea.vmem [#allocation3], %s238
          %s240 = smul.u32 2, %s21
          %s241 = smul.addr %s240, 4
          %s242 = scalar_lea.vmem %s3, %s241
          // Predicated region
          $region33: #{_lambda_.36} parent=31 // pred_check
            _
          $region34: #{_lambda_.36} parent=31 // pred_check_branch
            %244 = sbr.rel (0) target = $region36
          $region35: #{_lambda_.36} parent=31 // pred_region
            // Predicated region
            $region37: #{_lambda_.36} parent=35 // pred_check
              _
            $region38: #{_lambda_.36} parent=35 // pred_check_branch
              %246 = sbr.rel (0) target = $region40
            $region39: #{_lambda_.36} parent=35 // pred_region
              // Predicated region
              $region52: #{_lambda_.36} parent=39 // pred_check
                _
              $region53: #{_lambda_.36} parent=39 // pred_check_branch
                %291 = sbr.rel (0) target = $region55
              $region54: #{_lambda_.36} parent=39 // pred_region
                loop: start=0, step=1, limit=1
                $region56: #{_lambda_.36} parent=54 // loop_pre_header
                  _
                $region57: #{_lambda_.36} parent=54 // loop_header
                  %s293 = sphi 0, %s297
                  %p294 = scmp.ge.s32.totalorder %s293, 1
                  %s298 = sphi %s242, %s242
                  %s299 = sphi %s239, %s239
                $region58: #{_lambda_.36} parent=54 // loop_header_branch
                  %296 = sbr.rel (%p294) target = $region62
                $region59: #{_lambda_.36} parent=54 // loop_body
                  %v300 = vld [vmem:[%s298] sm:$0xff]
                  %301 = vst [vmem:[%s299] sm:$0xff] %v300
                  %v302 = vld [vmem:[%s298 + $0x10] sm:$0xff]
                  %303 = vst [vmem:[%s299 + $0x8] sm:$0xff] %v302
                  %v304 = vld [vmem:[%s298 + $0x20] sm:$0xff]
                  %305 = vst [vmem:[%s299 + $0x10] sm:$0xff] %v304
                  %v306 = vld [vmem:[%s298 + $0x30] sm:$0xff]
                  %307 = vst [vmem:[%s299 + $0x18] sm:$0xff] %v306
                  %v308 = vld [vmem:[%s298 + $0x40] sm:$0xff]
                  %309 = vst [vmem:[%s299 + $0x20] sm:$0xff] %v308
                  %v310 = vld [vmem:[%s298 + $0x50] sm:$0xff]
                  %311 = vst [vmem:[%s299 + $0x28] sm:$0xff] %v310
                  %v312 = vld [vmem:[%s298 + $0x60] sm:$0xff]
                  %313 = vst [vmem:[%s299 + $0x30] sm:$0xff] %v312
                  %v314 = vld [vmem:[%s298 + $0x70] sm:$0xff]
                  %315 = vst [vmem:[%s299 + $0x38] sm:$0xff] %v314
                  %v316 = vld [vmem:[%s298 + $0x80] sm:$0xff]
                  %317 = vst [vmem:[%s299 + $0x40] sm:$0xff] %v316
                  %v318 = vld [vmem:[%s298 + $0x90] sm:$0xff]
                  %319 = vst [vmem:[%s299 + $0x48] sm:$0xff] %v318
                  %v320 = vld [vmem:[%s298 + $0xa0] sm:$0xff]
                  %321 = vst [vmem:[%s299 + $0x50] sm:$0xff] %v320
                  %v322 = vld [vmem:[%s298 + $0xb0] sm:$0xff]
                  %323 = vst [vmem:[%s299 + $0x58] sm:$0xff] %v322
                  %v324 = vld [vmem:[%s298 + $0xc0] sm:$0xff]
                  %325 = vst [vmem:[%s299 + $0x60] sm:$0xff] %v324
                  %v326 = vld [vmem:[%s298 + $0xd0] sm:$0xff]
                  %327 = vst [vmem:[%s299 + $0x68] sm:$0xff] %v326
                  %v328 = vld [vmem:[%s298 + $0xe0] sm:$0xff]
                  %329 = vst [vmem:[%s299 + $0x70] sm:$0xff] %v328
                  %v330 = vld [vmem:[%s298 + $0xf0] sm:$0xff]
                  %331 = vst [vmem:[%s299 + $0x78] sm:$0xff] %v330
                $region60: #{_lambda_.36} parent=54 // loop_footer
                  %s297 = sadd.s32 1, %s293
                $region61: #{_lambda_.36} parent=54 // loop_footer_branch
                  %292 = sbr.rel target = $region57
                $region62: #{_lambda_.36} parent=54 // loop_exit
                  _
              $region55: #{_lambda_.36} parent=39 // pred_fallthru
                _
              // Predicated region
              $region63: #{_lambda_.36} parent=39 // pred_check
                _
              $region64: #{_lambda_.36} parent=39 // pred_check_branch
                %333 = sbr.rel target = $region66
              $region65: #{_lambda_.36} parent=39 // pred_region
                _
              $region66: #{_lambda_.36} parent=39 // pred_fallthru
                _
            $region40: #{_lambda_.36} parent=35 // pred_fallthru
              _
            // Predicated region
            $region41: #{_lambda_.36} parent=35 // pred_check
              _
            $region42: #{_lambda_.36} parent=35 // pred_check_branch
              %248 = sbr.rel target = $region44
            $region43: #{_lambda_.36} parent=35 // pred_region
              loop: start=0, step=1, limit=1
              $region45: #{_lambda_.36} parent=43 // loop_pre_header
                _
              $region46: #{_lambda_.36} parent=43 // loop_header
                %s251 = sphi 0, %s255
                %p252 = scmp.ge.s32.totalorder %s251, 1
                %s256 = sphi %s242, %s242
                %s257 = sphi %s239, %s239
              $region47: #{_lambda_.36} parent=43 // loop_header_branch
                %254 = sbr.rel (%p252) target = $region51
              $region48: #{_lambda_.36} parent=43 // loop_body
                %v258 = vld [vmem:[%s256] sm:$0xff]
                %259 = vst [vmem:[%s257] sm:$0xff] %v258
                %v260 = vld [vmem:[%s256 + $0x10] sm:$0xff]
                %261 = vst [vmem:[%s257 + $0x8] sm:$0xff] %v260
                %v262 = vld [vmem:[%s256 + $0x20] sm:$0xff]
                %263 = vst [vmem:[%s257 + $0x10] sm:$0xff] %v262
                %v264 = vld [vmem:[%s256 + $0x30] sm:$0xff]
                %265 = vst [vmem:[%s257 + $0x18] sm:$0xff] %v264
                %v266 = vld [vmem:[%s256 + $0x40] sm:$0xff]
                %267 = vst [vmem:[%s257 + $0x20] sm:$0xff] %v266
                %v268 = vld [vmem:[%s256 + $0x50] sm:$0xff]
                %269 = vst [vmem:[%s257 + $0x28] sm:$0xff] %v268
                %v270 = vld [vmem:[%s256 + $0x60] sm:$0xff]
                %271 = vst [vmem:[%s257 + $0x30] sm:$0xff] %v270
                %v272 = vld [vmem:[%s256 + $0x70] sm:$0xff]
                %273 = vst [vmem:[%s257 + $0x38] sm:$0xff] %v272
                %v274 = vld [vmem:[%s256 + $0x80] sm:$0xff]
                %275 = vst [vmem:[%s257 + $0x40] sm:$0xff] %v274
                %v276 = vld [vmem:[%s256 + $0x90] sm:$0xff]
                %277 = vst [vmem:[%s257 + $0x48] sm:$0xff] %v276
                %v278 = vld [vmem:[%s256 + $0xa0] sm:$0xff]
                %279 = vst [vmem:[%s257 + $0x50] sm:$0xff] %v278
                %v280 = vld [vmem:[%s256 + $0xb0] sm:$0xff]
                %281 = vst [vmem:[%s257 + $0x58] sm:$0xff] %v280
                %v282 = vld [vmem:[%s256 + $0xc0] sm:$0xff]
                %283 = vst [vmem:[%s257 + $0x60] sm:$0xff] %v282
                %v284 = vld [vmem:[%s256 + $0xd0] sm:$0xff]
                %285 = vst [vmem:[%s257 + $0x68] sm:$0xff] %v284
                %v286 = vld [vmem:[%s256 + $0xe0] sm:$0xff]
                %287 = vst [vmem:[%s257 + $0x70] sm:$0xff] %v286
                %v288 = vld [vmem:[%s256 + $0xf0] sm:$0xff]
                %289 = vst [vmem:[%s257 + $0x78] sm:$0xff] %v288
              $region49: #{_lambda_.36} parent=43 // loop_footer
                %s255 = sadd.s32 1, %s251
              $region50: #{_lambda_.36} parent=43 // loop_footer_branch
                %250 = sbr.rel target = $region46
              $region51: #{_lambda_.36} parent=43 // loop_exit
                _
            $region44: #{_lambda_.36} parent=35 // pred_fallthru
              _
          $region36: #{_lambda_.36} parent=31 // pred_fallthru
            _
          %334 = vnop
        $region32: #{_lambda_.36} parent=27 // pred_fallthru
          _
        // Predicated region
        $region67: #{_lambda_.36} parent=27 // pred_check
          %p335 = pneg %p139
        $region68: #{_lambda_.36} parent=27 // pred_check_branch
          %337 = sbr.rel (%p335) target = $region70
        $region69: #{_lambda_.36} parent=27 // pred_region
          %s338 = smul.u32 2, %s21
          %p339 = scmp.lt.s32.totalorder %s338, 3
          %s340 = scalar_select %p339, %s338, 3
          %s341 = scalar_lea.vmem %s4, %s340
          %s342 = smul.u32 2, %s21
        $region70: #{_lambda_.36} parent=27 // pred_fallthru
          _
      $region28: #{_lambda_.36} parent=5 // pred_fallthru
        _
      %p343 = scmp.le.s32.totalorder 1, %s13
      %p344 = scmp.lt.s32.totalorder %s13, 3
      %p345 = pnand %p343, %p344
      %p346 = pneg %p345
      // Predicated region
      $region71: #{_lambda_.36} parent=5 // pred_check
        _
      $region72: #{_lambda_.36} parent=5 // pred_check_branch
        %348 = sbr.rel (%p345) target = $region74
      $region73: #{_lambda_.36} parent=5 // pred_region
        %s349 = ssub.s32 %s13, 1
        %s350 = sand.u32 %s106, 1
        %s351 = sand.u32 %s106, 1
        %s352 = smul.addr %s351, 128
        %s353 = scalar_lea.vmem [#allocation3], %s352
        // Predicated region
        $region75: #{_lambda_.36} parent=73 // pred_check
          %p354 = pneg %p119
        $region76: #{_lambda_.36} parent=73 // pred_check_branch
          %356 = sbr.rel (%p354) target = $region78
        $region77: #{_lambda_.36} parent=73 // pred_region
          _
        $region78: #{_lambda_.36} parent=73 // pred_fallthru
          _
        %s357 = smul.u32 2, %s22
        %p358 = scmp.lt.s32.totalorder %s357, 1
        %s359 = scalar_select %p358, %s357, 1
        %s360 = smul.addr %s359, 8
        %s361 = scalar_lea.vmem %s0, %s360
        %p362 = pneg %p51
        %p363 = pneg %p48
        %p364 = pneg %p72
        %p365 = pneg %p69
        %p366 = pneg %p93
        %p367 = pneg %p90
        %s368 = sand.u32 %s106, 1
        %s369 = sand.u32 %s106, 1
        %s370 = smul.addr %s369, 128
        %s371 = scalar_lea.vmem [#allocation3], %s370
        %p372 = pneg %p119
        %p373 = pneg %p116
        %s374 = smul.u32 2, %s23
        %p375 = scmp.lt.s32.totalorder %s374, 3
        %s376 = scalar_select %p375, %s374, 3
        %s377 = scalar_lea.vmem %s4, %s376
        %p378 = pneg %p145
        %p379 = pneg %p142
        %p380 = pneg %p173
        %p381 = pneg %p170
        %s382 = sand.u32 %s160, 1
        %s383 = sand.u32 %s160, 1
        %s384 = smul.addr %s383, 32
        %s385 = scalar_lea.vmem [#allocation4], %s384
        %p386 = pneg %p199
        %p387 = pneg %p196
        %s388 = smul.u32 2, %s22
        %p389 = scmp.lt.s32.totalorder %s388, 1
        %s390 = scalar_select %p389, %s388, 1
        %s391 = smul.addr %s390, 8
        %s392 = scalar_lea.vmem %s6, %s391
        %s393 = smul.u32 2, %s22
        %p394 = scmp.lt.s32.totalorder %s393, 1
        %s395 = scalar_select %p394, %s393, 1
        %s396 = smul.addr %s395, 8
        %s397 = scalar_lea.vmem %s0, %s396
        %s398 = smul.u32 2, %s22
        %s399 = smul.u32 2, %s23
        %s400 = smul.u32 2, %s23
        %p401 = scmp.lt.s32.totalorder %s400, 3
        %s402 = scalar_select %p401, %s400, 3
        %s403 = scalar_lea.vmem %s4, %s402
        %s404 = smul.u32 2, %s23
        %s405 = smul.u32 2, %s22
        %s406 = smul.u32 2, %s23
        %s407 = smul.u32 2, %s22
        %p408 = scmp.lt.s32.totalorder %s407, 1
        %s409 = scalar_select %p408, %s407, 1
        %s410 = smul.addr %s409, 8
        %s411 = scalar_lea.vmem %s6, %s410
        %s412 = smul.u32 2, %s22
        %p414 = scmp.eq.s32.totalorder %s23, 0
        // Predicated region
        $region79: #{_lambda_.36} parent=73 // pred_check
          %p415 = pneg %p414
        $region80: #{_lambda_.36} parent=73 // pred_check_branch
          %417 = sbr.rel (%p415) target = $region82
        $region81: #{_lambda_.36} parent=73 // pred_region
          %v418 = vld [vmem:[%s397] sm:$0xff]
          %v419 = vld [vmem:[%s397 + $0x8] sm:$0xff]
          %420 = vadd.xlane.f32.xlu0 %v418
          %v421 = vpop.xlane.xlu0 %420
          %422 = vadd.xlane.f32.xlu0 %v419
          %v423 = vpop.xlane.xlu0 %422
          %v424 = vrcp.pop 128.0
          %v425 = vmul.f32 %v421, %v424
          %v426 = vmul.f32 %v423, %v424
          %v427 = vsub.f32 %v418, %v425
          %v428 = vsub.f32 %v419, %v426
          %v429 = vmul.f32 %v427, %v427
          %v430 = vmul.f32 %v428, %v428
          %431 = vadd.xlane.f32.xlu0 %v429
          %v432 = vpop.xlane.xlu0 %431
          %433 = vadd.xlane.f32.xlu0 %v430
          %v434 = vpop.xlane.xlu0 %433
          %v435 = vmul.f32 %v432, %v424
          %v436 = vmul.f32 %v434, %v424
          %v437 = vadd.f32 %v435, 1e-12
          %v438 = vadd.f32 %v436, 1e-12
          %v439 = vrsqrt.pop %v437
          %v440 = vrsqrt.pop %v438
          %v441 = vmul.f32 %v427, %v439
          %v442 = vmul.f32 %v428, %v440
          %v443 = vld [vmem:[%s1] sm:$0x1]
          %v445 = vlaneseq
          %v446 = vshrl.u32 %v445, 7
          %v447 = vsub.s32 0, %v446
          %v448 = vrot.slane %v443, %v447
          %v450 = vmul.f32 %v441, %v448
          %v451 = vmul.f32 %v442, %v448
          %v452 = vld [vmem:[%s2] sm:$0x1]
          %v454 = vlaneseq
          %v455 = vshrl.u32 %v454, 7
          %v456 = vsub.s32 0, %v455
          %v457 = vrot.slane %v452, %v456
          %v459 = vadd.f32 %v450, %v457
          %v460 = vadd.f32 %v451, %v457
          %461 = vst [vmem:[%s411] sm:$0xff] %v459
          %462 = vst [vmem:[%s411 + $0x8] sm:$0xff] %v460
          %v463 = vpack.c.bf16 %v460, %v459
          %464 = vst [vmem:[#allocation2] sm:$0xff] %v463
        $region82: #{_lambda_.36} parent=73 // pred_fallthru
          _
        %v465 = vld [vmem:[#allocation2] sm:$0xff]
        %v466 = vld [vmem:[%s353] sm:$0xff]
        %v467 = vld [vmem:[%s353 + $0x8] sm:$0xff]
        %v468 = vld [vmem:[%s353 + $0x10] sm:$0xff]
        %v469 = vld [vmem:[%s353 + $0x18] sm:$0xff]
        %v470 = vld [vmem:[%s353 + $0x20] sm:$0xff]
        %v471 = vld [vmem:[%s353 + $0x28] sm:$0xff]
        %v472 = vld [vmem:[%s353 + $0x30] sm:$0xff]
        %v473 = vld [vmem:[%s353 + $0x38] sm:$0xff]
        %v474 = vld [vmem:[%s353 + $0x40] sm:$0xff]
        %v475 = vld [vmem:[%s353 + $0x48] sm:$0xff]
        %v476 = vld [vmem:[%s353 + $0x50] sm:$0xff]
        %v477 = vld [vmem:[%s353 + $0x58] sm:$0xff]
        %v478 = vld [vmem:[%s353 + $0x60] sm:$0xff]
        %v479 = vld [vmem:[%s353 + $0x68] sm:$0xff]
        %v480 = vld [vmem:[%s353 + $0x70] sm:$0xff]
        %v481 = vld [vmem:[%s353 + $0x78] sm:$0xff]
        %v482 = vld [vmem:[%s403] sm:$0x3]
        %v484 = vlaneseq
        %v485 = vshrl.u32 %v484, 7
        %v486 = vsub.s32 0, %v485
        %v487 = vrot.slane %v482, %v486
        %v488 = vlaneseq
        %v489 = vshrl.u32 %v488, 7
        %v490 = vsub.s32 1, %v489
        %v491 = vrot.slane %v482, %v490
        %v510 = vunpack.c.l.b16 %v466
        %v511 = vunpack.c.h.b16 %v466
        %v512 = vunpack.c.l.b16 %v467
        %v513 = vunpack.c.h.b16 %v467
        %v514 = vunpack.c.l.b16 %v468
        %v515 = vunpack.c.h.b16 %v468
        %v516 = vunpack.c.l.b16 %v469
        %v517 = vunpack.c.h.b16 %v469
        %v518 = vunpack.c.l.b16 %v470
        %v519 = vunpack.c.h.b16 %v470
        %v520 = vunpack.c.l.b16 %v471
        %v521 = vunpack.c.h.b16 %v471
        %v522 = vunpack.c.l.b16 %v472
        %v523 = vunpack.c.h.b16 %v472
        %v524 = vunpack.c.l.b16 %v473
        %v525 = vunpack.c.h.b16 %v473
        %v526 = vunpack.c.l.b16 %v474
        %v527 = vunpack.c.h.b16 %v474
        %v528 = vunpack.c.l.b16 %v475
        %v529 = vunpack.c.h.b16 %v475
        %v530 = vunpack.c.l.b16 %v476
        %v531 = vunpack.c.h.b16 %v476
        %v532 = vunpack.c.l.b16 %v477
        %v533 = vunpack.c.h.b16 %v477
        %v534 = vunpack.c.l.b16 %v478
        %v535 = vunpack.c.h.b16 %v478
        %v536 = vunpack.c.l.b16 %v479
        %v537 = vunpack.c.h.b16 %v479
        %v538 = vunpack.c.l.b16 %v480
        %v539 = vunpack.c.h.b16 %v480
        %v540 = vunpack.c.l.b16 %v481
        %v541 = vunpack.c.h.b16 %v481
        %v542 = vpack.c.b16 %v512, %v510
        %v543 = vpack.c.b16 %v513, %v511
        %v544 = vpack.c.b16 %v516, %v514
        %v545 = vpack.c.b16 %v517, %v515
        %v546 = vpack.c.b16 %v520, %v518
        %v547 = vpack.c.b16 %v521, %v519
        %v548 = vpack.c.b16 %v524, %v522
        %v549 = vpack.c.b16 %v525, %v523
        %v550 = vpack.c.b16 %v528, %v526
        %v551 = vpack.c.b16 %v529, %v527
        %v552 = vpack.c.b16 %v532, %v530
        %v553 = vpack.c.b16 %v533, %v531
        %v554 = vpack.c.b16 %v536, %v534
        %v555 = vpack.c.b16 %v537, %v535
        %v556 = vpack.c.b16 %v540, %v538
        %v557 = vpack.c.b16 %v541, %v539
        %574 = vmatprep.subr.bf16.mxu0 %v543
        %575 = vmatpush1.bf16.msra.mxu0 %v542
        %576 = vmatprep.subr.bf16.mxu0 %v545
        %577 = vmatpush1.bf16.msra.mxu0 %v544
        %578 = vmatprep.subr.bf16.mxu0 %v547
        %579 = vmatpush1.bf16.msra.mxu0 %v546
        %580 = vmatprep.subr.bf16.mxu0 %v549
        %581 = vmatpush1.bf16.msra.mxu0 %v548
        %582 = vmatprep.subr.bf16.mxu0 %v551
        %583 = vmatpush1.bf16.msra.mxu0 %v550
        %584 = vmatprep.subr.bf16.mxu0 %v553
        %585 = vmatpush1.bf16.msra.mxu0 %v552
        %586 = vmatprep.subr.bf16.mxu0 %v555
        %587 = vmatpush1.bf16.msra.mxu0 %v554
        %588 = vmatprep.subr.bf16.mxu0 %v557
        %589 = vmatpush1.bf16.msra.mxu0 %v556
        %590 = vmatprep.subr.bf16.mxu0 0
        %591 = vmatpush1.bf16.msra.mxu0 0
        %592 = vmatprep.subr.bf16.mxu0 0
        %593 = vmatpush1.bf16.msra.mxu0 0
        %594 = vmatprep.subr.bf16.mxu0 0
        %595 = vmatpush1.bf16.msra.mxu0 0
        %596 = vmatprep.subr.bf16.mxu0 0
        %597 = vmatpush1.bf16.msra.mxu0 0
        %598 = vmatprep.subr.bf16.mxu0 0
        %599 = vmatpush1.bf16.msra.mxu0 0
        %600 = vmatprep.subr.bf16.mxu0 0
        %601 = vmatpush1.bf16.msra.mxu0 0
        %602 = vmatprep.subr.bf16.mxu0 0
        %603 = vmatpush1.bf16.msra.mxu0 0
        %604 = vmatprep.subr.bf16.mxu0 0
        %605 = vmatpush1.bf16.msra.mxu0 0
        %606 = vmatprep.mubr.bf16.mxu0 0
        %607 = vmatmul.mubr.bf16.gmra.mrb[0].mxu0 %v465
        %v608 = vpop.f32.mrb[0].mxu0
        %v609 = vadd.f32 %v487, %v608
        %v610 = vpop.f32.mrb[0].mxu0
        %v611 = vadd.f32 %v491, %v610
        %v612 = vpop.f32.mrb[0].mxu0
        %v613 = vadd.f32 %v487, %v612
        %v614 = vpop.f32.mrb[0].mxu0
        %v615 = vadd.f32 %v491, %v614
        %616 = vdwg.mxu0
        %v617 = vmul.f32 %v609, 0.5
        %v618 = vmul.f32 %v611, 0.5
        %v619 = vmul.f32 %v613, 0.5
        %v620 = vmul.f32 %v615, 0.5
        %v621 = vmul.f32 %v609, 0.044715
        %v622 = vmul.f32 %v611, 0.044715
        %v623 = vmul.f32 %v613, 0.044715
        %v624 = vmul.f32 %v615, 0.044715
        %v625 = vmul.f32 %v621, %v609
        %v626 = vmul.f32 %v622, %v611
        %v627 = vmul.f32 %v623, %v613
        %v628 = vmul.f32 %v624, %v615
        %v629 = vmul.f32 %v625, %v609
        %v630 = vmul.f32 %v626, %v611
        %v631 = vmul.f32 %v627, %v613
        %v632 = vmul.f32 %v628, %v615
        %v633 = vadd.f32 %v609, %v629
        %v634 = vadd.f32 %v611, %v630
        %v635 = vadd.f32 %v613, %v631
        %v636 = vadd.f32 %v615, %v632
        %v637 = vmul.f32 %v633, 0.7978846
        %v638 = vmul.f32 %v634, 0.7978846
        %v639 = vmul.f32 %v635, 0.7978846
        %v640 = vmul.f32 %v636, 0.7978846
        %v641 = vtanh.pop %v637
        %v642 = vtanh.pop %v638
        %v643 = vtanh.pop %v639
        %v644 = vtanh.pop %v640
        %v645 = vadd.f32 %v641, 1.0
        %v646 = vadd.f32 %v642, 1.0
        %v647 = vadd.f32 %v643, 1.0
        %v648 = vadd.f32 %v644, 1.0
        %v649 = vmul.f32 %v617, %v645
        %v650 = vmul.f32 %v618, %v646
        %v651 = vmul.f32 %v619, %v647
        %v652 = vmul.f32 %v620, %v648
        %653 = vst [vmem:[%s385] sm:$0xff] %v649
        %654 = vst [vmem:[%s385 + $0x8] sm:$0xff] %v650
        %655 = vst [vmem:[%s385 + $0x10] sm:$0xff] %v651
        %656 = vst [vmem:[%s385 + $0x18] sm:$0xff] %v652
        %s657 = sand.u32 %s160, 1
        %s658 = sand.u32 %s160, 1
        %s659 = smul.addr %s658, 32
        %s660 = scalar_lea.vmem [#allocation4], %s659
        %s661 = smul.u32 2, %s22
        %p662 = scmp.lt.s32.totalorder %s661, 1
        %s663 = scalar_select %p662, %s661, 1
        %s664 = smul.addr %s663, 8
        %s665 = scalar_lea.vmem %s6, %s664
        // Predicated region
        $region83: #{_lambda_.36} parent=73 // pred_check
          %p666 = pneg %p170
        $region84: #{_lambda_.36} parent=73 // pred_check_branch
          %668 = sbr.rel (%p666) target = $region86
        $region85: #{_lambda_.36} parent=73 // pred_region
          %s669 = smul.u32 2, %s22
          %s670 = smul.u32 2, %s23
          %s671 = smul.addr %s669, 4
          %s672 = sadd.s32 %s670, %s671
          %s673 = smul.addr %s672, 8
          %s674 = scalar_lea.vmem %s5, %s673
          // Predicated region
          $region87: #{_lambda_.36} parent=85 // pred_check
            _
          $region88: #{_lambda_.36} parent=85 // pred_check_branch
            %676 = sbr.rel (0) target = $region90
          $region89: #{_lambda_.36} parent=85 // pred_region
            // Predicated region
            $region91: #{_lambda_.36} parent=89 // pred_check
              _
            $region92: #{_lambda_.36} parent=89 // pred_check_branch
              %678 = sbr.rel (0) target = $region94
            $region93: #{_lambda_.36} parent=89 // pred_region
              loop: start=0, step=1, limit=1
              $region95: #{_lambda_.36} parent=93 // loop_pre_header
                _
              $region96: #{_lambda_.36} parent=93 // loop_header
                %s680 = sphi 0, %s684
                %p681 = scmp.ge.s32.totalorder %s680, 1
                %s685 = sphi %s660, %s660
                %s686 = sphi %s674, %s674
              $region97: #{_lambda_.36} parent=93 // loop_header_branch
                %683 = sbr.rel (%p681) target = $region101
              $region98: #{_lambda_.36} parent=93 // loop_body
                %v687 = vld [vmem:[%s685] sm:$0xff]
                %688 = vst [vmem:[%s686] sm:$0xff] %v687
                %v689 = vld [vmem:[%s685 + $0x8] sm:$0xff]
                %690 = vst [vmem:[%s686 + $0x8] sm:$0xff] %v689
                %v691 = vld [vmem:[%s685 + $0x10] sm:$0xff]
                %692 = vst [vmem:[%s686 + $0x20] sm:$0xff] %v691
                %v693 = vld [vmem:[%s685 + $0x18] sm:$0xff]
                %694 = vst [vmem:[%s686 + $0x28] sm:$0xff] %v693
              $region99: #{_lambda_.36} parent=93 // loop_footer
                %s684 = sadd.s32 1, %s680
              $region100: #{_lambda_.36} parent=93 // loop_footer_branch
                %679 = sbr.rel target = $region96
              $region101: #{_lambda_.36} parent=93 // loop_exit
                _
            $region94: #{_lambda_.36} parent=89 // pred_fallthru
              _
            // Predicated region
            $region102: #{_lambda_.36} parent=89 // pred_check
              _
            $region103: #{_lambda_.36} parent=89 // pred_check_branch
              %696 = sbr.rel target = $region105
            $region104: #{_lambda_.36} parent=89 // pred_region
              _
            $region105: #{_lambda_.36} parent=89 // pred_fallthru
              _
          $region90: #{_lambda_.36} parent=85 // pred_fallthru
            _
          %697 = vnop
        $region86: #{_lambda_.36} parent=73 // pred_fallthru
          _
        // Predicated region
        $region106: #{_lambda_.36} parent=73 // pred_check
          %p698 = pneg %p196
        $region107: #{_lambda_.36} parent=73 // pred_check_branch
          %700 = sbr.rel (%p698) target = $region109
        $region108: #{_lambda_.36} parent=73 // pred_region
          %s701 = smul.u32 2, %s22
        $region109: #{_lambda_.36} parent=73 // pred_fallthru
          _
        // Predicated region
        $region110: #{_lambda_.36} parent=73 // pred_check
          %p702 = pneg %p196
        $region111: #{_lambda_.36} parent=73 // pred_check_branch
          %704 = sbr.rel (%p702) target = $region113
        $region112: #{_lambda_.36} parent=73 // pred_region
          %s705 = smul.u32 2, %s22
          %p706 = scmp.lt.s32.totalorder %s705, 1
          %s707 = scalar_select %p706, %s705, 1
          %s708 = smul.addr %s707, 8
          %s709 = scalar_lea.vmem %s6, %s708
        $region113: #{_lambda_.36} parent=73 // pred_fallthru
          _
      $region74: #{_lambda_.36} parent=5 // pred_fallthru
        _
      %p710 = scmp.le.s32.totalorder 2, %s13
      // Predicated region
      $region114: #{_lambda_.36} parent=5 // pred_check
        %p711 = pneg %p710
      $region115: #{_lambda_.36} parent=5 // pred_check_branch
        %713 = sbr.rel (%p711) target = $region117
      $region116: #{_lambda_.36} parent=5 // pred_region
        %s714 = ssub.s32 %s13, 2
        // Predicated region
        $region118: #{_lambda_.36} parent=116 // pred_check
          %p715 = pneg %p176
        $region119: #{_lambda_.36} parent=116 // pred_check_branch
          %717 = sbr.rel (%p715) target = $region121
        $region120: #{_lambda_.36} parent=116 // pred_region
          %s718 = sand.u32 %s161, 1
          %s719 = sand.u32 %s161, 1
          %s720 = smul.addr %s719, 32
          %s721 = scalar_lea.vmem [#allocation4], %s720
        $region121: #{_lambda_.36} parent=116 // pred_fallthru
          _
      $region117: #{_lambda_.36} parent=5 // pred_fallthru
        _
    $region6: #{_lambda_.36} parent=1 // loop_footer
      %s17 = sadd.s32 1, %s13
    $region7: #{_lambda_.36} parent=1 // loop_footer_branch
      %12 = sbr.rel target = $region3
    $region8: #{_lambda_.36} parent=1 // loop_exit
      _

// kernel: _lambda_.58
$region0: #{_lambda_.58}
  #allocation0 [shape = 'u32[]', space=smem, size = 0x4, offset = 0x4, fixed_abs, tag = 'smem constant byte address 0x4 - core index']
  #allocation1 [shape = 'u32[144,128]{1,0:T(1,128)}', space=vmem, size = 0x12000, scoped, tag = 'internal scratch']
  #allocation2 [shape = 'bf16[16,128]{1,0:T(16,128)(2,1)}', space=vmem, size = 0x1000, scoped, tag = 'scratch operand']
  %s0 = inlined_call_operand.vmem [shape: f32[16,128], index: 0, kind: input, shape index: {}]
  %s1 = inlined_call_operand.vmem [shape: f32[1,128], index: 1, kind: input, shape index: {}]
  %s2 = inlined_call_operand.vmem [shape: f32[1,128], index: 2, kind: input, shape index: {}]
  %s3 = inlined_call_operand.vmem [shape: bf16[128,384], index: 3, kind: input, shape index: {}]
  %s4 = inlined_call_operand.vmem [shape: f32[1,384], index: 4, kind: input, shape index: {}]
  %s5 = inlined_call_operand.vmem [shape: f32[16,384], index: 5, kind: output, shape index: {}]
  %s6 = sld [smem:[#allocation0]]
  $region132: #{_lambda_.58} parent=0
    _
  %s8 = ssub.s32 1, %s6
  %s9 = scalar_select 0, %s8, %s6
  $region1: #{_lambda_.58} parent=0
    #allocation3 [shape = 'u8[65536]{0}', space=vmem, size = 0x10000, scoped, tag = 'input window, operand 3']
    #allocation4 [shape = 'u8[16384]{0}', space=vmem, size = 0x4000, scoped, tag = 'output window, operand 0']
    loop: start=0, step=1, limit=5
    $region2: #{_lambda_.58} parent=1 // loop_pre_header
      _
    $region3: #{_lambda_.58} parent=1 // loop_header
      %s11 = sphi 0, %s15
      %p12 = scmp.ge.s32.totalorder %s11, 5
      %s18 = sphi 0, %s30
      %s19 = sphi 0, %s26
      %s20 = sphi 0, %s18
      %s21 = sphi 0, %s19
      %s22 = sphi 0, %s20
      %s23 = sphi 0, %s21
      %s33 = sphi 0, %s35
      %s36 = sphi 0, %s33
      %s37 = sphi 0, %s36
      %s53 = sphi 0, %s37
      %s57 = sphi 0, %s57
      %s59 = sphi 0, %s57
      %s60 = sphi 0, %s59
      %s74 = sphi 0, %s60
      %s78 = sphi 0, %s78
      %s80 = sphi 0, %s78
      %s81 = sphi 0, %s80
      %s95 = sphi 0, %s81
      %s101 = sphi 0, %s103
      %s104 = sphi 0, %s101
      %s105 = sphi 0, %s104
      %s121 = sphi 0, %s105
      %s127 = sphi 0, %s129
      %s130 = sphi 0, %s127
      %s131 = sphi 0, %s130
      %s147 = sphi 0, %s131
      %s155 = sphi 0, %s157
      %s158 = sphi 0, %s155
      %s159 = sphi 0, %s158
      %s175 = sphi 0, %s159
    $region4: #{_lambda_.58} parent=1 // loop_header_branch
      %14 = sbr.rel (%p12) target = $region8
    $region5: #{_lambda_.58} parent=1 // loop_body
      %s16 = ssub.s32 %s11, 1
      %s17 = ssub.s32 %s11, 2
      %s24 = sadd.s32 1, %s19
      %p25 = scmp.ge.s32.totalorder %s24, 3
      %s26 = scalar_select %p25, 0, %s24
      %s27 = sadd.s32 1, %s18
      %s28 = scalar_select %p25, %s27, %s18
      %p29 = scmp.ge.s32.totalorder %s28, 1
      %s30 = scalar_select %p29, 0, %s28
      %s31 = ssub.s32 %s18, %s30
      %p32 = scmp.eq.s32.totalorder %s31, 0
      %s34 = sadd.s32 %s33, 1
      %s35 = scalar_select %p32, %s33, %s34
      %p38 = pneg %p32
      %p39 = scmp.eq.s32.totalorder %s11, 2
      %p40 = por %p38, %p39
      %p41 = scmp.ne.s32.totalorder %s33, %s36
      %p42 = scmp.eq.s32.totalorder %s11, 0
      %p43 = por %p41, %p42
      %p44 = scmp.ne.s32.totalorder %s33, %s36
      %p45 = scmp.eq.s32.totalorder %s16, 2
      %p46 = por %p44, %p45
      %p47 = scmp.ne.s32.totalorder %s36, %s37
      %p48 = scmp.eq.s32.totalorder %s16, 0
      %p49 = por %p47, %p48
      %p50 = scmp.ne.s32.totalorder %s36, %s37
      %p51 = scmp.eq.s32.totalorder %s17, 2
      %p52 = por %p50, %p51
      %p54 = scmp.ne.s32.totalorder %s37, %s53
      %p55 = scmp.eq.s32.totalorder %s17, 0
      %p56 = por %p54, %p55
      %s58 = sadd.s32 %s57, 1
      %p61 = scmp.eq.s32.totalorder %s11, 2
      %p62 = scmp.ne.s32.totalorder %s57, %s59
      %p63 = scmp.eq.s32.totalorder %s11, 0
      %p64 = por %p62, %p63
      %p65 = scmp.ne.s32.totalorder %s57, %s59
      %p66 = scmp.eq.s32.totalorder %s16, 2
      %p67 = por %p65, %p66
      %p68 = scmp.ne.s32.totalorder %s59, %s60
      %p69 = scmp.eq.s32.totalorder %s16, 0
      %p70 = por %p68, %p69
      %p71 = scmp.ne.s32.totalorder %s59, %s60
      %p72 = scmp.eq.s32.totalorder %s17, 2
      %p73 = por %p71, %p72
      %p75 = scmp.ne.s32.totalorder %s60, %s74
      %p76 = scmp.eq.s32.totalorder %s17, 0
      %p77 = por %p75, %p76
      %s79 = sadd.s32 %s78, 1
      %p82 = scmp.eq.s32.totalorder %s11, 2
      %p83 = scmp.ne.s32.totalorder %s78, %s80
      %p84 = scmp.eq.s32.totalorder %s11, 0
      %p85 = por %p83, %p84
      %p86 = scmp.ne.s32.totalorder %s78, %s80
      %p87 = scmp.eq.s32.totalorder %s16, 2
      %p88 = por %p86, %p87
      %p89 = scmp.ne.s32.totalorder %s80, %s81
      %p90 = scmp.eq.s32.totalorder %s16, 0
      %p91 = por %p89, %p90
      %p92 = scmp.ne.s32.totalorder %s80, %s81
      %p93 = scmp.eq.s32.totalorder %s17, 2
      %p94 = por %p92, %p93
      %p96 = scmp.ne.s32.totalorder %s81, %s95
      %p97 = scmp.eq.s32.totalorder %s17, 0
      %p98 = por %p96, %p97
      %s99 = ssub.s32 %s19, %s26
      %p100 = scmp.eq.s32.totalorder %s99, 0
      %s102 = sadd.s32 %s101, 1
      %s103 = scalar_select %p100, %s101, %s102
      %p106 = pneg %p100
      %p107 = scmp.eq.s32.totalorder %s11, 2
      %p108 = por %p106, %p107
      %p109 = scmp.ne.s32.totalorder %s101, %s104
      %p110 = scmp.eq.s32.totalorder %s11, 0
      %p111 = por %p109, %p110
      %p112 = scmp.ne.s32.totalorder %s101, %s104
      %p113 = scmp.eq.s32.totalorder %s16, 2
      %p114 = por %p112, %p113
      %p115 = scmp.ne.s32.totalorder %s104, %s105
      %p116 = scmp.eq.s32.totalorder %s16, 0
      %p117 = por %p115, %p116
      %p118 = scmp.ne.s32.totalorder %s104, %s105
      %p119 = scmp.eq.s32.totalorder %s17, 2
      %p120 = por %p118, %p119
      %p122 = scmp.ne.s32.totalorder %s105, %s121
      %p123 = scmp.eq.s32.totalorder %s17, 0
      %p124 = por %p122, %p123
      %s125 = ssub.s32 %s19, %s26
      %p126 = scmp.eq.s32.totalorder %s125, 0
      %s128 = sadd.s32 %s127, 1
      %s129 = scalar_select %p126, %s127, %s128
      %p132 = pneg %p126
      %p133 = scmp.eq.s32.totalorder %s11, 2
      %p134 = por %p132, %p133
      %p135 = scmp.ne.s32.totalorder %s127, %s130
      %p136 = scmp.eq.s32.totalorder %s11, 0
      %p137 = por %p135, %p136
      %p138 = scmp.ne.s32.totalorder %s127, %s130
      %p139 = scmp.eq.s32.totalorder %s16, 2
      %p140 = por %p138, %p139
      %p141 = scmp.ne.s32.totalorder %s130, %s131
      %p142 = scmp.eq.s32.totalorder %s16, 0
      %p143 = por %p141, %p142
      %p144 = scmp.ne.s32.totalorder %s130, %s131
      %p145 = scmp.eq.s32.totalorder %s17, 2
      %p146 = por %p144, %p145
      %p148 = scmp.ne.s32.totalorder %s131, %s147
      %p149 = scmp.eq.s32.totalorder %s17, 0
      %p150 = por %p148, %p149
      %s151 = ssub.s32 %s18, %s30
      %s152 = ssub.s32 %s19, %s26
      %s153 = sor.u32 %s151, %s152
      %p154 = scmp.eq.s32.totalorder %s153, 0
      %s156 = sadd.s32 %s155, 1
      %s157 = scalar_select %p154, %s155, %s156
      %p160 = pneg %p154
      %p161 = scmp.eq.s32.totalorder %s11, 2
      %p162 = por %p160, %p161
      %p163 = scmp.ne.s32.totalorder %s155, %s158
      %p164 = scmp.eq.s32.totalorder %s11, 0
      %p165 = por %p163, %p164
      %p166 = scmp.ne.s32.totalorder %s155, %s158
      %p167 = scmp.eq.s32.totalorder %s16, 2
      %p168 = por %p166, %p167
      %p169 = scmp.ne.s32.totalorder %s158, %s159
      %p170 = scmp.eq.s32.totalorder %s16, 0
      %p171 = por %p169, %p170
      %p172 = scmp.ne.s32.totalorder %s158, %s159
      %p173 = scmp.eq.s32.totalorder %s17, 2
      %p174 = por %p172, %p173
      %p176 = scmp.ne.s32.totalorder %s159, %s175
      %p177 = scmp.eq.s32.totalorder %s17, 0
      %p178 = por %p176, %p177
      %p179 = scmp.le.s32.totalorder 1, %s11
      %p180 = scmp.lt.s32.totalorder %s11, 4
      %p181 = pnand %p179, %p180
      %p182 = pneg %p181
      // Predicated region
      $region9: #{_lambda_.58} parent=5 // pred_check
        _
      $region10: #{_lambda_.58} parent=5 // pred_check_branch
        %184 = sbr.rel (%p181) target = $region12
      $region11: #{_lambda_.58} parent=5 // pred_region
        %s185 = ssub.s32 %s11, 1
        // Predicated region
        $region13: #{_lambda_.58} parent=11 // pred_check
          %p186 = pneg %p49
        $region14: #{_lambda_.58} parent=11 // pred_check_branch
          %188 = sbr.rel (%p186) target = $region16
        $region15: #{_lambda_.58} parent=11 // pred_region
          %s189 = smul.u32 2, %s20
          %p190 = scmp.lt.s32.totalorder %s189, 1
          %s191 = scalar_select %p190, %s189, 1
          %s192 = smul.addr %s191, 8
          %s193 = scalar_lea.vmem %s0, %s192
          %s194 = smul.u32 2, %s20
        $region16: #{_lambda_.58} parent=11 // pred_fallthru
          _
        // Predicated region
        $region17: #{_lambda_.58} parent=11 // pred_check
          %p195 = pneg %p70
        $region18: #{_lambda_.58} parent=11 // pred_check_branch
          %197 = sbr.rel (%p195) target = $region20
        $region19: #{_lambda_.58} parent=11 // pred_region
          _
        $region20: #{_lambda_.58} parent=11 // pred_fallthru
          _
        // Predicated region
        $region21: #{_lambda_.58} parent=11 // pred_check
          %p198 = pneg %p91
        $region22: #{_lambda_.58} parent=11 // pred_check_branch
          %200 = sbr.rel (%p198) target = $region24
        $region23: #{_lambda_.58} parent=11 // pred_region
          _
        $region24: #{_lambda_.58} parent=11 // pred_fallthru
          _
      $region12: #{_lambda_.58} parent=5 // pred_fallthru
        _
      %p201 = scmp.lt.s32.totalorder %s11, 3
      // Predicated region
      $region25: #{_lambda_.58} parent=5 // pred_check
        %p202 = pneg %p201
      $region26: #{_lambda_.58} parent=5 // pred_check_branch
        %204 = sbr.rel (%p202) target = $region28
      $region27: #{_lambda_.58} parent=5 // pred_region
        // Predicated region
        $region29: #{_lambda_.58} parent=27 // pred_check
          %p205 = pneg %p111
        $region30: #{_lambda_.58} parent=27 // pred_check_branch
          %207 = sbr.rel (%p205) target = $region32
        $region31: #{_lambda_.58} parent=27 // pred_region
          %s208 = sand.u32 %s101, 1
          %s209 = sand.u32 %s101, 1
          %s210 = smul.addr %s209, 64
          %s211 = scalar_lea.vmem [#allocation3], %s210
          %s212 = smul.addr %s19, 4
          %s213 = scalar_lea.vmem %s3, %s212
          // Predicated region
          $region33: #{_lambda_.58} parent=31 // pred_check
            _
          $region34: #{_lambda_.58} parent=31 // pred_check_branch
            %215 = sbr.rel (0) target = $region36
          $region35: #{_lambda_.58} parent=31 // pred_region
            // Predicated region
            $region37: #{_lambda_.58} parent=35 // pred_check
              _
            $region38: #{_lambda_.58} parent=35 // pred_check_branch
              %217 = sbr.rel target = $region40
            $region39: #{_lambda_.58} parent=35 // pred_region
              // Predicated region
              $region52: #{_lambda_.58} parent=39 // pred_check
                _
              $region53: #{_lambda_.58} parent=39 // pred_check_branch
                %262 = sbr.rel (0) target = $region55
              $region54: #{_lambda_.58} parent=39 // pred_region
                loop: start=0, step=1, limit=1
                $region56: #{_lambda_.58} parent=54 // loop_pre_header
                  _
                $region57: #{_lambda_.58} parent=54 // loop_header
                  %s264 = sphi 0, %s268
                  %p265 = scmp.ge.s32.totalorder %s264, 1
                  %s269 = sphi %s213, %s213
                  %s270 = sphi %s211, %s211
                $region58: #{_lambda_.58} parent=54 // loop_header_branch
                  %267 = sbr.rel (%p265) target = $region62
                $region59: #{_lambda_.58} parent=54 // loop_body
                  _
                $region60: #{_lambda_.58} parent=54 // loop_footer
                  %s268 = sadd.s32 1, %s264
                $region61: #{_lambda_.58} parent=54 // loop_footer_branch
                  %263 = sbr.rel target = $region57
                $region62: #{_lambda_.58} parent=54 // loop_exit
                  _
                loop: start=0, step=1, limit=1
                $region63: #{_lambda_.58} parent=54 // loop_pre_header
                  _
                $region64: #{_lambda_.58} parent=54 // loop_header
                  %s273 = sphi 0, %s277
                  %p274 = scmp.ge.s32.totalorder %s273, 1
                  %s278 = sphi %s213, %s213
                  %s279 = sphi %s211, %s211
                $region65: #{_lambda_.58} parent=54 // loop_header_branch
                  %276 = sbr.rel (%p274) target = $region69
                $region66: #{_lambda_.58} parent=54 // loop_body
                  %v280 = vld [vmem:[%s278] sm:$0xf]
                  %281 = vst [vmem:[%s279] sm:$0xf] %v280
                  %v282 = vld [vmem:[%s278 + $0xc] sm:$0xf]
                  %283 = vst [vmem:[%s279 + $0x4] sm:$0xf] %v282
                  %v284 = vld [vmem:[%s278 + $0x18] sm:$0xf]
                  %285 = vst [vmem:[%s279 + $0x8] sm:$0xf] %v284
                  %v286 = vld [vmem:[%s278 + $0x24] sm:$0xf]
                  %287 = vst [vmem:[%s279 + $0xc] sm:$0xf] %v286
                  %v288 = vld [vmem:[%s278 + $0x30] sm:$0xf]
                  %289 = vst [vmem:[%s279 + $0x10] sm:$0xf] %v288
                  %v290 = vld [vmem:[%s278 + $0x3c] sm:$0xf]
                  %291 = vst [vmem:[%s279 + $0x14] sm:$0xf] %v290
                  %v292 = vld [vmem:[%s278 + $0x48] sm:$0xf]
                  %293 = vst [vmem:[%s279 + $0x18] sm:$0xf] %v292
                  %v294 = vld [vmem:[%s278 + $0x54] sm:$0xf]
                  %295 = vst [vmem:[%s279 + $0x1c] sm:$0xf] %v294
                  %v296 = vld [vmem:[%s278 + $0x60] sm:$0xf]
                  %297 = vst [vmem:[%s279 + $0x20] sm:$0xf] %v296
                  %v298 = vld [vmem:[%s278 + $0x6c] sm:$0xf]
                  %299 = vst [vmem:[%s279 + $0x24] sm:$0xf] %v298
                  %v300 = vld [vmem:[%s278 + $0x78] sm:$0xf]
                  %301 = vst [vmem:[%s279 + $0x28] sm:$0xf] %v300
                  %v302 = vld [vmem:[%s278 + $0x84] sm:$0xf]
                  %303 = vst [vmem:[%s279 + $0x2c] sm:$0xf] %v302
                  %v304 = vld [vmem:[%s278 + $0x90] sm:$0xf]
                  %305 = vst [vmem:[%s279 + $0x30] sm:$0xf] %v304
                  %v306 = vld [vmem:[%s278 + $0x9c] sm:$0xf]
                  %307 = vst [vmem:[%s279 + $0x34] sm:$0xf] %v306
                  %v308 = vld [vmem:[%s278 + $0xa8] sm:$0xf]
                  %309 = vst [vmem:[%s279 + $0x38] sm:$0xf] %v308
                  %v310 = vld [vmem:[%s278 + $0xb4] sm:$0xf]
                  %311 = vst [vmem:[%s279 + $0x3c] sm:$0xf] %v310
                $region67: #{_lambda_.58} parent=54 // loop_footer
                  %s277 = sadd.s32 1, %s273
                $region68: #{_lambda_.58} parent=54 // loop_footer_branch
                  %272 = sbr.rel target = $region64
                $region69: #{_lambda_.58} parent=54 // loop_exit
                  _
              $region55: #{_lambda_.58} parent=39 // pred_fallthru
                _
            $region40: #{_lambda_.58} parent=35 // pred_fallthru
              _
            // Predicated region
            $region41: #{_lambda_.58} parent=35 // pred_check
              _
            $region42: #{_lambda_.58} parent=35 // pred_check_branch
              %219 = sbr.rel (0) target = $region44
            $region43: #{_lambda_.58} parent=35 // pred_region
              loop: start=0, step=1, limit=1
              $region45: #{_lambda_.58} parent=43 // loop_pre_header
                _
              $region46: #{_lambda_.58} parent=43 // loop_header
                %s222 = sphi 0, %s226
                %p223 = scmp.ge.s32.totalorder %s222, 1
                %s227 = sphi %s213, %s213
                %s228 = sphi %s211, %s211
              $region47: #{_lambda_.58} parent=43 // loop_header_branch
                %225 = sbr.rel (%p223) target = $region51
              $region48: #{_lambda_.58} parent=43 // loop_body
                %v229 = vld [vmem:[%s227] sm:$0xf]
                %230 = vst [vmem:[%s228] sm:$0xf] %v229
                %v231 = vld [vmem:[%s227 + $0xc] sm:$0xf]
                %232 = vst [vmem:[%s228 + $0x4] sm:$0xf] %v231
                %v233 = vld [vmem:[%s227 + $0x18] sm:$0xf]
                %234 = vst [vmem:[%s228 + $0x8] sm:$0xf] %v233
                %v235 = vld [vmem:[%s227 + $0x24] sm:$0xf]
                %236 = vst [vmem:[%s228 + $0xc] sm:$0xf] %v235
                %v237 = vld [vmem:[%s227 + $0x30] sm:$0xf]
                %238 = vst [vmem:[%s228 + $0x10] sm:$0xf] %v237
                %v239 = vld [vmem:[%s227 + $0x3c] sm:$0xf]
                %240 = vst [vmem:[%s228 + $0x14] sm:$0xf] %v239
                %v241 = vld [vmem:[%s227 + $0x48] sm:$0xf]
                %242 = vst [vmem:[%s228 + $0x18] sm:$0xf] %v241
                %v243 = vld [vmem:[%s227 + $0x54] sm:$0xf]
                %244 = vst [vmem:[%s228 + $0x1c] sm:$0xf] %v243
                %v245 = vld [vmem:[%s227 + $0x60] sm:$0xf]
                %246 = vst [vmem:[%s228 + $0x20] sm:$0xf] %v245
                %v247 = vld [vmem:[%s227 + $0x6c] sm:$0xf]
                %248 = vst [vmem:[%s228 + $0x24] sm:$0xf] %v247
                %v249 = vld [vmem:[%s227 + $0x78] sm:$0xf]
                %250 = vst [vmem:[%s228 + $0x28] sm:$0xf] %v249
                %v251 = vld [vmem:[%s227 + $0x84] sm:$0xf]
                %252 = vst [vmem:[%s228 + $0x2c] sm:$0xf] %v251
                %v253 = vld [vmem:[%s227 + $0x90] sm:$0xf]
                %254 = vst [vmem:[%s228 + $0x30] sm:$0xf] %v253
                %v255 = vld [vmem:[%s227 + $0x9c] sm:$0xf]
                %256 = vst [vmem:[%s228 + $0x34] sm:$0xf] %v255
                %v257 = vld [vmem:[%s227 + $0xa8] sm:$0xf]
                %258 = vst [vmem:[%s228 + $0x38] sm:$0xf] %v257
                %v259 = vld [vmem:[%s227 + $0xb4] sm:$0xf]
                %260 = vst [vmem:[%s228 + $0x3c] sm:$0xf] %v259
              $region49: #{_lambda_.58} parent=43 // loop_footer
                %s226 = sadd.s32 1, %s222
              $region50: #{_lambda_.58} parent=43 // loop_footer_branch
                %221 = sbr.rel target = $region46
              $region51: #{_lambda_.58} parent=43 // loop_exit
                _
            $region44: #{_lambda_.58} parent=35 // pred_fallthru
              _
          $region36: #{_lambda_.58} parent=31 // pred_fallthru
            _
          %312 = vnop
        $region32: #{_lambda_.58} parent=27 // pred_fallthru
          _
        // Predicated region
        $region70: #{_lambda_.58} parent=27 // pred_check
          %p313 = pneg %p137
        $region71: #{_lambda_.58} parent=27 // pred_check_branch
          %315 = sbr.rel (%p313) target = $region73
        $region72: #{_lambda_.58} parent=27 // pred_region
          %p316 = scmp.lt.s32.totalorder %s19, 2
          %s317 = scalar_select %p316, %s19, 2
          %s318 = scalar_lea.vmem %s4, %s317
        $region73: #{_lambda_.58} parent=27 // pred_fallthru
          _
      $region28: #{_lambda_.58} parent=5 // pred_fallthru
        _
      %p319 = scmp.le.s32.totalorder 1, %s11
      %p320 = scmp.lt.s32.totalorder %s11, 4
      %p321 = pnand %p319, %p320
      %p322 = pneg %p321
      // Predicated region
      $region74: #{_lambda_.58} parent=5 // pred_check
        _
      $region75: #{_lambda_.58} parent=5 // pred_check_branch
        %324 = sbr.rel (%p321) target = $region77
      $region76: #{_lambda_.58} parent=5 // pred_region
        %s325 = ssub.s32 %s11, 1
        %s326 = sand.u32 %s104, 1
        %s327 = sand.u32 %s104, 1
        %s328 = smul.addr %s327, 64
        %s329 = scalar_lea.vmem [#allocation3], %s328
        // Predicated region
        $region78: #{_lambda_.58} parent=76 // pred_check
          %p330 = pneg %p117
        $region79: #{_lambda_.58} parent=76 // pred_check_branch
          %332 = sbr.rel (%p330) target = $region81
        $region80: #{_lambda_.58} parent=76 // pred_region
          _
        $region81: #{_lambda_.58} parent=76 // pred_fallthru
          _
        %s333 = smul.u32 2, %s20
        %p334 = scmp.lt.s32.totalorder %s333, 1
        %s335 = scalar_select %p334, %s333, 1
        %s336 = smul.addr %s335, 8
        %s337 = scalar_lea.vmem %s0, %s336
        %p338 = pneg %p49
        %p339 = pneg %p46
        %p340 = pneg %p70
        %p341 = pneg %p67
        %p342 = pneg %p91
        %p343 = pneg %p88
        %s344 = sand.u32 %s104, 1
        %s345 = sand.u32 %s104, 1
        %s346 = smul.addr %s345, 64
        %s347 = scalar_lea.vmem [#allocation3], %s346
        %p348 = pneg %p117
        %p349 = pneg %p114
        %p350 = scmp.lt.s32.totalorder %s21, 2
        %s351 = scalar_select %p350, %s21, 2
        %s352 = scalar_lea.vmem %s4, %s351
        %p353 = pneg %p143
        %p354 = pneg %p140
        %p355 = pneg %p171
        %p356 = pneg %p168
        %s357 = sand.u32 %s158, 1
        %s358 = sand.u32 %s158, 1
        %s359 = smul.addr %s358, 16
        %s360 = scalar_lea.vmem [#allocation4], %s359
        %s361 = smul.u32 2, %s20
        %p362 = scmp.lt.s32.totalorder %s361, 1
        %s363 = scalar_select %p362, %s361, 1
        %s364 = smul.addr %s363, 8
        %s365 = scalar_lea.vmem %s0, %s364
        %s366 = smul.u32 2, %s20
        %p367 = scmp.lt.s32.totalorder %s21, 2
        %s368 = scalar_select %p367, %s21, 2
        %s369 = scalar_lea.vmem %s4, %s368
        %s370 = smul.u32 2, %s20
        %p372 = scmp.eq.s32.totalorder %s21, 0
        // Predicated region
        $region82: #{_lambda_.58} parent=76 // pred_check
          %p373 = pneg %p372
        $region83: #{_lambda_.58} parent=76 // pred_check_branch
          %375 = sbr.rel (%p373) target = $region85
        $region84: #{_lambda_.58} parent=76 // pred_region
          %v376 = vld [vmem:[%s365] sm:$0xff]
          %v377 = vld [vmem:[%s365 + $0x8] sm:$0xff]
          %378 = vadd.xlane.f32.xlu0 %v376
          %v379 = vpop.xlane.xlu0 %378
          %380 = vadd.xlane.f32.xlu0 %v377
          %v381 = vpop.xlane.xlu0 %380
          %v382 = vrcp.pop 128.0
          %v383 = vmul.f32 %v379, %v382
          %v384 = vmul.f32 %v381, %v382
          %v385 = vsub.f32 %v376, %v383
          %v386 = vsub.f32 %v377, %v384
          %v387 = vmul.f32 %v385, %v385
          %v388 = vmul.f32 %v386, %v386
          %389 = vadd.xlane.f32.xlu0 %v387
          %v390 = vpop.xlane.xlu0 %389
          %391 = vadd.xlane.f32.xlu0 %v388
          %v392 = vpop.xlane.xlu0 %391
          %v393 = vmul.f32 %v390, %v382
          %v394 = vmul.f32 %v392, %v382
          %v395 = vadd.f32 %v393, 1e-12
          %v396 = vadd.f32 %v394, 1e-12
          %v397 = vrsqrt.pop %v395
          %v398 = vrsqrt.pop %v396
          %v399 = vmul.f32 %v385, %v397
          %v400 = vmul.f32 %v386, %v398
          %v401 = vld [vmem:[%s1] sm:$0x1]
          %v403 = vlaneseq
          %v404 = vshrl.u32 %v403, 7
          %v405 = vsub.s32 0, %v404
          %v406 = vrot.slane %v401, %v405
          %v408 = vmul.f32 %v399, %v406
          %v409 = vmul.f32 %v400, %v406
          %v410 = vld [vmem:[%s2] sm:$0x1]
          %v412 = vlaneseq
          %v413 = vshrl.u32 %v412, 7
          %v414 = vsub.s32 0, %v413
          %v415 = vrot.slane %v410, %v414
          %v417 = vadd.f32 %v408, %v415
          %v418 = vadd.f32 %v409, %v415
          %v419 = vpack.c.bf16 %v418, %v417
          %420 = vst [vmem:[#allocation2] sm:$0xff] %v419
        $region85: #{_lambda_.58} parent=76 // pred_fallthru
          _
        %v421 = vld [vmem:[#allocation2] sm:$0xff]
        %v422 = vld [vmem:[%s329] sm:$0xf]
        %v423 = vld [vmem:[%s329 + $0x4] sm:$0xf]
        %v424 = vld [vmem:[%s329 + $0x8] sm:$0xf]
        %v425 = vld [vmem:[%s329 + $0xc] sm:$0xf]
        %v426 = vld [vmem:[%s329 + $0x10] sm:$0xf]
        %v427 = vld [vmem:[%s329 + $0x14] sm:$0xf]
        %v428 = vld [vmem:[%s329 + $0x18] sm:$0xf]
        %v429 = vld [vmem:[%s329 + $0x1c] sm:$0xf]
        %v430 = vld [vmem:[%s329 + $0x20] sm:$0xf]
        %v431 = vld [vmem:[%s329 + $0x24] sm:$0xf]
        %v432 = vld [vmem:[%s329 + $0x28] sm:$0xf]
        %v433 = vld [vmem:[%s329 + $0x2c] sm:$0xf]
        %v434 = vld [vmem:[%s329 + $0x30] sm:$0xf]
        %v435 = vld [vmem:[%s329 + $0x34] sm:$0xf]
        %v436 = vld [vmem:[%s329 + $0x38] sm:$0xf]
        %v437 = vld [vmem:[%s329 + $0x3c] sm:$0xf]
        %v438 = vld [vmem:[%s369] sm:$0x1]
        %v440 = vlaneseq
        %v441 = vshrl.u32 %v440, 7
        %v442 = vsub.s32 0, %v441
        %v443 = vrot.slane %v438, %v442
        %v461 = vunpack.c.l.b16 %v422
        %v462 = vunpack.c.l.b16 %v423
        %v463 = vunpack.c.l.b16 %v424
        %v464 = vunpack.c.l.b16 %v425
        %v465 = vunpack.c.l.b16 %v426
        %v466 = vunpack.c.l.b16 %v427
        %v467 = vunpack.c.l.b16 %v428
        %v468 = vunpack.c.l.b16 %v429
        %v469 = vunpack.c.l.b16 %v430
        %v470 = vunpack.c.l.b16 %v431
        %v471 = vunpack.c.l.b16 %v432
        %v472 = vunpack.c.l.b16 %v433
        %v473 = vunpack.c.l.b16 %v434
        %v474 = vunpack.c.l.b16 %v435
        %v475 = vunpack.c.l.b16 %v436
        %v476 = vunpack.c.l.b16 %v437
        %v477 = vpack.c.b16 %v462, %v461
        %v478 = vpack.c.b16 %v464, %v463
        %v479 = vpack.c.b16 %v466, %v465
        %v480 = vpack.c.b16 %v468, %v467
        %v481 = vpack.c.b16 %v470, %v469
        %v482 = vpack.c.b16 %v472, %v471
        %v483 = vpack.c.b16 %v474, %v473
        %v484 = vpack.c.b16 %v476, %v475
        %493 = vmatprep.subr.bf16.mxu0 0
        %494 = vmatpush1.bf16.msra.mxu0 %v477
        %495 = vmatprep.subr.bf16.mxu0 0
        %496 = vmatpush1.bf16.msra.mxu0 %v478
        %497 = vmatprep.subr.bf16.mxu0 0
        %498 = vmatpush1.bf16.msra.mxu0 %v479
        %499 = vmatprep.subr.bf16.mxu0 0
        %500 = vmatpush1.bf16.msra.mxu0 %v480
        %501 = vmatprep.subr.bf16.mxu0 0
        %502 = vmatpush1.bf16.msra.mxu0 %v481
        %503 = vmatprep.subr.bf16.mxu0 0
        %504 = vmatpush1.bf16.msra.mxu0 %v482
        %505 = vmatprep.subr.bf16.mxu0 0
        %506 = vmatpush1.bf16.msra.mxu0 %v483
        %507 = vmatprep.subr.bf16.mxu0 0
        %508 = vmatpush1.bf16.msra.mxu0 %v484
        %509 = vmatprep.subr.bf16.mxu0 0
        %510 = vmatpush1.bf16.msra.mxu0 0
        %511 = vmatprep.subr.bf16.mxu0 0
        %512 = vmatpush1.bf16.msra.mxu0 0
        %513 = vmatprep.subr.bf16.mxu0 0
        %514 = vmatpush1.bf16.msra.mxu0 0
        %515 = vmatprep.subr.bf16.mxu0 0
        %516 = vmatpush1.bf16.msra.mxu0 0
        %517 = vmatprep.subr.bf16.mxu0 0
        %518 = vmatpush1.bf16.msra.mxu0 0
        %519 = vmatprep.subr.bf16.mxu0 0
        %520 = vmatpush1.bf16.msra.mxu0 0
        %521 = vmatprep.subr.bf16.mxu0 0
        %522 = vmatpush1.bf16.msra.mxu0 0
        %523 = vmatprep.subr.bf16.mxu0 0
        %524 = vmatpush1.bf16.msra.mxu0 0
        %525 = vmatprep.mubr.bf16.mxu0 0
        %526 = vmatmul.mubr.bf16.gmra.mrb[0].mxu0 %v421
        %v527 = vpop.f32.mrb[0].mxu0
        %v528 = vadd.f32 %v443, %v527
        %v529 = vpop.f32.mrb[0].mxu0
        %v530 = vpop.f32.mrb[0].mxu0
        %v531 = vadd.f32 %v443, %v530
        %v532 = vpop.f32.mrb[0].mxu0
        %533 = vdwg.mxu0
        %534 = vst [vmem:[%s360] sm:$0xff] %v528
        %535 = vst [vmem:[%s360 + $0x8] sm:$0xff] %v531
        %s536 = sand.u32 %s158, 1
        %s537 = sand.u32 %s158, 1
        %s538 = smul.addr %s537, 16
        %s539 = scalar_lea.vmem [#allocation4], %s538
        // Predicated region
        $region86: #{_lambda_.58} parent=76 // pred_check
          %p540 = pneg %p168
        $region87: #{_lambda_.58} parent=76 // pred_check_branch
          %542 = sbr.rel (%p540) target = $region89
        $region88: #{_lambda_.58} parent=76 // pred_region
          %s543 = smul.u32 2, %s20
          %s544 = smul.addr %s543, 3
          %s545 = sadd.s32 %s21, %s544
          %s546 = smul.addr %s545, 8
          %s547 = scalar_lea.vmem %s5, %s546
          // Predicated region
          $region90: #{_lambda_.58} parent=88 // pred_check
            _
          $region91: #{_lambda_.58} parent=88 // pred_check_branch
            %549 = sbr.rel (0) target = $region93
          $region92: #{_lambda_.58} parent=88 // pred_region
            // Predicated region
            $region94: #{_lambda_.58} parent=92 // pred_check
              _
            $region95: #{_lambda_.58} parent=92 // pred_check_branch
              %551 = sbr.rel (0) target = $region97
            $region96: #{_lambda_.58} parent=92 // pred_region
              // Predicated region
              $region109: #{_lambda_.58} parent=96 // pred_check
                _
              $region110: #{_lambda_.58} parent=96 // pred_check_branch
                %568 = sbr.rel (0) target = $region112
              $region111: #{_lambda_.58} parent=96 // pred_region
                loop: start=0, step=1, limit=1
                $region113: #{_lambda_.58} parent=111 // loop_pre_header
                  _
                $region114: #{_lambda_.58} parent=111 // loop_header
                  %s570 = sphi 0, %s574
                  %p571 = scmp.ge.s32.totalorder %s570, 1
                  %s575 = sphi %s539, %s539
                  %s576 = sphi %s547, %s547
                $region115: #{_lambda_.58} parent=111 // loop_header_branch
                  %573 = sbr.rel (%p571) target = $region119
                $region116: #{_lambda_.58} parent=111 // loop_body
                  %v577 = vld [vmem:[%s575] sm:$0xff]
                  %578 = vst [vmem:[%s576] sm:$0xff] %v577
                  %v579 = vld [vmem:[%s575 + $0x8] sm:$0xff]
                  %580 = vst [vmem:[%s576 + $0x18] sm:$0xff] %v579
                $region117: #{_lambda_.58} parent=111 // loop_footer
                  %s574 = sadd.s32 1, %s570
                $region118: #{_lambda_.58} parent=111 // loop_footer_branch
                  %569 = sbr.rel target = $region114
                $region119: #{_lambda_.58} parent=111 // loop_exit
                  _
              $region112: #{_lambda_.58} parent=96 // pred_fallthru
                _
              // Predicated region
              $region120: #{_lambda_.58} parent=96 // pred_check
                _
              $region121: #{_lambda_.58} parent=96 // pred_check_branch
                %582 = sbr.rel target = $region123
              $region122: #{_lambda_.58} parent=96 // pred_region
                _
              $region123: #{_lambda_.58} parent=96 // pred_fallthru
                _
            $region97: #{_lambda_.58} parent=92 // pred_fallthru
              _
            // Predicated region
            $region98: #{_lambda_.58} parent=92 // pred_check
              _
            $region99: #{_lambda_.58} parent=92 // pred_check_branch
              %553 = sbr.rel target = $region101
            $region100: #{_lambda_.58} parent=92 // pred_region
              loop: start=0, step=1, limit=1
              $region102: #{_lambda_.58} parent=100 // loop_pre_header
                _
              $region103: #{_lambda_.58} parent=100 // loop_header
                %s556 = sphi 0, %s560
                %p557 = scmp.ge.s32.totalorder %s556, 1
                %s561 = sphi %s539, %s539
                %s562 = sphi %s547, %s547
              $region104: #{_lambda_.58} parent=100 // loop_header_branch
                %559 = sbr.rel (%p557) target = $region108
              $region105: #{_lambda_.58} parent=100 // loop_body
                %v563 = vld [vmem:[%s561] sm:$0xff]
                %564 = vst [vmem:[%s562] sm:$0xff] %v563
                %v565 = vld [vmem:[%s561 + $0x8] sm:$0xff]
                %566 = vst [vmem:[%s562 + $0x18] sm:$0xff] %v565
              $region106: #{_lambda_.58} parent=100 // loop_footer
                %s560 = sadd.s32 1, %s556
              $region107: #{_lambda_.58} parent=100 // loop_footer_branch
                %555 = sbr.rel target = $region103
              $region108: #{_lambda_.58} parent=100 // loop_exit
                _
            $region101: #{_lambda_.58} parent=92 // pred_fallthru
              _
          $region93: #{_lambda_.58} parent=88 // pred_fallthru
            _
          %583 = vnop
        $region89: #{_lambda_.58} parent=76 // pred_fallthru
          _
      $region77: #{_lambda_.58} parent=5 // pred_fallthru
        _
      %p584 = scmp.le.s32.totalorder 2, %s11
      // Predicated region
      $region124: #{_lambda_.58} parent=5 // pred_check
        %p585 = pneg %p584
      $region125: #{_lambda_.58} parent=5 // pred_check_branch
        %587 = sbr.rel (%p585) target = $region127
      $region126: #{_lambda_.58} parent=5 // pred_region
        %s588 = ssub.s32 %s11, 2
        // Predicated region
        $region128: #{_lambda_.58} parent=126 // pred_check
          %p589 = pneg %p174
        $region129: #{_lambda_.58} parent=126 // pred_check_branch
          %591 = sbr.rel (%p589) target = $region131
        $region130: #{_lambda_.58} parent=126 // pred_region
          %s592 = sand.u32 %s159, 1
          %s593 = sand.u32 %s159, 1
          %s594 = smul.addr %s593, 16
          %s595 = scalar_lea.vmem [#allocation4], %s594
        $region131: #{_lambda_.58} parent=126 // pred_fallthru
          _
      $region127: #{_lambda_.58} parent=5 // pred_fallthru
        _
    $region6: #{_lambda_.58} parent=1 // loop_footer
      %s15 = sadd.s32 1, %s11
    $region7: #{_lambda_.58} parent=1 // loop_footer_branch
      %10 = sbr.rel target = $region3
    $region8: #{_lambda_.58} parent=1 // loop_exit
      _

// kernel: _lambda_.60
$region0: #{_lambda_.60}
  #allocation0 [shape = 'u32[]', space=smem, size = 0x4, offset = 0x4, fixed_abs, tag = 'smem constant byte address 0x4 - core index']
  #allocation1 [shape = 'u32[144,128]{1,0:T(1,128)}', space=vmem, size = 0x12000, scoped, tag = 'internal scratch']
  %s0 = inlined_call_operand.vmem [shape: f32[16,128], index: 0, kind: input, shape index: {}]
  %s1 = inlined_call_operand.vmem [shape: bf16[128,128], index: 1, kind: input, shape index: {}]
  %s2 = inlined_call_operand.vmem [shape: f32[1,128], index: 2, kind: input, shape index: {}]
  %s3 = inlined_call_operand.vmem [shape: f32[16,128], index: 3, kind: input, shape index: {}]
  %s4 = inlined_call_operand.vmem [shape: f32[16,128], index: 4, kind: output, shape index: {}]
  %s5 = sld [smem:[#allocation0]]
  $region38: #{_lambda_.60} parent=0
    _
  %s7 = ssub.s32 1, %s5
  %s8 = scalar_select 0, %s7, %s5
  // Predicated region
  $region2: #{_lambda_.60} parent=0 // pred_check
    _
  $region3: #{_lambda_.60} parent=0 // pred_check_branch
    %10 = sbr.rel (0) target = $region5
  $region4: #{_lambda_.60} parent=0 // pred_region
    _
  $region5: #{_lambda_.60} parent=0 // pred_fallthru
    _
  // Predicated region
  $region6: #{_lambda_.60} parent=0 // pred_check
    _
  $region7: #{_lambda_.60} parent=0 // pred_check_branch
    %12 = sbr.rel (0) target = $region9
  $region8: #{_lambda_.60} parent=0 // pred_region
    _
  $region9: #{_lambda_.60} parent=0 // pred_fallthru
    _
  // Predicated region
  $region10: #{_lambda_.60} parent=0 // pred_check
    _
  $region11: #{_lambda_.60} parent=0 // pred_check_branch
    %14 = sbr.rel (0) target = $region13
  $region12: #{_lambda_.60} parent=0 // pred_region
    _
  $region13: #{_lambda_.60} parent=0 // pred_fallthru
    _
  // Predicated region
  $region14: #{_lambda_.60} parent=0 // pred_check
    _
  $region15: #{_lambda_.60} parent=0 // pred_check_branch
    %16 = sbr.rel (0) target = $region17
  $region16: #{_lambda_.60} parent=0 // pred_region
    _
  $region17: #{_lambda_.60} parent=0 // pred_fallthru
    _
  %v18 = vld [vmem:[%s0] sm:$0xff]
  %v19 = vld [vmem:[%s0 + $0x8] sm:$0xff]
  %v20 = vpack.c.bf16 %v19, %v18
  %v21 = vld [vmem:[%s1] sm:$0xf]
  %v22 = vld [vmem:[%s1 + $0x4] sm:$0xf]
  %v23 = vld [vmem:[%s1 + $0x8] sm:$0xf]
  %v24 = vld [vmem:[%s1 + $0xc] sm:$0xf]
  %v25 = vld [vmem:[%s1 + $0x10] sm:$0xf]
  %v26 = vld [vmem:[%s1 + $0x14] sm:$0xf]
  %v27 = vld [vmem:[%s1 + $0x18] sm:$0xf]
  %v28 = vld [vmem:[%s1 + $0x1c] sm:$0xf]
  %v29 = vld [vmem:[%s1 + $0x20] sm:$0xf]
  %v30 = vld [vmem:[%s1 + $0x24] sm:$0xf]
  %v31 = vld [vmem:[%s1 + $0x28] sm:$0xf]
  %v32 = vld [vmem:[%s1 + $0x2c] sm:$0xf]
  %v33 = vld [vmem:[%s1 + $0x30] sm:$0xf]
  %v34 = vld [vmem:[%s1 + $0x34] sm:$0xf]
  %v35 = vld [vmem:[%s1 + $0x38] sm:$0xf]
  %v36 = vld [vmem:[%s1 + $0x3c] sm:$0xf]
  %v53 = vunpack.c.l.b16 %v21
  %v54 = vunpack.c.l.b16 %v22
  %v55 = vunpack.c.l.b16 %v23
  %v56 = vunpack.c.l.b16 %v24
  %v57 = vunpack.c.l.b16 %v25
  %v58 = vunpack.c.l.b16 %v26
  %v59 = vunpack.c.l.b16 %v27
  %v60 = vunpack.c.l.b16 %v28
  %v61 = vunpack.c.l.b16 %v29
  %v62 = vunpack.c.l.b16 %v30
  %v63 = vunpack.c.l.b16 %v31
  %v64 = vunpack.c.l.b16 %v32
  %v65 = vunpack.c.l.b16 %v33
  %v66 = vunpack.c.l.b16 %v34
  %v67 = vunpack.c.l.b16 %v35
  %v68 = vunpack.c.l.b16 %v36
  %v69 = vpack.c.b16 %v54, %v53
  %v70 = vpack.c.b16 %v56, %v55
  %v71 = vpack.c.b16 %v58, %v57
  %v72 = vpack.c.b16 %v60, %v59
  %v73 = vpack.c.b16 %v62, %v61
  %v74 = vpack.c.b16 %v64, %v63
  %v75 = vpack.c.b16 %v66, %v65
  %v76 = vpack.c.b16 %v68, %v67
  %85 = vmatprep.subr.bf16.mxu0 0
  %86 = vmatpush1.bf16.msra.mxu0 %v69
  %87 = vmatprep.subr.bf16.mxu0 0
  %88 = vmatpush1.bf16.msra.mxu0 %v70
  %89 = vmatprep.subr.bf16.mxu0 0
  %90 = vmatpush1.bf16.msra.mxu0 %v71
  %91 = vmatprep.subr.bf16.mxu0 0
  %92 = vmatpush1.bf16.msra.mxu0 %v72
  %93 = vmatprep.subr.bf16.mxu0 0
  %94 = vmatpush1.bf16.msra.mxu0 %v73
  %95 = vmatprep.subr.bf16.mxu0 0
  %96 = vmatpush1.bf16.msra.mxu0 %v74
  %97 = vmatprep.subr.bf16.mxu0 0
  %98 = vmatpush1.bf16.msra.mxu0 %v75
  %99 = vmatprep.subr.bf16.mxu0 0
  %100 = vmatpush1.bf16.msra.mxu0 %v76
  %101 = vmatprep.subr.bf16.mxu0 0
  %102 = vmatpush1.bf16.msra.mxu0 0
  %103 = vmatprep.subr.bf16.mxu0 0
  %104 = vmatpush1.bf16.msra.mxu0 0
  %105 = vmatprep.subr.bf16.mxu0 0
  %106 = vmatpush1.bf16.msra.mxu0 0
  %107 = vmatprep.subr.bf16.mxu0 0
  %108 = vmatpush1.bf16.msra.mxu0 0
  %109 = vmatprep.subr.bf16.mxu0 0
  %110 = vmatpush1.bf16.msra.mxu0 0
  %111 = vmatprep.subr.bf16.mxu0 0
  %112 = vmatpush1.bf16.msra.mxu0 0
  %113 = vmatprep.subr.bf16.mxu0 0
  %114 = vmatpush1.bf16.msra.mxu0 0
  %115 = vmatprep.subr.bf16.mxu0 0
  %116 = vmatpush1.bf16.msra.mxu0 0
  %117 = vmatprep.mubr.bf16.mxu0 0
  %118 = vmatmul.mubr.bf16.gmra.mrb[0].mxu0 %v20
  %v119 = vpop.f32.mrb[0].mxu0
  %v120 = vadd.f32 0.0, %v119
  %v121 = vpop.f32.mrb[0].mxu0
  %v122 = vpop.f32.mrb[0].mxu0
  %v123 = vadd.f32 0.0, %v122
  %v124 = vpop.f32.mrb[0].mxu0
  %125 = vdwg.mxu0
  %p126 = scmp.eq.s32.totalorder 0, 0
  // Predicated region
  $region18: #{_lambda_.60} parent=0 // pred_check
    %p127 = pneg %p126
  $region19: #{_lambda_.60} parent=0 // pred_check_branch
    %129 = sbr.rel (%p127) target = $region21
  $region20: #{_lambda_.60} parent=0 // pred_region
    %130 = vst [vmem:[%s4] sm:$0xff] %v120
    %131 = vst [vmem:[%s4 + $0x8] sm:$0xff] %v123
  $region21: #{_lambda_.60} parent=0 // pred_fallthru
    _
  %p132 = scmp.gt.s32.totalorder 0, 0
  // Predicated region
  $region22: #{_lambda_.60} parent=0 // pred_check
    %p133 = pneg %p132
  $region23: #{_lambda_.60} parent=0 // pred_check_branch
    %135 = sbr.rel (%p133) target = $region25
  $region24: #{_lambda_.60} parent=0 // pred_region
    %v136 = vld [vmem:[%s4] sm:$0xff]
    %v137 = vld [vmem:[%s4 + $0x8] sm:$0xff]
    %v138 = vadd.f32 %v136, %v120
    %v139 = vadd.f32 %v137, %v123
    %140 = vst [vmem:[%s4] sm:$0xff] %v138
    %141 = vst [vmem:[%s4 + $0x8] sm:$0xff] %v139
  $region25: #{_lambda_.60} parent=0 // pred_fallthru
    _
  // Predicated region
  $region26: #{_lambda_.60} parent=0 // pred_check
    %p142 = pneg %p126
  $region27: #{_lambda_.60} parent=0 // pred_check_branch
    %144 = sbr.rel (%p142) target = $region29
  $region28: #{_lambda_.60} parent=0 // pred_region
    %v145 = vld [vmem:[%s4] sm:$0xff]
    %v146 = vld [vmem:[%s4 + $0x8] sm:$0xff]
    %v147 = vld [vmem:[%s2] sm:$0x1]
    %v149 = vlaneseq
    %v150 = vshrl.u32 %v149, 7
    %v151 = vsub.s32 0, %v150
    %v152 = vrot.slane %v147, %v151
    %v154 = vadd.f32 %v145, %v152
    %v155 = vadd.f32 %v146, %v152
    %v156 = vld [vmem:[%s3] sm:$0xff]
    %v157 = vld [vmem:[%s3 + $0x8] sm:$0xff]
    %v158 = vadd.f32 %v154, %v156
    %v159 = vadd.f32 %v155, %v157
    %160 = vst [vmem:[%s4] sm:$0xff] %v158
    %161 = vst [vmem:[%s4 + $0x8] sm:$0xff] %v159
  $region29: #{_lambda_.60} parent=0 // pred_fallthru
    _
  // Predicated region
  $region30: #{_lambda_.60} parent=0 // pred_check
    _
  $region31: #{_lambda_.60} parent=0 // pred_check_branch
    %163 = sbr.rel (0) target = $region33
  $region32: #{_lambda_.60} parent=0 // pred_region
    _
  $region33: #{_lambda_.60} parent=0 // pred_fallthru
    _
  // Predicated region
  $region34: #{_lambda_.60} parent=0 // pred_check
    _
  $region35: #{_lambda_.60} parent=0 // pred_check_branch
    %165 = sbr.rel (0) target = $region37
  $region36: #{_lambda_.60} parent=0 // pred_region
    _
  $region37: #{_lambda_.60} parent=0 // pred_fallthru
    _

// kernel: _lambda_.37
$region0: #{_lambda_.37}
  #allocation0 [shape = 'u32[]', space=smem, size = 0x4, offset = 0x4, fixed_abs, tag = 'smem constant byte address 0x4 - core index']
  #allocation1 [shape = 'u32[144,128]{1,0:T(1,128)}', space=vmem, size = 0x12000, scoped, tag = 'internal scratch']
  %s0 = inlined_call_operand.vmem [shape: f32[16,512], index: 0, kind: input, shape index: {}]
  %s1 = inlined_call_operand.vmem [shape: f32[16,128], index: 1, kind: input, shape index: {}]
  %s2 = inlined_call_operand.vmem [shape: bf16[512,128], index: 2, kind: input, shape index: {}]
  %s3 = inlined_call_operand.vmem [shape: f32[1,128], index: 3, kind: input, shape index: {}]
  %s4 = inlined_call_operand.vmem [shape: bf16[128,64], index: 4, kind: input, shape index: {}]
  %s5 = inlined_call_operand.vmem [shape: f32[1,64], index: 5, kind: input, shape index: {}]
  %s6 = inlined_call_operand.vmem [shape: bf16[64,128], index: 6, kind: input, shape index: {}]
  %s7 = inlined_call_operand.vmem [shape: f32[1,128], index: 7, kind: input, shape index: {}]
  %s8 = inlined_call_operand.vmem [shape: f32[16,128], index: 8, kind: output, shape index: {}]
  %s9 = sld [smem:[#allocation0]]
  $region42: #{_lambda_.37} parent=0
    _
  %s11 = ssub.s32 1, %s9
  %s12 = scalar_select 0, %s11, %s9
  // Predicated region
  $region2: #{_lambda_.37} parent=0 // pred_check
    _
  $region3: #{_lambda_.37} parent=0 // pred_check_branch
    %14 = sbr.rel (0) target = $region5
  $region4: #{_lambda_.37} parent=0 // pred_region
    _
  $region5: #{_lambda_.37} parent=0 // pred_fallthru
    _
  // Predicated region
  $region6: #{_lambda_.37} parent=0 // pred_check
    _
  $region7: #{_lambda_.37} parent=0 // pred_check_branch
    %16 = sbr.rel (0) target = $region9
  $region8: #{_lambda_.37} parent=0 // pred_region
    _
  $region9: #{_lambda_.37} parent=0 // pred_fallthru
    _
  // Predicated region
  $region10: #{_lambda_.37} parent=0 // pred_check
    _
  $region11: #{_lambda_.37} parent=0 // pred_check_branch
    %18 = sbr.rel (0) target = $region13
  $region12: #{_lambda_.37} parent=0 // pred_region
    _
  $region13: #{_lambda_.37} parent=0 // pred_fallthru
    _
  // Predicated region
  $region14: #{_lambda_.37} parent=0 // pred_check
    _
  $region15: #{_lambda_.37} parent=0 // pred_check_branch
    %20 = sbr.rel (0) target = $region17
  $region16: #{_lambda_.37} parent=0 // pred_region
    _
  $region17: #{_lambda_.37} parent=0 // pred_fallthru
    _
  // Predicated region
  $region18: #{_lambda_.37} parent=0 // pred_check
    _
  $region19: #{_lambda_.37} parent=0 // pred_check_branch
    %22 = sbr.rel (0) target = $region21
  $region20: #{_lambda_.37} parent=0 // pred_region
    _
  $region21: #{_lambda_.37} parent=0 // pred_fallthru
    _
  // Predicated region
  $region22: #{_lambda_.37} parent=0 // pred_check
    _
  $region23: #{_lambda_.37} parent=0 // pred_check_branch
    %24 = sbr.rel (0) target = $region25
  $region24: #{_lambda_.37} parent=0 // pred_region
    _
  $region25: #{_lambda_.37} parent=0 // pred_fallthru
    _
  // Predicated region
  $region26: #{_lambda_.37} parent=0 // pred_check
    _
  $region27: #{_lambda_.37} parent=0 // pred_check_branch
    %26 = sbr.rel (0) target = $region29
  $region28: #{_lambda_.37} parent=0 // pred_region
    _
  $region29: #{_lambda_.37} parent=0 // pred_fallthru
    _
  // Predicated region
  $region30: #{_lambda_.37} parent=0 // pred_check
    _
  $region31: #{_lambda_.37} parent=0 // pred_check_branch
    %28 = sbr.rel (0) target = $region33
  $region32: #{_lambda_.37} parent=0 // pred_region
    _
  $region33: #{_lambda_.37} parent=0 // pred_fallthru
    _
  %v30 = vld [vmem:[%s0] sm:$0xff]
  %v31 = vld [vmem:[%s0 + $0x8] sm:$0xff]
  %v32 = vld [vmem:[%s0 + $0x10] sm:$0xff]
  %v33 = vld [vmem:[%s0 + $0x18] sm:$0xff]
  %v34 = vld [vmem:[%s0 + $0x20] sm:$0xff]
  %v35 = vld [vmem:[%s0 + $0x28] sm:$0xff]
  %v36 = vld [vmem:[%s0 + $0x30] sm:$0xff]
  %v37 = vld [vmem:[%s0 + $0x38] sm:$0xff]
  %v38 = vpack.c.bf16 %v34, %v30
  %v39 = vpack.c.bf16 %v35, %v31
  %v40 = vpack.c.bf16 %v36, %v32
  %v41 = vpack.c.bf16 %v37, %v33
  %v42 = vld [vmem:[%s1] sm:$0xff]
  %v43 = vld [vmem:[%s1 + $0x8] sm:$0xff]
  %v44 = vld [vmem:[%s2] sm:$0xf]
  %v45 = vld [vmem:[%s2 + $0x4] sm:$0xf]
  %v46 = vld [vmem:[%s2 + $0x8] sm:$0xf]
  %v47 = vld [vmem:[%s2 + $0xc] sm:$0xf]
  %v48 = vld [vmem:[%s2 + $0x10] sm:$0xf]
  %v49 = vld [vmem:[%s2 + $0x14] sm:$0xf]
  %v50 = vld [vmem:[%s2 + $0x18] sm:$0xf]
  %v51 = vld [vmem:[%s2 + $0x1c] sm:$0xf]
  %v52 = vld [vmem:[%s2 + $0x20] sm:$0xf]
  %v53 = vld [vmem:[%s2 + $0x24] sm:$0xf]
  %v54 = vld [vmem:[%s2 + $0x28] sm:$0xf]
  %v55 = vld [vmem:[%s2 + $0x2c] sm:$0xf]
  %v56 = vld [vmem:[%s2 + $0x30] sm:$0xf]
  %v57 = vld [vmem:[%s2 + $0x34] sm:$0xf]
  %v58 = vld [vmem:[%s2 + $0x38] sm:$0xf]
  %v59 = vld [vmem:[%s2 + $0x3c] sm:$0xf]
  %v60 = vld [vmem:[%s2 + $0x40] sm:$0xf]
  %v61 = vld [vmem:[%s2 + $0x44] sm:$0xf]
  %v62 = vld [vmem:[%s2 + $0x48] sm:$0xf]
  %v63 = vld [vmem:[%s2 + $0x4c] sm:$0xf]
  %v64 = vld [vmem:[%s2 + $0x50] sm:$0xf]
  %v65 = vld [vmem:[%s2 + $0x54] sm:$0xf]
  %v66 = vld [vmem:[%s2 + $0x58] sm:$0xf]
  %v67 = vld [vmem:[%s2 + $0x5c] sm:$0xf]
  %v68 = vld [vmem:[%s2 + $0x60] sm:$0xf]
  %v69 = vld [vmem:[%s2 + $0x64] sm:$0xf]
  %v70 = vld [vmem:[%s2 + $0x68] sm:$0xf]
  %v71 = vld [vmem:[%s2 + $0x6c] sm:$0xf]
  %v72 = vld [vmem:[%s2 + $0x70] sm:$0xf]
  %v73 = vld [vmem:[%s2 + $0x74] sm:$0xf]
  %v74 = vld [vmem:[%s2 + $0x78] sm:$0xf]
  %v75 = vld [vmem:[%s2 + $0x7c] sm:$0xf]
  %v76 = vld [vmem:[%s2 + $0x80] sm:$0xf]
  %v77 = vld [vmem:[%s2 + $0x84] sm:$0xf]
  %v78 = vld [vmem:[%s2 + $0x88] sm:$0xf]
  %v79 = vld [vmem:[%s2 + $0x8c] sm:$0xf]
  %v80 = vld [vmem:[%s2 + $0x90] sm:$0xf]
  %v81 = vld [vmem:[%s2 + $0x94] sm:$0xf]
  %v82 = vld [vmem:[%s2 + $0x98] sm:$0xf]
  %v83 = vld [vmem:[%s2 + $0x9c] sm:$0xf]
  %v84 = vld [vmem:[%s2 + $0xa0] sm:$0xf]
  %v85 = vld [vmem:[%s2 + $0xa4] sm:$0xf]
  %v86 = vld [vmem:[%s2 + $0xa8] sm:$0xf]
  %v87 = vld [vmem:[%s2 + $0xac] sm:$0xf]
  %v88 = vld [vmem:[%s2 + $0xb0] sm:$0xf]
  %v89 = vld [vmem:[%s2 + $0xb4] sm:$0xf]
  %v90 = vld [vmem:[%s2 + $0xb8] sm:$0xf]
  %v91 = vld [vmem:[%s2 + $0xbc] sm:$0xf]
  %v92 = vld [vmem:[%s2 + $0xc0] sm:$0xf]
  %v93 = vld [vmem:[%s2 + $0xc4] sm:$0xf]
  %v94 = vld [vmem:[%s2 + $0xc8] sm:$0xf]
  %v95 = vld [vmem:[%s2 + $0xcc] sm:$0xf]
  %v96 = vld [vmem:[%s2 + $0xd0] sm:$0xf]
  %v97 = vld [vmem:[%s2 + $0xd4] sm:$0xf]
  %v98 = vld [vmem:[%s2 + $0xd8] sm:$0xf]
  %v99 = vld [vmem:[%s2 + $0xdc] sm:$0xf]
  %v100 = vld [vmem:[%s2 + $0xe0] sm:$0xf]
  %v101 = vld [vmem:[%s2 + $0xe4] sm:$0xf]
  %v102 = vld [vmem:[%s2 + $0xe8] sm:$0xf]
  %v103 = vld [vmem:[%s2 + $0xec] sm:$0xf]
  %v104 = vld [vmem:[%s2 + $0xf0] sm:$0xf]
  %v105 = vld [vmem:[%s2 + $0xf4] sm:$0xf]
  %v106 = vld [vmem:[%s2 + $0xf8] sm:$0xf]
  %v107 = vld [vmem:[%s2 + $0xfc] sm:$0xf]
  %v108 = vld [vmem:[%s3] sm:$0x1]
  %v110 = vlaneseq
  %v111 = vshrl.u32 %v110, 7
  %v112 = vsub.s32 0, %v111
  %v113 = vrot.slane %v108, %v112
  %v179 = vunpack.c.l.b16 %v44
  %v180 = vunpack.c.l.b16 %v45
  %v181 = vunpack.c.l.b16 %v46
  %v182 = vunpack.c.l.b16 %v47
  %v183 = vunpack.c.l.b16 %v48
  %v184 = vunpack.c.l.b16 %v49
  %v185 = vunpack.c.l.b16 %v50
  %v186 = vunpack.c.l.b16 %v51
  %v187 = vunpack.c.l.b16 %v52
  %v188 = vunpack.c.l.b16 %v53
  %v189 = vunpack.c.l.b16 %v54
  %v190 = vunpack.c.l.b16 %v55
  %v191 = vunpack.c.l.b16 %v56
  %v192 = vunpack.c.l.b16 %v57
  %v193 = vunpack.c.l.b16 %v58
  %v194 = vunpack.c.l.b16 %v59
  %v195 = vunpack.c.l.b16 %v60
  %v196 = vunpack.c.l.b16 %v61
  %v197 = vunpack.c.l.b16 %v62
  %v198 = vunpack.c.l.b16 %v63
  %v199 = vunpack.c.l.b16 %v64
  %v200 = vunpack.c.l.b16 %v65
  %v201 = vunpack.c.l.b16 %v66
  %v202 = vunpack.c.l.b16 %v67
  %v203 = vunpack.c.l.b16 %v68
  %v204 = vunpack.c.l.b16 %v69
  %v205 = vunpack.c.l.b16 %v70
  %v206 = vunpack.c.l.b16 %v71
  %v207 = vunpack.c.l.b16 %v72
  %v208 = vunpack.c.l.b16 %v73
  %v209 = vunpack.c.l.b16 %v74
  %v210 = vunpack.c.l.b16 %v75
  %v211 = vunpack.c.l.b16 %v76
  %v212 = vunpack.c.l.b16 %v77
  %v213 = vunpack.c.l.b16 %v78
  %v214 = vunpack.c.l.b16 %v79
  %v215 = vunpack.c.l.b16 %v80
  %v216 = vunpack.c.l.b16 %v81
  %v217 = vunpack.c.l.b16 %v82
  %v218 = vunpack.c.l.b16 %v83
  %v219 = vunpack.c.l.b16 %v84
  %v220 = vunpack.c.l.b16 %v85
  %v221 = vunpack.c.l.b16 %v86
  %v222 = vunpack.c.l.b16 %v87
  %v223 = vunpack.c.l.b16 %v88
  %v224 = vunpack.c.l.b16 %v89
  %v225 = vunpack.c.l.b16 %v90
  %v226 = vunpack.c.l.b16 %v91
  %v227 = vunpack.c.l.b16 %v92
  %v228 = vunpack.c.l.b16 %v93
  %v229 = vunpack.c.l.b16 %v94
  %v230 = vunpack.c.l.b16 %v95
  %v231 = vunpack.c.l.b16 %v96
  %v232 = vunpack.c.l.b16 %v97
  %v233 = vunpack.c.l.b16 %v98
  %v234 = vunpack.c.l.b16 %v99
  %v235 = vunpack.c.l.b16 %v100
  %v236 = vunpack.c.l.b16 %v101
  %v237 = vunpack.c.l.b16 %v102
  %v238 = vunpack.c.l.b16 %v103
  %v239 = vunpack.c.l.b16 %v104
  %v240 = vunpack.c.l.b16 %v105
  %v241 = vunpack.c.l.b16 %v106
  %v242 = vunpack.c.l.b16 %v107
  %v243 = vpack.c.b16 %v180, %v179
  %v244 = vpack.c.b16 %v182, %v181
  %v245 = vpack.c.b16 %v184, %v183
  %v246 = vpack.c.b16 %v186, %v185
  %v247 = vpack.c.b16 %v188, %v187
  %v248 = vpack.c.b16 %v190, %v189
  %v249 = vpack.c.b16 %v192, %v191
  %v250 = vpack.c.b16 %v194, %v193
  %v251 = vpack.c.b16 %v196, %v195
  %v252 = vpack.c.b16 %v198, %v197
  %v253 = vpack.c.b16 %v200, %v199
  %v254 = vpack.c.b16 %v202, %v201
  %v255 = vpack.c.b16 %v204, %v203
  %v256 = vpack.c.b16 %v206, %v205
  %v257 = vpack.c.b16 %v208, %v207
  %v258 = vpack.c.b16 %v210, %v209
  %v259 = vpack.c.b16 %v212, %v211
  %v260 = vpack.c.b16 %v214, %v213
  %v261 = vpack.c.b16 %v216, %v215
  %v262 = vpack.c.b16 %v218, %v217
  %v263 = vpack.c.b16 %v220, %v219
  %v264 = vpack.c.b16 %v222, %v221
  %v265 = vpack.c.b16 %v224, %v223
  %v266 = vpack.c.b16 %v226, %v225
  %v267 = vpack.c.b16 %v228, %v227
  %v268 = vpack.c.b16 %v230, %v229
  %v269 = vpack.c.b16 %v232, %v231
  %v270 = vpack.c.b16 %v234, %v233
  %v271 = vpack.c.b16 %v236, %v235
  %v272 = vpack.c.b16 %v238, %v237
  %v273 = vpack.c.b16 %v240, %v239
  %v274 = vpack.c.b16 %v242, %v241
  %307 = vmatprep.subr.bf16.mxu0 0
  %308 = vmatpush1.bf16.msra.mxu0 %v243
  %309 = vmatprep.subr.bf16.mxu0 0
  %310 = vmatpush1.bf16.msra.mxu0 %v244
  %311 = vmatprep.subr.bf16.mxu0 0
  %312 = vmatpush1.bf16.msra.mxu0 %v245
  %313 = vmatprep.subr.bf16.mxu0 0
  %314 = vmatpush1.bf16.msra.mxu0 %v246
  %315 = vmatprep.subr.bf16.mxu0 0
  %316 = vmatpush1.bf16.msra.mxu0 %v247
  %317 = vmatprep.subr.bf16.mxu0 0
  %318 = vmatpush1.bf16.msra.mxu0 %v248
  %319 = vmatprep.subr.bf16.mxu0 0
  %320 = vmatpush1.bf16.msra.mxu0 %v249
  %321 = vmatprep.subr.bf16.mxu0 0
  %322 = vmatpush1.bf16.msra.mxu0 %v250
  %323 = vmatprep.subr.bf16.mxu0 0
  %324 = vmatpush1.bf16.msra.mxu0 %v251
  %325 = vmatprep.subr.bf16.mxu0 0
  %326 = vmatpush1.bf16.msra.mxu0 %v252
  %327 = vmatprep.subr.bf16.mxu0 0
  %328 = vmatpush1.bf16.msra.mxu0 %v253
  %329 = vmatprep.subr.bf16.mxu0 0
  %330 = vmatpush1.bf16.msra.mxu0 %v254
  %331 = vmatprep.subr.bf16.mxu0 0
  %332 = vmatpush1.bf16.msra.mxu0 %v255
  %333 = vmatprep.subr.bf16.mxu0 0
  %334 = vmatpush1.bf16.msra.mxu0 %v256
  %335 = vmatprep.subr.bf16.mxu0 0
  %336 = vmatpush1.bf16.msra.mxu0 %v257
  %337 = vmatprep.subr.bf16.mxu0 0
  %338 = vmatpush1.bf16.msra.mxu0 %v258
  %339 = vmatprep.mubr.bf16.mxu0 %v39
  %340 = vmatmul.mubr.bf16.gmra.mrb[0].mxu0 %v38
  %v341 = vpop.f32.mrb[0].mxu0
  %v342 = vadd.f32 %v113, %v341
  %v343 = vpop.f32.mrb[0].mxu0
  %v344 = vpop.f32.mrb[0].mxu0
  %v345 = vadd.f32 %v113, %v344
  %v346 = vpop.f32.mrb[0].mxu0
  %347 = vdwg.mxu0
  %348 = vmatprep.subr.bf16.mxu0 0
  %349 = vmatpush1.bf16.msra.mxu0 %v259
  %350 = vmatprep.subr.bf16.mxu0 0
  %351 = vmatpush1.bf16.msra.mxu0 %v260
  %352 = vmatprep.subr.bf16.mxu0 0
  %353 = vmatpush1.bf16.msra.mxu0 %v261
  %354 = vmatprep.subr.bf16.mxu0 0
  %355 = vmatpush1.bf16.msra.mxu0 %v262
  %356 = vmatprep.subr.bf16.mxu0 0
  %357 = vmatpush1.bf16.msra.mxu0 %v263
  %358 = vmatprep.subr.bf16.mxu0 0
  %359 = vmatpush1.bf16.msra.mxu0 %v264
  %360 = vmatprep.subr.bf16.mxu0 0
  %361 = vmatpush1.bf16.msra.mxu0 %v265
  %362 = vmatprep.subr.bf16.mxu0 0
  %363 = vmatpush1.bf16.msra.mxu0 %v266
  %364 = vmatprep.subr.bf16.mxu0 0
  %365 = vmatpush1.bf16.msra.mxu0 %v267
  %366 = vmatprep.subr.bf16.mxu0 0
  %367 = vmatpush1.bf16.msra.mxu0 %v268
  %368 = vmatprep.subr.bf16.mxu0 0
  %369 = vmatpush1.bf16.msra.mxu0 %v269
  %370 = vmatprep.subr.bf16.mxu0 0
  %371 = vmatpush1.bf16.msra.mxu0 %v270
  %372 = vmatprep.subr.bf16.mxu0 0
  %373 = vmatpush1.bf16.msra.mxu0 %v271
  %374 = vmatprep.subr.bf16.mxu0 0
  %375 = vmatpush1.bf16.msra.mxu0 %v272
  %376 = vmatprep.subr.bf16.mxu0 0
  %377 = vmatpush1.bf16.msra.mxu0 %v273
  %378 = vmatprep.subr.bf16.mxu0 0
  %379 = vmatpush1.bf16.msra.mxu0 %v274
  %380 = vmatprep.mubr.bf16.mxu0 %v41
  %381 = vmatmul.mubr.bf16.gmra.mrb[0].mxu0 %v40
  %v382 = vpop.f32.mrb[0].mxu0
  %v383 = vadd.f32 %v342, %v382
  %v384 = vpop.f32.mrb[0].mxu0
  %v385 = vpop.f32.mrb[0].mxu0
  %v386 = vadd.f32 %v345, %v385
  %v387 = vpop.f32.mrb[0].mxu0
  %388 = vdwg.mxu0
  %v389 = vpack.c.bf16 %v43, %v42
  %v390 = vld [vmem:[%s4] sm:$0xf]
  %v391 = vld [vmem:[%s4 + $0x4] sm:$0xf]
  %v392 = vld [vmem:[%s4 + $0x8] sm:$0xf]
  %v393 = vld [vmem:[%s4 + $0xc] sm:$0xf]
  %v394 = vld [vmem:[%s4 + $0x10] sm:$0xf]
  %v395 = vld [vmem:[%s4 + $0x14] sm:$0xf]
  %v396 = vld [vmem:[%s4 + $0x18] sm:$0xf]
  %v397 = vld [vmem:[%s4 + $0x1c] sm:$0xf]
  %v398 = vld [vmem:[%s4 + $0x20] sm:$0xf]
  %v399 = vld [vmem:[%s4 + $0x24] sm:$0xf]
  %v400 = vld [vmem:[%s4 + $0x28] sm:$0xf]
  %v401 = vld [vmem:[%s4 + $0x2c] sm:$0xf]
  %v402 = vld [vmem:[%s4 + $0x30] sm:$0xf]
  %v403 = vld [vmem:[%s4 + $0x34] sm:$0xf]
  %v404 = vld [vmem:[%s4 + $0x38] sm:$0xf]
  %v405 = vld [vmem:[%s4 + $0x3c] sm:$0xf]
  %v406 = vld [vmem:[%s5] sm:$0x1]
  %v408 = vlaneseq
  %v409 = vshrl.u32 %v408, 7
  %v410 = vsub.s32 0, %v409
  %v411 = vrot.slane %v406, %v410
  %v429 = vunpack.c.l.b16 %v390
  %v430 = vunpack.c.l.b16 %v391
  %v431 = vunpack.c.l.b16 %v392
  %v432 = vunpack.c.l.b16 %v393
  %v433 = vunpack.c.l.b16 %v394
  %v434 = vunpack.c.l.b16 %v395
  %v435 = vunpack.c.l.b16 %v396
  %v436 = vunpack.c.l.b16 %v397
  %v437 = vunpack.c.l.b16 %v398
  %v438 = vunpack.c.l.b16 %v399
  %v439 = vunpack.c.l.b16 %v400
  %v440 = vunpack.c.l.b16 %v401
  %v441 = vunpack.c.l.b16 %v402
  %v442 = vunpack.c.l.b16 %v403
  %v443 = vunpack.c.l.b16 %v404
  %v444 = vunpack.c.l.b16 %v405
  %v445 = vpack.c.b16 %v430, %v429
  %v446 = vpack.c.b16 %v432, %v431
  %v447 = vpack.c.b16 %v434, %v433
  %v448 = vpack.c.b16 %v436, %v435
  %v449 = vpack.c.b16 %v438, %v437
  %v450 = vpack.c.b16 %v440, %v439
  %v451 = vpack.c.b16 %v442, %v441
  %v452 = vpack.c.b16 %v444, %v443
  %461 = vmatprep.subr.bf16.mxu0 0
  %462 = vmatpush1.bf16.msra.mxu0 %v445
  %463 = vmatprep.subr.bf16.mxu0 0
  %464 = vmatpush1.bf16.msra.mxu0 %v446
  %465 = vmatprep.subr.bf16.mxu0 0
  %466 = vmatpush1.bf16.msra.mxu0 %v447
  %467 = vmatprep.subr.bf16.mxu0 0
  %468 = vmatpush1.bf16.msra.mxu0 %v448
  %469 = vmatprep.subr.bf16.mxu0 0
  %470 = vmatpush1.bf16.msra.mxu0 %v449
  %471 = vmatprep.subr.bf16.mxu0 0
  %472 = vmatpush1.bf16.msra.mxu0 %v450
  %473 = vmatprep.subr.bf16.mxu0 0
  %474 = vmatpush1.bf16.msra.mxu0 %v451
  %475 = vmatprep.subr.bf16.mxu0 0
  %476 = vmatpush1.bf16.msra.mxu0 %v452
  %477 = vmatprep.subr.bf16.mxu0 0
  %478 = vmatpush1.bf16.msra.mxu0 0
  %479 = vmatprep.subr.bf16.mxu0 0
  %480 = vmatpush1.bf16.msra.mxu0 0
  %481 = vmatprep.subr.bf16.mxu0 0
  %482 = vmatpush1.bf16.msra.mxu0 0
  %483 = vmatprep.subr.bf16.mxu0 0
  %484 = vmatpush1.bf16.msra.mxu0 0
  %485 = vmatprep.subr.bf16.mxu0 0
  %486 = vmatpush1.bf16.msra.mxu0 0
  %487 = vmatprep.subr.bf16.mxu0 0
  %488 = vmatpush1.bf16.msra.mxu0 0
  %489 = vmatprep.subr.bf16.mxu0 0
  %490 = vmatpush1.bf16.msra.mxu0 0
  %491 = vmatprep.subr.bf16.mxu0 0
  %492 = vmatpush1.bf16.msra.mxu0 0
  %493 = vmatprep.mubr.bf16.mxu0 0
  %494 = vmatmul.mubr.bf16.gmra.mrb[0].mxu0 %v389
  %v495 = vpop.f32.mrb[0].mxu0
  %v496 = vadd.f32 %v411, %v495
  %v497 = vpop.f32.mrb[0].mxu0
  %v498 = vpop.f32.mrb[0].mxu0
  %v499 = vadd.f32 %v411, %v498
  %v500 = vpop.f32.mrb[0].mxu0
  %501 = vdwg.mxu0
  %v502 = vmax.f32 %v496, 0.0
  %v503 = vmax.f32 %v499, 0.0
  %v504 = vpack.c.bf16 %v503, %v502
  %v505 = vld [vmem:[%s6] sm:$0xf]
  %v506 = vld [vmem:[%s6 + $0x4] sm:$0xf]
  %v507 = vld [vmem:[%s6 + $0x8] sm:$0xf]
  %v508 = vld [vmem:[%s6 + $0xc] sm:$0xf]
  %v509 = vld [vmem:[%s6 + $0x10] sm:$0xf]
  %v510 = vld [vmem:[%s6 + $0x14] sm:$0xf]
  %v511 = vld [vmem:[%s6 + $0x18] sm:$0xf]
  %v512 = vld [vmem:[%s6 + $0x1c] sm:$0xf]
  %v513 = vld [vmem:[%s7] sm:$0x1]
  %v515 = vlaneseq
  %v516 = vshrl.u32 %v515, 7
  %v517 = vsub.s32 0, %v516
  %v518 = vrot.slane %v513, %v517
  %v528 = vunpack.c.l.b16 %v505
  %v529 = vunpack.c.l.b16 %v506
  %v530 = vunpack.c.l.b16 %v507
  %v531 = vunpack.c.l.b16 %v508
  %v532 = vunpack.c.l.b16 %v509
  %v533 = vunpack.c.l.b16 %v510
  %v534 = vunpack.c.l.b16 %v511
  %v535 = vunpack.c.l.b16 %v512
  %v536 = vpack.c.b16 %v529, %v528
  %v537 = vpack.c.b16 %v531, %v530
  %v538 = vpack.c.b16 %v533, %v532
  %v539 = vpack.c.b16 %v535, %v534
  %vm544 = vcmask 523264
  %v546 = vsel %vm544, %v504, 0
  %548 = vmatprep.subr.bf16.mxu0 0
  %549 = vmatpush1.bf16.msra.mxu0 %v536
  %550 = vmatprep.subr.bf16.mxu0 0
  %551 = vmatpush1.bf16.msra.mxu0 %v537
  %552 = vmatprep.subr.bf16.mxu0 0
  %553 = vmatpush1.bf16.msra.mxu0 %v538
  %554 = vmatprep.subr.bf16.mxu0 0
  %555 = vmatpush1.bf16.msra.mxu0 %v539
  %556 = vmatprep.subr.bf16.mxu0 0
  %557 = vmatpush1.bf16.msra.mxu0 0
  %558 = vmatprep.subr.bf16.mxu0 0
  %559 = vmatpush1.bf16.msra.mxu0 0
  %560 = vmatprep.subr.bf16.mxu0 0
  %561 = vmatpush1.bf16.msra.mxu0 0
  %562 = vmatprep.subr.bf16.mxu0 0
  %563 = vmatpush1.bf16.msra.mxu0 0
  %564 = vmatprep.subr.bf16.mxu0 0
  %565 = vmatpush1.bf16.msra.mxu0 0
  %566 = vmatprep.subr.bf16.mxu0 0
  %567 = vmatpush1.bf16.msra.mxu0 0
  %568 = vmatprep.subr.bf16.mxu0 0
  %569 = vmatpush1.bf16.msra.mxu0 0
  %570 = vmatprep.subr.bf16.mxu0 0
  %571 = vmatpush1.bf16.msra.mxu0 0
  %572 = vmatprep.subr.bf16.mxu0 0
  %573 = vmatpush1.bf16.msra.mxu0 0
  %574 = vmatprep.subr.bf16.mxu0 0
  %575 = vmatpush1.bf16.msra.mxu0 0
  %576 = vmatprep.subr.bf16.mxu0 0
  %577 = vmatpush1.bf16.msra.mxu0 0
  %578 = vmatprep.subr.bf16.mxu0 0
  %579 = vmatpush1.bf16.msra.mxu0 0
  %580 = vmatprep.mubr.bf16.mxu0 0
  %581 = vmatmul.mubr.bf16.gmra.mrb[0].mxu0 %v546
  %v582 = vpop.f32.mrb[0].mxu0
  %v583 = vadd.f32 %v518, %v582
  %v584 = vpop.f32.mrb[0].mxu0
  %v585 = vpop.f32.mrb[0].mxu0
  %v586 = vadd.f32 %v518, %v585
  %v587 = vpop.f32.mrb[0].mxu0
  %588 = vdwg.mxu0
  %v589 = vadd.f32 %v383, %v42
  %v590 = vadd.f32 %v386, %v43
  %v591 = vadd.f32 %v589, %v583
  %v592 = vadd.f32 %v590, %v586
  %593 = vst [vmem:[%s8] sm:$0xff] %v591
  %594 = vst [vmem:[%s8 + $0x8] sm:$0xff] %v592
  // Predicated region
  $region34: #{_lambda_.37} parent=0 // pred_check
    _
  $region35: #{_lambda_.37} parent=0 // pred_check_branch
    %596 = sbr.rel (0) target = $region37
  $region36: #{_lambda_.37} parent=0 // pred_region
    _
  $region37: #{_lambda_.37} parent=0 // pred_fallthru
    _
  // Predicated region
  $region38: #{_lambda_.37} parent=0 // pred_check
    _
  $region39: #{_lambda_.37} parent=0 // pred_check_branch
    %598 = sbr.rel (0) target = $region41
  $region40: #{_lambda_.37} parent=0 // pred_region
    _
  $region41: #{_lambda_.37} parent=0 // pred_fallthru
    _

// kernel: _lambda_.61
$region0: #{_lambda_.61}
  #allocation0 [shape = 'u32[]', space=smem, size = 0x4, offset = 0x4, fixed_abs, tag = 'smem constant byte address 0x4 - core index']
  #allocation1 [shape = 'u32[144,128]{1,0:T(1,128)}', space=vmem, size = 0x12000, scoped, tag = 'internal scratch']
  #allocation2 [shape = 'bf16[16,128]{1,0:T(16,128)(2,1)}', space=vmem, size = 0x1000, scoped, tag = 'scratch operand']
  %s0 = inlined_call_operand.vmem [shape: f32[16,128], index: 0, kind: input, shape index: {}]
  %s1 = inlined_call_operand.vmem [shape: f32[1,128], index: 1, kind: input, shape index: {}]
  %s2 = inlined_call_operand.vmem [shape: f32[1,128], index: 2, kind: input, shape index: {}]
  %s3 = inlined_call_operand.vmem [shape: bf16[128,512], index: 3, kind: input, shape index: {}]
  %s4 = inlined_call_operand.vmem [shape: f32[1,512], index: 4, kind: input, shape index: {}]
  %s5 = inlined_call_operand.vmem [shape: f32[16,512], index: 5, kind: output, shape index: {}]
  %s6 = sld [smem:[#allocation0]]
  $region114: #{_lambda_.61} parent=0
    _
  %s8 = ssub.s32 1, %s6
  %s9 = scalar_select 0, %s8, %s6
  $region1: #{_lambda_.61} parent=0
    #allocation3 [shape = 'u8[131072]{0}', space=vmem, size = 0x20000, scoped, tag = 'input window, operand 3']
    #allocation4 [shape = 'u8[32768]{0}', space=vmem, size = 0x8000, scoped, tag = 'output window, operand 0']
    loop: start=0, step=1, limit=4
    $region2: #{_lambda_.61} parent=1 // loop_pre_header
      _
    $region3: #{_lambda_.61} parent=1 // loop_header
      %s11 = sphi 0, %s15
      %p12 = scmp.ge.s32.totalorder %s11, 4
      %s18 = sphi 0, %s30
      %s19 = sphi 0, %s26
      %s20 = sphi 0, %s18
      %s21 = sphi 0, %s19
      %s22 = sphi 0, %s20
      %s23 = sphi 0, %s21
      %s33 = sphi 0, %s35
      %s36 = sphi 0, %s33
      %s37 = sphi 0, %s36
      %s53 = sphi 0, %s37
      %s57 = sphi 0, %s57
      %s59 = sphi 0, %s57
      %s60 = sphi 0, %s59
      %s74 = sphi 0, %s60
      %s78 = sphi 0, %s78
      %s80 = sphi 0, %s78
      %s81 = sphi 0, %s80
      %s95 = sphi 0, %s81
      %s101 = sphi 0, %s103
      %s104 = sphi 0, %s101
      %s105 = sphi 0, %s104
      %s121 = sphi 0, %s105
      %s127 = sphi 0, %s129
      %s130 = sphi 0, %s127
      %s131 = sphi 0, %s130
      %s147 = sphi 0, %s131
      %s155 = sphi 0, %s157
      %s158 = sphi 0, %s155
      %s159 = sphi 0, %s158
      %s175 = sphi 0, %s159
    $region4: #{_lambda_.61} parent=1 // loop_header_branch
      %14 = sbr.rel (%p12) target = $region8
    $region5: #{_lambda_.61} parent=1 // loop_body
      %s16 = ssub.s32 %s11, 1
      %s17 = ssub.s32 %s11, 2
      %s24 = sadd.s32 1, %s19
      %p25 = scmp.ge.s32.totalorder %s24, 2
      %s26 = scalar_select %p25, 0, %s24
      %s27 = sadd.s32 1, %s18
      %s28 = scalar_select %p25, %s27, %s18
      %p29 = scmp.ge.s32.totalorder %s28, 1
      %s30 = scalar_select %p29, 0, %s28
      %s31 = ssub.s32 %s18, %s30
      %p32 = scmp.eq.s32.totalorder %s31, 0
      %s34 = sadd.s32 %s33, 1
      %s35 = scalar_select %p32, %s33, %s34
      %p38 = pneg %p32
      %p39 = scmp.eq.s32.totalorder %s11, 1
      %p40 = por %p38, %p39
      %p41 = scmp.ne.s32.totalorder %s33, %s36
      %p42 = scmp.eq.s32.totalorder %s11, 0
      %p43 = por %p41, %p42
      %p44 = scmp.ne.s32.totalorder %s33, %s36
      %p45 = scmp.eq.s32.totalorder %s16, 1
      %p46 = por %p44, %p45
      %p47 = scmp.ne.s32.totalorder %s36, %s37
      %p48 = scmp.eq.s32.totalorder %s16, 0
      %p49 = por %p47, %p48
      %p50 = scmp.ne.s32.totalorder %s36, %s37
      %p51 = scmp.eq.s32.totalorder %s17, 1
      %p52 = por %p50, %p51
      %p54 = scmp.ne.s32.totalorder %s37, %s53
      %p55 = scmp.eq.s32.totalorder %s17, 0
      %p56 = por %p54, %p55
      %s58 = sadd.s32 %s57, 1
      %p61 = scmp.eq.s32.totalorder %s11, 1
      %p62 = scmp.ne.s32.totalorder %s57, %s59
      %p63 = scmp.eq.s32.totalorder %s11, 0
      %p64 = por %p62, %p63
      %p65 = scmp.ne.s32.totalorder %s57, %s59
      %p66 = scmp.eq.s32.totalorder %s16, 1
      %p67 = por %p65, %p66
      %p68 = scmp.ne.s32.totalorder %s59, %s60
      %p69 = scmp.eq.s32.totalorder %s16, 0
      %p70 = por %p68, %p69
      %p71 = scmp.ne.s32.totalorder %s59, %s60
      %p72 = scmp.eq.s32.totalorder %s17, 1
      %p73 = por %p71, %p72
      %p75 = scmp.ne.s32.totalorder %s60, %s74
      %p76 = scmp.eq.s32.totalorder %s17, 0
      %p77 = por %p75, %p76
      %s79 = sadd.s32 %s78, 1
      %p82 = scmp.eq.s32.totalorder %s11, 1
      %p83 = scmp.ne.s32.totalorder %s78, %s80
      %p84 = scmp.eq.s32.totalorder %s11, 0
      %p85 = por %p83, %p84
      %p86 = scmp.ne.s32.totalorder %s78, %s80
      %p87 = scmp.eq.s32.totalorder %s16, 1
      %p88 = por %p86, %p87
      %p89 = scmp.ne.s32.totalorder %s80, %s81
      %p90 = scmp.eq.s32.totalorder %s16, 0
      %p91 = por %p89, %p90
      %p92 = scmp.ne.s32.totalorder %s80, %s81
      %p93 = scmp.eq.s32.totalorder %s17, 1
      %p94 = por %p92, %p93
      %p96 = scmp.ne.s32.totalorder %s81, %s95
      %p97 = scmp.eq.s32.totalorder %s17, 0
      %p98 = por %p96, %p97
      %s99 = ssub.s32 %s19, %s26
      %p100 = scmp.eq.s32.totalorder %s99, 0
      %s102 = sadd.s32 %s101, 1
      %s103 = scalar_select %p100, %s101, %s102
      %p106 = pneg %p100
      %p107 = scmp.eq.s32.totalorder %s11, 1
      %p108 = por %p106, %p107
      %p109 = scmp.ne.s32.totalorder %s101, %s104
      %p110 = scmp.eq.s32.totalorder %s11, 0
      %p111 = por %p109, %p110
      %p112 = scmp.ne.s32.totalorder %s101, %s104
      %p113 = scmp.eq.s32.totalorder %s16, 1
      %p114 = por %p112, %p113
      %p115 = scmp.ne.s32.totalorder %s104, %s105
      %p116 = scmp.eq.s32.totalorder %s16, 0
      %p117 = por %p115, %p116
      %p118 = scmp.ne.s32.totalorder %s104, %s105
      %p119 = scmp.eq.s32.totalorder %s17, 1
      %p120 = por %p118, %p119
      %p122 = scmp.ne.s32.totalorder %s105, %s121
      %p123 = scmp.eq.s32.totalorder %s17, 0
      %p124 = por %p122, %p123
      %s125 = ssub.s32 %s19, %s26
      %p126 = scmp.eq.s32.totalorder %s125, 0
      %s128 = sadd.s32 %s127, 1
      %s129 = scalar_select %p126, %s127, %s128
      %p132 = pneg %p126
      %p133 = scmp.eq.s32.totalorder %s11, 1
      %p134 = por %p132, %p133
      %p135 = scmp.ne.s32.totalorder %s127, %s130
      %p136 = scmp.eq.s32.totalorder %s11, 0
      %p137 = por %p135, %p136
      %p138 = scmp.ne.s32.totalorder %s127, %s130
      %p139 = scmp.eq.s32.totalorder %s16, 1
      %p140 = por %p138, %p139
      %p141 = scmp.ne.s32.totalorder %s130, %s131
      %p142 = scmp.eq.s32.totalorder %s16, 0
      %p143 = por %p141, %p142
      %p144 = scmp.ne.s32.totalorder %s130, %s131
      %p145 = scmp.eq.s32.totalorder %s17, 1
      %p146 = por %p144, %p145
      %p148 = scmp.ne.s32.totalorder %s131, %s147
      %p149 = scmp.eq.s32.totalorder %s17, 0
      %p150 = por %p148, %p149
      %s151 = ssub.s32 %s18, %s30
      %s152 = ssub.s32 %s19, %s26
      %s153 = sor.u32 %s151, %s152
      %p154 = scmp.eq.s32.totalorder %s153, 0
      %s156 = sadd.s32 %s155, 1
      %s157 = scalar_select %p154, %s155, %s156
      %p160 = pneg %p154
      %p161 = scmp.eq.s32.totalorder %s11, 1
      %p162 = por %p160, %p161
      %p163 = scmp.ne.s32.totalorder %s155, %s158
      %p164 = scmp.eq.s32.totalorder %s11, 0
      %p165 = por %p163, %p164
      %p166 = scmp.ne.s32.totalorder %s155, %s158
      %p167 = scmp.eq.s32.totalorder %s16, 1
      %p168 = por %p166, %p167
      %p169 = scmp.ne.s32.totalorder %s158, %s159
      %p170 = scmp.eq.s32.totalorder %s16, 0
      %p171 = por %p169, %p170
      %p172 = scmp.ne.s32.totalorder %s158, %s159
      %p173 = scmp.eq.s32.totalorder %s17, 1
      %p174 = por %p172, %p173
      %p176 = scmp.ne.s32.totalorder %s159, %s175
      %p177 = scmp.eq.s32.totalorder %s17, 0
      %p178 = por %p176, %p177
      %p179 = scmp.le.s32.totalorder 1, %s11
      %p180 = scmp.lt.s32.totalorder %s11, 3
      %p181 = pnand %p179, %p180
      %p182 = pneg %p181
      // Predicated region
      $region9: #{_lambda_.61} parent=5 // pred_check
        _
      $region10: #{_lambda_.61} parent=5 // pred_check_branch
        %184 = sbr.rel (%p181) target = $region12
      $region11: #{_lambda_.61} parent=5 // pred_region
        %s185 = ssub.s32 %s11, 1
        // Predicated region
        $region13: #{_lambda_.61} parent=11 // pred_check
          %p186 = pneg %p49
        $region14: #{_lambda_.61} parent=11 // pred_check_branch
          %188 = sbr.rel (%p186) target = $region16
        $region15: #{_lambda_.61} parent=11 // pred_region
          %s189 = smul.u32 2, %s20
          %p190 = scmp.lt.s32.totalorder %s189, 1
          %s191 = scalar_select %p190, %s189, 1
          %s192 = smul.addr %s191, 8
          %s193 = scalar_lea.vmem %s0, %s192
          %s194 = smul.u32 2, %s20
        $region16: #{_lambda_.61} parent=11 // pred_fallthru
          _
        // Predicated region
        $region17: #{_lambda_.61} parent=11 // pred_check
          %p195 = pneg %p70
        $region18: #{_lambda_.61} parent=11 // pred_check_branch
          %197 = sbr.rel (%p195) target = $region20
        $region19: #{_lambda_.61} parent=11 // pred_region
          _
        $region20: #{_lambda_.61} parent=11 // pred_fallthru
          _
        // Predicated region
        $region21: #{_lambda_.61} parent=11 // pred_check
          %p198 = pneg %p91
        $region22: #{_lambda_.61} parent=11 // pred_check_branch
          %200 = sbr.rel (%p198) target = $region24
        $region23: #{_lambda_.61} parent=11 // pred_region
          _
        $region24: #{_lambda_.61} parent=11 // pred_fallthru
          _
      $region12: #{_lambda_.61} parent=5 // pred_fallthru
        _
      %p201 = scmp.lt.s32.totalorder %s11, 2
      // Predicated region
      $region25: #{_lambda_.61} parent=5 // pred_check
        %p202 = pneg %p201
      $region26: #{_lambda_.61} parent=5 // pred_check_branch
        %204 = sbr.rel (%p202) target = $region28
      $region27: #{_lambda_.61} parent=5 // pred_region
        // Predicated region
        $region29: #{_lambda_.61} parent=27 // pred_check
          %p205 = pneg %p111
        $region30: #{_lambda_.61} parent=27 // pred_check_branch
          %207 = sbr.rel (%p205) target = $region32
        $region31: #{_lambda_.61} parent=27 // pred_region
          %s208 = sand.u32 %s101, 1
          %s209 = sand.u32 %s101, 1
          %s210 = smul.addr %s209, 128
          %s211 = scalar_lea.vmem [#allocation3], %s210
          %s212 = smul.u32 2, %s19
          %s213 = smul.addr %s212, 4
          %s214 = scalar_lea.vmem %s3, %s213
          // Predicated region
          $region33: #{_lambda_.61} parent=31 // pred_check
            _
          $region34: #{_lambda_.61} parent=31 // pred_check_branch
            %216 = sbr.rel (0) target = $region36
          $region35: #{_lambda_.61} parent=31 // pred_region
            // Predicated region
            $region37: #{_lambda_.61} parent=35 // pred_check
              _
            $region38: #{_lambda_.61} parent=35 // pred_check_branch
              %218 = sbr.rel (0) target = $region40
            $region39: #{_lambda_.61} parent=35 // pred_region
              // Predicated region
              $region52: #{_lambda_.61} parent=39 // pred_check
                _
              $region53: #{_lambda_.61} parent=39 // pred_check_branch
                %263 = sbr.rel (0) target = $region55
              $region54: #{_lambda_.61} parent=39 // pred_region
                loop: start=0, step=1, limit=1
                $region56: #{_lambda_.61} parent=54 // loop_pre_header
                  _
                $region57: #{_lambda_.61} parent=54 // loop_header
                  %s265 = sphi 0, %s269
                  %p266 = scmp.ge.s32.totalorder %s265, 1
                  %s270 = sphi %s214, %s214
                  %s271 = sphi %s211, %s211
                $region58: #{_lambda_.61} parent=54 // loop_header_branch
                  %268 = sbr.rel (%p266) target = $region62
                $region59: #{_lambda_.61} parent=54 // loop_body
                  %v272 = vld [vmem:[%s270] sm:$0xff]
                  %273 = vst [vmem:[%s271] sm:$0xff] %v272
                  %v274 = vld [vmem:[%s270 + $0x10] sm:$0xff]
                  %275 = vst [vmem:[%s271 + $0x8] sm:$0xff] %v274
                  %v276 = vld [vmem:[%s270 + $0x20] sm:$0xff]
                  %277 = vst [vmem:[%s271 + $0x10] sm:$0xff] %v276
                  %v278 = vld [vmem:[%s270 + $0x30] sm:$0xff]
                  %279 = vst [vmem:[%s271 + $0x18] sm:$0xff] %v278
                  %v280 = vld [vmem:[%s270 + $0x40] sm:$0xff]
                  %281 = vst [vmem:[%s271 + $0x20] sm:$0xff] %v280
                  %v282 = vld [vmem:[%s270 + $0x50] sm:$0xff]
                  %283 = vst [vmem:[%s271 + $0x28] sm:$0xff] %v282
                  %v284 = vld [vmem:[%s270 + $0x60] sm:$0xff]
                  %285 = vst [vmem:[%s271 + $0x30] sm:$0xff] %v284
                  %v286 = vld [vmem:[%s270 + $0x70] sm:$0xff]
                  %287 = vst [vmem:[%s271 + $0x38] sm:$0xff] %v286
                  %v288 = vld [vmem:[%s270 + $0x80] sm:$0xff]
                  %289 = vst [vmem:[%s271 + $0x40] sm:$0xff] %v288
                  %v290 = vld [vmem:[%s270 + $0x90] sm:$0xff]
                  %291 = vst [vmem:[%s271 + $0x48] sm:$0xff] %v290
                  %v292 = vld [vmem:[%s270 + $0xa0] sm:$0xff]
                  %293 = vst [vmem:[%s271 + $0x50] sm:$0xff] %v292
                  %v294 = vld [vmem:[%s270 + $0xb0] sm:$0xff]
                  %295 = vst [vmem:[%s271 + $0x58] sm:$0xff] %v294
                  %v296 = vld [vmem:[%s270 + $0xc0] sm:$0xff]
                  %297 = vst [vmem:[%s271 + $0x60] sm:$0xff] %v296
                  %v298 = vld [vmem:[%s270 + $0xd0] sm:$0xff]
                  %299 = vst [vmem:[%s271 + $0x68] sm:$0xff] %v298
                  %v300 = vld [vmem:[%s270 + $0xe0] sm:$0xff]
                  %301 = vst [vmem:[%s271 + $0x70] sm:$0xff] %v300
                  %v302 = vld [vmem:[%s270 + $0xf0] sm:$0xff]
                  %303 = vst [vmem:[%s271 + $0x78] sm:$0xff] %v302
                $region60: #{_lambda_.61} parent=54 // loop_footer
                  %s269 = sadd.s32 1, %s265
                $region61: #{_lambda_.61} parent=54 // loop_footer_branch
                  %264 = sbr.rel target = $region57
                $region62: #{_lambda_.61} parent=54 // loop_exit
                  _
              $region55: #{_lambda_.61} parent=39 // pred_fallthru
                _
              // Predicated region
              $region63: #{_lambda_.61} parent=39 // pred_check
                _
              $region64: #{_lambda_.61} parent=39 // pred_check_branch
                %305 = sbr.rel target = $region66
              $region65: #{_lambda_.61} parent=39 // pred_region
                _
              $region66: #{_lambda_.61} parent=39 // pred_fallthru
                _
            $region40: #{_lambda_.61} parent=35 // pred_fallthru
              _
            // Predicated region
            $region41: #{_lambda_.61} parent=35 // pred_check
              _
            $region42: #{_lambda_.61} parent=35 // pred_check_branch
              %220 = sbr.rel target = $region44
            $region43: #{_lambda_.61} parent=35 // pred_region
              loop: start=0, step=1, limit=1
              $region45: #{_lambda_.61} parent=43 // loop_pre_header
                _
              $region46: #{_lambda_.61} parent=43 // loop_header
                %s223 = sphi 0, %s227
                %p224 = scmp.ge.s32.totalorder %s223, 1
                %s228 = sphi %s214, %s214
                %s229 = sphi %s211, %s211
              $region47: #{_lambda_.61} parent=43 // loop_header_branch
                %226 = sbr.rel (%p224) target = $region51
              $region48: #{_lambda_.61} parent=43 // loop_body
                %v230 = vld [vmem:[%s228] sm:$0xff]
                %231 = vst [vmem:[%s229] sm:$0xff] %v230
                %v232 = vld [vmem:[%s228 + $0x10] sm:$0xff]
                %233 = vst [vmem:[%s229 + $0x8] sm:$0xff] %v232
                %v234 = vld [vmem:[%s228 + $0x20] sm:$0xff]
                %235 = vst [vmem:[%s229 + $0x10] sm:$0xff] %v234
                %v236 = vld [vmem:[%s228 + $0x30] sm:$0xff]
                %237 = vst [vmem:[%s229 + $0x18] sm:$0xff] %v236
                %v238 = vld [vmem:[%s228 + $0x40] sm:$0xff]
                %239 = vst [vmem:[%s229 + $0x20] sm:$0xff] %v238
                %v240 = vld [vmem:[%s228 + $0x50] sm:$0xff]
                %241 = vst [vmem:[%s229 + $0x28] sm:$0xff] %v240
                %v242 = vld [vmem:[%s228 + $0x60] sm:$0xff]
                %243 = vst [vmem:[%s229 + $0x30] sm:$0xff] %v242
                %v244 = vld [vmem:[%s228 + $0x70] sm:$0xff]
                %245 = vst [vmem:[%s229 + $0x38] sm:$0xff] %v244
                %v246 = vld [vmem:[%s228 + $0x80] sm:$0xff]
                %247 = vst [vmem:[%s229 + $0x40] sm:$0xff] %v246
                %v248 = vld [vmem:[%s228 + $0x90] sm:$0xff]
                %249 = vst [vmem:[%s229 + $0x48] sm:$0xff] %v248
                %v250 = vld [vmem:[%s228 + $0xa0] sm:$0xff]
                %251 = vst [vmem:[%s229 + $0x50] sm:$0xff] %v250
                %v252 = vld [vmem:[%s228 + $0xb0] sm:$0xff]
                %253 = vst [vmem:[%s229 + $0x58] sm:$0xff] %v252
                %v254 = vld [vmem:[%s228 + $0xc0] sm:$0xff]
                %255 = vst [vmem:[%s229 + $0x60] sm:$0xff] %v254
                %v256 = vld [vmem:[%s228 + $0xd0] sm:$0xff]
                %257 = vst [vmem:[%s229 + $0x68] sm:$0xff] %v256
                %v258 = vld [vmem:[%s228 + $0xe0] sm:$0xff]
                %259 = vst [vmem:[%s229 + $0x70] sm:$0xff] %v258
                %v260 = vld [vmem:[%s228 + $0xf0] sm:$0xff]
                %261 = vst [vmem:[%s229 + $0x78] sm:$0xff] %v260
              $region49: #{_lambda_.61} parent=43 // loop_footer
                %s227 = sadd.s32 1, %s223
              $region50: #{_lambda_.61} parent=43 // loop_footer_branch
                %222 = sbr.rel target = $region46
              $region51: #{_lambda_.61} parent=43 // loop_exit
                _
            $region44: #{_lambda_.61} parent=35 // pred_fallthru
              _
          $region36: #{_lambda_.61} parent=31 // pred_fallthru
            _
          %306 = vnop
        $region32: #{_lambda_.61} parent=27 // pred_fallthru
          _
        // Predicated region
        $region67: #{_lambda_.61} parent=27 // pred_check
          %p307 = pneg %p137
        $region68: #{_lambda_.61} parent=27 // pred_check_branch
          %309 = sbr.rel (%p307) target = $region70
        $region69: #{_lambda_.61} parent=27 // pred_region
          %s310 = smul.u32 2, %s19
          %p311 = scmp.lt.s32.totalorder %s310, 3
          %s312 = scalar_select %p311, %s310, 3
          %s313 = scalar_lea.vmem %s4, %s312
          %s314 = smul.u32 2, %s19
        $region70: #{_lambda_.61} parent=27 // pred_fallthru
          _
      $region28: #{_lambda_.61} parent=5 // pred_fallthru
        _
      %p315 = scmp.le.s32.totalorder 1, %s11
      %p316 = scmp.lt.s32.totalorder %s11, 3
      %p317 = pnand %p315, %p316
      %p318 = pneg %p317
      // Predicated region
      $region71: #{_lambda_.61} parent=5 // pred_check
        _
      $region72: #{_lambda_.61} parent=5 // pred_check_branch
        %320 = sbr.rel (%p317) target = $region74
      $region73: #{_lambda_.61} parent=5 // pred_region
        %s321 = ssub.s32 %s11, 1
        %s322 = sand.u32 %s104, 1
        %s323 = sand.u32 %s104, 1
        %s324 = smul.addr %s323, 128
        %s325 = scalar_lea.vmem [#allocation3], %s324
        // Predicated region
        $region75: #{_lambda_.61} parent=73 // pred_check
          %p326 = pneg %p117
        $region76: #{_lambda_.61} parent=73 // pred_check_branch
          %328 = sbr.rel (%p326) target = $region78
        $region77: #{_lambda_.61} parent=73 // pred_region
          _
        $region78: #{_lambda_.61} parent=73 // pred_fallthru
          _
        %s329 = smul.u32 2, %s20
        %p330 = scmp.lt.s32.totalorder %s329, 1
        %s331 = scalar_select %p330, %s329, 1
        %s332 = smul.addr %s331, 8
        %s333 = scalar_lea.vmem %s0, %s332
        %p334 = pneg %p49
        %p335 = pneg %p46
        %p336 = pneg %p70
        %p337 = pneg %p67
        %p338 = pneg %p91
        %p339 = pneg %p88
        %s340 = sand.u32 %s104, 1
        %s341 = sand.u32 %s104, 1
        %s342 = smul.addr %s341, 128
        %s343 = scalar_lea.vmem [#allocation3], %s342
        %p344 = pneg %p117
        %p345 = pneg %p114
        %s346 = smul.u32 2, %s21
        %p347 = scmp.lt.s32.totalorder %s346, 3
        %s348 = scalar_select %p347, %s346, 3
        %s349 = scalar_lea.vmem %s4, %s348
        %p350 = pneg %p143
        %p351 = pneg %p140
        %p352 = pneg %p171
        %p353 = pneg %p168
        %s354 = sand.u32 %s158, 1
        %s355 = sand.u32 %s158, 1
        %s356 = smul.addr %s355, 32
        %s357 = scalar_lea.vmem [#allocation4], %s356
        %s358 = smul.u32 2, %s20
        %p359 = scmp.lt.s32.totalorder %s358, 1
        %s360 = scalar_select %p359, %s358, 1
        %s361 = smul.addr %s360, 8
        %s362 = scalar_lea.vmem %s0, %s361
        %s363 = smul.u32 2, %s20
        %s364 = smul.u32 2, %s21
        %s365 = smul.u32 2, %s21
        %p366 = scmp.lt.s32.totalorder %s365, 3
        %s367 = scalar_select %p366, %s365, 3
        %s368 = scalar_lea.vmem %s4, %s367
        %s369 = smul.u32 2, %s21
        %s370 = smul.u32 2, %s20
        %s371 = smul.u32 2, %s21
        %p373 = scmp.eq.s32.totalorder %s21, 0
        // Predicated region
        $region79: #{_lambda_.61} parent=73 // pred_check
          %p374 = pneg %p373
        $region80: #{_lambda_.61} parent=73 // pred_check_branch
          %376 = sbr.rel (%p374) target = $region82
        $region81: #{_lambda_.61} parent=73 // pred_region
          %v377 = vld [vmem:[%s362] sm:$0xff]
          %v378 = vld [vmem:[%s362 + $0x8] sm:$0xff]
          %379 = vadd.xlane.f32.xlu0 %v377
          %v380 = vpop.xlane.xlu0 %379
          %381 = vadd.xlane.f32.xlu0 %v378
          %v382 = vpop.xlane.xlu0 %381
          %v383 = vrcp.pop 128.0
          %v384 = vmul.f32 %v380, %v383
          %v385 = vmul.f32 %v382, %v383
          %v386 = vsub.f32 %v377, %v384
          %v387 = vsub.f32 %v378, %v385
          %v388 = vmul.f32 %v386, %v386
          %v389 = vmul.f32 %v387, %v387
          %390 = vadd.xlane.f32.xlu0 %v388
          %v391 = vpop.xlane.xlu0 %390
          %392 = vadd.xlane.f32.xlu0 %v389
          %v393 = vpop.xlane.xlu0 %392
          %v394 = vmul.f32 %v391, %v383
          %v395 = vmul.f32 %v393, %v383
          %v396 = vadd.f32 %v394, 1e-12
          %v397 = vadd.f32 %v395, 1e-12
          %v398 = vrsqrt.pop %v396
          %v399 = vrsqrt.pop %v397
          %v400 = vmul.f32 %v386, %v398
          %v401 = vmul.f32 %v387, %v399
          %v402 = vld [vmem:[%s1] sm:$0x1]
          %v404 = vlaneseq
          %v405 = vshrl.u32 %v404, 7
          %v406 = vsub.s32 0, %v405
          %v407 = vrot.slane %v402, %v406
          %v409 = vmul.f32 %v400, %v407
          %v410 = vmul.f32 %v401, %v407
          %v411 = vld [vmem:[%s2] sm:$0x1]
          %v413 = vlaneseq
          %v414 = vshrl.u32 %v413, 7
          %v415 = vsub.s32 0, %v414
          %v416 = vrot.slane %v411, %v415
          %v418 = vadd.f32 %v409, %v416
          %v419 = vadd.f32 %v410, %v416
          %v420 = vpack.c.bf16 %v419, %v418
          %421 = vst [vmem:[#allocation2] sm:$0xff] %v420
        $region82: #{_lambda_.61} parent=73 // pred_fallthru
          _
        %v422 = vld [vmem:[#allocation2] sm:$0xff]
        %v423 = vld [vmem:[%s325] sm:$0xff]
        %v424 = vld [vmem:[%s325 + $0x8] sm:$0xff]
        %v425 = vld [vmem:[%s325 + $0x10] sm:$0xff]
        %v426 = vld [vmem:[%s325 + $0x18] sm:$0xff]
        %v427 = vld [vmem:[%s325 + $0x20] sm:$0xff]
        %v428 = vld [vmem:[%s325 + $0x28] sm:$0xff]
        %v429 = vld [vmem:[%s325 + $0x30] sm:$0xff]
        %v430 = vld [vmem:[%s325 + $0x38] sm:$0xff]
        %v431 = vld [vmem:[%s325 + $0x40] sm:$0xff]
        %v432 = vld [vmem:[%s325 + $0x48] sm:$0xff]
        %v433 = vld [vmem:[%s325 + $0x50] sm:$0xff]
        %v434 = vld [vmem:[%s325 + $0x58] sm:$0xff]
        %v435 = vld [vmem:[%s325 + $0x60] sm:$0xff]
        %v436 = vld [vmem:[%s325 + $0x68] sm:$0xff]
        %v437 = vld [vmem:[%s325 + $0x70] sm:$0xff]
        %v438 = vld [vmem:[%s325 + $0x78] sm:$0xff]
        %v439 = vld [vmem:[%s368] sm:$0x3]
        %v441 = vlaneseq
        %v442 = vshrl.u32 %v441, 7
        %v443 = vsub.s32 0, %v442
        %v444 = vrot.slane %v439, %v443
        %v445 = vlaneseq
        %v446 = vshrl.u32 %v445, 7
        %v447 = vsub.s32 1, %v446
        %v448 = vrot.slane %v439, %v447
        %v467 = vunpack.c.l.b16 %v423
        %v468 = vunpack.c.h.b16 %v423
        %v469 = vunpack.c.l.b16 %v424
        %v470 = vunpack.c.h.b16 %v424
        %v471 = vunpack.c.l.b16 %v425
        %v472 = vunpack.c.h.b16 %v425
        %v473 = vunpack.c.l.b16 %v426
        %v474 = vunpack.c.h.b16 %v426
        %v475 = vunpack.c.l.b16 %v427
        %v476 = vunpack.c.h.b16 %v427
        %v477 = vunpack.c.l.b16 %v428
        %v478 = vunpack.c.h.b16 %v428
        %v479 = vunpack.c.l.b16 %v429
        %v480 = vunpack.c.h.b16 %v429
        %v481 = vunpack.c.l.b16 %v430
        %v482 = vunpack.c.h.b16 %v430
        %v483 = vunpack.c.l.b16 %v431
        %v484 = vunpack.c.h.b16 %v431
        %v485 = vunpack.c.l.b16 %v432
        %v486 = vunpack.c.h.b16 %v432
        %v487 = vunpack.c.l.b16 %v433
        %v488 = vunpack.c.h.b16 %v433
        %v489 = vunpack.c.l.b16 %v434
        %v490 = vunpack.c.h.b16 %v434
        %v491 = vunpack.c.l.b16 %v435
        %v492 = vunpack.c.h.b16 %v435
        %v493 = vunpack.c.l.b16 %v436
        %v494 = vunpack.c.h.b16 %v436
        %v495 = vunpack.c.l.b16 %v437
        %v496 = vunpack.c.h.b16 %v437
        %v497 = vunpack.c.l.b16 %v438
        %v498 = vunpack.c.h.b16 %v438
        %v499 = vpack.c.b16 %v469, %v467
        %v500 = vpack.c.b16 %v470, %v468
        %v501 = vpack.c.b16 %v473, %v471
        %v502 = vpack.c.b16 %v474, %v472
        %v503 = vpack.c.b16 %v477, %v475
        %v504 = vpack.c.b16 %v478, %v476
        %v505 = vpack.c.b16 %v481, %v479
        %v506 = vpack.c.b16 %v482, %v480
        %v507 = vpack.c.b16 %v485, %v483
        %v508 = vpack.c.b16 %v486, %v484
        %v509 = vpack.c.b16 %v489, %v487
        %v510 = vpack.c.b16 %v490, %v488
        %v511 = vpack.c.b16 %v493, %v491
        %v512 = vpack.c.b16 %v494, %v492
        %v513 = vpack.c.b16 %v497, %v495
        %v514 = vpack.c.b16 %v498, %v496
        %531 = vmatprep.subr.bf16.mxu0 %v500
        %532 = vmatpush1.bf16.msra.mxu0 %v499
        %533 = vmatprep.subr.bf16.mxu0 %v502
        %534 = vmatpush1.bf16.msra.mxu0 %v501
        %535 = vmatprep.subr.bf16.mxu0 %v504
        %536 = vmatpush1.bf16.msra.mxu0 %v503
        %537 = vmatprep.subr.bf16.mxu0 %v506
        %538 = vmatpush1.bf16.msra.mxu0 %v505
        %539 = vmatprep.subr.bf16.mxu0 %v508
        %540 = vmatpush1.bf16.msra.mxu0 %v507
        %541 = vmatprep.subr.bf16.mxu0 %v510
        %542 = vmatpush1.bf16.msra.mxu0 %v509
        %543 = vmatprep.subr.bf16.mxu0 %v512
        %544 = vmatpush1.bf16.msra.mxu0 %v511
        %545 = vmatprep.subr.bf16.mxu0 %v514
        %546 = vmatpush1.bf16.msra.mxu0 %v513
        %547 = vmatprep.subr.bf16.mxu0 0
        %548 = vmatpush1.bf16.msra.mxu0 0
        %549 = vmatprep.subr.bf16.mxu0 0
        %550 = vmatpush1.bf16.msra.mxu0 0
        %551 = vmatprep.subr.bf16.mxu0 0
        %552 = vmatpush1.bf16.msra.mxu0 0
        %553 = vmatprep.subr.bf16.mxu0 0
        %554 = vmatpush1.bf16.msra.mxu0 0
        %555 = vmatprep.subr.bf16.mxu0 0
        %556 = vmatpush1.bf16.msra.mxu0 0
        %557 = vmatprep.subr.bf16.mxu0 0
        %558 = vmatpush1.bf16.msra.mxu0 0
        %559 = vmatprep.subr.bf16.mxu0 0
        %560 = vmatpush1.bf16.msra.mxu0 0
        %561 = vmatprep.subr.bf16.mxu0 0
        %562 = vmatpush1.bf16.msra.mxu0 0
        %563 = vmatprep.mubr.bf16.mxu0 0
        %564 = vmatmul.mubr.bf16.gmra.mrb[0].mxu0 %v422
        %v565 = vpop.f32.mrb[0].mxu0
        %v566 = vadd.f32 %v444, %v565
        %v567 = vpop.f32.mrb[0].mxu0
        %v568 = vadd.f32 %v448, %v567
        %v569 = vpop.f32.mrb[0].mxu0
        %v570 = vadd.f32 %v444, %v569
        %v571 = vpop.f32.mrb[0].mxu0
        %v572 = vadd.f32 %v448, %v571
        %573 = vdwg.mxu0
        %v574 = vmul.f32 %v566, 0.5
        %v575 = vmul.f32 %v568, 0.5
        %v576 = vmul.f32 %v570, 0.5
        %v577 = vmul.f32 %v572, 0.5
        %v578 = vmul.f32 %v566, 0.044715
        %v579 = vmul.f32 %v568, 0.044715
        %v580 = vmul.f32 %v570, 0.044715
        %v581 = vmul.f32 %v572, 0.044715
        %v582 = vmul.f32 %v578, %v566
        %v583 = vmul.f32 %v579, %v568
        %v584 = vmul.f32 %v580, %v570
        %v585 = vmul.f32 %v581, %v572
        %v586 = vmul.f32 %v582, %v566
        %v587 = vmul.f32 %v583, %v568
        %v588 = vmul.f32 %v584, %v570
        %v589 = vmul.f32 %v585, %v572
        %v590 = vadd.f32 %v566, %v586
        %v591 = vadd.f32 %v568, %v587
        %v592 = vadd.f32 %v570, %v588
        %v593 = vadd.f32 %v572, %v589
        %v594 = vmul.f32 %v590, 0.7978846
        %v595 = vmul.f32 %v591, 0.7978846
        %v596 = vmul.f32 %v592, 0.7978846
        %v597 = vmul.f32 %v593, 0.7978846
        %v598 = vtanh.pop %v594
        %v599 = vtanh.pop %v595
        %v600 = vtanh.pop %v596
        %v601 = vtanh.pop %v597
        %v602 = vadd.f32 %v598, 1.0
        %v603 = vadd.f32 %v599, 1.0
        %v604 = vadd.f32 %v600, 1.0
        %v605 = vadd.f32 %v601, 1.0
        %v606 = vmul.f32 %v574, %v602
        %v607 = vmul.f32 %v575, %v603
        %v608 = vmul.f32 %v576, %v604
        %v609 = vmul.f32 %v577, %v605
        %610 = vst [vmem:[%s357] sm:$0xff] %v606
        %611 = vst [vmem:[%s357 + $0x8] sm:$0xff] %v607
        %612 = vst [vmem:[%s357 + $0x10] sm:$0xff] %v608
        %613 = vst [vmem:[%s357 + $0x18] sm:$0xff] %v609
        %s614 = sand.u32 %s158, 1
        %s615 = sand.u32 %s158, 1
        %s616 = smul.addr %s615, 32
        %s617 = scalar_lea.vmem [#allocation4], %s616
        // Predicated region
        $region83: #{_lambda_.61} parent=73 // pred_check
          %p618 = pneg %p168
        $region84: #{_lambda_.61} parent=73 // pred_check_branch
          %620 = sbr.rel (%p618) target = $region86
        $region85: #{_lambda_.61} parent=73 // pred_region
          %s621 = smul.u32 2, %s20
          %s622 = smul.u32 2, %s21
          %s623 = smul.addr %s621, 4
          %s624 = sadd.s32 %s622, %s623
          %s625 = smul.addr %s624, 8
          %s626 = scalar_lea.vmem %s5, %s625
          // Predicated region
          $region87: #{_lambda_.61} parent=85 // pred_check
            _
          $region88: #{_lambda_.61} parent=85 // pred_check_branch
            %628 = sbr.rel (0) target = $region90
          $region89: #{_lambda_.61} parent=85 // pred_region
            // Predicated region
            $region91: #{_lambda_.61} parent=89 // pred_check
              _
            $region92: #{_lambda_.61} parent=89 // pred_check_branch
              %630 = sbr.rel (0) target = $region94
            $region93: #{_lambda_.61} parent=89 // pred_region
              loop: start=0, step=1, limit=1
              $region95: #{_lambda_.61} parent=93 // loop_pre_header
                _
              $region96: #{_lambda_.61} parent=93 // loop_header
                %s632 = sphi 0, %s636
                %p633 = scmp.ge.s32.totalorder %s632, 1
                %s637 = sphi %s617, %s617
                %s638 = sphi %s626, %s626
              $region97: #{_lambda_.61} parent=93 // loop_header_branch
                %635 = sbr.rel (%p633) target = $region101
              $region98: #{_lambda_.61} parent=93 // loop_body
                %v639 = vld [vmem:[%s637] sm:$0xff]
                %640 = vst [vmem:[%s638] sm:$0xff] %v639
                %v641 = vld [vmem:[%s637 + $0x8] sm:$0xff]
                %642 = vst [vmem:[%s638 + $0x8] sm:$0xff] %v641
                %v643 = vld [vmem:[%s637 + $0x10] sm:$0xff]
                %644 = vst [vmem:[%s638 + $0x20] sm:$0xff] %v643
                %v645 = vld [vmem:[%s637 + $0x18] sm:$0xff]
                %646 = vst [vmem:[%s638 + $0x28] sm:$0xff] %v645
              $region99: #{_lambda_.61} parent=93 // loop_footer
                %s636 = sadd.s32 1, %s632
              $region100: #{_lambda_.61} parent=93 // loop_footer_branch
                %631 = sbr.rel target = $region96
              $region101: #{_lambda_.61} parent=93 // loop_exit
                _
            $region94: #{_lambda_.61} parent=89 // pred_fallthru
              _
            // Predicated region
            $region102: #{_lambda_.61} parent=89 // pred_check
              _
            $region103: #{_lambda_.61} parent=89 // pred_check_branch
              %648 = sbr.rel target = $region105
            $region104: #{_lambda_.61} parent=89 // pred_region
              _
            $region105: #{_lambda_.61} parent=89 // pred_fallthru
              _
          $region90: #{_lambda_.61} parent=85 // pred_fallthru
            _
          %649 = vnop
        $region86: #{_lambda_.61} parent=73 // pred_fallthru
          _
      $region74: #{_lambda_.61} parent=5 // pred_fallthru
        _
      %p650 = scmp.le.s32.totalorder 2, %s11
      // Predicated region
      $region106: #{_lambda_.61} parent=5 // pred_check
        %p651 = pneg %p650
      $region107: #{_lambda_.61} parent=5 // pred_check_branch
        %653 = sbr.rel (%p651) target = $region109
      $region108: #{_lambda_.61} parent=5 // pred_region
        %s654 = ssub.s32 %s11, 2
        // Predicated region
        $region110: #{_lambda_.61} parent=108 // pred_check
          %p655 = pneg %p174
        $region111: #{_lambda_.61} parent=108 // pred_check_branch
          %657 = sbr.rel (%p655) target = $region113
        $region112: #{_lambda_.61} parent=108 // pred_region
          %s658 = sand.u32 %s159, 1
          %s659 = sand.u32 %s159, 1
          %s660 = smul.addr %s659, 32
          %s661 = scalar_lea.vmem [#allocation4], %s660
        $region113: #{_lambda_.61} parent=108 // pred_fallthru
          _
      $region109: #{_lambda_.61} parent=5 // pred_fallthru
        _
    $region6: #{_lambda_.61} parent=1 // loop_footer
      %s15 = sadd.s32 1, %s11
    $region7: #{_lambda_.61} parent=1 // loop_footer_branch
      %10 = sbr.rel target = $region3
    $region8: #{_lambda_.61} parent=1 // loop_exit
      _

// kernel: _lambda_.63
$region0: #{_lambda_.63}
  #allocation0 [shape = 'u32[]', space=smem, size = 0x4, offset = 0x4, fixed_abs, tag = 'smem constant byte address 0x4 - core index']
  #allocation1 [shape = 'u32[144,128]{1,0:T(1,128)}', space=vmem, size = 0x12000, scoped, tag = 'internal scratch']
  #allocation2 [shape = 'bf16[2,128]{1,0:T(2,128)(2,1)}', space=vmem, size = 0x200, scoped, tag = 'scratch operand']
  %s0 = inlined_call_operand.vmem [shape: f32[2,128], index: 0, kind: input, shape index: {}]
  %s1 = inlined_call_operand.vmem [shape: f32[1,128], index: 1, kind: input, shape index: {}]
  %s2 = inlined_call_operand.vmem [shape: f32[1,128], index: 2, kind: input, shape index: {}]
  %s3 = inlined_call_operand.vmem [shape: bf16[128,10], index: 3, kind: input, shape index: {}]
  %s4 = inlined_call_operand.vmem [shape: f32[1,10], index: 4, kind: input, shape index: {}]
  %s5 = inlined_call_operand.hbm [shape: f32[2,10], index: 5, kind: output, shape index: {}]
  %s6 = sld [smem:[#allocation0]]
  $region34: #{_lambda_.63} parent=0
    _
  %s8 = ssub.s32 1, %s6
  %s9 = scalar_select 0, %s8, %s6
  $region1: #{_lambda_.63} parent=0
    #allocation3 [shape = 'u8[1024]{0}', space=vmem, size = 0x400, scoped, tag = 'output window, operand 0, single buffered']
    #allocation4 [shape = 's32[1]{0}', space=sflag, size = 0x4, scoped, tag = 'scoped memory for _lambda_.63']
    %10 = vsyncpa [#allocation4], 0
    // Predicated region
    $region2: #{_lambda_.63} parent=1 // pred_check
      _
    $region3: #{_lambda_.63} parent=1 // pred_check_branch
      %12 = sbr.rel (0) target = $region5
    $region4: #{_lambda_.63} parent=1 // pred_region
      _
    $region5: #{_lambda_.63} parent=1 // pred_fallthru
      _
    // Predicated region
    $region6: #{_lambda_.63} parent=1 // pred_check
      _
    $region7: #{_lambda_.63} parent=1 // pred_check_branch
      %14 = sbr.rel (0) target = $region9
    $region8: #{_lambda_.63} parent=1 // pred_region
      _
    $region9: #{_lambda_.63} parent=1 // pred_fallthru
      _
    // Predicated region
    $region10: #{_lambda_.63} parent=1 // pred_check
      _
    $region11: #{_lambda_.63} parent=1 // pred_check_branch
      %16 = sbr.rel (0) target = $region13
    $region12: #{_lambda_.63} parent=1 // pred_region
      _
    $region13: #{_lambda_.63} parent=1 // pred_fallthru
      _
    // Predicated region
    $region14: #{_lambda_.63} parent=1 // pred_check
      _
    $region15: #{_lambda_.63} parent=1 // pred_check_branch
      %18 = sbr.rel (0) target = $region17
    $region16: #{_lambda_.63} parent=1 // pred_region
      _
    $region17: #{_lambda_.63} parent=1 // pred_fallthru
      _
    // Predicated region
    $region18: #{_lambda_.63} parent=1 // pred_check
      _
    $region19: #{_lambda_.63} parent=1 // pred_check_branch
      %20 = sbr.rel (0) target = $region21
    $region20: #{_lambda_.63} parent=1 // pred_region
      _
    $region21: #{_lambda_.63} parent=1 // pred_fallthru
      _
    %p22 = scmp.eq.s32.totalorder 0, 0
    // Predicated region
    $region22: #{_lambda_.63} parent=1 // pred_check
      %p23 = pneg %p22
    $region23: #{_lambda_.63} parent=1 // pred_check_branch
      %25 = sbr.rel (%p23) target = $region25
    $region24: #{_lambda_.63} parent=1 // pred_region
      %v26 = vld [vmem:[%s0] sm:$0x3]
      %vm27 = vcmask 1041408
      %v28 = vsel %vm27, %v26, 0.0
      %29 = vadd.xlane.f32.xlu0 %v28
      %v30 = vpop.xlane.xlu0 %29
      %v31 = vrcp.pop 128.0
      %v32 = vmul.f32 %v30, %v31
      %v33 = vsub.f32 %v26, %v32
      %v34 = vmul.f32 %v33, %v33
      %v35 = vsel %vm27, %v34, 0.0
      %36 = vadd.xlane.f32.xlu0 %v35
      %v37 = vpop.xlane.xlu0 %36
      %v38 = vmul.f32 %v37, %v31
      %v39 = vadd.f32 %v38, 1e-12
      %v40 = vrsqrt.pop %v39
      %v41 = vmul.f32 %v33, %v40
      %v42 = vld [vmem:[%s1] sm:$0x1]
      %v44 = vlaneseq
      %v45 = vshrl.u32 %v44, 7
      %v46 = vsub.s32 0, %v45
      %v47 = vrot.slane %v42, %v46
      %v49 = vmul.f32 %v41, %v47
      %v50 = vld [vmem:[%s2] sm:$0x1]
      %v52 = vlaneseq
      %v53 = vshrl.u32 %v52, 7
      %v54 = vsub.s32 0, %v53
      %v55 = vrot.slane %v50, %v54
      %v57 = vadd.f32 %v49, %v55
      %v58 = vpack.c.bf16 %v57, %v57
      %59 = vst [vmem:[#allocation2] sm:$0x1] %v58
    $region25: #{_lambda_.63} parent=1 // pred_fallthru
      _
    %v60 = vld [vmem:[#allocation2] sm:$0x1]
    %v61 = vld [vmem:[%s3] sm:$0xf]
    %v62 = vld [vmem:[%s3 + $0x4] sm:$0xf]
    %v63 = vld [vmem:[%s3 + $0x8] sm:$0xf]
    %v64 = vld [vmem:[%s3 + $0xc] sm:$0xf]
    %v65 = vld [vmem:[%s3 + $0x10] sm:$0xf]
    %v66 = vld [vmem:[%s3 + $0x14] sm:$0xf]
    %v67 = vld [vmem:[%s3 + $0x18] sm:$0xf]
    %v68 = vld [vmem:[%s3 + $0x1c] sm:$0xf]
    %v69 = vld [vmem:[%s3 + $0x20] sm:$0xf]
    %v70 = vld [vmem:[%s3 + $0x24] sm:$0xf]
    %v71 = vld [vmem:[%s3 + $0x28] sm:$0xf]
    %v72 = vld [vmem:[%s3 + $0x2c] sm:$0xf]
    %v73 = vld [vmem:[%s3 + $0x30] sm:$0xf]
    %v74 = vld [vmem:[%s3 + $0x34] sm:$0xf]
    %v75 = vld [vmem:[%s3 + $0x38] sm:$0xf]
    %v76 = vld [vmem:[%s3 + $0x3c] sm:$0xf]
    %v77 = vld [vmem:[%s4] sm:$0x1]
    %v79 = vlaneseq
    %v80 = vshrl.u32 %v79, 7
    %v81 = vsub.s32 0, %v80
    %v82 = vrot.slane %v77, %v81
    %v100 = vunpack.c.l.b16 %v61
    %v101 = vunpack.c.l.b16 %v62
    %v102 = vunpack.c.l.b16 %v63
    %v103 = vunpack.c.l.b16 %v64
    %v104 = vunpack.c.l.b16 %v65
    %v105 = vunpack.c.l.b16 %v66
    %v106 = vunpack.c.l.b16 %v67
    %v107 = vunpack.c.l.b16 %v68
    %v108 = vunpack.c.l.b16 %v69
    %v109 = vunpack.c.l.b16 %v70
    %v110 = vunpack.c.l.b16 %v71
    %v111 = vunpack.c.l.b16 %v72
    %v112 = vunpack.c.l.b16 %v73
    %v113 = vunpack.c.l.b16 %v74
    %v114 = vunpack.c.l.b16 %v75
    %v115 = vunpack.c.l.b16 %v76
    %v116 = vpack.c.b16 %v101, %v100
    %v117 = vpack.c.b16 %v103, %v102
    %v118 = vpack.c.b16 %v105, %v104
    %v119 = vpack.c.b16 %v107, %v106
    %v120 = vpack.c.b16 %v109, %v108
    %v121 = vpack.c.b16 %v111, %v110
    %v122 = vpack.c.b16 %v113, %v112
    %v123 = vpack.c.b16 %v115, %v114
    %132 = vmatprep.subr.bf16.mxu0 0
    %133 = vmatpush1.bf16.msra.mxu0 %v116
    %134 = vmatprep.subr.bf16.mxu0 0
    %135 = vmatpush1.bf16.msra.mxu0 %v117
    %136 = vmatprep.subr.bf16.mxu0 0
    %137 = vmatpush1.bf16.msra.mxu0 %v118
    %138 = vmatprep.subr.bf16.mxu0 0
    %139 = vmatpush1.bf16.msra.mxu0 %v119
    %140 = vmatprep.subr.bf16.mxu0 0
    %141 = vmatpush1.bf16.msra.mxu0 %v120
    %142 = vmatprep.subr.bf16.mxu0 0
    %143 = vmatpush1.bf16.msra.mxu0 %v121
    %144 = vmatprep.subr.bf16.mxu0 0
    %145 = vmatpush1.bf16.msra.mxu0 %v122
    %146 = vmatprep.subr.bf16.mxu0 0
    %147 = vmatpush1.bf16.msra.mxu0 %v123
    %148 = vmatprep.subr.bf16.mxu0 0
    %149 = vmatpush1.bf16.msra.mxu0 0
    %150 = vmatprep.subr.bf16.mxu0 0
    %151 = vmatpush1.bf16.msra.mxu0 0
    %152 = vmatprep.subr.bf16.mxu0 0
    %153 = vmatpush1.bf16.msra.mxu0 0
    %154 = vmatprep.subr.bf16.mxu0 0
    %155 = vmatpush1.bf16.msra.mxu0 0
    %156 = vmatprep.subr.bf16.mxu0 0
    %157 = vmatpush1.bf16.msra.mxu0 0
    %158 = vmatprep.subr.bf16.mxu0 0
    %159 = vmatpush1.bf16.msra.mxu0 0
    %160 = vmatprep.subr.bf16.mxu0 0
    %161 = vmatpush1.bf16.msra.mxu0 0
    %162 = vmatprep.subr.bf16.mxu0 0
    %163 = vmatpush1.bf16.msra.mxu0 0
    %164 = vmatprep.mubr.bf16.mxu0 0
    %165 = vmatmul.mubr.bf16.gmra.mrb[0].mxu0 %v60
    %v166 = vpop.f32.mrb[0].mxu0
    %v167 = vadd.f32 %v82, %v166
    %v168 = vpop.f32.mrb[0].mxu0
    %v169 = vpop.f32.mrb[0].mxu0
    %v170 = vpop.f32.mrb[0].mxu0
    %171 = vdwg.mxu0
    %vm172 = vcmask 74752
    %173 = vst.msk [vmem:[#allocation3] sm:$0x3] %vm172, %v167
    // Predicated region
    $region26: #{_lambda_.63} parent=1 // pred_check
      _
    $region27: #{_lambda_.63} parent=1 // pred_check_branch
      %175 = sbr.rel (0) target = $region29
    $region28: #{_lambda_.63} parent=1 // pred_region
      %s177 = ssub.s32 32, 32
      %178 = vsyncadd [#allocation4], %s177
      %s180 = sshll.u32 [#allocation3], 4
      %s181 = int_to_ptr.vmem [resolvable:$true] %s180
      %183 = dma.vmem_to_hbm [thread:$0]  %s181, 32, %s5, [#allocation4]
    $region29: #{_lambda_.63} parent=1 // pred_fallthru
      _
    // Predicated region
    $region30: #{_lambda_.63} parent=1 // pred_check
      _
    $region31: #{_lambda_.63} parent=1 // pred_check_branch
      %185 = sbr.rel (0) target = $region33
    $region32: #{_lambda_.63} parent=1 // pred_region
      %186 = dma.done [#allocation4], 32
    $region33: #{_lambda_.63} parent=1 // pred_fallthru
      _
    %187 = vsyncpa [#allocation4], 1

// kernel: _lambda_.62
$region0: #{_lambda_.62}
  #allocation0 [shape = 'u32[]', space=smem, size = 0x4, offset = 0x4, fixed_abs, tag = 'smem constant byte address 0x4 - core index']
  #allocation1 [shape = 'u32[144,128]{1,0:T(1,128)}', space=vmem, size = 0x12000, scoped, tag = 'internal scratch']
  %s0 = inlined_call_operand.vmem [shape: f32[16,512], index: 0, kind: input, shape index: {}]
  %s1 = inlined_call_operand.vmem [shape: bf16[512,128], index: 1, kind: input, shape index: {}]
  %s2 = inlined_call_operand.vmem [shape: f32[1,128], index: 2, kind: input, shape index: {}]
  %s3 = inlined_call_operand.vmem [shape: f32[16,128], index: 3, kind: input, shape index: {}]
  %s4 = inlined_call_operand.vmem [shape: f32[16,128], index: 4, kind: output, shape index: {}]
  %s5 = sld [smem:[#allocation0]]
  $region38: #{_lambda_.62} parent=0
    _
  %s7 = ssub.s32 1, %s5
  %s8 = scalar_select 0, %s7, %s5
  // Predicated region
  $region2: #{_lambda_.62} parent=0 // pred_check
    _
  $region3: #{_lambda_.62} parent=0 // pred_check_branch
    %10 = sbr.rel (0) target = $region5
  $region4: #{_lambda_.62} parent=0 // pred_region
    _
  $region5: #{_lambda_.62} parent=0 // pred_fallthru
    _
  // Predicated region
  $region6: #{_lambda_.62} parent=0 // pred_check
    _
  $region7: #{_lambda_.62} parent=0 // pred_check_branch
    %12 = sbr.rel (0) target = $region9
  $region8: #{_lambda_.62} parent=0 // pred_region
    _
  $region9: #{_lambda_.62} parent=0 // pred_fallthru
    _
  // Predicated region
  $region10: #{_lambda_.62} parent=0 // pred_check
    _
  $region11: #{_lambda_.62} parent=0 // pred_check_branch
    %14 = sbr.rel (0) target = $region13
  $region12: #{_lambda_.62} parent=0 // pred_region
    _
  $region13: #{_lambda_.62} parent=0 // pred_fallthru
    _
  // Predicated region
  $region14: #{_lambda_.62} parent=0 // pred_check
    _
  $region15: #{_lambda_.62} parent=0 // pred_check_branch
    %16 = sbr.rel (0) target = $region17
  $region16: #{_lambda_.62} parent=0 // pred_region
    _
  $region17: #{_lambda_.62} parent=0 // pred_fallthru
    _
  %v18 = vld [vmem:[%s0] sm:$0xff]
  %v19 = vld [vmem:[%s0 + $0x8] sm:$0xff]
  %v20 = vld [vmem:[%s0 + $0x10] sm:$0xff]
  %v21 = vld [vmem:[%s0 + $0x18] sm:$0xff]
  %v22 = vld [vmem:[%s0 + $0x20] sm:$0xff]
  %v23 = vld [vmem:[%s0 + $0x28] sm:$0xff]
  %v24 = vld [vmem:[%s0 + $0x30] sm:$0xff]
  %v25 = vld [vmem:[%s0 + $0x38] sm:$0xff]
  %v26 = vpack.c.bf16 %v22, %v18
  %v27 = vpack.c.bf16 %v23, %v19
  %v28 = vpack.c.bf16 %v24, %v20
  %v29 = vpack.c.bf16 %v25, %v21
  %v30 = vld [vmem:[%s1] sm:$0xf]
  %v31 = vld [vmem:[%s1 + $0x4] sm:$0xf]
  %v32 = vld [vmem:[%s1 + $0x8] sm:$0xf]
  %v33 = vld [vmem:[%s1 + $0xc] sm:$0xf]
  %v34 = vld [vmem:[%s1 + $0x10] sm:$0xf]
  %v35 = vld [vmem:[%s1 + $0x14] sm:$0xf]
  %v36 = vld [vmem:[%s1 + $0x18] sm:$0xf]
  %v37 = vld [vmem:[%s1 + $0x1c] sm:$0xf]
  %v38 = vld [vmem:[%s1 + $0x20] sm:$0xf]
  %v39 = vld [vmem:[%s1 + $0x24] sm:$0xf]
  %v40 = vld [vmem:[%s1 + $0x28] sm:$0xf]
  %v41 = vld [vmem:[%s1 + $0x2c] sm:$0xf]
  %v42 = vld [vmem:[%s1 + $0x30] sm:$0xf]
  %v43 = vld [vmem:[%s1 + $0x34] sm:$0xf]
  %v44 = vld [vmem:[%s1 + $0x38] sm:$0xf]
  %v45 = vld [vmem:[%s1 + $0x3c] sm:$0xf]
  %v46 = vld [vmem:[%s1 + $0x40] sm:$0xf]
  %v47 = vld [vmem:[%s1 + $0x44] sm:$0xf]
  %v48 = vld [vmem:[%s1 + $0x48] sm:$0xf]
  %v49 = vld [vmem:[%s1 + $0x4c] sm:$0xf]
  %v50 = vld [vmem:[%s1 + $0x50] sm:$0xf]
  %v51 = vld [vmem:[%s1 + $0x54] sm:$0xf]
  %v52 = vld [vmem:[%s1 + $0x58] sm:$0xf]
  %v53 = vld [vmem:[%s1 + $0x5c] sm:$0xf]
  %v54 = vld [vmem:[%s1 + $0x60] sm:$0xf]
  %v55 = vld [vmem:[%s1 + $0x64] sm:$0xf]
  %v56 = vld [vmem:[%s1 + $0x68] sm:$0xf]
  %v57 = vld [vmem:[%s1 + $0x6c] sm:$0xf]
  %v58 = vld [vmem:[%s1 + $0x70] sm:$0xf]
  %v59 = vld [vmem:[%s1 + $0x74] sm:$0xf]
  %v60 = vld [vmem:[%s1 + $0x78] sm:$0xf]
  %v61 = vld [vmem:[%s1 + $0x7c] sm:$0xf]
  %v62 = vld [vmem:[%s1 + $0x80] sm:$0xf]
  %v63 = vld [vmem:[%s1 + $0x84] sm:$0xf]
  %v64 = vld [vmem:[%s1 + $0x88] sm:$0xf]
  %v65 = vld [vmem:[%s1 + $0x8c] sm:$0xf]
  %v66 = vld [vmem:[%s1 + $0x90] sm:$0xf]
  %v67 = vld [vmem:[%s1 + $0x94] sm:$0xf]
  %v68 = vld [vmem:[%s1 + $0x98] sm:$0xf]
  %v69 = vld [vmem:[%s1 + $0x9c] sm:$0xf]
  %v70 = vld [vmem:[%s1 + $0xa0] sm:$0xf]
  %v71 = vld [vmem:[%s1 + $0xa4] sm:$0xf]
  %v72 = vld [vmem:[%s1 + $0xa8] sm:$0xf]
  %v73 = vld [vmem:[%s1 + $0xac] sm:$0xf]
  %v74 = vld [vmem:[%s1 + $0xb0] sm:$0xf]
  %v75 = vld [vmem:[%s1 + $0xb4] sm:$0xf]
  %v76 = vld [vmem:[%s1 + $0xb8] sm:$0xf]
  %v77 = vld [vmem:[%s1 + $0xbc] sm:$0xf]
  %v78 = vld [vmem:[%s1 + $0xc0] sm:$0xf]
  %v79 = vld [vmem:[%s1 + $0xc4] sm:$0xf]
  %v80 = vld [vmem:[%s1 + $0xc8] sm:$0xf]
  %v81 = vld [vmem:[%s1 + $0xcc] sm:$0xf]
  %v82 = vld [vmem:[%s1 + $0xd0] sm:$0xf]
  %v83 = vld [vmem:[%s1 + $0xd4] sm:$0xf]
  %v84 = vld [vmem:[%s1 + $0xd8] sm:$0xf]
  %v85 = vld [vmem:[%s1 + $0xdc] sm:$0xf]
  %v86 = vld [vmem:[%s1 + $0xe0] sm:$0xf]
  %v87 = vld [vmem:[%s1 + $0xe4] sm:$0xf]
  %v88 = vld [vmem:[%s1 + $0xe8] sm:$0xf]
  %v89 = vld [vmem:[%s1 + $0xec] sm:$0xf]
  %v90 = vld [vmem:[%s1 + $0xf0] sm:$0xf]
  %v91 = vld [vmem:[%s1 + $0xf4] sm:$0xf]
  %v92 = vld [vmem:[%s1 + $0xf8] sm:$0xf]
  %v93 = vld [vmem:[%s1 + $0xfc] sm:$0xf]
  %v158 = vunpack.c.l.b16 %v30
  %v159 = vunpack.c.l.b16 %v31
  %v160 = vunpack.c.l.b16 %v32
  %v161 = vunpack.c.l.b16 %v33
  %v162 = vunpack.c.l.b16 %v34
  %v163 = vunpack.c.l.b16 %v35
  %v164 = vunpack.c.l.b16 %v36
  %v165 = vunpack.c.l.b16 %v37
  %v166 = vunpack.c.l.b16 %v38
  %v167 = vunpack.c.l.b16 %v39
  %v168 = vunpack.c.l.b16 %v40
  %v169 = vunpack.c.l.b16 %v41
  %v170 = vunpack.c.l.b16 %v42
  %v171 = vunpack.c.l.b16 %v43
  %v172 = vunpack.c.l.b16 %v44
  %v173 = vunpack.c.l.b16 %v45
  %v174 = vunpack.c.l.b16 %v46
  %v175 = vunpack.c.l.b16 %v47
  %v176 = vunpack.c.l.b16 %v48
  %v177 = vunpack.c.l.b16 %v49
  %v178 = vunpack.c.l.b16 %v50
  %v179 = vunpack.c.l.b16 %v51
  %v180 = vunpack.c.l.b16 %v52
  %v181 = vunpack.c.l.b16 %v53
  %v182 = vunpack.c.l.b16 %v54
  %v183 = vunpack.c.l.b16 %v55
  %v184 = vunpack.c.l.b16 %v56
  %v185 = vunpack.c.l.b16 %v57
  %v186 = vunpack.c.l.b16 %v58
  %v187 = vunpack.c.l.b16 %v59
  %v188 = vunpack.c.l.b16 %v60
  %v189 = vunpack.c.l.b16 %v61
  %v190 = vunpack.c.l.b16 %v62
  %v191 = vunpack.c.l.b16 %v63
  %v192 = vunpack.c.l.b16 %v64
  %v193 = vunpack.c.l.b16 %v65
  %v194 = vunpack.c.l.b16 %v66
  %v195 = vunpack.c.l.b16 %v67
  %v196 = vunpack.c.l.b16 %v68
  %v197 = vunpack.c.l.b16 %v69
  %v198 = vunpack.c.l.b16 %v70
  %v199 = vunpack.c.l.b16 %v71
  %v200 = vunpack.c.l.b16 %v72
  %v201 = vunpack.c.l.b16 %v73
  %v202 = vunpack.c.l.b16 %v74
  %v203 = vunpack.c.l.b16 %v75
  %v204 = vunpack.c.l.b16 %v76
  %v205 = vunpack.c.l.b16 %v77
  %v206 = vunpack.c.l.b16 %v78
  %v207 = vunpack.c.l.b16 %v79
  %v208 = vunpack.c.l.b16 %v80
  %v209 = vunpack.c.l.b16 %v81
  %v210 = vunpack.c.l.b16 %v82
  %v211 = vunpack.c.l.b16 %v83
  %v212 = vunpack.c.l.b16 %v84
  %v213 = vunpack.c.l.b16 %v85
  %v214 = vunpack.c.l.b16 %v86
  %v215 = vunpack.c.l.b16 %v87
  %v216 = vunpack.c.l.b16 %v88
  %v217 = vunpack.c.l.b16 %v89
  %v218 = vunpack.c.l.b16 %v90
  %v219 = vunpack.c.l.b16 %v91
  %v220 = vunpack.c.l.b16 %v92
  %v221 = vunpack.c.l.b16 %v93
  %v222 = vpack.c.b16 %v159, %v158
  %v223 = vpack.c.b16 %v161, %v160
  %v224 = vpack.c.b16 %v163, %v162
  %v225 = vpack.c.b16 %v165, %v164
  %v226 = vpack.c.b16 %v167, %v166
  %v227 = vpack.c.b16 %v169, %v168
  %v228 = vpack.c.b16 %v171, %v170
  %v229 = vpack.c.b16 %v173, %v172
  %v230 = vpack.c.b16 %v175, %v174
  %v231 = vpack.c.b16 %v177, %v176
  %v232 = vpack.c.b16 %v179, %v178
  %v233 = vpack.c.b16 %v181, %v180
  %v234 = vpack.c.b16 %v183, %v182
  %v235 = vpack.c.b16 %v185, %v184
  %v236 = vpack.c.b16 %v187, %v186
  %v237 = vpack.c.b16 %v189, %v188
  %v238 = vpack.c.b16 %v191, %v190
  %v239 = vpack.c.b16 %v193, %v192
  %v240 = vpack.c.b16 %v195, %v194
  %v241 = vpack.c.b16 %v197, %v196
  %v242 = vpack.c.b16 %v199, %v198
  %v243 = vpack.c.b16 %v201, %v200
  %v244 = vpack.c.b16 %v203, %v202
  %v245 = vpack.c.b16 %v205, %v204
  %v246 = vpack.c.b16 %v207, %v206
  %v247 = vpack.c.b16 %v209, %v208
  %v248 = vpack.c.b16 %v211, %v210
  %v249 = vpack.c.b16 %v213, %v212
  %v250 = vpack.c.b16 %v215, %v214
  %v251 = vpack.c.b16 %v217, %v216
  %v252 = vpack.c.b16 %v219, %v218
  %v253 = vpack.c.b16 %v221, %v220
  %286 = vmatprep.subr.bf16.mxu0 0
  %287 = vmatpush1.bf16.msra.mxu0 %v222
  %288 = vmatprep.subr.bf16.mxu0 0
  %289 = vmatpush1.bf16.msra.mxu0 %v223
  %290 = vmatprep.subr.bf16.mxu0 0
  %291 = vmatpush1.bf16.msra.mxu0 %v224
  %292 = vmatprep.subr.bf16.mxu0 0
  %293 = vmatpush1.bf16.msra.mxu0 %v225
  %294 = vmatprep.subr.bf16.mxu0 0
  %295 = vmatpush1.bf16.msra.mxu0 %v226
  %296 = vmatprep.subr.bf16.mxu0 0
  %297 = vmatpush1.bf16.msra.mxu0 %v227
  %298 = vmatprep.subr.bf16.mxu0 0
  %299 = vmatpush1.bf16.msra.mxu0 %v228
  %300 = vmatprep.subr.bf16.mxu0 0
  %301 = vmatpush1.bf16.msra.mxu0 %v229
  %302 = vmatprep.subr.bf16.mxu0 0
  %303 = vmatpush1.bf16.msra.mxu0 %v230
  %304 = vmatprep.subr.bf16.mxu0 0
  %305 = vmatpush1.bf16.msra.mxu0 %v231
  %306 = vmatprep.subr.bf16.mxu0 0
  %307 = vmatpush1.bf16.msra.mxu0 %v232
  %308 = vmatprep.subr.bf16.mxu0 0
  %309 = vmatpush1.bf16.msra.mxu0 %v233
  %310 = vmatprep.subr.bf16.mxu0 0
  %311 = vmatpush1.bf16.msra.mxu0 %v234
  %312 = vmatprep.subr.bf16.mxu0 0
  %313 = vmatpush1.bf16.msra.mxu0 %v235
  %314 = vmatprep.subr.bf16.mxu0 0
  %315 = vmatpush1.bf16.msra.mxu0 %v236
  %316 = vmatprep.subr.bf16.mxu0 0
  %317 = vmatpush1.bf16.msra.mxu0 %v237
  %318 = vmatprep.mubr.bf16.mxu0 %v27
  %319 = vmatmul.mubr.bf16.gmra.mrb[0].mxu0 %v26
  %v320 = vpop.f32.mrb[0].mxu0
  %v321 = vadd.f32 0.0, %v320
  %v322 = vpop.f32.mrb[0].mxu0
  %v323 = vpop.f32.mrb[0].mxu0
  %v324 = vadd.f32 0.0, %v323
  %v325 = vpop.f32.mrb[0].mxu0
  %326 = vdwg.mxu0
  %327 = vmatprep.subr.bf16.mxu0 0
  %328 = vmatpush1.bf16.msra.mxu0 %v238
  %329 = vmatprep.subr.bf16.mxu0 0
  %330 = vmatpush1.bf16.msra.mxu0 %v239
  %331 = vmatprep.subr.bf16.mxu0 0
  %332 = vmatpush1.bf16.msra.mxu0 %v240
  %333 = vmatprep.subr.bf16.mxu0 0
  %334 = vmatpush1.bf16.msra.mxu0 %v241
  %335 = vmatprep.subr.bf16.mxu0 0
  %336 = vmatpush1.bf16.msra.mxu0 %v242
  %337 = vmatprep.subr.bf16.mxu0 0
  %338 = vmatpush1.bf16.msra.mxu0 %v243
  %339 = vmatprep.subr.bf16.mxu0 0
  %340 = vmatpush1.bf16.msra.mxu0 %v244
  %341 = vmatprep.subr.bf16.mxu0 0
  %342 = vmatpush1.bf16.msra.mxu0 %v245
  %343 = vmatprep.subr.bf16.mxu0 0
  %344 = vmatpush1.bf16.msra.mxu0 %v246
  %345 = vmatprep.subr.bf16.mxu0 0
  %346 = vmatpush1.bf16.msra.mxu0 %v247
  %347 = vmatprep.subr.bf16.mxu0 0
  %348 = vmatpush1.bf16.msra.mxu0 %v248
  %349 = vmatprep.subr.bf16.mxu0 0
  %350 = vmatpush1.bf16.msra.mxu0 %v249
  %351 = vmatprep.subr.bf16.mxu0 0
  %352 = vmatpush1.bf16.msra.mxu0 %v250
  %353 = vmatprep.subr.bf16.mxu0 0
  %354 = vmatpush1.bf16.msra.mxu0 %v251
  %355 = vmatprep.subr.bf16.mxu0 0
  %356 = vmatpush1.bf16.msra.mxu0 %v252
  %357 = vmatprep.subr.bf16.mxu0 0
  %358 = vmatpush1.bf16.msra.mxu0 %v253
  %359 = vmatprep.mubr.bf16.mxu0 %v29
  %360 = vmatmul.mubr.bf16.gmra.mrb[0].mxu0 %v28
  %v361 = vpop.f32.mrb[0].mxu0
  %v362 = vadd.f32 %v321, %v361
  %v363 = vpop.f32.mrb[0].mxu0
  %v364 = vpop.f32.mrb[0].mxu0
  %v365 = vadd.f32 %v324, %v364
  %v366 = vpop.f32.mrb[0].mxu0
  %367 = vdwg.mxu0
  %p368 = scmp.eq.s32.totalorder 0, 0
  // Predicated region
  $region18: #{_lambda_.62} parent=0 // pred_check
    %p369 = pneg %p368
  $region19: #{_lambda_.62} parent=0 // pred_check_branch
    %371 = sbr.rel (%p369) target = $region21
  $region20: #{_lambda_.62} parent=0 // pred_region
    %372 = vst [vmem:[%s4] sm:$0xff] %v362
    %373 = vst [vmem:[%s4 + $0x8] sm:$0xff] %v365
  $region21: #{_lambda_.62} parent=0 // pred_fallthru
    _
  %p374 = scmp.gt.s32.totalorder 0, 0
  // Predicated region
  $region22: #{_lambda_.62} parent=0 // pred_check
    %p375 = pneg %p374
  $region23: #{_lambda_.62} parent=0 // pred_check_branch
    %377 = sbr.rel (%p375) target = $region25
  $region24: #{_lambda_.62} parent=0 // pred_region
    %v378 = vld [vmem:[%s4] sm:$0xff]
    %v379 = vld [vmem:[%s4 + $0x8] sm:$0xff]
    %v380 = vadd.f32 %v378, %v362
    %v381 = vadd.f32 %v379, %v365
    %382 = vst [vmem:[%s4] sm:$0xff] %v380
    %383 = vst [vmem:[%s4 + $0x8] sm:$0xff] %v381
  $region25: #{_lambda_.62} parent=0 // pred_fallthru
    _
  // Predicated region
  $region26: #{_lambda_.62} parent=0 // pred_check
    %p384 = pneg %p368
  $region27: #{_lambda_.62} parent=0 // pred_check_branch
    %386 = sbr.rel (%p384) target = $region29
  $region28: #{_lambda_.62} parent=0 // pred_region
    %v387 = vld [vmem:[%s4] sm:$0xff]
    %v388 = vld [vmem:[%s4 + $0x8] sm:$0xff]
    %v389 = vld [vmem:[%s2] sm:$0x1]
    %v391 = vlaneseq
    %v392 = vshrl.u32 %v391, 7
    %v393 = vsub.s32 0, %v392
    %v394 = vrot.slane %v389, %v393
    %v396 = vadd.f32 %v387, %v394
    %v397 = vadd.f32 %v388, %v394
    %v398 = vld [vmem:[%s3] sm:$0xff]
    %v399 = vld [vmem:[%s3 + $0x8] sm:$0xff]
    %v400 = vadd.f32 %v396, %v398
    %v401 = vadd.f32 %v397, %v399
    %402 = vst [vmem:[%s4] sm:$0xff] %v400
    %403 = vst [vmem:[%s4 + $0x8] sm:$0xff] %v401
  $region29: #{_lambda_.62} parent=0 // pred_fallthru
    _
  // Predicated region
  $region30: #{_lambda_.62} parent=0 // pred_check
    _
  $region31: #{_lambda_.62} parent=0 // pred_check_branch
    %405 = sbr.rel (0) target = $region33
  $region32: #{_lambda_.62} parent=0 // pred_region
    _
  $region33: #{_lambda_.62} parent=0 // pred_fallthru
    _
  // Predicated region
  $region34: #{_lambda_.62} parent=0 // pred_check
    _
  $region35: #{_lambda_.62} parent=0 // pred_check_branch
    %407 = sbr.rel (0) target = $region37
  $region36: #{_lambda_.62} parent=0 // pred_region
    _
  $region37: #{_lambda_.62} parent=0 // pred_fallthru
    _

</llo_original>
